<compile_context>
chip_gen: v6e
topology: v6e:2x2x1
jax: 0.10.0
libtpu: 0.0.40
codegen_flags: <defaults>
</compile_context>

<pallas_src>
import functools
import math

import jax
import jax.numpy as jnp
from jax.experimental import pallas as pl
from jax.experimental.pallas import tpu as pltpu

_VMEM_LIMIT = 32 * 1024 * 1024  # safe on v5e/v6e (128 MiB) and v7x (64 MiB)


def _cparams():
    return pltpu.CompilerParams(
        dimension_semantics=("parallel",), vmem_limit_bytes=_VMEM_LIMIT)


def _pick_tile_m(M, target=256):
    """Largest multiple-of-8 divisor of M that is <= target (and, when
    possible, exposes >= 2 grid steps for the two v7x TensorCores)."""
    cap = min(target, M)
    if M >= 16:
        cap = min(cap, M // 2)
    best = None
    tm = 8
    while tm <= cap:
        if M % tm == 0:
            best = tm
        tm += 8
    return best if best is not None else M


def _ln(x, g, b, eps=1e-5):
    mu = jnp.mean(x, axis=-1, keepdims=True)
    var = jnp.mean(jnp.square(x - mu), axis=-1, keepdims=True)
    return (x - mu) * jax.lax.rsqrt(var + eps) * g + b


# ----------------------------- Pallas kernels ------------------------------

def _fused_linear_kernel(*refs, act, res_scale, has_ln, has_res, has_post_ln):
    it = iter(refs)
    x_ref = next(it)
    if has_ln:
        g_ref = next(it)
        bln_ref = next(it)
    w_ref = next(it)
    b_ref = next(it)
    if has_res:
        res_ref = next(it)
    if has_post_ln:
        pg_ref = next(it)
        pb_ref = next(it)
    o_ref = next(it)

    x = x_ref[...]
    if has_ln:
        x = _ln(x, g_ref[...], bln_ref[...])
    y = jnp.dot(x, w_ref[...], preferred_element_type=jnp.float32) + b_ref[...]
    if act == "relu":
        y = jnp.maximum(y, 0.0)
    elif act == "silu":
        y = y * jax.nn.sigmoid(y)
    if has_res:
        y = res_ref[...] + res_scale * y
    if has_post_ln:
        y = _ln(y, pg_ref[...], pb_ref[...])
    o_ref[...] = y


def fused_linear(x, w, b, *, act=None, ln=None, residual=None, res_scale=1.0,
                 post_ln=None):
    """out = [post_LN]( [residual + res_scale *] act( [LN](x) @ w + b ) )."""
    M, K = x.shape
    N = w.shape[1]
    tm = _pick_tile_m(M)

    in_specs = [pl.BlockSpec((tm, K), lambda i: (i, 0))]
    args = [x]
    if ln is not None:
        in_specs += [pl.BlockSpec((1, K), lambda i: (0, 0)),
                     pl.BlockSpec((1, K), lambda i: (0, 0))]
        args += [ln[0].reshape(1, K), ln[1].reshape(1, K)]
    in_specs += [pl.BlockSpec((K, N), lambda i: (0, 0)),
                 pl.BlockSpec((1, N), lambda i: (0, 0))]
    args += [w, b.reshape(1, N)]
    if residual is not None:
        in_specs += [pl.BlockSpec((tm, N), lambda i: (i, 0))]
        args += [residual]
    if post_ln is not None:
        in_specs += [pl.BlockSpec((1, N), lambda i: (0, 0)),
                     pl.BlockSpec((1, N), lambda i: (0, 0))]
        args += [post_ln[0].reshape(1, N), post_ln[1].reshape(1, N)]

    kernel = functools.partial(
        _fused_linear_kernel, act=act, res_scale=res_scale,
        has_ln=ln is not None, has_res=residual is not None,
        has_post_ln=post_ln is not None)

    flops = 2 * M * K * N
    trans = M * N if act == "silu" else 0
    bytes_accessed = 4 * (M * K + K * N + N + 2 * M * N
                          + (M * N if residual is not None else 0))
    return pl.pallas_call(
        kernel,
        out_shape=jax.ShapeDtypeStruct((M, N), jnp.float32),
        grid=(M // tm,),
        in_specs=in_specs,
        out_specs=pl.BlockSpec((tm, N), lambda i: (i, 0)),
        compiler_params=_cparams(),
        cost_estimate=pl.CostEstimate(flops=int(flops), transcendentals=int(trans),
                                      bytes_accessed=int(bytes_accessed)),
    )(*args)


def _attention_kernel(q_ref, k_ref, v_ref, o_ref, *, scale):
    q = q_ref[0]                       # (H, T, dh)
    k = k_ref[0]
    v = v_ref[0]
    s = jnp.einsum("htd,hsd->hts", q, k,
                   preferred_element_type=jnp.float32) * scale
    m = jnp.max(s, axis=-1, keepdims=True)
    p = jnp.exp(s - m)
    p = p / jnp.sum(p, axis=-1, keepdims=True)
    o_ref[0] = jnp.einsum("hts,hsd->htd", p, v,
                          preferred_element_type=jnp.float32)


def attention(q, k, v):
    """q, k, v: (B, H, T, dh) -> (B, H, T, dh); all heads of a batch element
    are processed in one grid step."""
    B, H, T, dh = q.shape
    scale = 1.0 / math.sqrt(dh)
    spec = pl.BlockSpec((1, H, T, dh), lambda i: (i, 0, 0, 0))
    return pl.pallas_call(
        functools.partial(_attention_kernel, scale=scale),
        out_shape=jax.ShapeDtypeStruct((B, H, T, dh), jnp.float32),
        grid=(B,),
        in_specs=[spec, spec, spec],
        out_specs=spec,
        compiler_params=_cparams(),
    )(q, k, v)


def _conv_module_kernel(x_ref, g_ref, bln_ref, wa_ref, ba_ref, wb_ref, bb_ref,
                        dw_ref, o_ref):
    """LayerNorm -> pointwise(2D)+GLU -> depthwise temporal conv (k=3, same
    padding handled in-kernel) -> swish, for one batch element."""
    x = x_ref[0]                          # (T, D)
    xn = _ln(x, g_ref[...], bln_ref[...])
    ya = jnp.dot(xn, wa_ref[...], preferred_element_type=jnp.float32) + ba_ref[...]
    yb = jnp.dot(xn, wb_ref[...], preferred_element_type=jnp.float32) + bb_ref[...]
    g = ya * jax.nn.sigmoid(yb)           # GLU (T, D)

    T = g.shape[0]
    dw = dw_ref[...]                      # (3, D)
    t_idx = jax.lax.broadcasted_iota(jnp.int32, g.shape, 0)
    prev = jnp.where(t_idx >= 1, pltpu.roll(g, shift=1, axis=0), 0.0)
    nxt = jnp.where(t_idx < T - 1, pltpu.roll(g, shift=T - 1, axis=0), 0.0)
    y = prev * dw[0:1] + g * dw[1:2] + nxt * dw[2:3]
    # TODO(synk): canonical Conformer conv-module BatchNorm omitted (no running stats without a checkpoint).
    o_ref[0] = y * jax.nn.sigmoid(y)      # fused swish


def conv_module_front(x3d, ln_g, ln_b, wa, ba, wb, bb, dw_w):
    B, T, D = x3d.shape
    vec = lambda a: a.reshape(1, D)
    return pl.pallas_call(
        _conv_module_kernel,
        out_shape=jax.ShapeDtypeStruct((B, T, D), jnp.float32),
        grid=(B,),
        in_specs=[
            pl.BlockSpec((1, T, D), lambda i: (i, 0, 0)),
            pl.BlockSpec((1, D), lambda i: (0, 0)),
            pl.BlockSpec((1, D), lambda i: (0, 0)),
            pl.BlockSpec((D, D), lambda i: (0, 0)),
            pl.BlockSpec((1, D), lambda i: (0, 0)),
            pl.BlockSpec((D, D), lambda i: (0, 0)),
            pl.BlockSpec((1, D), lambda i: (0, 0)),
            pl.BlockSpec((3, D), lambda i: (0, 0)),
        ],
        out_specs=pl.BlockSpec((1, T, D), lambda i: (i, 0, 0)),
        compiler_params=_cparams(),
    )(x3d, vec(ln_g), vec(ln_b), wa, vec(ba), wb, vec(bb), dw_w)


def _pool_proj_kernel(x_ref, w_ref, b_ref, pos_ref, o_ref):
    x = x_ref[...]                        # (tn, HW, C) — channels on lanes
    pooled = jnp.mean(x, axis=1)          # (tn, C)
    y = jnp.dot(pooled, w_ref[...], preferred_element_type=jnp.float32)
    o_ref[...] = y + b_ref[...] + pos_ref[...]


def pool_project(x, w, b, pos_bt):
    """x: (N, HW, C) -> mean over HW -> @ (C, D) + b + pos  -> (N, D)."""
    N, HW, C = x.shape
    D = w.shape[1]
    tn = 8 if N % 8 == 0 else N
    return pl.pallas_call(
        _pool_proj_kernel,
        out_shape=jax.ShapeDtypeStruct((N, D), jnp.float32),
        grid=(N // tn,),
        in_specs=[
            pl.BlockSpec((tn, HW, C), lambda i: (i, 0, 0)),
            pl.BlockSpec((C, D), lambda i: (0, 0)),
            pl.BlockSpec((1, D), lambda i: (0, 0)),
            pl.BlockSpec((tn, D), lambda i: (i, 0)),
        ],
        out_specs=pl.BlockSpec((tn, D), lambda i: (i, 0)),
        compiler_params=_cparams(),
    )(x, w, b.reshape(1, D), pos_bt)


# ------------------------------ JAX glue ----------------------------------

def im2col(x, k, stride, pad):
    """x: (N, C, H, W) NCHW -> patches (N, Ho, Wo, C*k*k)."""
    # TODO(synk): the 9x-expanded patch tensor still round-trips through HBM;
    # a fully fused Pallas conv stem (pl.ds patch gather inside the GEMM
    # kernel) would remove it.
    N, C, H, W = x.shape
    xp = jnp.pad(x, ((0, 0), (0, 0), (pad, pad), (pad, pad)))
    Ho = (H + 2 * pad - k) // stride + 1
    Wo = (W + 2 * pad - k) // stride + 1
    cols = []
    for i in range(k):
        for j in range(k):
            cols.append(xp[:, :, i:i + stride * Ho:stride, j:j + stride * Wo:stride])
    patches = jnp.stack(cols, axis=-1)            # (N, C, Ho, Wo, k*k)
    patches = patches.transpose(0, 2, 3, 1, 4)    # (N, Ho, Wo, C, k*k)
    return patches.reshape(N, Ho, Wo, C * k * k), Ho, Wo


def image_encoder(frames, params, pos_bt):
    """frames: (N, C, H, W) -> (N, d_model) with positional encoding added."""
    N = frames.shape[0]
    p1, H1, W1 = im2col(frames, 3, 2, 1)
    h = fused_linear(p1.reshape(N * H1 * W1, -1),
                     params["conv1_w"], params["conv1_b"], act="relu")
    c1 = h.shape[-1]
    h = h.reshape(N, H1, W1, c1).transpose(0, 3, 1, 2)        # back to NCHW
    p2, H2, W2 = im2col(h, 3, 2, 1)
    h = fused_linear(p2.reshape(N * H2 * W2, -1),
                     params["conv2_w"], params["conv2_b"], act="relu")
    c2 = h.shape[-1]
    h = h.reshape(N, H2 * W2, c2)                              # (N, HW, C)
    # global avg pool + projection + positional encoding in one kernel
    return pool_project(h, params["proj_w"], params["proj_b"], pos_bt)


def conformer_block(x, p, num_heads):
    B, T, D = x.shape
    dh = D // num_heads
    xf = x.reshape(B * T, D)

    # Feed-forward module 1 (half-step residual), LN fused as prologue.
    h = fused_linear(xf, p["ff1_w1"], p["ff1_b1"], act="silu",
                     ln=(p["ln1_g"], p["ln1_b"]))
    xf = fused_linear(h, p["ff1_w2"], p["ff1_b2"], residual=xf, res_scale=0.5)

    # Multi-head self-attention: fused LN + QKV projection (single N=3D GEMM).
    qkv = fused_linear(xf, p["w_qkv"], p["b_qkv"], ln=(p["ln2_g"], p["ln2_b"]))
    q, k, v = qkv[:, :D], qkv[:, D:2 * D], qkv[:, 2 * D:]

    def split_heads(t):
        return t.reshape(B, T, num_heads, dh).transpose(0, 2, 1, 3)

    o = attention(split_heads(q), split_heads(k), split_heads(v))  # (B,H,T,dh)
    o = o.transpose(0, 2, 1, 3).reshape(B * T, D)
    xf = fused_linear(o, p["wo"], p["bo"], residual=xf)

    # Convolution module: LN + pointwise/GLU + depthwise conv + swish (one
    # kernel), then pointwise 2 + residual (one kernel).
    g = conv_module_front(xf.reshape(B, T, D), p["ln3_g"], p["ln3_b"],
                          p["pw1_wa"], p["pw1_ba"], p["pw1_wb"], p["pw1_bb"],
                          p["dw_w"])
    xf = fused_linear(g.reshape(B * T, D), p["pw2_w"], p["pw2_b"], residual=xf)

    # Feed-forward module 2 (half-step residual) + final LayerNorm (fused as
    # the epilogue of the second FFN GEMM).
    h = fused_linear(xf, p["ff2_w1"], p["ff2_b1"], act="silu",
                     ln=(p["ln4_g"], p["ln4_b"]))
    xf = fused_linear(h, p["ff2_w2"], p["ff2_b2"], residual=xf, res_scale=0.5,
                      post_ln=(p["ln5_g"], p["ln5_b"]))
    return xf.reshape(B, T, D)


@functools.partial(jax.jit, static_argnames=("num_heads",))
def japanese_lipnet_forward(x, params, *, num_heads):
    """x: (B, T, C, H, W) float32 -> logits (B, T, num_classes)."""
    B, T, C, H, W = x.shape
    D = params["proj_w"].shape[1]
    # x + pos_encoder[:, :T] — broadcast once, fused into the pool/proj kernel.
    pos_bt = jnp.broadcast_to(params["pos"][:, :T, :], (B, T, D)).reshape(B * T, D)
    feats = image_encoder(x.reshape(B * T, C, H, W), params, pos_bt)  # (B*T, D)
    h = feats.reshape(B, T, D)
    for lp in params["layers"]:
        h = conformer_block(h, lp, num_heads)
    logits = fused_linear(h.reshape(B * T, D), params["out_w"], params["out_b"])
    return logits.reshape(B, T, -1)


# --------------------------- parameter init --------------------------------

def _init_linear(key, k_in, k_out, scale=0.05):
    w = scale * jax.random.normal(key, (k_in, k_out), jnp.float32)
    b = jnp.zeros((k_out,), jnp.float32)
    return w, b


def init_params(key, *, num_classes, d_model, num_layers, num_heads,
                max_seq_length, in_channels, conv_channels=(64, 128),
                ffn_mult=4):
    assert d_model % num_heads == 0
    keys = jax.random.split(key, 4 + num_layers)
    c1, c2 = conv_channels
    d_ff = ffn_mult * d_model
    p = {}
    p["conv1_w"], p["conv1_b"] = _init_linear(keys[0], in_channels * 9, c1)
    p["conv2_w"], p["conv2_b"] = _init_linear(keys[1], c1 * 9, c2)
    p["proj_w"], p["proj_b"] = _init_linear(keys[2], c2, d_model)
    # matches nn.Parameter(torch.zeros(1, max_seq_length, d_model))
    p["pos"] = jnp.zeros((1, max_seq_length, d_model), jnp.float32)
    p["out_w"], p["out_b"] = _init_linear(keys[3], d_model, num_classes)

    ones = jnp.ones((d_model,), jnp.float32)
    zeros = jnp.zeros((d_model,), jnp.float32)
    layers = []
    for li in range(num_layers):
        lk = jax.random.split(keys[4 + li], 10)
        lp = {}
        lp["ln1_g"], lp["ln1_b"] = ones, zeros
        lp["ff1_w1"], lp["ff1_b1"] = _init_linear(lk[0], d_model, d_ff)
        lp["ff1_w2"], lp["ff1_b2"] = _init_linear(lk[1], d_ff, d_model)
        lp["ln2_g"], lp["ln2_b"] = ones, zeros
        lp["w_qkv"], lp["b_qkv"] = _init_linear(lk[2], d_model, 3 * d_model)
        lp["wo"], lp["bo"] = _init_linear(lk[3], d_model, d_model)
        lp["ln3_g"], lp["ln3_b"] = ones, zeros
        # GLU kept as two separate weight halves (value half / gate half).
        lp["pw1_wa"], lp["pw1_ba"] = _init_linear(lk[4], d_model, d_model)
        lp["pw1_wb"], lp["pw1_bb"] = _init_linear(lk[5], d_model, d_model)
        lp["dw_w"] = 0.05 * jax.random.normal(lk[6], (3, d_model), jnp.float32)
        lp["pw2_w"], lp["pw2_b"] = _init_linear(lk[7], d_model, d_model)
        lp["ln4_g"], lp["ln4_b"] = ones, zeros
        lp["ff2_w1"], lp["ff2_b1"] = _init_linear(lk[8], d_model, d_ff)
        lp["ff2_w2"], lp["ff2_b2"] = _init_linear(lk[9], d_ff, d_model)
        lp["ln5_g"], lp["ln5_b"] = ones, zeros
        layers.append(lp)
    p["layers"] = layers
    return p


# --------------------------------- main -------------------------------------

if __name__ == "__main__":
    B, T, C, H, W = 2, 8, 1, 16, 16
    num_classes, d_model = 10, 128
    num_layers, num_heads = 2, 8
    max_seq_length = 16

    key = jax.random.PRNGKey(0)
    pkey, xkey = jax.random.split(key)
    params = init_params(pkey, num_classes=num_classes, d_model=d_model,
                         num_layers=num_layers, num_heads=num_heads,
                         max_seq_length=max_seq_length, in_channels=C)
    x = jax.random.normal(xkey, (B, T, C, H, W), jnp.float32)

    logits = japanese_lipnet_forward(x, params, num_heads=num_heads)
    jax.block_until_ready(logits)
    assert logits.shape == (B, T, num_classes)
    assert bool(jnp.all(jnp.isfinite(logits)))
    print("KERNEL_OK")
</pallas_src>

<mosaic_0001>
module attributes {stable_mosaic.version = 11 : i64} {
  func.func @_fused_linear_kernel(%arg0: i32, %arg1: memref<256x9xf32, #tpu.memory_space<vmem>>, %arg2: memref<9x64xf32, #tpu.memory_space<vmem>>, %arg3: memref<1x64xf32, #tpu.memory_space<vmem>>, %arg4: memref<256x64xf32, #tpu.memory_space<vmem>>) attributes {dimension_semantics = [#tpu.dimension_semantics<parallel>], iteration_bounds = array<i64: 4>, scalar_prefetch = 0 : i64, scratch_operands = 0 : i64, tpu.core_type = #tpu.core_type<tc>, window_params = [{transform_indices = @transform_0, window_bounds = array<i64: 256, 9>}, {pipeline_mode = #tpu.pipeline_mode<synchronous>, transform_indices = @transform_1, window_bounds = array<i64: 9, 64>}, {pipeline_mode = #tpu.pipeline_mode<synchronous>, transform_indices = @transform_2, window_bounds = array<i64: 1, 64>}, {transform_indices = @transform_3, window_bounds = array<i64: 256, 64>}]} {
    %c0 = arith.constant 0 : index
    %c0_0 = arith.constant 0 : index
    %0 = vector.load %arg1[%c0, %c0_0] : memref<256x9xf32, #tpu.memory_space<vmem>>, vector<256x9xf32>
    %c0_1 = arith.constant 0 : index
    %c0_2 = arith.constant 0 : index
    %1 = vector.load %arg2[%c0_1, %c0_2] : memref<9x64xf32, #tpu.memory_space<vmem>>, vector<9x64xf32>
    %cst = arith.constant dense<0.000000e+00> : vector<256x64xf32>
    %2 = tpu.matmul %0, %1, %cst {dimension_numbers = #tpu.dot_dimension_numbers<[1], [0], [0], [1], [0, 0, 1, 1], [], []>} : vector<256x9xf32>, vector<9x64xf32>, vector<256x64xf32> -> vector<256x64xf32>
    %c0_3 = arith.constant 0 : index
    %c0_4 = arith.constant 0 : index
    %3 = vector.load %arg3[%c0_3, %c0_4] : memref<1x64xf32, #tpu.memory_space<vmem>>, vector<1x64xf32>
    %4 = vector.broadcast %3 : vector<1x64xf32> to vector<256x64xf32>
    %5 = arith.addf %2, %4 : vector<256x64xf32>
    %cst_5 = arith.constant 0.000000e+00 : f32
    %6 = vector.broadcast %cst_5 : f32 to vector<256x64xf32>
    %7 = arith.maximumf %5, %6 : vector<256x64xf32>
    %c0_6 = arith.constant 0 : index
    %c0_7 = arith.constant 0 : index
    %8 = vector.load %arg4[%c0_6, %c0_7] : memref<256x64xf32, #tpu.memory_space<vmem>>, vector<256x64xf32>
    tpu.vector_store %arg4[%c0_6, %c0_7], %7 {strides = array<i32>} : memref<256x64xf32, #tpu.memory_space<vmem>>, vector<256x64xf32>,
    return
  }
  func.func @transform_0(%arg0: i32) -> (i32, i32) {
    %c0_i32 = arith.constant 0 : i32
    %c0_i32_0 = arith.constant 0 : i32
    return %arg0, %c0_i32 : i32, i32
  }
  func.func @transform_1(%arg0: i32) -> (i32, i32) {
    %c0_i32 = arith.constant 0 : i32
    %c0_i32_0 = arith.constant 0 : i32
    %c0_i32_1 = arith.constant 0 : i32
    return %c0_i32, %c0_i32_0 : i32, i32
  }
  func.func @transform_2(%arg0: i32) -> (i32, i32) {
    %c0_i32 = arith.constant 0 : i32
    %c0_i32_0 = arith.constant 0 : i32
    %c0_i32_1 = arith.constant 0 : i32
    return %c0_i32, %c0_i32_0 : i32, i32
  }
  func.func @transform_3(%arg0: i32) -> (i32, i32) {
    %c0_i32 = arith.constant 0 : i32
    %c0_i32_0 = arith.constant 0 : i32
    return %arg0, %c0_i32 : i32, i32
  }
}

module attributes {stable_mosaic.version = 11 : i64} {
  func.func @_fused_linear_kernel(%arg0: i32, %arg1: memref<128x576xf32, #tpu.memory_space<vmem>>, %arg2: memref<576x128xf32, #tpu.memory_space<vmem>>, %arg3: memref<1x128xf32, #tpu.memory_space<vmem>>, %arg4: memref<128x128xf32, #tpu.memory_space<vmem>>) attributes {dimension_semantics = [#tpu.dimension_semantics<parallel>], iteration_bounds = array<i64: 2>, scalar_prefetch = 0 : i64, scratch_operands = 0 : i64, tpu.core_type = #tpu.core_type<tc>, window_params = [{transform_indices = @transform_0, window_bounds = array<i64: 128, 576>}, {pipeline_mode = #tpu.pipeline_mode<synchronous>, transform_indices = @transform_1, window_bounds = array<i64: 576, 128>}, {pipeline_mode = #tpu.pipeline_mode<synchronous>, transform_indices = @transform_2, window_bounds = array<i64: 1, 128>}, {transform_indices = @transform_3, window_bounds = array<i64: 128, 128>}]} {
    %c0 = arith.constant 0 : index
    %c0_0 = arith.constant 0 : index
    %0 = vector.load %arg1[%c0, %c0_0] : memref<128x576xf32, #tpu.memory_space<vmem>>, vector<128x576xf32>
    %c0_1 = arith.constant 0 : index
    %c0_2 = arith.constant 0 : index
    %1 = vector.load %arg2[%c0_1, %c0_2] : memref<576x128xf32, #tpu.memory_space<vmem>>, vector<576x128xf32>
    %cst = arith.constant dense<0.000000e+00> : vector<128x128xf32>
    %2 = tpu.matmul %0, %1, %cst {dimension_numbers = #tpu.dot_dimension_numbers<[1], [0], [0], [1], [0, 0, 1, 1], [], []>} : vector<128x576xf32>, vector<576x128xf32>, vector<128x128xf32> -> vector<128x128xf32>
    %c0_3 = arith.constant 0 : index
    %c0_4 = arith.constant 0 : index
    %3 = vector.load %arg3[%c0_3, %c0_4] : memref<1x128xf32, #tpu.memory_space<vmem>>, vector<1x128xf32>
    %4 = vector.broadcast %3 : vector<1x128xf32> to vector<128x128xf32>
    %5 = arith.addf %2, %4 : vector<128x128xf32>
    %cst_5 = arith.constant 0.000000e+00 : f32
    %6 = vector.broadcast %cst_5 : f32 to vector<128x128xf32>
    %7 = arith.maximumf %5, %6 : vector<128x128xf32>
    %c0_6 = arith.constant 0 : index
    %c0_7 = arith.constant 0 : index
    %8 = vector.load %arg4[%c0_6, %c0_7] : memref<128x128xf32, #tpu.memory_space<vmem>>, vector<128x128xf32>
    tpu.vector_store %arg4[%c0_6, %c0_7], %7 {strides = array<i32>} : memref<128x128xf32, #tpu.memory_space<vmem>>, vector<128x128xf32>,
    return
  }
  func.func @transform_0(%arg0: i32) -> (i32, i32) {
    %c0_i32 = arith.constant 0 : i32
    %c0_i32_0 = arith.constant 0 : i32
    return %arg0, %c0_i32 : i32, i32
  }
  func.func @transform_1(%arg0: i32) -> (i32, i32) {
    %c0_i32 = arith.constant 0 : i32
    %c0_i32_0 = arith.constant 0 : i32
    %c0_i32_1 = arith.constant 0 : i32
    return %c0_i32, %c0_i32_0 : i32, i32
  }
  func.func @transform_2(%arg0: i32) -> (i32, i32) {
    %c0_i32 = arith.constant 0 : i32
    %c0_i32_0 = arith.constant 0 : i32
    %c0_i32_1 = arith.constant 0 : i32
    return %c0_i32, %c0_i32_0 : i32, i32
  }
  func.func @transform_3(%arg0: i32) -> (i32, i32) {
    %c0_i32 = arith.constant 0 : i32
    %c0_i32_0 = arith.constant 0 : i32
    return %arg0, %c0_i32 : i32, i32
  }
}

module attributes {stable_mosaic.version = 11 : i64} {
  func.func @_pool_proj_kernel(%arg0: i32, %arg1: memref<8x16x128xf32, #tpu.memory_space<vmem>>, %arg2: memref<128x128xf32, #tpu.memory_space<vmem>>, %arg3: memref<1x128xf32, #tpu.memory_space<vmem>>, %arg4: memref<8x128xf32, #tpu.memory_space<vmem>>, %arg5: memref<8x128xf32, #tpu.memory_space<vmem>>) attributes {dimension_semantics = [#tpu.dimension_semantics<parallel>], iteration_bounds = array<i64: 2>, scalar_prefetch = 0 : i64, scratch_operands = 0 : i64, tpu.core_type = #tpu.core_type<tc>, window_params = [{transform_indices = @transform_0, window_bounds = array<i64: 8, 16, 128>}, {pipeline_mode = #tpu.pipeline_mode<synchronous>, transform_indices = @transform_1, window_bounds = array<i64: 128, 128>}, {pipeline_mode = #tpu.pipeline_mode<synchronous>, transform_indices = @transform_2, window_bounds = array<i64: 1, 128>}, {transform_indices = @transform_3, window_bounds = array<i64: 8, 128>}, {transform_indices = @transform_4, window_bounds = array<i64: 8, 128>}]} {
    %c0 = arith.constant 0 : index
    %c0_0 = arith.constant 0 : index
    %c0_1 = arith.constant 0 : index
    %0 = vector.load %arg1[%c0, %c0_0, %c0_1] : memref<8x16x128xf32, #tpu.memory_space<vmem>>, vector<8x16x128xf32>
    %cst = arith.constant dense<0.000000e+00> : vector<8x128xf32>
    %1 = vector.multi_reduction <add>, %0, %cst [1] : vector<8x16x128xf32> to vector<8x128xf32>
    %cst_2 = arith.constant 1.600000e+01 : f32
    %2 = vector.broadcast %cst_2 : f32 to vector<8x128xf32>
    %3 = arith.divf %1, %2 : vector<8x128xf32>
    %c0_3 = arith.constant 0 : index
    %c0_4 = arith.constant 0 : index
    %4 = vector.load %arg2[%c0_3, %c0_4] : memref<128x128xf32, #tpu.memory_space<vmem>>, vector<128x128xf32>
    %cst_5 = arith.constant dense<0.000000e+00> : vector<8x128xf32>
    %5 = tpu.matmul %3, %4, %cst_5 {dimension_numbers = #tpu.dot_dimension_numbers<[1], [0], [0], [1], [0, 0, 1, 1], [], []>} : vector<8x128xf32>, vector<128x128xf32>, vector<8x128xf32> -> vector<8x128xf32>
    %c0_6 = arith.constant 0 : index
    %c0_7 = arith.constant 0 : index
    %6 = vector.load %arg3[%c0_6, %c0_7] : memref<1x128xf32, #tpu.memory_space<vmem>>, vector<1x128xf32>
    %7 = vector.broadcast %6 : vector<1x128xf32> to vector<8x128xf32>
    %8 = arith.addf %5, %7 : vector<8x128xf32>
    %c0_8 = arith.constant 0 : index
    %c0_9 = arith.constant 0 : index
    %9 = vector.load %arg4[%c0_8, %c0_9] : memref<8x128xf32, #tpu.memory_space<vmem>>, vector<8x128xf32>
    %10 = arith.addf %8, %9 : vector<8x128xf32>
    %c0_10 = arith.constant 0 : index
    %c0_11 = arith.constant 0 : index
    %11 = vector.load %arg5[%c0_10, %c0_11] : memref<8x128xf32, #tpu.memory_space<vmem>>, vector<8x128xf32>
    tpu.vector_store %arg5[%c0_10, %c0_11], %10 {strides = array<i32>} : memref<8x128xf32, #tpu.memory_space<vmem>>, vector<8x128xf32>,
    return
  }
  func.func @transform_0(%arg0: i32) -> (i32, i32, i32) {
    %c0_i32 = arith.constant 0 : i32
    %c0_i32_0 = arith.constant 0 : i32
    %c0_i32_1 = arith.constant 0 : i32
    return %arg0, %c0_i32, %c0_i32_0 : i32, i32, i32
  }
  func.func @transform_1(%arg0: i32) -> (i32, i32) {
    %c0_i32 = arith.constant 0 : i32
    %c0_i32_0 = arith.constant 0 : i32
    %c0_i32_1 = arith.constant 0 : i32
    return %c0_i32, %c0_i32_0 : i32, i32
  }
  func.func @transform_2(%arg0: i32) -> (i32, i32) {
    %c0_i32 = arith.constant 0 : i32
    %c0_i32_0 = arith.constant 0 : i32
    %c0_i32_1 = arith.constant 0 : i32
    return %c0_i32, %c0_i32_0 : i32, i32
  }
  func.func @transform_3(%arg0: i32) -> (i32, i32) {
    %c0_i32 = arith.constant 0 : i32
    %c0_i32_0 = arith.constant 0 : i32
    return %arg0, %c0_i32 : i32, i32
  }
  func.func @transform_4(%arg0: i32) -> (i32, i32) {
    %c0_i32 = arith.constant 0 : i32
    %c0_i32_0 = arith.constant 0 : i32
    return %arg0, %c0_i32 : i32, i32
  }
}

module attributes {stable_mosaic.version = 11 : i64} {
  func.func @_fused_linear_kernel(%arg0: i32, %arg1: memref<8x128xf32, #tpu.memory_space<vmem>>, %arg2: memref<1x128xf32, #tpu.memory_space<vmem>>, %arg3: memref<1x128xf32, #tpu.memory_space<vmem>>, %arg4: memref<128x512xf32, #tpu.memory_space<vmem>>, %arg5: memref<1x512xf32, #tpu.memory_space<vmem>>, %arg6: memref<8x512xf32, #tpu.memory_space<vmem>>) attributes {dimension_semantics = [#tpu.dimension_semantics<parallel>], iteration_bounds = array<i64: 2>, scalar_prefetch = 0 : i64, scratch_operands = 0 : i64, tpu.core_type = #tpu.core_type<tc>, window_params = [{transform_indices = @transform_0, window_bounds = array<i64: 8, 128>}, {pipeline_mode = #tpu.pipeline_mode<synchronous>, transform_indices = @transform_1, window_bounds = array<i64: 1, 128>}, {pipeline_mode = #tpu.pipeline_mode<synchronous>, transform_indices = @transform_2, window_bounds = array<i64: 1, 128>}, {pipeline_mode = #tpu.pipeline_mode<synchronous>, transform_indices = @transform_3, window_bounds = array<i64: 128, 512>}, {pipeline_mode = #tpu.pipeline_mode<synchronous>, transform_indices = @transform_4, window_bounds = array<i64: 1, 512>}, {transform_indices = @transform_5, window_bounds = array<i64: 8, 512>}]} {
    %c0 = arith.constant 0 : index
    %c0_0 = arith.constant 0 : index
    %0 = vector.load %arg1[%c0, %c0_0] : memref<8x128xf32, #tpu.memory_space<vmem>>, vector<8x128xf32>
    %c0_1 = arith.constant 0 : index
    %c0_2 = arith.constant 0 : index
    %1 = vector.load %arg2[%c0_1, %c0_2] : memref<1x128xf32, #tpu.memory_space<vmem>>, vector<1x128xf32>
    %c0_3 = arith.constant 0 : index
    %c0_4 = arith.constant 0 : index
    %2 = vector.load %arg3[%c0_3, %c0_4] : memref<1x128xf32, #tpu.memory_space<vmem>>, vector<1x128xf32>
    %cst = arith.constant dense<0.000000e+00> : vector<8xf32>
    %3 = vector.multi_reduction <add>, %0, %cst [1] : vector<8x128xf32> to vector<8xf32>
    %4 = vector.shape_cast %3 : vector<8xf32> to vector<8x1xf32>
    %cst_5 = arith.constant 1.280000e+02 : f32
    %5 = vector.broadcast %cst_5 : f32 to vector<8x1xf32>
    %6 = arith.divf %4, %5 : vector<8x1xf32>
    %7 = vector.broadcast %6 : vector<8x1xf32> to vector<8x128xf32>
    %8 = arith.subf %0, %7 : vector<8x128xf32>
    %9 = arith.mulf %8, %8 : vector<8x128xf32>
    %cst_6 = arith.constant dense<0.000000e+00> : vector<8xf32>
    %10 = vector.multi_reduction <add>, %9, %cst_6 [1] : vector<8x128xf32> to vector<8xf32>
    %11 = vector.shape_cast %10 : vector<8xf32> to vector<8x1xf32>
    %cst_7 = arith.constant 1.280000e+02 : f32
    %12 = vector.broadcast %cst_7 : f32 to vector<8x1xf32>
    %13 = arith.divf %11, %12 : vector<8x1xf32>
    %14 = vector.broadcast %6 : vector<8x1xf32> to vector<8x128xf32>
    %15 = arith.subf %0, %14 : vector<8x128xf32>
    %cst_8 = arith.constant 9.99999974E-6 : f32
    %16 = vector.broadcast %cst_8 : f32 to vector<8x1xf32>
    %17 = arith.addf %13, %16 : vector<8x1xf32>
    %18 = math.rsqrt %17 : vector<8x1xf32>
    %19 = vector.broadcast %18 : vector<8x1xf32> to vector<8x128xf32>
    %20 = arith.mulf %15, %19 : vector<8x128xf32>
    %21 = vector.broadcast %1 : vector<1x128xf32> to vector<8x128xf32>
    %22 = arith.mulf %20, %21 : vector<8x128xf32>
    %23 = vector.broadcast %2 : vector<1x128xf32> to vector<8x128xf32>
    %24 = arith.addf %22, %23 : vector<8x128xf32>
    %c0_9 = arith.constant 0 : index
    %c0_10 = arith.constant 0 : index
    %25 = vector.load %arg4[%c0_9, %c0_10] : memref<128x512xf32, #tpu.memory_space<vmem>>, vector<128x512xf32>
    %cst_11 = arith.constant dense<0.000000e+00> : vector<8x512xf32>
    %26 = tpu.matmul %24, %25, %cst_11 {dimension_numbers = #tpu.dot_dimension_numbers<[1], [0], [0], [1], [0, 0, 1, 1], [], []>} : vector<8x128xf32>, vector<128x512xf32>, vector<8x512xf32> -> vector<8x512xf32>
    %c0_12 = arith.constant 0 : index
    %c0_13 = arith.constant 0 : index
    %27 = vector.load %arg5[%c0_12, %c0_13] : memref<1x512xf32, #tpu.memory_space<vmem>>, vector<1x512xf32>
    %28 = vector.broadcast %27 : vector<1x512xf32> to vector<8x512xf32>
    %29 = arith.addf %26, %28 : vector<8x512xf32>
    %30 = arith.negf %29 : vector<8x512xf32>
    %31 = math.exp %30 : vector<8x512xf32>
    %cst_14 = arith.constant 1.000000e+00 : f32
    %32 = vector.broadcast %cst_14 : f32 to vector<8x512xf32>
    %33 = arith.addf %32, %31 : vector<8x512xf32>
    %34 = arith.divf %32, %33 : vector<8x512xf32>
    %35 = arith.mulf %29, %34 : vector<8x512xf32>
    %c0_15 = arith.constant 0 : index
    %c0_16 = arith.constant 0 : index
    %36 = vector.load %arg6[%c0_15, %c0_16] : memref<8x512xf32, #tpu.memory_space<vmem>>, vector<8x512xf32>
    tpu.vector_store %arg6[%c0_15, %c0_16], %35 {strides = array<i32>} : memref<8x512xf32, #tpu.memory_space<vmem>>, vector<8x512xf32>,
    return
  }
  func.func @transform_0(%arg0: i32) -> (i32, i32) {
    %c0_i32 = arith.constant 0 : i32
    %c0_i32_0 = arith.constant 0 : i32
    return %arg0, %c0_i32 : i32, i32
  }
  func.func @transform_1(%arg0: i32) -> (i32, i32) {
    %c0_i32 = arith.constant 0 : i32
    %c0_i32_0 = arith.constant 0 : i32
    %c0_i32_1 = arith.constant 0 : i32
    return %c0_i32, %c0_i32_0 : i32, i32
  }
  func.func @transform_2(%arg0: i32) -> (i32, i32) {
    %c0_i32 = arith.constant 0 : i32
    %c0_i32_0 = arith.constant 0 : i32
    %c0_i32_1 = arith.constant 0 : i32
    return %c0_i32, %c0_i32_0 : i32, i32
  }
  func.func @transform_3(%arg0: i32) -> (i32, i32) {
    %c0_i32 = arith.constant 0 : i32
    %c0_i32_0 = arith.constant 0 : i32
    %c0_i32_1 = arith.constant 0 : i32
    return %c0_i32, %c0_i32_0 : i32, i32
  }
  func.func @transform_4(%arg0: i32) -> (i32, i32) {
    %c0_i32 = arith.constant 0 : i32
    %c0_i32_0 = arith.constant 0 : i32
    %c0_i32_1 = arith.constant 0 : i32
    return %c0_i32, %c0_i32_0 : i32, i32
  }
  func.func @transform_5(%arg0: i32) -> (i32, i32) {
    %c0_i32 = arith.constant 0 : i32
    %c0_i32_0 = arith.constant 0 : i32
    return %arg0, %c0_i32 : i32, i32
  }
}

module attributes {stable_mosaic.version = 11 : i64} {
  func.func @_fused_linear_kernel(%arg0: i32, %arg1: memref<8x512xf32, #tpu.memory_space<vmem>>, %arg2: memref<512x128xf32, #tpu.memory_space<vmem>>, %arg3: memref<1x128xf32, #tpu.memory_space<vmem>>, %arg4: memref<8x128xf32, #tpu.memory_space<vmem>>, %arg5: memref<8x128xf32, #tpu.memory_space<vmem>>) attributes {dimension_semantics = [#tpu.dimension_semantics<parallel>], iteration_bounds = array<i64: 2>, scalar_prefetch = 0 : i64, scratch_operands = 0 : i64, tpu.core_type = #tpu.core_type<tc>, window_params = [{transform_indices = @transform_0, window_bounds = array<i64: 8, 512>}, {pipeline_mode = #tpu.pipeline_mode<synchronous>, transform_indices = @transform_1, window_bounds = array<i64: 512, 128>}, {pipeline_mode = #tpu.pipeline_mode<synchronous>, transform_indices = @transform_2, window_bounds = array<i64: 1, 128>}, {transform_indices = @transform_3, window_bounds = array<i64: 8, 128>}, {transform_indices = @transform_4, window_bounds = array<i64: 8, 128>}]} {
    %c0 = arith.constant 0 : index
    %c0_0 = arith.constant 0 : index
    %0 = vector.load %arg1[%c0, %c0_0] : memref<8x512xf32, #tpu.memory_space<vmem>>, vector<8x512xf32>
    %c0_1 = arith.constant 0 : index
    %c0_2 = arith.constant 0 : index
    %1 = vector.load %arg2[%c0_1, %c0_2] : memref<512x128xf32, #tpu.memory_space<vmem>>, vector<512x128xf32>
    %cst = arith.constant dense<0.000000e+00> : vector<8x128xf32>
    %2 = tpu.matmul %0, %1, %cst {dimension_numbers = #tpu.dot_dimension_numbers<[1], [0], [0], [1], [0, 0, 1, 1], [], []>} : vector<8x512xf32>, vector<512x128xf32>, vector<8x128xf32> -> vector<8x128xf32>
    %c0_3 = arith.constant 0 : index
    %c0_4 = arith.constant 0 : index
    %3 = vector.load %arg3[%c0_3, %c0_4] : memref<1x128xf32, #tpu.memory_space<vmem>>, vector<1x128xf32>
    %4 = vector.broadcast %3 : vector<1x128xf32> to vector<8x128xf32>
    %5 = arith.addf %2, %4 : vector<8x128xf32>
    %c0_5 = arith.constant 0 : index
    %c0_6 = arith.constant 0 : index
    %6 = vector.load %arg4[%c0_5, %c0_6] : memref<8x128xf32, #tpu.memory_space<vmem>>, vector<8x128xf32>
    %cst_7 = arith.constant 5.000000e-01 : f32
    %7 = vector.broadcast %cst_7 : f32 to vector<8x128xf32>
    %8 = arith.mulf %7, %5 : vector<8x128xf32>
    %9 = arith.addf %6, %8 : vector<8x128xf32>
    %c0_8 = arith.constant 0 : index
    %c0_9 = arith.constant 0 : index
    %10 = vector.load %arg5[%c0_8, %c0_9] : memref<8x128xf32, #tpu.memory_space<vmem>>, vector<8x128xf32>
    tpu.vector_store %arg5[%c0_8, %c0_9], %9 {strides = array<i32>} : memref<8x128xf32, #tpu.memory_space<vmem>>, vector<8x128xf32>,
    return
  }
  func.func @transform_0(%arg0: i32) -> (i32, i32) {
    %c0_i32 = arith.constant 0 : i32
    %c0_i32_0 = arith.constant 0 : i32
    return %arg0, %c0_i32 : i32, i32
  }
  func.func @transform_1(%arg0: i32) -> (i32, i32) {
    %c0_i32 = arith.constant 0 : i32
    %c0_i32_0 = arith.constant 0 : i32
    %c0_i32_1 = arith.constant 0 : i32
    return %c0_i32, %c0_i32_0 : i32, i32
  }
  func.func @transform_2(%arg0: i32) -> (i32, i32) {
    %c0_i32 = arith.constant 0 : i32
    %c0_i32_0 = arith.constant 0 : i32
    %c0_i32_1 = arith.constant 0 : i32
    return %c0_i32, %c0_i32_0 : i32, i32
  }
  func.func @transform_3(%arg0: i32) -> (i32, i32) {
    %c0_i32 = arith.constant 0 : i32
    %c0_i32_0 = arith.constant 0 : i32
    return %arg0, %c0_i32 : i32, i32
  }
  func.func @transform_4(%arg0: i32) -> (i32, i32) {
    %c0_i32 = arith.constant 0 : i32
    %c0_i32_0 = arith.constant 0 : i32
    return %arg0, %c0_i32 : i32, i32
  }
}

module attributes {stable_mosaic.version = 11 : i64} {
  func.func @_fused_linear_kernel(%arg0: i32, %arg1: memref<8x128xf32, #tpu.memory_space<vmem>>, %arg2: memref<1x128xf32, #tpu.memory_space<vmem>>, %arg3: memref<1x128xf32, #tpu.memory_space<vmem>>, %arg4: memref<128x384xf32, #tpu.memory_space<vmem>>, %arg5: memref<1x384xf32, #tpu.memory_space<vmem>>, %arg6: memref<8x384xf32, #tpu.memory_space<vmem>>) attributes {dimension_semantics = [#tpu.dimension_semantics<parallel>], iteration_bounds = array<i64: 2>, scalar_prefetch = 0 : i64, scratch_operands = 0 : i64, tpu.core_type = #tpu.core_type<tc>, window_params = [{transform_indices = @transform_0, window_bounds = array<i64: 8, 128>}, {pipeline_mode = #tpu.pipeline_mode<synchronous>, transform_indices = @transform_1, window_bounds = array<i64: 1, 128>}, {pipeline_mode = #tpu.pipeline_mode<synchronous>, transform_indices = @transform_2, window_bounds = array<i64: 1, 128>}, {pipeline_mode = #tpu.pipeline_mode<synchronous>, transform_indices = @transform_3, window_bounds = array<i64: 128, 384>}, {pipeline_mode = #tpu.pipeline_mode<synchronous>, transform_indices = @transform_4, window_bounds = array<i64: 1, 384>}, {transform_indices = @transform_5, window_bounds = array<i64: 8, 384>}]} {
    %c0 = arith.constant 0 : index
    %c0_0 = arith.constant 0 : index
    %0 = vector.load %arg1[%c0, %c0_0] : memref<8x128xf32, #tpu.memory_space<vmem>>, vector<8x128xf32>
    %c0_1 = arith.constant 0 : index
    %c0_2 = arith.constant 0 : index
    %1 = vector.load %arg2[%c0_1, %c0_2] : memref<1x128xf32, #tpu.memory_space<vmem>>, vector<1x128xf32>
    %c0_3 = arith.constant 0 : index
    %c0_4 = arith.constant 0 : index
    %2 = vector.load %arg3[%c0_3, %c0_4] : memref<1x128xf32, #tpu.memory_space<vmem>>, vector<1x128xf32>
    %cst = arith.constant dense<0.000000e+00> : vector<8xf32>
    %3 = vector.multi_reduction <add>, %0, %cst [1] : vector<8x128xf32> to vector<8xf32>
    %4 = vector.shape_cast %3 : vector<8xf32> to vector<8x1xf32>
    %cst_5 = arith.constant 1.280000e+02 : f32
    %5 = vector.broadcast %cst_5 : f32 to vector<8x1xf32>
    %6 = arith.divf %4, %5 : vector<8x1xf32>
    %7 = vector.broadcast %6 : vector<8x1xf32> to vector<8x128xf32>
    %8 = arith.subf %0, %7 : vector<8x128xf32>
    %9 = arith.mulf %8, %8 : vector<8x128xf32>
    %cst_6 = arith.constant dense<0.000000e+00> : vector<8xf32>
    %10 = vector.multi_reduction <add>, %9, %cst_6 [1] : vector<8x128xf32> to vector<8xf32>
    %11 = vector.shape_cast %10 : vector<8xf32> to vector<8x1xf32>
    %cst_7 = arith.constant 1.280000e+02 : f32
    %12 = vector.broadcast %cst_7 : f32 to vector<8x1xf32>
    %13 = arith.divf %11, %12 : vector<8x1xf32>
    %14 = vector.broadcast %6 : vector<8x1xf32> to vector<8x128xf32>
    %15 = arith.subf %0, %14 : vector<8x128xf32>
    %cst_8 = arith.constant 9.99999974E-6 : f32
    %16 = vector.broadcast %cst_8 : f32 to vector<8x1xf32>
    %17 = arith.addf %13, %16 : vector<8x1xf32>
    %18 = math.rsqrt %17 : vector<8x1xf32>
    %19 = vector.broadcast %18 : vector<8x1xf32> to vector<8x128xf32>
    %20 = arith.mulf %15, %19 : vector<8x128xf32>
    %21 = vector.broadcast %1 : vector<1x128xf32> to vector<8x128xf32>
    %22 = arith.mulf %20, %21 : vector<8x128xf32>
    %23 = vector.broadcast %2 : vector<1x128xf32> to vector<8x128xf32>
    %24 = arith.addf %22, %23 : vector<8x128xf32>
    %c0_9 = arith.constant 0 : index
    %c0_10 = arith.constant 0 : index
    %25 = vector.load %arg4[%c0_9, %c0_10] : memref<128x384xf32, #tpu.memory_space<vmem>>, vector<128x384xf32>
    %cst_11 = arith.constant dense<0.000000e+00> : vector<8x384xf32>
    %26 = tpu.matmul %24, %25, %cst_11 {dimension_numbers = #tpu.dot_dimension_numbers<[1], [0], [0], [1], [0, 0, 1, 1], [], []>} : vector<8x128xf32>, vector<128x384xf32>, vector<8x384xf32> -> vector<8x384xf32>
    %c0_12 = arith.constant 0 : index
    %c0_13 = arith.constant 0 : index
    %27 = vector.load %arg5[%c0_12, %c0_13] : memref<1x384xf32, #tpu.memory_space<vmem>>, vector<1x384xf32>
    %28 = vector.broadcast %27 : vector<1x384xf32> to vector<8x384xf32>
    %29 = arith.addf %26, %28 : vector<8x384xf32>
    %c0_14 = arith.constant 0 : index
    %c0_15 = arith.constant 0 : index
    %30 = vector.load %arg6[%c0_14, %c0_15] : memref<8x384xf32, #tpu.memory_space<vmem>>, vector<8x384xf32>
    tpu.vector_store %arg6[%c0_14, %c0_15], %29 {strides = array<i32>} : memref<8x384xf32, #tpu.memory_space<vmem>>, vector<8x384xf32>,
    return
  }
  func.func @transform_0(%arg0: i32) -> (i32, i32) {
    %c0_i32 = arith.constant 0 : i32
    %c0_i32_0 = arith.constant 0 : i32
    return %arg0, %c0_i32 : i32, i32
  }
  func.func @transform_1(%arg0: i32) -> (i32, i32) {
    %c0_i32 = arith.constant 0 : i32
    %c0_i32_0 = arith.constant 0 : i32
    %c0_i32_1 = arith.constant 0 : i32
    return %c0_i32, %c0_i32_0 : i32, i32
  }
  func.func @transform_2(%arg0: i32) -> (i32, i32) {
    %c0_i32 = arith.constant 0 : i32
    %c0_i32_0 = arith.constant 0 : i32
    %c0_i32_1 = arith.constant 0 : i32
    return %c0_i32, %c0_i32_0 : i32, i32
  }
  func.func @transform_3(%arg0: i32) -> (i32, i32) {
    %c0_i32 = arith.constant 0 : i32
    %c0_i32_0 = arith.constant 0 : i32
    %c0_i32_1 = arith.constant 0 : i32
    return %c0_i32, %c0_i32_0 : i32, i32
  }
  func.func @transform_4(%arg0: i32) -> (i32, i32) {
    %c0_i32 = arith.constant 0 : i32
    %c0_i32_0 = arith.constant 0 : i32
    %c0_i32_1 = arith.constant 0 : i32
    return %c0_i32, %c0_i32_0 : i32, i32
  }
  func.func @transform_5(%arg0: i32) -> (i32, i32) {
    %c0_i32 = arith.constant 0 : i32
    %c0_i32_0 = arith.constant 0 : i32
    return %arg0, %c0_i32 : i32, i32
  }
}

module attributes {stable_mosaic.version = 11 : i64} {
  func.func @_attention_kernel(%arg0: i32, %arg1: memref<1x8x8x16xf32, #tpu.memory_space<vmem>>, %arg2: memref<1x8x8x16xf32, #tpu.memory_space<vmem>>, %arg3: memref<1x8x8x16xf32, #tpu.memory_space<vmem>>, %arg4: memref<1x8x8x16xf32, #tpu.memory_space<vmem>>) attributes {dimension_semantics = [#tpu.dimension_semantics<parallel>], iteration_bounds = array<i64: 2>, scalar_prefetch = 0 : i64, scratch_operands = 0 : i64, tpu.core_type = #tpu.core_type<tc>, window_params = [{transform_indices = @transform_0, window_bounds = array<i64: 1, 8, 8, 16>}, {transform_indices = @transform_1, window_bounds = array<i64: 1, 8, 8, 16>}, {transform_indices = @transform_2, window_bounds = array<i64: 1, 8, 8, 16>}, {transform_indices = @transform_3, window_bounds = array<i64: 1, 8, 8, 16>}]} {
    %c0 = arith.constant 0 : index
    %c0_0 = arith.constant 0 : index
    %c0_1 = arith.constant 0 : index
    %c0_2 = arith.constant 0 : index
    %0 = vector.load %arg1[%c0, %c0_0, %c0_1, %c0_2] : memref<1x8x8x16xf32, #tpu.memory_space<vmem>>, vector<1x8x8x16xf32>
    %1 = vector.shape_cast %0 : vector<1x8x8x16xf32> to vector<8x8x16xf32>
    %c0_3 = arith.constant 0 : index
    %c0_4 = arith.constant 0 : index
    %c0_5 = arith.constant 0 : index
    %c0_6 = arith.constant 0 : index
    %2 = vector.load %arg2[%c0_3, %c0_4, %c0_5, %c0_6] : memref<1x8x8x16xf32, #tpu.memory_space<vmem>>, vector<1x8x8x16xf32>
    %3 = vector.shape_cast %2 : vector<1x8x8x16xf32> to vector<8x8x16xf32>
    %c0_7 = arith.constant 0 : index
    %c0_8 = arith.constant 0 : index
    %c0_9 = arith.constant 0 : index
    %c0_10 = arith.constant 0 : index
    %4 = vector.load %arg3[%c0_7, %c0_8, %c0_9, %c0_10] : memref<1x8x8x16xf32, #tpu.memory_space<vmem>>, vector<1x8x8x16xf32>
    %5 = vector.shape_cast %4 : vector<1x8x8x16xf32> to vector<8x8x16xf32>
    "tpu.trace_start"() <{level = 10 : i32, message = "htd,hsd->hts"}> : () -> ()
    %cst = arith.constant dense<0.000000e+00> : vector<8x8x8xf32>
    %6 = tpu.matmul %1, %3, %cst {dimension_numbers = #tpu.dot_dimension_numbers<[2], [2], [1], [1], [0, 0, 0, 1, 1, 1], [0], [0]>} : vector<8x8x16xf32>, vector<8x8x16xf32>, vector<8x8x8xf32> -> vector<8x8x8xf32>
    "tpu.trace_stop"() : () -> ()
    %cst_11 = arith.constant 2.500000e-01 : f32
    %7 = vector.broadcast %cst_11 : f32 to vector<8x8x8xf32>
    %8 = arith.mulf %6, %7 : vector<8x8x8xf32>
    %cst_12 = arith.constant dense<0xFF800000> : vector<8x8xf32>
    %9 = vector.multi_reduction <maximumf>, %8, %cst_12 [2] : vector<8x8x8xf32> to vector<8x8xf32>
    %10 = vector.shape_cast %9 : vector<8x8xf32> to vector<8x8x1xf32>
    %11 = vector.broadcast %10 : vector<8x8x1xf32> to vector<8x8x8xf32>
    %12 = arith.subf %8, %11 : vector<8x8x8xf32>
    %13 = math.exp %12 : vector<8x8x8xf32>
    %cst_13 = arith.constant dense<0.000000e+00> : vector<8x8xf32>
    %14 = vector.multi_reduction <add>, %13, %cst_13 [2] : vector<8x8x8xf32> to vector<8x8xf32>
    %15 = vector.shape_cast %14 : vector<8x8xf32> to vector<8x8x1xf32>
    %16 = vector.broadcast %15 : vector<8x8x1xf32> to vector<8x8x8xf32>
    %17 = arith.divf %13, %16 : vector<8x8x8xf32>
    "tpu.trace_start"() <{level = 10 : i32, message = "hts,hsd->htd"}> : () -> ()
    %cst_14 = arith.constant dense<0.000000e+00> : vector<8x8x16xf32>
    %18 = tpu.matmul %17, %5, %cst_14 {dimension_numbers = #tpu.dot_dimension_numbers<[2], [1], [1], [2], [0, 0, 0, 1, 1, 2], [0], [0]>} : vector<8x8x8xf32>, vector<8x8x16xf32>, vector<8x8x16xf32> -> vector<8x8x16xf32>
    "tpu.trace_stop"() : () -> ()
    %c0_15 = arith.constant 0 : index
    %c0_16 = arith.constant 0 : index
    %c0_17 = arith.constant 0 : index
    %c0_18 = arith.constant 0 : index
    %19 = vector.load %arg4[%c0_15, %c0_16, %c0_17, %c0_18] : memref<1x8x8x16xf32, #tpu.memory_space<vmem>>, vector<1x8x8x16xf32>
    %20 = vector.shape_cast %19 : vector<1x8x8x16xf32> to vector<8x8x16xf32>
    %21 = vector.shape_cast %18 : vector<8x8x16xf32> to vector<1x8x8x16xf32>
    tpu.vector_store %arg4[%c0_15, %c0_16, %c0_17, %c0_18], %21 {strides = array<i32>} : memref<1x8x8x16xf32, #tpu.memory_space<vmem>>, vector<1x8x8x16xf32>,
    return
  }
  func.func @transform_0(%arg0: i32) -> (i32, i32, i32, i32) {
    %c0_i32 = arith.constant 0 : i32
    %c0_i32_0 = arith.constant 0 : i32
    %c0_i32_1 = arith.constant 0 : i32
    %c0_i32_2 = arith.constant 0 : i32
    return %arg0, %c0_i32, %c0_i32_0, %c0_i32_1 : i32, i32, i32, i32
  }
  func.func @transform_1(%arg0: i32) -> (i32, i32, i32, i32) {
    %c0_i32 = arith.constant 0 : i32
    %c0_i32_0 = arith.constant 0 : i32
    %c0_i32_1 = arith.constant 0 : i32
    %c0_i32_2 = arith.constant 0 : i32
    return %arg0, %c0_i32, %c0_i32_0, %c0_i32_1 : i32, i32, i32, i32
  }
  func.func @transform_2(%arg0: i32) -> (i32, i32, i32, i32) {
    %c0_i32 = arith.constant 0 : i32
    %c0_i32_0 = arith.constant 0 : i32
    %c0_i32_1 = arith.constant 0 : i32
    %c0_i32_2 = arith.constant 0 : i32
    return %arg0, %c0_i32, %c0_i32_0, %c0_i32_1 : i32, i32, i32, i32
  }
  func.func @transform_3(%arg0: i32) -> (i32, i32, i32, i32) {
    %c0_i32 = arith.constant 0 : i32
    %c0_i32_0 = arith.constant 0 : i32
    %c0_i32_1 = arith.constant 0 : i32
    %c0_i32_2 = arith.constant 0 : i32
    return %arg0, %c0_i32, %c0_i32_0, %c0_i32_1 : i32, i32, i32, i32
  }
}

module attributes {stable_mosaic.version = 11 : i64} {
  func.func @_fused_linear_kernel(%arg0: i32, %arg1: memref<8x128xf32, #tpu.memory_space<vmem>>, %arg2: memref<128x128xf32, #tpu.memory_space<vmem>>, %arg3: memref<1x128xf32, #tpu.memory_space<vmem>>, %arg4: memref<8x128xf32, #tpu.memory_space<vmem>>, %arg5: memref<8x128xf32, #tpu.memory_space<vmem>>) attributes {dimension_semantics = [#tpu.dimension_semantics<parallel>], iteration_bounds = array<i64: 2>, scalar_prefetch = 0 : i64, scratch_operands = 0 : i64, tpu.core_type = #tpu.core_type<tc>, window_params = [{transform_indices = @transform_0, window_bounds = array<i64: 8, 128>}, {pipeline_mode = #tpu.pipeline_mode<synchronous>, transform_indices = @transform_1, window_bounds = array<i64: 128, 128>}, {pipeline_mode = #tpu.pipeline_mode<synchronous>, transform_indices = @transform_2, window_bounds = array<i64: 1, 128>}, {transform_indices = @transform_3, window_bounds = array<i64: 8, 128>}, {transform_indices = @transform_4, window_bounds = array<i64: 8, 128>}]} {
    %c0 = arith.constant 0 : index
    %c0_0 = arith.constant 0 : index
    %0 = vector.load %arg1[%c0, %c0_0] : memref<8x128xf32, #tpu.memory_space<vmem>>, vector<8x128xf32>
    %c0_1 = arith.constant 0 : index
    %c0_2 = arith.constant 0 : index
    %1 = vector.load %arg2[%c0_1, %c0_2] : memref<128x128xf32, #tpu.memory_space<vmem>>, vector<128x128xf32>
    %cst = arith.constant dense<0.000000e+00> : vector<8x128xf32>
    %2 = tpu.matmul %0, %1, %cst {dimension_numbers = #tpu.dot_dimension_numbers<[1], [0], [0], [1], [0, 0, 1, 1], [], []>} : vector<8x128xf32>, vector<128x128xf32>, vector<8x128xf32> -> vector<8x128xf32>
    %c0_3 = arith.constant 0 : index
    %c0_4 = arith.constant 0 : index
    %3 = vector.load %arg3[%c0_3, %c0_4] : memref<1x128xf32, #tpu.memory_space<vmem>>, vector<1x128xf32>
    %4 = vector.broadcast %3 : vector<1x128xf32> to vector<8x128xf32>
    %5 = arith.addf %2, %4 : vector<8x128xf32>
    %c0_5 = arith.constant 0 : index
    %c0_6 = arith.constant 0 : index
    %6 = vector.load %arg4[%c0_5, %c0_6] : memref<8x128xf32, #tpu.memory_space<vmem>>, vector<8x128xf32>
    %cst_7 = arith.constant 1.000000e+00 : f32
    %7 = vector.broadcast %cst_7 : f32 to vector<8x128xf32>
    %8 = arith.mulf %7, %5 : vector<8x128xf32>
    %9 = arith.addf %6, %8 : vector<8x128xf32>
    %c0_8 = arith.constant 0 : index
    %c0_9 = arith.constant 0 : index
    %10 = vector.load %arg5[%c0_8, %c0_9] : memref<8x128xf32, #tpu.memory_space<vmem>>, vector<8x128xf32>
    tpu.vector_store %arg5[%c0_8, %c0_9], %9 {strides = array<i32>} : memref<8x128xf32, #tpu.memory_space<vmem>>, vector<8x128xf32>,
    return
  }
  func.func @transform_0(%arg0: i32) -> (i32, i32) {
    %c0_i32 = arith.constant 0 : i32
    %c0_i32_0 = arith.constant 0 : i32
    return %arg0, %c0_i32 : i32, i32
  }
  func.func @transform_1(%arg0: i32) -> (i32, i32) {
    %c0_i32 = arith.constant 0 : i32
    %c0_i32_0 = arith.constant 0 : i32
    %c0_i32_1 = arith.constant 0 : i32
    return %c0_i32, %c0_i32_0 : i32, i32
  }
  func.func @transform_2(%arg0: i32) -> (i32, i32) {
    %c0_i32 = arith.constant 0 : i32
    %c0_i32_0 = arith.constant 0 : i32
    %c0_i32_1 = arith.constant 0 : i32
    return %c0_i32, %c0_i32_0 : i32, i32
  }
  func.func @transform_3(%arg0: i32) -> (i32, i32) {
    %c0_i32 = arith.constant 0 : i32
    %c0_i32_0 = arith.constant 0 : i32
    return %arg0, %c0_i32 : i32, i32
  }
  func.func @transform_4(%arg0: i32) -> (i32, i32) {
    %c0_i32 = arith.constant 0 : i32
    %c0_i32_0 = arith.constant 0 : i32
    return %arg0, %c0_i32 : i32, i32
  }
}

module attributes {stable_mosaic.version = 11 : i64} {
  func.func @_conv_module_kernel(%arg0: i32, %arg1: memref<1x8x128xf32, #tpu.memory_space<vmem>>, %arg2: memref<1x128xf32, #tpu.memory_space<vmem>>, %arg3: memref<1x128xf32, #tpu.memory_space<vmem>>, %arg4: memref<128x128xf32, #tpu.memory_space<vmem>>, %arg5: memref<1x128xf32, #tpu.memory_space<vmem>>, %arg6: memref<128x128xf32, #tpu.memory_space<vmem>>, %arg7: memref<1x128xf32, #tpu.memory_space<vmem>>, %arg8: memref<3x128xf32, #tpu.memory_space<vmem>>, %arg9: memref<1x8x128xf32, #tpu.memory_space<vmem>>) attributes {dimension_semantics = [#tpu.dimension_semantics<parallel>], iteration_bounds = array<i64: 2>, scalar_prefetch = 0 : i64, scratch_operands = 0 : i64, tpu.core_type = #tpu.core_type<tc>, window_params = [{transform_indices = @transform_0, window_bounds = array<i64: 1, 8, 128>}, {pipeline_mode = #tpu.pipeline_mode<synchronous>, transform_indices = @transform_1, window_bounds = array<i64: 1, 128>}, {pipeline_mode = #tpu.pipeline_mode<synchronous>, transform_indices = @transform_2, window_bounds = array<i64: 1, 128>}, {pipeline_mode = #tpu.pipeline_mode<synchronous>, transform_indices = @transform_3, window_bounds = array<i64: 128, 128>}, {pipeline_mode = #tpu.pipeline_mode<synchronous>, transform_indices = @transform_4, window_bounds = array<i64: 1, 128>}, {pipeline_mode = #tpu.pipeline_mode<synchronous>, transform_indices = @transform_5, window_bounds = array<i64: 128, 128>}, {pipeline_mode = #tpu.pipeline_mode<synchronous>, transform_indices = @transform_6, window_bounds = array<i64: 1, 128>}, {pipeline_mode = #tpu.pipeline_mode<synchronous>, transform_indices = @transform_7, window_bounds = array<i64: 3, 128>}, {transform_indices = @transform_8, window_bounds = array<i64: 1, 8, 128>}]} {
    %c0 = arith.constant 0 : index
    %c0_0 = arith.constant 0 : index
    %c0_1 = arith.constant 0 : index
    %0 = vector.load %arg1[%c0, %c0_0, %c0_1] : memref<1x8x128xf32, #tpu.memory_space<vmem>>, vector<1x8x128xf32>
    %1 = vector.shape_cast %0 : vector<1x8x128xf32> to vector<8x128xf32>
    %c0_2 = arith.constant 0 : index
    %c0_3 = arith.constant 0 : index
    %2 = vector.load %arg2[%c0_2, %c0_3] : memref<1x128xf32, #tpu.memory_space<vmem>>, vector<1x128xf32>
    %c0_4 = arith.constant 0 : index
    %c0_5 = arith.constant 0 : index
    %3 = vector.load %arg3[%c0_4, %c0_5] : memref<1x128xf32, #tpu.memory_space<vmem>>, vector<1x128xf32>
    %cst = arith.constant dense<0.000000e+00> : vector<8xf32>
    %4 = vector.multi_reduction <add>, %1, %cst [1] : vector<8x128xf32> to vector<8xf32>
    %5 = vector.shape_cast %4 : vector<8xf32> to vector<8x1xf32>
    %cst_6 = arith.constant 1.280000e+02 : f32
    %6 = vector.broadcast %cst_6 : f32 to vector<8x1xf32>
    %7 = arith.divf %5, %6 : vector<8x1xf32>
    %8 = vector.broadcast %7 : vector<8x1xf32> to vector<8x128xf32>
    %9 = arith.subf %1, %8 : vector<8x128xf32>
    %10 = arith.mulf %9, %9 : vector<8x128xf32>
    %cst_7 = arith.constant dense<0.000000e+00> : vector<8xf32>
    %11 = vector.multi_reduction <add>, %10, %cst_7 [1] : vector<8x128xf32> to vector<8xf32>
    %12 = vector.shape_cast %11 : vector<8xf32> to vector<8x1xf32>
    %cst_8 = arith.constant 1.280000e+02 : f32
    %13 = vector.broadcast %cst_8 : f32 to vector<8x1xf32>
    %14 = arith.divf %12, %13 : vector<8x1xf32>
    %15 = vector.broadcast %7 : vector<8x1xf32> to vector<8x128xf32>
    %16 = arith.subf %1, %15 : vector<8x128xf32>
    %cst_9 = arith.constant 9.99999974E-6 : f32
    %17 = vector.broadcast %cst_9 : f32 to vector<8x1xf32>
    %18 = arith.addf %14, %17 : vector<8x1xf32>
    %19 = math.rsqrt %18 : vector<8x1xf32>
    %20 = vector.broadcast %19 : vector<8x1xf32> to vector<8x128xf32>
    %21 = arith.mulf %16, %20 : vector<8x128xf32>
    %22 = vector.broadcast %2 : vector<1x128xf32> to vector<8x128xf32>
    %23 = arith.mulf %21, %22 : vector<8x128xf32>
    %24 = vector.broadcast %3 : vector<1x128xf32> to vector<8x128xf32>
    %25 = arith.addf %23, %24 : vector<8x128xf32>
    %c0_10 = arith.constant 0 : index
    %c0_11 = arith.constant 0 : index
    %26 = vector.load %arg4[%c0_10, %c0_11] : memref<128x128xf32, #tpu.memory_space<vmem>>, vector<128x128xf32>
    %cst_12 = arith.constant dense<0.000000e+00> : vector<8x128xf32>
    %27 = tpu.matmul %25, %26, %cst_12 {dimension_numbers = #tpu.dot_dimension_numbers<[1], [0], [0], [1], [0, 0, 1, 1], [], []>} : vector<8x128xf32>, vector<128x128xf32>, vector<8x128xf32> -> vector<8x128xf32>
    %c0_13 = arith.constant 0 : index
    %c0_14 = arith.constant 0 : index
    %28 = vector.load %arg5[%c0_13, %c0_14] : memref<1x128xf32, #tpu.memory_space<vmem>>, vector<1x128xf32>
    %29 = vector.broadcast %28 : vector<1x128xf32> to vector<8x128xf32>
    %30 = arith.addf %27, %29 : vector<8x128xf32>
    %c0_15 = arith.constant 0 : index
    %c0_16 = arith.constant 0 : index
    %31 = vector.load %arg6[%c0_15, %c0_16] : memref<128x128xf32, #tpu.memory_space<vmem>>, vector<128x128xf32>
    %cst_17 = arith.constant dense<0.000000e+00> : vector<8x128xf32>
    %32 = tpu.matmul %25, %31, %cst_17 {dimension_numbers = #tpu.dot_dimension_numbers<[1], [0], [0], [1], [0, 0, 1, 1], [], []>} : vector<8x128xf32>, vector<128x128xf32>, vector<8x128xf32> -> vector<8x128xf32>
    %c0_18 = arith.constant 0 : index
    %c0_19 = arith.constant 0 : index
    %33 = vector.load %arg7[%c0_18, %c0_19] : memref<1x128xf32, #tpu.memory_space<vmem>>, vector<1x128xf32>
    %34 = vector.broadcast %33 : vector<1x128xf32> to vector<8x128xf32>
    %35 = arith.addf %32, %34 : vector<8x128xf32>
    %36 = arith.negf %35 : vector<8x128xf32>
    %37 = math.exp %36 : vector<8x128xf32>
    %cst_20 = arith.constant 1.000000e+00 : f32
    %38 = vector.broadcast %cst_20 : f32 to vector<8x128xf32>
    %39 = arith.addf %38, %37 : vector<8x128xf32>
    %40 = arith.divf %38, %39 : vector<8x128xf32>
    %41 = arith.mulf %30, %40 : vector<8x128xf32>
    %c0_21 = arith.constant 0 : index
    %c0_22 = arith.constant 0 : index
    %42 = vector.load %arg8[%c0_21, %c0_22] : memref<3x128xf32, #tpu.memory_space<vmem>>, vector<3x128xf32>
    %43 = tpu.iota {dimensions = array<i32: 0>} : vector<8x128xi32>
    %c1_i32 = arith.constant 1 : i32
    %44 = vector.broadcast %c1_i32 : i32 to vector<8x128xi32>
    %45 = arith.cmpi sge, %43, %44 : vector<8x128xi32>
    %c1_i32_23 = arith.constant 1 : i32
    %46 = tpu.dynamic_rotate %41 by %c1_i32_23 dim 0 : vector<8x128xf32>, i32 -> vector<8x128xf32>
    %cst_24 = arith.constant 0.000000e+00 : f32
    %47 = vector.broadcast %cst_24 : f32 to vector<8x128xf32>
    %48 = arith.select %45, %46, %47 : vector<8x128xi1>, vector<8x128xf32>
    %c7_i32 = arith.constant 7 : i32
    %49 = vector.broadcast %c7_i32 : i32 to vector<8x128xi32>
    %50 = arith.cmpi slt, %43, %49 : vector<8x128xi32>
    %c7_i32_25 = arith.constant 7 : i32
    %51 = tpu.dynamic_rotate %41 by %c7_i32_25 dim 0 : vector<8x128xf32>, i32 -> vector<8x128xf32>
    %cst_26 = arith.constant 0.000000e+00 : f32
    %52 = vector.broadcast %cst_26 : f32 to vector<8x128xf32>
    %53 = arith.select %50, %51, %52 : vector<8x128xi1>, vector<8x128xf32>
    %54 = vector.extract_strided_slice %42 {offsets = [0, 0], sizes = [1, 128], strides = [1, 1]} : vector<3x128xf32> to vector<1x128xf32>
    %55 = vector.broadcast %54 : vector<1x128xf32> to vector<8x128xf32>
    %56 = arith.mulf %48, %55 : vector<8x128xf32>
    %57 = vector.extract_strided_slice %42 {offsets = [1, 0], sizes = [1, 128], strides = [1, 1]} : vector<3x128xf32> to vector<1x128xf32>
    %58 = vector.broadcast %57 : vector<1x128xf32> to vector<8x128xf32>
    %59 = arith.mulf %41, %58 : vector<8x128xf32>
    %60 = arith.addf %56, %59 : vector<8x128xf32>
    %61 = vector.extract_strided_slice %42 {offsets = [2, 0], sizes = [1, 128], strides = [1, 1]} : vector<3x128xf32> to vector<1x128xf32>
    %62 = vector.broadcast %61 : vector<1x128xf32> to vector<8x128xf32>
    %63 = arith.mulf %53, %62 : vector<8x128xf32>
    %64 = arith.addf %60, %63 : vector<8x128xf32>
    %65 = arith.negf %64 : vector<8x128xf32>
    %66 = math.exp %65 : vector<8x128xf32>
    %cst_27 = arith.constant 1.000000e+00 : f32
    %67 = vector.broadcast %cst_27 : f32 to vector<8x128xf32>
    %68 = arith.addf %67, %66 : vector<8x128xf32>
    %69 = arith.divf %67, %68 : vector<8x128xf32>
    %70 = arith.mulf %64, %69 : vector<8x128xf32>
    %c0_28 = arith.constant 0 : index
    %c0_29 = arith.constant 0 : index
    %c0_30 = arith.constant 0 : index
    %71 = vector.load %arg9[%c0_28, %c0_29, %c0_30] : memref<1x8x128xf32, #tpu.memory_space<vmem>>, vector<1x8x128xf32>
    %72 = vector.shape_cast %71 : vector<1x8x128xf32> to vector<8x128xf32>
    %73 = vector.shape_cast %70 : vector<8x128xf32> to vector<1x8x128xf32>
    tpu.vector_store %arg9[%c0_28, %c0_29, %c0_30], %73 {strides = array<i32>} : memref<1x8x128xf32, #tpu.memory_space<vmem>>, vector<1x8x128xf32>,
    return
  }
  func.func @transform_0(%arg0: i32) -> (i32, i32, i32) {
    %c0_i32 = arith.constant 0 : i32
    %c0_i32_0 = arith.constant 0 : i32
    %c0_i32_1 = arith.constant 0 : i32
    return %arg0, %c0_i32, %c0_i32_0 : i32, i32, i32
  }
  func.func @transform_1(%arg0: i32) -> (i32, i32) {
    %c0_i32 = arith.constant 0 : i32
    %c0_i32_0 = arith.constant 0 : i32
    %c0_i32_1 = arith.constant 0 : i32
    return %c0_i32, %c0_i32_0 : i32, i32
  }
  func.func @transform_2(%arg0: i32) -> (i32, i32) {
    %c0_i32 = arith.constant 0 : i32
    %c0_i32_0 = arith.constant 0 : i32
    %c0_i32_1 = arith.constant 0 : i32
    return %c0_i32, %c0_i32_0 : i32, i32
  }
  func.func @transform_3(%arg0: i32) -> (i32, i32) {
    %c0_i32 = arith.constant 0 : i32
    %c0_i32_0 = arith.constant 0 : i32
    %c0_i32_1 = arith.constant 0 : i32
    return %c0_i32, %c0_i32_0 : i32, i32
  }
  func.func @transform_4(%arg0: i32) -> (i32, i32) {
    %c0_i32 = arith.constant 0 : i32
    %c0_i32_0 = arith.constant 0 : i32
    %c0_i32_1 = arith.constant 0 : i32
    return %c0_i32, %c0_i32_0 : i32, i32
  }
  func.func @transform_5(%arg0: i32) -> (i32, i32) {
    %c0_i32 = arith.constant 0 : i32
    %c0_i32_0 = arith.constant 0 : i32
    %c0_i32_1 = arith.constant 0 : i32
    return %c0_i32, %c0_i32_0 : i32, i32
  }
  func.func @transform_6(%arg0: i32) -> (i32, i32) {
    %c0_i32 = arith.constant 0 : i32
    %c0_i32_0 = arith.constant 0 : i32
    %c0_i32_1 = arith.constant 0 : i32
    return %c0_i32, %c0_i32_0 : i32, i32
  }
  func.func @transform_7(%arg0: i32) -> (i32, i32) {
    %c0_i32 = arith.constant 0 : i32
    %c0_i32_0 = arith.constant 0 : i32
    %c0_i32_1 = arith.constant 0 : i32
    return %c0_i32, %c0_i32_0 : i32, i32
  }
  func.func @transform_8(%arg0: i32) -> (i32, i32, i32) {
    %c0_i32 = arith.constant 0 : i32
    %c0_i32_0 = arith.constant 0 : i32
    %c0_i32_1 = arith.constant 0 : i32
    return %arg0, %c0_i32, %c0_i32_0 : i32, i32, i32
  }
}

module attributes {stable_mosaic.version = 11 : i64} {
  func.func @_fused_linear_kernel(%arg0: i32, %arg1: memref<8x512xf32, #tpu.memory_space<vmem>>, %arg2: memref<512x128xf32, #tpu.memory_space<vmem>>, %arg3: memref<1x128xf32, #tpu.memory_space<vmem>>, %arg4: memref<8x128xf32, #tpu.memory_space<vmem>>, %arg5: memref<1x128xf32, #tpu.memory_space<vmem>>, %arg6: memref<1x128xf32, #tpu.memory_space<vmem>>, %arg7: memref<8x128xf32, #tpu.memory_space<vmem>>) attributes {dimension_semantics = [#tpu.dimension_semantics<parallel>], iteration_bounds = array<i64: 2>, scalar_prefetch = 0 : i64, scratch_operands = 0 : i64, tpu.core_type = #tpu.core_type<tc>, window_params = [{transform_indices = @transform_0, window_bounds = array<i64: 8, 512>}, {pipeline_mode = #tpu.pipeline_mode<synchronous>, transform_indices = @transform_1, window_bounds = array<i64: 512, 128>}, {pipeline_mode = #tpu.pipeline_mode<synchronous>, transform_indices = @transform_2, window_bounds = array<i64: 1, 128>}, {transform_indices = @transform_3, window_bounds = array<i64: 8, 128>}, {pipeline_mode = #tpu.pipeline_mode<synchronous>, transform_indices = @transform_4, window_bounds = array<i64: 1, 128>}, {pipeline_mode = #tpu.pipeline_mode<synchronous>, transform_indices = @transform_5, window_bounds = array<i64: 1, 128>}, {transform_indices = @transform_6, window_bounds = array<i64: 8, 128>}]} {
    %c0 = arith.constant 0 : index
    %c0_0 = arith.constant 0 : index
    %0 = vector.load %arg1[%c0, %c0_0] : memref<8x512xf32, #tpu.memory_space<vmem>>, vector<8x512xf32>
    %c0_1 = arith.constant 0 : index
    %c0_2 = arith.constant 0 : index
    %1 = vector.load %arg2[%c0_1, %c0_2] : memref<512x128xf32, #tpu.memory_space<vmem>>, vector<512x128xf32>
    %cst = arith.constant dense<0.000000e+00> : vector<8x128xf32>
    %2 = tpu.matmul %0, %1, %cst {dimension_numbers = #tpu.dot_dimension_numbers<[1], [0], [0], [1], [0, 0, 1, 1], [], []>} : vector<8x512xf32>, vector<512x128xf32>, vector<8x128xf32> -> vector<8x128xf32>
    %c0_3 = arith.constant 0 : index
    %c0_4 = arith.constant 0 : index
    %3 = vector.load %arg3[%c0_3, %c0_4] : memref<1x128xf32, #tpu.memory_space<vmem>>, vector<1x128xf32>
    %4 = vector.broadcast %3 : vector<1x128xf32> to vector<8x128xf32>
    %5 = arith.addf %2, %4 : vector<8x128xf32>
    %c0_5 = arith.constant 0 : index
    %c0_6 = arith.constant 0 : index
    %6 = vector.load %arg4[%c0_5, %c0_6] : memref<8x128xf32, #tpu.memory_space<vmem>>, vector<8x128xf32>
    %cst_7 = arith.constant 5.000000e-01 : f32
    %7 = vector.broadcast %cst_7 : f32 to vector<8x128xf32>
    %8 = arith.mulf %7, %5 : vector<8x128xf32>
    %9 = arith.addf %6, %8 : vector<8x128xf32>
    %c0_8 = arith.constant 0 : index
    %c0_9 = arith.constant 0 : index
    %10 = vector.load %arg5[%c0_8, %c0_9] : memref<1x128xf32, #tpu.memory_space<vmem>>, vector<1x128xf32>
    %c0_10 = arith.constant 0 : index
    %c0_11 = arith.constant 0 : index
    %11 = vector.load %arg6[%c0_10, %c0_11] : memref<1x128xf32, #tpu.memory_space<vmem>>, vector<1x128xf32>
    %cst_12 = arith.constant dense<0.000000e+00> : vector<8xf32>
    %12 = vector.multi_reduction <add>, %9, %cst_12 [1] : vector<8x128xf32> to vector<8xf32>
    %13 = vector.shape_cast %12 : vector<8xf32> to vector<8x1xf32>
    %cst_13 = arith.constant 1.280000e+02 : f32
    %14 = vector.broadcast %cst_13 : f32 to vector<8x1xf32>
    %15 = arith.divf %13, %14 : vector<8x1xf32>
    %16 = vector.broadcast %15 : vector<8x1xf32> to vector<8x128xf32>
    %17 = arith.subf %9, %16 : vector<8x128xf32>
    %18 = arith.mulf %17, %17 : vector<8x128xf32>
    %cst_14 = arith.constant dense<0.000000e+00> : vector<8xf32>
    %19 = vector.multi_reduction <add>, %18, %cst_14 [1] : vector<8x128xf32> to vector<8xf32>
    %20 = vector.shape_cast %19 : vector<8xf32> to vector<8x1xf32>
    %cst_15 = arith.constant 1.280000e+02 : f32
    %21 = vector.broadcast %cst_15 : f32 to vector<8x1xf32>
    %22 = arith.divf %20, %21 : vector<8x1xf32>
    %23 = vector.broadcast %15 : vector<8x1xf32> to vector<8x128xf32>
    %24 = arith.subf %9, %23 : vector<8x128xf32>
    %cst_16 = arith.constant 9.99999974E-6 : f32
    %25 = vector.broadcast %cst_16 : f32 to vector<8x1xf32>
    %26 = arith.addf %22, %25 : vector<8x1xf32>
    %27 = math.rsqrt %26 : vector<8x1xf32>
    %28 = vector.broadcast %27 : vector<8x1xf32> to vector<8x128xf32>
    %29 = arith.mulf %24, %28 : vector<8x128xf32>
    %30 = vector.broadcast %10 : vector<1x128xf32> to vector<8x128xf32>
    %31 = arith.mulf %29, %30 : vector<8x128xf32>
    %32 = vector.broadcast %11 : vector<1x128xf32> to vector<8x128xf32>
    %33 = arith.addf %31, %32 : vector<8x128xf32>
    %c0_17 = arith.constant 0 : index
    %c0_18 = arith.constant 0 : index
    %34 = vector.load %arg7[%c0_17, %c0_18] : memref<8x128xf32, #tpu.memory_space<vmem>>, vector<8x128xf32>
    tpu.vector_store %arg7[%c0_17, %c0_18], %33 {strides = array<i32>} : memref<8x128xf32, #tpu.memory_space<vmem>>, vector<8x128xf32>,
    return
  }
  func.func @transform_0(%arg0: i32) -> (i32, i32) {
    %c0_i32 = arith.constant 0 : i32
    %c0_i32_0 = arith.constant 0 : i32
    return %arg0, %c0_i32 : i32, i32
  }
  func.func @transform_1(%arg0: i32) -> (i32, i32) {
    %c0_i32 = arith.constant 0 : i32
    %c0_i32_0 = arith.constant 0 : i32
    %c0_i32_1 = arith.constant 0 : i32
    return %c0_i32, %c0_i32_0 : i32, i32
  }
  func.func @transform_2(%arg0: i32) -> (i32, i32) {
    %c0_i32 = arith.constant 0 : i32
    %c0_i32_0 = arith.constant 0 : i32
    %c0_i32_1 = arith.constant 0 : i32
    return %c0_i32, %c0_i32_0 : i32, i32
  }
  func.func @transform_3(%arg0: i32) -> (i32, i32) {
    %c0_i32 = arith.constant 0 : i32
    %c0_i32_0 = arith.constant 0 : i32
    return %arg0, %c0_i32 : i32, i32
  }
  func.func @transform_4(%arg0: i32) -> (i32, i32) {
    %c0_i32 = arith.constant 0 : i32
    %c0_i32_0 = arith.constant 0 : i32
    %c0_i32_1 = arith.constant 0 : i32
    return %c0_i32, %c0_i32_0 : i32, i32
  }
  func.func @transform_5(%arg0: i32) -> (i32, i32) {
    %c0_i32 = arith.constant 0 : i32
    %c0_i32_0 = arith.constant 0 : i32
    %c0_i32_1 = arith.constant 0 : i32
    return %c0_i32, %c0_i32_0 : i32, i32
  }
  func.func @transform_6(%arg0: i32) -> (i32, i32) {
    %c0_i32 = arith.constant 0 : i32
    %c0_i32_0 = arith.constant 0 : i32
    return %arg0, %c0_i32 : i32, i32
  }
}

module attributes {stable_mosaic.version = 11 : i64} {
  func.func @_fused_linear_kernel(%arg0: i32, %arg1: memref<8x128xf32, #tpu.memory_space<vmem>>, %arg2: memref<1x128xf32, #tpu.memory_space<vmem>>, %arg3: memref<1x128xf32, #tpu.memory_space<vmem>>, %arg4: memref<128x512xf32, #tpu.memory_space<vmem>>, %arg5: memref<1x512xf32, #tpu.memory_space<vmem>>, %arg6: memref<8x512xf32, #tpu.memory_space<vmem>>) attributes {dimension_semantics = [#tpu.dimension_semantics<parallel>], iteration_bounds = array<i64: 2>, scalar_prefetch = 0 : i64, scratch_operands = 0 : i64, tpu.core_type = #tpu.core_type<tc>, window_params = [{transform_indices = @transform_0, window_bounds = array<i64: 8, 128>}, {pipeline_mode = #tpu.pipeline_mode<synchronous>, transform_indices = @transform_1, window_bounds = array<i64: 1, 128>}, {pipeline_mode = #tpu.pipeline_mode<synchronous>, transform_indices = @transform_2, window_bounds = array<i64: 1, 128>}, {pipeline_mode = #tpu.pipeline_mode<synchronous>, transform_indices = @transform_3, window_bounds = array<i64: 128, 512>}, {pipeline_mode = #tpu.pipeline_mode<synchronous>, transform_indices = @transform_4, window_bounds = array<i64: 1, 512>}, {transform_indices = @transform_5, window_bounds = array<i64: 8, 512>}]} {
    %c0 = arith.constant 0 : index
    %c0_0 = arith.constant 0 : index
    %0 = vector.load %arg1[%c0, %c0_0] : memref<8x128xf32, #tpu.memory_space<vmem>>, vector<8x128xf32>
    %c0_1 = arith.constant 0 : index
    %c0_2 = arith.constant 0 : index
    %1 = vector.load %arg2[%c0_1, %c0_2] : memref<1x128xf32, #tpu.memory_space<vmem>>, vector<1x128xf32>
    %c0_3 = arith.constant 0 : index
    %c0_4 = arith.constant 0 : index
    %2 = vector.load %arg3[%c0_3, %c0_4] : memref<1x128xf32, #tpu.memory_space<vmem>>, vector<1x128xf32>
    %cst = arith.constant dense<0.000000e+00> : vector<8xf32>
    %3 = vector.multi_reduction <add>, %0, %cst [1] : vector<8x128xf32> to vector<8xf32>
    %4 = vector.shape_cast %3 : vector<8xf32> to vector<8x1xf32>
    %cst_5 = arith.constant 1.280000e+02 : f32
    %5 = vector.broadcast %cst_5 : f32 to vector<8x1xf32>
    %6 = arith.divf %4, %5 : vector<8x1xf32>
    %7 = vector.broadcast %6 : vector<8x1xf32> to vector<8x128xf32>
    %8 = arith.subf %0, %7 : vector<8x128xf32>
    %9 = arith.mulf %8, %8 : vector<8x128xf32>
    %cst_6 = arith.constant dense<0.000000e+00> : vector<8xf32>
    %10 = vector.multi_reduction <add>, %9, %cst_6 [1] : vector<8x128xf32> to vector<8xf32>
    %11 = vector.shape_cast %10 : vector<8xf32> to vector<8x1xf32>
    %cst_7 = arith.constant 1.280000e+02 : f32
    %12 = vector.broadcast %cst_7 : f32 to vector<8x1xf32>
    %13 = arith.divf %11, %12 : vector<8x1xf32>
    %14 = vector.broadcast %6 : vector<8x1xf32> to vector<8x128xf32>
    %15 = arith.subf %0, %14 : vector<8x128xf32>
    %cst_8 = arith.constant 9.99999974E-6 : f32
    %16 = vector.broadcast %cst_8 : f32 to vector<8x1xf32>
    %17 = arith.addf %13, %16 : vector<8x1xf32>
    %18 = math.rsqrt %17 : vector<8x1xf32>
    %19 = vector.broadcast %18 : vector<8x1xf32> to vector<8x128xf32>
    %20 = arith.mulf %15, %19 : vector<8x128xf32>
    %21 = vector.broadcast %1 : vector<1x128xf32> to vector<8x128xf32>
    %22 = arith.mulf %20, %21 : vector<8x128xf32>
    %23 = vector.broadcast %2 : vector<1x128xf32> to vector<8x128xf32>
    %24 = arith.addf %22, %23 : vector<8x128xf32>
    %c0_9 = arith.constant 0 : index
    %c0_10 = arith.constant 0 : index
    %25 = vector.load %arg4[%c0_9, %c0_10] : memref<128x512xf32, #tpu.memory_space<vmem>>, vector<128x512xf32>
    %cst_11 = arith.constant dense<0.000000e+00> : vector<8x512xf32>
    %26 = tpu.matmul %24, %25, %cst_11 {dimension_numbers = #tpu.dot_dimension_numbers<[1], [0], [0], [1], [0, 0, 1, 1], [], []>} : vector<8x128xf32>, vector<128x512xf32>, vector<8x512xf32> -> vector<8x512xf32>
    %c0_12 = arith.constant 0 : index
    %c0_13 = arith.constant 0 : index
    %27 = vector.load %arg5[%c0_12, %c0_13] : memref<1x512xf32, #tpu.memory_space<vmem>>, vector<1x512xf32>
    %28 = vector.broadcast %27 : vector<1x512xf32> to vector<8x512xf32>
    %29 = arith.addf %26, %28 : vector<8x512xf32>
    %30 = arith.negf %29 : vector<8x512xf32>
    %31 = math.exp %30 : vector<8x512xf32>
    %cst_14 = arith.constant 1.000000e+00 : f32
    %32 = vector.broadcast %cst_14 : f32 to vector<8x512xf32>
    %33 = arith.addf %32, %31 : vector<8x512xf32>
    %34 = arith.divf %32, %33 : vector<8x512xf32>
    %35 = arith.mulf %29, %34 : vector<8x512xf32>
    %c0_15 = arith.constant 0 : index
    %c0_16 = arith.constant 0 : index
    %36 = vector.load %arg6[%c0_15, %c0_16] : memref<8x512xf32, #tpu.memory_space<vmem>>, vector<8x512xf32>
    tpu.vector_store %arg6[%c0_15, %c0_16], %35 {strides = array<i32>} : memref<8x512xf32, #tpu.memory_space<vmem>>, vector<8x512xf32>,
    return
  }
  func.func @transform_0(%arg0: i32) -> (i32, i32) {
    %c0_i32 = arith.constant 0 : i32
    %c0_i32_0 = arith.constant 0 : i32
    return %arg0, %c0_i32 : i32, i32
  }
  func.func @transform_1(%arg0: i32) -> (i32, i32) {
    %c0_i32 = arith.constant 0 : i32
    %c0_i32_0 = arith.constant 0 : i32
    %c0_i32_1 = arith.constant 0 : i32
    return %c0_i32, %c0_i32_0 : i32, i32
  }
  func.func @transform_2(%arg0: i32) -> (i32, i32) {
    %c0_i32 = arith.constant 0 : i32
    %c0_i32_0 = arith.constant 0 : i32
    %c0_i32_1 = arith.constant 0 : i32
    return %c0_i32, %c0_i32_0 : i32, i32
  }
  func.func @transform_3(%arg0: i32) -> (i32, i32) {
    %c0_i32 = arith.constant 0 : i32
    %c0_i32_0 = arith.constant 0 : i32
    %c0_i32_1 = arith.constant 0 : i32
    return %c0_i32, %c0_i32_0 : i32, i32
  }
  func.func @transform_4(%arg0: i32) -> (i32, i32) {
    %c0_i32 = arith.constant 0 : i32
    %c0_i32_0 = arith.constant 0 : i32
    %c0_i32_1 = arith.constant 0 : i32
    return %c0_i32, %c0_i32_0 : i32, i32
  }
  func.func @transform_5(%arg0: i32) -> (i32, i32) {
    %c0_i32 = arith.constant 0 : i32
    %c0_i32_0 = arith.constant 0 : i32
    return %arg0, %c0_i32 : i32, i32
  }
}

module attributes {stable_mosaic.version = 11 : i64} {
  func.func @_fused_linear_kernel(%arg0: i32, %arg1: memref<8x128xf32, #tpu.memory_space<vmem>>, %arg2: memref<128x10xf32, #tpu.memory_space<vmem>>, %arg3: memref<1x10xf32, #tpu.memory_space<vmem>>, %arg4: memref<8x10xf32, #tpu.memory_space<vmem>>) attributes {dimension_semantics = [#tpu.dimension_semantics<parallel>], iteration_bounds = array<i64: 2>, scalar_prefetch = 0 : i64, scratch_operands = 0 : i64, tpu.core_type = #tpu.core_type<tc>, window_params = [{transform_indices = @transform_0, window_bounds = array<i64: 8, 128>}, {pipeline_mode = #tpu.pipeline_mode<synchronous>, transform_indices = @transform_1, window_bounds = array<i64: 128, 10>}, {pipeline_mode = #tpu.pipeline_mode<synchronous>, transform_indices = @transform_2, window_bounds = array<i64: 1, 10>}, {transform_indices = @transform_3, window_bounds = array<i64: 8, 10>}]} {
    %c0 = arith.constant 0 : index
    %c0_0 = arith.constant 0 : index
    %0 = vector.load %arg1[%c0, %c0_0] : memref<8x128xf32, #tpu.memory_space<vmem>>, vector<8x128xf32>
    %c0_1 = arith.constant 0 : index
    %c0_2 = arith.constant 0 : index
    %1 = vector.load %arg2[%c0_1, %c0_2] : memref<128x10xf32, #tpu.memory_space<vmem>>, vector<128x10xf32>
    %cst = arith.constant dense<0.000000e+00> : vector<8x10xf32>
    %2 = tpu.matmul %0, %1, %cst {dimension_numbers = #tpu.dot_dimension_numbers<[1], [0], [0], [1], [0, 0, 1, 1], [], []>} : vector<8x128xf32>, vector<128x10xf32>, vector<8x10xf32> -> vector<8x10xf32>
    %c0_3 = arith.constant 0 : index
    %c0_4 = arith.constant 0 : index
    %3 = vector.load %arg3[%c0_3, %c0_4] : memref<1x10xf32, #tpu.memory_space<vmem>>, vector<1x10xf32>
    %4 = vector.broadcast %3 : vector<1x10xf32> to vector<8x10xf32>
    %5 = arith.addf %2, %4 : vector<8x10xf32>
    %c0_5 = arith.constant 0 : index
    %c0_6 = arith.constant 0 : index
    %6 = vector.load %arg4[%c0_5, %c0_6] : memref<8x10xf32, #tpu.memory_space<vmem>>, vector<8x10xf32>
    tpu.vector_store %arg4[%c0_5, %c0_6], %5 {strides = array<i32>} : memref<8x10xf32, #tpu.memory_space<vmem>>, vector<8x10xf32>,
    return
  }
  func.func @transform_0(%arg0: i32) -> (i32, i32) {
    %c0_i32 = arith.constant 0 : i32
    %c0_i32_0 = arith.constant 0 : i32
    return %arg0, %c0_i32 : i32, i32
  }
  func.func @transform_1(%arg0: i32) -> (i32, i32) {
    %c0_i32 = arith.constant 0 : i32
    %c0_i32_0 = arith.constant 0 : i32
    %c0_i32_1 = arith.constant 0 : i32
    return %c0_i32, %c0_i32_0 : i32, i32
  }
  func.func @transform_2(%arg0: i32) -> (i32, i32) {
    %c0_i32 = arith.constant 0 : i32
    %c0_i32_0 = arith.constant 0 : i32
    %c0_i32_1 = arith.constant 0 : i32
    return %c0_i32, %c0_i32_0 : i32, i32
  }
  func.func @transform_3(%arg0: i32) -> (i32, i32) {
    %c0_i32 = arith.constant 0 : i32
    %c0_i32_0 = arith.constant 0 : i32
    return %arg0, %c0_i32 : i32, i32
  }
}

</mosaic_0001>

<llo_original>
// kernel: japanese_lipnet_forward.22
$region0: #{japanese_lipnet_forward.22}
  #allocation0 [shape = 'u32[]', space=smem, size = 0x4, offset = 0x4, fixed_abs, tag = 'smem constant byte address 0x4 - core index']
  #allocation1 [shape = 'u32[144,128]{1,0:T(1,128)}', space=vmem, size = 0x12000, scoped, tag = 'internal scratch']
  %s0 = inlined_call_operand.vmem [shape: f32[1024,9], index: 0, kind: input, shape index: {}]
  %s1 = inlined_call_operand.vmem [shape: f32[9,64], index: 1, kind: input, shape index: {}]
  %s2 = inlined_call_operand.vmem [shape: f32[1,64], index: 2, kind: input, shape index: {}]
  %s3 = inlined_call_operand.vmem [shape: f32[1024,64], index: 3, kind: output, shape index: {}]
  %s4 = sld [smem:[#allocation0]]
  $region45: #{japanese_lipnet_forward.22} parent=0
    _
  %s6 = ssub.s32 1, %s4
  %s7 = scalar_select 0, %s6, %s4
  loop: start=0, step=1, limit=6
  $region2: #{japanese_lipnet_forward.22} parent=0 // loop_pre_header
    _
  $region3: #{japanese_lipnet_forward.22} parent=0 // loop_header
    %s9 = sphi 0, %s13
    %p10 = scmp.ge.s32.totalorder %s9, 6
    %s19 = sphi 0, %s21
    %s22 = sphi 0, %s19
    %s23 = sphi 0, %s22
    %s39 = sphi 0, %s23
    %s43 = sphi 0, %s43
    %s45 = sphi 0, %s43
    %s46 = sphi 0, %s45
    %s60 = sphi 0, %s46
    %s64 = sphi 0, %s64
    %s66 = sphi 0, %s64
    %s67 = sphi 0, %s66
    %s81 = sphi 0, %s67
    %s87 = sphi 0, %s89
    %s90 = sphi 0, %s87
    %s91 = sphi 0, %s90
    %s107 = sphi 0, %s91
  $region4: #{japanese_lipnet_forward.22} parent=0 // loop_header_branch
    %12 = sbr.rel (%p10) target = $region8
  $region5: #{japanese_lipnet_forward.22} parent=0 // loop_body
    %s14 = ssub.s32 %s9, 1
    %s15 = ssub.s32 %s9, 2
    %s16 = sadd.s32 %s9, 1
    %s17 = ssub.s32 %s9, %s16
    %p18 = scmp.eq.s32.totalorder %s17, 0
    %s20 = sadd.s32 %s19, 1
    %s21 = scalar_select %p18, %s19, %s20
    %p24 = pneg %p18
    %p25 = scmp.eq.s32.totalorder %s9, 3
    %p26 = por %p24, %p25
    %p27 = scmp.ne.s32.totalorder %s19, %s22
    %p28 = scmp.eq.s32.totalorder %s9, 0
    %p29 = por %p27, %p28
    %p30 = scmp.ne.s32.totalorder %s19, %s22
    %p31 = scmp.eq.s32.totalorder %s14, 3
    %p32 = por %p30, %p31
    %p33 = scmp.ne.s32.totalorder %s22, %s23
    %p34 = scmp.eq.s32.totalorder %s14, 0
    %p35 = por %p33, %p34
    %p36 = scmp.ne.s32.totalorder %s22, %s23
    %p37 = scmp.eq.s32.totalorder %s15, 3
    %p38 = por %p36, %p37
    %p40 = scmp.ne.s32.totalorder %s23, %s39
    %p41 = scmp.eq.s32.totalorder %s15, 0
    %p42 = por %p40, %p41
    %s44 = sadd.s32 %s43, 1
    %p47 = scmp.eq.s32.totalorder %s9, 3
    %p48 = scmp.ne.s32.totalorder %s43, %s45
    %p49 = scmp.eq.s32.totalorder %s9, 0
    %p50 = por %p48, %p49
    %p51 = scmp.ne.s32.totalorder %s43, %s45
    %p52 = scmp.eq.s32.totalorder %s14, 3
    %p53 = por %p51, %p52
    %p54 = scmp.ne.s32.totalorder %s45, %s46
    %p55 = scmp.eq.s32.totalorder %s14, 0
    %p56 = por %p54, %p55
    %p57 = scmp.ne.s32.totalorder %s45, %s46
    %p58 = scmp.eq.s32.totalorder %s15, 3
    %p59 = por %p57, %p58
    %p61 = scmp.ne.s32.totalorder %s46, %s60
    %p62 = scmp.eq.s32.totalorder %s15, 0
    %p63 = por %p61, %p62
    %s65 = sadd.s32 %s64, 1
    %p68 = scmp.eq.s32.totalorder %s9, 3
    %p69 = scmp.ne.s32.totalorder %s64, %s66
    %p70 = scmp.eq.s32.totalorder %s9, 0
    %p71 = por %p69, %p70
    %p72 = scmp.ne.s32.totalorder %s64, %s66
    %p73 = scmp.eq.s32.totalorder %s14, 3
    %p74 = por %p72, %p73
    %p75 = scmp.ne.s32.totalorder %s66, %s67
    %p76 = scmp.eq.s32.totalorder %s14, 0
    %p77 = por %p75, %p76
    %p78 = scmp.ne.s32.totalorder %s66, %s67
    %p79 = scmp.eq.s32.totalorder %s15, 3
    %p80 = por %p78, %p79
    %p82 = scmp.ne.s32.totalorder %s67, %s81
    %p83 = scmp.eq.s32.totalorder %s15, 0
    %p84 = por %p82, %p83
    %s85 = ssub.s32 %s9, %s16
    %p86 = scmp.eq.s32.totalorder %s85, 0
    %s88 = sadd.s32 %s87, 1
    %s89 = scalar_select %p86, %s87, %s88
    %p92 = pneg %p86
    %p93 = scmp.eq.s32.totalorder %s9, 3
    %p94 = por %p92, %p93
    %p95 = scmp.ne.s32.totalorder %s87, %s90
    %p96 = scmp.eq.s32.totalorder %s9, 0
    %p97 = por %p95, %p96
    %p98 = scmp.ne.s32.totalorder %s87, %s90
    %p99 = scmp.eq.s32.totalorder %s14, 3
    %p100 = por %p98, %p99
    %p101 = scmp.ne.s32.totalorder %s90, %s91
    %p102 = scmp.eq.s32.totalorder %s14, 0
    %p103 = por %p101, %p102
    %p104 = scmp.ne.s32.totalorder %s90, %s91
    %p105 = scmp.eq.s32.totalorder %s15, 3
    %p106 = por %p104, %p105
    %p108 = scmp.ne.s32.totalorder %s91, %s107
    %p109 = scmp.eq.s32.totalorder %s15, 0
    %p110 = por %p108, %p109
    %p111 = scmp.le.s32.totalorder 1, %s9
    %p112 = scmp.lt.s32.totalorder %s9, 5
    %p113 = pnand %p111, %p112
    %p114 = pneg %p113
    // Predicated region
    $region9: #{japanese_lipnet_forward.22} parent=5 // pred_check
      _
    $region10: #{japanese_lipnet_forward.22} parent=5 // pred_check_branch
      %116 = sbr.rel (%p113) target = $region12
    $region11: #{japanese_lipnet_forward.22} parent=5 // pred_region
      %s117 = ssub.s32 %s9, 1
      // Predicated region
      $region13: #{japanese_lipnet_forward.22} parent=11 // pred_check
        %p118 = pneg %p56
      $region14: #{japanese_lipnet_forward.22} parent=11 // pred_check_branch
        %120 = sbr.rel (%p118) target = $region16
      $region15: #{japanese_lipnet_forward.22} parent=11 // pred_region
        _
      $region16: #{japanese_lipnet_forward.22} parent=11 // pred_fallthru
        _
      // Predicated region
      $region17: #{japanese_lipnet_forward.22} parent=11 // pred_check
        %p121 = pneg %p77
      $region18: #{japanese_lipnet_forward.22} parent=11 // pred_check_branch
        %123 = sbr.rel (%p121) target = $region20
      $region19: #{japanese_lipnet_forward.22} parent=11 // pred_region
        _
      $region20: #{japanese_lipnet_forward.22} parent=11 // pred_fallthru
        _
    $region12: #{japanese_lipnet_forward.22} parent=5 // pred_fallthru
      _
    %p124 = scmp.lt.s32.totalorder %s9, 4
    // Predicated region
    $region21: #{japanese_lipnet_forward.22} parent=5 // pred_check
      %p125 = pneg %p124
    $region22: #{japanese_lipnet_forward.22} parent=5 // pred_check_branch
      %127 = sbr.rel (%p125) target = $region24
    $region23: #{japanese_lipnet_forward.22} parent=5 // pred_region
      // Predicated region
      $region25: #{japanese_lipnet_forward.22} parent=23 // pred_check
        %p128 = pneg %p29
      $region26: #{japanese_lipnet_forward.22} parent=23 // pred_check_branch
        %130 = sbr.rel (%p128) target = $region28
      $region27: #{japanese_lipnet_forward.22} parent=23 // pred_region
        %s131 = smul.u32 32, %s9
        %p132 = scmp.lt.s32.totalorder %s131, 127
        %s133 = scalar_select %p132, %s131, 127
        %s134 = smul.addr %s133, 8
        %s135 = scalar_lea.vmem %s0, %s134
        %s136 = smul.u32 32, %s9
      $region28: #{japanese_lipnet_forward.22} parent=23 // pred_fallthru
        _
    $region24: #{japanese_lipnet_forward.22} parent=5 // pred_fallthru
      _
    %p137 = scmp.le.s32.totalorder 1, %s9
    %p138 = scmp.lt.s32.totalorder %s9, 5
    %p139 = pnand %p137, %p138
    %p140 = pneg %p139
    // Predicated region
    $region29: #{japanese_lipnet_forward.22} parent=5 // pred_check
      _
    $region30: #{japanese_lipnet_forward.22} parent=5 // pred_check_branch
      %142 = sbr.rel (%p139) target = $region32
    $region31: #{japanese_lipnet_forward.22} parent=5 // pred_region
      %s143 = ssub.s32 %s9, 1
      %s144 = smul.u32 32, %s14
      %p145 = scmp.lt.s32.totalorder %s144, 127
      %s146 = scalar_select %p145, %s144, 127
      %s147 = smul.addr %s146, 8
      %s148 = scalar_lea.vmem %s0, %s147
      %p149 = pneg %p35
      %p150 = pneg %p32
      %p151 = pneg %p56
      %p152 = pneg %p53
      %p153 = pneg %p77
      %p154 = pneg %p74
      %p155 = pneg %p103
      %p156 = pneg %p100
      %s157 = smul.u32 32, %s14
      %p158 = scmp.lt.s32.totalorder %s157, 127
      %s159 = scalar_select %p158, %s157, 127
      %s160 = smul.addr %s159, 8
      %s161 = scalar_lea.vmem %s3, %s160
      %s162 = smul.u32 32, %s14
      %p163 = scmp.lt.s32.totalorder %s162, 127
      %s164 = scalar_select %p163, %s162, 127
      %s165 = smul.addr %s164, 8
      %s166 = scalar_lea.vmem %s0, %s165
      %s167 = smul.u32 32, %s14
      %s168 = smul.u32 32, %s14
      %p169 = scmp.lt.s32.totalorder %s168, 127
      %s170 = scalar_select %p169, %s168, 127
      %s171 = smul.addr %s170, 8
      %s172 = scalar_lea.vmem %s3, %s171
      %s173 = smul.u32 32, %s14
      %v174 = vld [vmem:[%s166] sm:$0xff]
      %v175 = vld [vmem:[%s166 + $0x8] sm:$0xff]
      %v176 = vld [vmem:[%s166 + $0x10] sm:$0xff]
      %v177 = vld [vmem:[%s166 + $0x18] sm:$0xff]
      %v178 = vld [vmem:[%s166 + $0x20] sm:$0xff]
      %v179 = vld [vmem:[%s166 + $0x28] sm:$0xff]
      %v180 = vld [vmem:[%s166 + $0x30] sm:$0xff]
      %v181 = vld [vmem:[%s166 + $0x38] sm:$0xff]
      %v182 = vld [vmem:[%s166 + $0x40] sm:$0xff]
      %v183 = vld [vmem:[%s166 + $0x48] sm:$0xff]
      %v184 = vld [vmem:[%s166 + $0x50] sm:$0xff]
      %v185 = vld [vmem:[%s166 + $0x58] sm:$0xff]
      %v186 = vld [vmem:[%s166 + $0x60] sm:$0xff]
      %v187 = vld [vmem:[%s166 + $0x68] sm:$0xff]
      %v188 = vld [vmem:[%s166 + $0x70] sm:$0xff]
      %v189 = vld [vmem:[%s166 + $0x78] sm:$0xff]
      %v190 = vld [vmem:[%s166 + $0x80] sm:$0xff]
      %v191 = vld [vmem:[%s166 + $0x88] sm:$0xff]
      %v192 = vld [vmem:[%s166 + $0x90] sm:$0xff]
      %v193 = vld [vmem:[%s166 + $0x98] sm:$0xff]
      %v194 = vld [vmem:[%s166 + $0xa0] sm:$0xff]
      %v195 = vld [vmem:[%s166 + $0xa8] sm:$0xff]
      %v196 = vld [vmem:[%s166 + $0xb0] sm:$0xff]
      %v197 = vld [vmem:[%s166 + $0xb8] sm:$0xff]
      %v198 = vld [vmem:[%s166 + $0xc0] sm:$0xff]
      %v199 = vld [vmem:[%s166 + $0xc8] sm:$0xff]
      %v200 = vld [vmem:[%s166 + $0xd0] sm:$0xff]
      %v201 = vld [vmem:[%s166 + $0xd8] sm:$0xff]
      %v202 = vld [vmem:[%s166 + $0xe0] sm:$0xff]
      %v203 = vld [vmem:[%s166 + $0xe8] sm:$0xff]
      %v204 = vld [vmem:[%s166 + $0xf0] sm:$0xff]
      %v205 = vld [vmem:[%s166 + $0xf8] sm:$0xff]
      %v206 = vld [vmem:[%s1] sm:$0xff]
      %v207 = vld [vmem:[%s1 + $0x8] sm:$0x1]
      %v208 = vld [vmem:[%s2] sm:$0x1]
      %v210 = vlaneseq
      %v211 = vshrl.u32 %v210, 7
      %v212 = vsub.s32 0, %v211
      %v213 = vrot.slane %v208, %v212
      %vm215 = vcmask 72704
      %v217 = vsel %vm215, %v174, 0
      %v220 = vsel %vm215, %v175, 0
      %v223 = vsel %vm215, %v176, 0
      %v226 = vsel %vm215, %v177, 0
      %v229 = vsel %vm215, %v178, 0
      %v232 = vsel %vm215, %v179, 0
      %v235 = vsel %vm215, %v180, 0
      %v238 = vsel %vm215, %v181, 0
      %v241 = vsel %vm215, %v182, 0
      %v244 = vsel %vm215, %v183, 0
      %v247 = vsel %vm215, %v184, 0
      %v250 = vsel %vm215, %v185, 0
      %v253 = vsel %vm215, %v186, 0
      %v256 = vsel %vm215, %v187, 0
      %v259 = vsel %vm215, %v188, 0
      %v262 = vsel %vm215, %v189, 0
      %v265 = vsel %vm215, %v190, 0
      %v268 = vsel %vm215, %v191, 0
      %v271 = vsel %vm215, %v192, 0
      %v274 = vsel %vm215, %v193, 0
      %v277 = vsel %vm215, %v194, 0
      %v280 = vsel %vm215, %v195, 0
      %v283 = vsel %vm215, %v196, 0
      %v286 = vsel %vm215, %v197, 0
      %v289 = vsel %vm215, %v198, 0
      %v292 = vsel %vm215, %v199, 0
      %v295 = vsel %vm215, %v200, 0
      %v298 = vsel %vm215, %v201, 0
      %v301 = vsel %vm215, %v202, 0
      %v304 = vsel %vm215, %v203, 0
      %v307 = vsel %vm215, %v204, 0
      %v310 = vsel %vm215, %v205, 0
      %vm312 = vcmask 1040384
      %v314 = vsel %vm312, %v207, 0
      %316 = vmatprep.subr.mxu0 0.0
      %317 = vmatpush1.msra.mxu0 0.0
      %318 = vmatprep.subr.mxu0 0.0
      %319 = vmatpush1.msra.mxu0 0.0
      %320 = vmatprep.subr.mxu0 0.0
      %321 = vmatpush1.msra.mxu0 0.0
      %322 = vmatprep.subr.mxu0 0.0
      %323 = vmatpush1.msra.mxu0 0.0
      %324 = vmatprep.subr.mxu0 0.0
      %325 = vmatpush1.msra.mxu0 0.0
      %326 = vmatprep.subr.mxu0 0.0
      %327 = vmatpush1.msra.mxu0 0.0
      %328 = vmatprep.subr.mxu0 0.0
      %329 = vmatpush1.msra.mxu0 0.0
      %330 = vmatprep.subr.mxu0 0.0
      %331 = vmatpush1.msra.mxu0 0.0
      %332 = vmatprep.subr.mxu0 0.0
      %333 = vmatpush1.msra.mxu0 0.0
      %334 = vmatprep.subr.mxu0 0.0
      %335 = vmatpush1.msra.mxu0 0.0
      %336 = vmatprep.subr.mxu0 0.0
      %337 = vmatpush1.msra.mxu0 0.0
      %338 = vmatprep.subr.mxu0 0.0
      %339 = vmatpush1.msra.mxu0 0.0
      %340 = vmatprep.subr.mxu0 0.0
      %341 = vmatpush1.msra.mxu0 0.0
      %342 = vmatprep.subr.mxu0 0.0
      %343 = vmatpush1.msra.mxu0 0.0
      %344 = vmatprep.subr.mxu0 0.0
      %345 = vmatpush1.msra.mxu0 %v314
      %346 = vmatprep.subr.mxu0 0.0
      %347 = vmatpush1.msra.mxu0 %v206
      %348 = vmatprep.subr.mxu0 0.0
      %349 = vmatpush2.msra.mxu0 0.0
      %350 = vmatprep.subr.mxu0 0.0
      %351 = vmatpush2.msra.mxu0 0.0
      %352 = vmatprep.subr.mxu0 0.0
      %353 = vmatpush2.msra.mxu0 0.0
      %354 = vmatprep.subr.mxu0 0.0
      %355 = vmatpush2.msra.mxu0 0.0
      %356 = vmatprep.subr.mxu0 0.0
      %357 = vmatpush2.msra.mxu0 0.0
      %358 = vmatprep.subr.mxu0 0.0
      %359 = vmatpush2.msra.mxu0 0.0
      %360 = vmatprep.subr.mxu0 0.0
      %361 = vmatpush2.msra.mxu0 0.0
      %362 = vmatprep.subr.mxu0 0.0
      %363 = vmatpush2.msra.mxu0 0.0
      %364 = vmatprep.subr.mxu0 0.0
      %365 = vmatpush2.msra.mxu0 0.0
      %366 = vmatprep.subr.mxu0 0.0
      %367 = vmatpush2.msra.mxu0 0.0
      %368 = vmatprep.subr.mxu0 0.0
      %369 = vmatpush2.msra.mxu0 0.0
      %370 = vmatprep.subr.mxu0 0.0
      %371 = vmatpush2.msra.mxu0 0.0
      %372 = vmatprep.subr.mxu0 0.0
      %373 = vmatpush2.msra.mxu0 0.0
      %374 = vmatprep.subr.mxu0 0.0
      %375 = vmatpush2.msra.mxu0 0.0
      %376 = vmatprep.subr.mxu0 0.0
      %377 = vmatpush2.msra.mxu0 0.0
      %378 = vmatprep.subr.mxu0 0.0
      %379 = vmatpush2.msra.mxu0 0.0
      %380 = vmatprep.mubr.f32.mxu0 0.0
      %381 = vmatmul.mubr.f32.gmra.mxu0 %v217
      %v382 = vpop.f32.mrf.mxu0
      %v383 = vadd.f32 %v213, %v382
      %v384 = vpop.f32.mrf.mxu0
      %385 = vmatprep.mubr.f32.mxu0 0.0
      %386 = vmatmul.mubr.f32.gmra.mxu0 %v220
      %v387 = vpop.f32.mrf.mxu0
      %v388 = vadd.f32 %v213, %v387
      %v389 = vpop.f32.mrf.mxu0
      %390 = vmatprep.mubr.f32.mxu0 0.0
      %391 = vmatmul.mubr.f32.gmra.mxu0 %v223
      %v392 = vpop.f32.mrf.mxu0
      %v393 = vadd.f32 %v213, %v392
      %v394 = vpop.f32.mrf.mxu0
      %395 = vmatprep.mubr.f32.mxu0 0.0
      %396 = vmatmul.mubr.f32.gmra.mxu0 %v226
      %v397 = vpop.f32.mrf.mxu0
      %v398 = vadd.f32 %v213, %v397
      %v399 = vpop.f32.mrf.mxu0
      %400 = vmatprep.mubr.f32.mxu0 0.0
      %401 = vmatmul.mubr.f32.gmra.mxu0 %v229
      %v402 = vpop.f32.mrf.mxu0
      %v403 = vadd.f32 %v213, %v402
      %v404 = vpop.f32.mrf.mxu0
      %405 = vmatprep.mubr.f32.mxu0 0.0
      %406 = vmatmul.mubr.f32.gmra.mxu0 %v232
      %v407 = vpop.f32.mrf.mxu0
      %v408 = vadd.f32 %v213, %v407
      %v409 = vpop.f32.mrf.mxu0
      %410 = vmatprep.mubr.f32.mxu0 0.0
      %411 = vmatmul.mubr.f32.gmra.mxu0 %v235
      %v412 = vpop.f32.mrf.mxu0
      %v413 = vadd.f32 %v213, %v412
      %v414 = vpop.f32.mrf.mxu0
      %415 = vmatprep.mubr.f32.mxu0 0.0
      %416 = vmatmul.mubr.f32.gmra.mxu0 %v238
      %v417 = vpop.f32.mrf.mxu0
      %v418 = vadd.f32 %v213, %v417
      %v419 = vpop.f32.mrf.mxu0
      %420 = vmatprep.mubr.f32.mxu0 0.0
      %421 = vmatmul.mubr.f32.gmra.mxu0 %v241
      %v422 = vpop.f32.mrf.mxu0
      %v423 = vadd.f32 %v213, %v422
      %v424 = vpop.f32.mrf.mxu0
      %425 = vmatprep.mubr.f32.mxu0 0.0
      %426 = vmatmul.mubr.f32.gmra.mxu0 %v244
      %v427 = vpop.f32.mrf.mxu0
      %v428 = vadd.f32 %v213, %v427
      %v429 = vpop.f32.mrf.mxu0
      %430 = vmatprep.mubr.f32.mxu0 0.0
      %431 = vmatmul.mubr.f32.gmra.mxu0 %v247
      %v432 = vpop.f32.mrf.mxu0
      %v433 = vadd.f32 %v213, %v432
      %v434 = vpop.f32.mrf.mxu0
      %435 = vmatprep.mubr.f32.mxu0 0.0
      %436 = vmatmul.mubr.f32.gmra.mxu0 %v250
      %v437 = vpop.f32.mrf.mxu0
      %v438 = vadd.f32 %v213, %v437
      %v439 = vpop.f32.mrf.mxu0
      %440 = vmatprep.mubr.f32.mxu0 0.0
      %441 = vmatmul.mubr.f32.gmra.mxu0 %v253
      %v442 = vpop.f32.mrf.mxu0
      %v443 = vadd.f32 %v213, %v442
      %v444 = vpop.f32.mrf.mxu0
      %445 = vmatprep.mubr.f32.mxu0 0.0
      %446 = vmatmul.mubr.f32.gmra.mxu0 %v256
      %v447 = vpop.f32.mrf.mxu0
      %v448 = vadd.f32 %v213, %v447
      %v449 = vpop.f32.mrf.mxu0
      %450 = vmatprep.mubr.f32.mxu0 0.0
      %451 = vmatmul.mubr.f32.gmra.mxu0 %v259
      %v452 = vpop.f32.mrf.mxu0
      %v453 = vadd.f32 %v213, %v452
      %v454 = vpop.f32.mrf.mxu0
      %455 = vmatprep.mubr.f32.mxu0 0.0
      %456 = vmatmul.mubr.f32.gmra.mxu0 %v262
      %v457 = vpop.f32.mrf.mxu0
      %v458 = vadd.f32 %v213, %v457
      %v459 = vpop.f32.mrf.mxu0
      %460 = vmatprep.mubr.f32.mxu0 0.0
      %461 = vmatmul.mubr.f32.gmra.mxu0 %v265
      %v462 = vpop.f32.mrf.mxu0
      %v463 = vadd.f32 %v213, %v462
      %v464 = vpop.f32.mrf.mxu0
      %465 = vmatprep.mubr.f32.mxu0 0.0
      %466 = vmatmul.mubr.f32.gmra.mxu0 %v268
      %v467 = vpop.f32.mrf.mxu0
      %v468 = vadd.f32 %v213, %v467
      %v469 = vpop.f32.mrf.mxu0
      %470 = vmatprep.mubr.f32.mxu0 0.0
      %471 = vmatmul.mubr.f32.gmra.mxu0 %v271
      %v472 = vpop.f32.mrf.mxu0
      %v473 = vadd.f32 %v213, %v472
      %v474 = vpop.f32.mrf.mxu0
      %475 = vmatprep.mubr.f32.mxu0 0.0
      %476 = vmatmul.mubr.f32.gmra.mxu0 %v274
      %v477 = vpop.f32.mrf.mxu0
      %v478 = vadd.f32 %v213, %v477
      %v479 = vpop.f32.mrf.mxu0
      %480 = vmatprep.mubr.f32.mxu0 0.0
      %481 = vmatmul.mubr.f32.gmra.mxu0 %v277
      %v482 = vpop.f32.mrf.mxu0
      %v483 = vadd.f32 %v213, %v482
      %v484 = vpop.f32.mrf.mxu0
      %485 = vmatprep.mubr.f32.mxu0 0.0
      %486 = vmatmul.mubr.f32.gmra.mxu0 %v280
      %v487 = vpop.f32.mrf.mxu0
      %v488 = vadd.f32 %v213, %v487
      %v489 = vpop.f32.mrf.mxu0
      %490 = vmatprep.mubr.f32.mxu0 0.0
      %491 = vmatmul.mubr.f32.gmra.mxu0 %v283
      %v492 = vpop.f32.mrf.mxu0
      %v493 = vadd.f32 %v213, %v492
      %v494 = vpop.f32.mrf.mxu0
      %495 = vmatprep.mubr.f32.mxu0 0.0
      %496 = vmatmul.mubr.f32.gmra.mxu0 %v286
      %v497 = vpop.f32.mrf.mxu0
      %v498 = vadd.f32 %v213, %v497
      %v499 = vpop.f32.mrf.mxu0
      %500 = vmatprep.mubr.f32.mxu0 0.0
      %501 = vmatmul.mubr.f32.gmra.mxu0 %v289
      %v502 = vpop.f32.mrf.mxu0
      %v503 = vadd.f32 %v213, %v502
      %v504 = vpop.f32.mrf.mxu0
      %505 = vmatprep.mubr.f32.mxu0 0.0
      %506 = vmatmul.mubr.f32.gmra.mxu0 %v292
      %v507 = vpop.f32.mrf.mxu0
      %v508 = vadd.f32 %v213, %v507
      %v509 = vpop.f32.mrf.mxu0
      %510 = vmatprep.mubr.f32.mxu0 0.0
      %511 = vmatmul.mubr.f32.gmra.mxu0 %v295
      %v512 = vpop.f32.mrf.mxu0
      %v513 = vadd.f32 %v213, %v512
      %v514 = vpop.f32.mrf.mxu0
      %515 = vmatprep.mubr.f32.mxu0 0.0
      %516 = vmatmul.mubr.f32.gmra.mxu0 %v298
      %v517 = vpop.f32.mrf.mxu0
      %v518 = vadd.f32 %v213, %v517
      %v519 = vpop.f32.mrf.mxu0
      %520 = vmatprep.mubr.f32.mxu0 0.0
      %521 = vmatmul.mubr.f32.gmra.mxu0 %v301
      %v522 = vpop.f32.mrf.mxu0
      %v523 = vadd.f32 %v213, %v522
      %v524 = vpop.f32.mrf.mxu0
      %525 = vmatprep.mubr.f32.mxu0 0.0
      %526 = vmatmul.mubr.f32.gmra.mxu0 %v304
      %v527 = vpop.f32.mrf.mxu0
      %v528 = vadd.f32 %v213, %v527
      %v529 = vpop.f32.mrf.mxu0
      %530 = vmatprep.mubr.f32.mxu0 0.0
      %531 = vmatmul.mubr.f32.gmra.mxu0 %v307
      %v532 = vpop.f32.mrf.mxu0
      %v533 = vadd.f32 %v213, %v532
      %v534 = vpop.f32.mrf.mxu0
      %535 = vmatprep.mubr.f32.mxu0 0.0
      %536 = vmatmul.mubr.f32.gmra.mxu0 %v310
      %v537 = vpop.f32.mrf.mxu0
      %v538 = vadd.f32 %v213, %v537
      %v539 = vpop.f32.mrf.mxu0
      %540 = vdwg.mxu0
      %v541 = vmax.f32 %v383, 0.0
      %v542 = vmax.f32 %v388, 0.0
      %v543 = vmax.f32 %v393, 0.0
      %v544 = vmax.f32 %v398, 0.0
      %v545 = vmax.f32 %v403, 0.0
      %v546 = vmax.f32 %v408, 0.0
      %v547 = vmax.f32 %v413, 0.0
      %v548 = vmax.f32 %v418, 0.0
      %v549 = vmax.f32 %v423, 0.0
      %v550 = vmax.f32 %v428, 0.0
      %v551 = vmax.f32 %v433, 0.0
      %v552 = vmax.f32 %v438, 0.0
      %v553 = vmax.f32 %v443, 0.0
      %v554 = vmax.f32 %v448, 0.0
      %v555 = vmax.f32 %v453, 0.0
      %v556 = vmax.f32 %v458, 0.0
      %v557 = vmax.f32 %v463, 0.0
      %v558 = vmax.f32 %v468, 0.0
      %v559 = vmax.f32 %v473, 0.0
      %v560 = vmax.f32 %v478, 0.0
      %v561 = vmax.f32 %v483, 0.0
      %v562 = vmax.f32 %v488, 0.0
      %v563 = vmax.f32 %v493, 0.0
      %v564 = vmax.f32 %v498, 0.0
      %v565 = vmax.f32 %v503, 0.0
      %v566 = vmax.f32 %v508, 0.0
      %v567 = vmax.f32 %v513, 0.0
      %v568 = vmax.f32 %v518, 0.0
      %v569 = vmax.f32 %v523, 0.0
      %v570 = vmax.f32 %v528, 0.0
      %v571 = vmax.f32 %v533, 0.0
      %v572 = vmax.f32 %v538, 0.0
      %vm573 = vcmask 523264
      %574 = vst.msk [vmem:[%s172] sm:$0xff] %vm573, %v541
      %575 = vst.msk [vmem:[%s172 + $0x8] sm:$0xff] %vm573, %v542
      %576 = vst.msk [vmem:[%s172 + $0x10] sm:$0xff] %vm573, %v543
      %577 = vst.msk [vmem:[%s172 + $0x18] sm:$0xff] %vm573, %v544
      %578 = vst.msk [vmem:[%s172 + $0x20] sm:$0xff] %vm573, %v545
      %579 = vst.msk [vmem:[%s172 + $0x28] sm:$0xff] %vm573, %v546
      %580 = vst.msk [vmem:[%s172 + $0x30] sm:$0xff] %vm573, %v547
      %581 = vst.msk [vmem:[%s172 + $0x38] sm:$0xff] %vm573, %v548
      %582 = vst.msk [vmem:[%s172 + $0x40] sm:$0xff] %vm573, %v549
      %583 = vst.msk [vmem:[%s172 + $0x48] sm:$0xff] %vm573, %v550
      %584 = vst.msk [vmem:[%s172 + $0x50] sm:$0xff] %vm573, %v551
      %585 = vst.msk [vmem:[%s172 + $0x58] sm:$0xff] %vm573, %v552
      %586 = vst.msk [vmem:[%s172 + $0x60] sm:$0xff] %vm573, %v553
      %587 = vst.msk [vmem:[%s172 + $0x68] sm:$0xff] %vm573, %v554
      %588 = vst.msk [vmem:[%s172 + $0x70] sm:$0xff] %vm573, %v555
      %589 = vst.msk [vmem:[%s172 + $0x78] sm:$0xff] %vm573, %v556
      %590 = vst.msk [vmem:[%s172 + $0x80] sm:$0xff] %vm573, %v557
      %591 = vst.msk [vmem:[%s172 + $0x88] sm:$0xff] %vm573, %v558
      %592 = vst.msk [vmem:[%s172 + $0x90] sm:$0xff] %vm573, %v559
      %593 = vst.msk [vmem:[%s172 + $0x98] sm:$0xff] %vm573, %v560
      %594 = vst.msk [vmem:[%s172 + $0xa0] sm:$0xff] %vm573, %v561
      %595 = vst.msk [vmem:[%s172 + $0xa8] sm:$0xff] %vm573, %v562
      %596 = vst.msk [vmem:[%s172 + $0xb0] sm:$0xff] %vm573, %v563
      %597 = vst.msk [vmem:[%s172 + $0xb8] sm:$0xff] %vm573, %v564
      %598 = vst.msk [vmem:[%s172 + $0xc0] sm:$0xff] %vm573, %v565
      %599 = vst.msk [vmem:[%s172 + $0xc8] sm:$0xff] %vm573, %v566
      %600 = vst.msk [vmem:[%s172 + $0xd0] sm:$0xff] %vm573, %v567
      %601 = vst.msk [vmem:[%s172 + $0xd8] sm:$0xff] %vm573, %v568
      %602 = vst.msk [vmem:[%s172 + $0xe0] sm:$0xff] %vm573, %v569
      %603 = vst.msk [vmem:[%s172 + $0xe8] sm:$0xff] %vm573, %v570
      %604 = vst.msk [vmem:[%s172 + $0xf0] sm:$0xff] %vm573, %v571
      %605 = vst.msk [vmem:[%s172 + $0xf8] sm:$0xff] %vm573, %v572
      %s606 = smul.u32 32, %s14
      %p607 = scmp.lt.s32.totalorder %s606, 127
      %s608 = scalar_select %p607, %s606, 127
      %s609 = smul.addr %s608, 8
      %s610 = scalar_lea.vmem %s3, %s609
      // Predicated region
      $region33: #{japanese_lipnet_forward.22} parent=31 // pred_check
        %p611 = pneg %p100
      $region34: #{japanese_lipnet_forward.22} parent=31 // pred_check_branch
        %613 = sbr.rel (%p611) target = $region36
      $region35: #{japanese_lipnet_forward.22} parent=31 // pred_region
        %s614 = smul.u32 32, %s14
      $region36: #{japanese_lipnet_forward.22} parent=31 // pred_fallthru
        _
    $region32: #{japanese_lipnet_forward.22} parent=5 // pred_fallthru
      _
    %p615 = scmp.le.s32.totalorder 2, %s9
    // Predicated region
    $region37: #{japanese_lipnet_forward.22} parent=5 // pred_check
      %p616 = pneg %p615
    $region38: #{japanese_lipnet_forward.22} parent=5 // pred_check_branch
      %618 = sbr.rel (%p616) target = $region40
    $region39: #{japanese_lipnet_forward.22} parent=5 // pred_region
      %s619 = ssub.s32 %s9, 2
      // Predicated region
      $region41: #{japanese_lipnet_forward.22} parent=39 // pred_check
        %p620 = pneg %p106
      $region42: #{japanese_lipnet_forward.22} parent=39 // pred_check_branch
        %622 = sbr.rel (%p620) target = $region44
      $region43: #{japanese_lipnet_forward.22} parent=39 // pred_region
        %s623 = smul.u32 32, %s15
        %p624 = scmp.lt.s32.totalorder %s623, 127
        %s625 = scalar_select %p624, %s623, 127
        %s626 = smul.addr %s625, 8
        %s627 = scalar_lea.vmem %s3, %s626
      $region44: #{japanese_lipnet_forward.22} parent=39 // pred_fallthru
        _
    $region40: #{japanese_lipnet_forward.22} parent=5 // pred_fallthru
      _
  $region6: #{japanese_lipnet_forward.22} parent=0 // loop_footer
    %s13 = sadd.s32 1, %s9
  $region7: #{japanese_lipnet_forward.22} parent=0 // loop_footer_branch
    %8 = sbr.rel target = $region3
  $region8: #{japanese_lipnet_forward.22} parent=0 // loop_exit
    _

// kernel: japanese_lipnet_forward.23
$region0: #{japanese_lipnet_forward.23}
  #allocation0 [shape = 'u32[]', space=smem, size = 0x4, offset = 0x4, fixed_abs, tag = 'smem constant byte address 0x4 - core index']
  #allocation1 [shape = 'u32[144,128]{1,0:T(1,128)}', space=vmem, size = 0x12000, scoped, tag = 'internal scratch']
  %s0 = inlined_call_operand.vmem [shape: f32[256,576], index: 0, kind: input, shape index: {}]
  %s1 = inlined_call_operand.vmem [shape: f32[576,128], index: 1, kind: input, shape index: {}]
  %s2 = inlined_call_operand.vmem [shape: f32[1,128], index: 2, kind: input, shape index: {}]
  %s3 = inlined_call_operand.vmem [shape: f32[256,128], index: 3, kind: output, shape index: {}]
  %s4 = sld [smem:[#allocation0]]
  $region45: #{japanese_lipnet_forward.23} parent=0
    _
  %s6 = ssub.s32 1, %s4
  %s7 = scalar_select 0, %s6, %s4
  loop: start=0, step=1, limit=4
  $region2: #{japanese_lipnet_forward.23} parent=0 // loop_pre_header
    _
  $region3: #{japanese_lipnet_forward.23} parent=0 // loop_header
    %s9 = sphi 0, %s13
    %p10 = scmp.ge.s32.totalorder %s9, 4
    %s19 = sphi 0, %s21
    %s22 = sphi 0, %s19
    %s23 = sphi 0, %s22
    %s39 = sphi 0, %s23
    %s43 = sphi 0, %s43
    %s45 = sphi 0, %s43
    %s46 = sphi 0, %s45
    %s60 = sphi 0, %s46
    %s64 = sphi 0, %s64
    %s66 = sphi 0, %s64
    %s67 = sphi 0, %s66
    %s81 = sphi 0, %s67
    %s87 = sphi 0, %s89
    %s90 = sphi 0, %s87
    %s91 = sphi 0, %s90
    %s107 = sphi 0, %s91
  $region4: #{japanese_lipnet_forward.23} parent=0 // loop_header_branch
    %12 = sbr.rel (%p10) target = $region8
  $region5: #{japanese_lipnet_forward.23} parent=0 // loop_body
    %s14 = ssub.s32 %s9, 1
    %s15 = ssub.s32 %s9, 2
    %s16 = sadd.s32 %s9, 1
    %s17 = ssub.s32 %s9, %s16
    %p18 = scmp.eq.s32.totalorder %s17, 0
    %s20 = sadd.s32 %s19, 1
    %s21 = scalar_select %p18, %s19, %s20
    %p24 = pneg %p18
    %p25 = scmp.eq.s32.totalorder %s9, 1
    %p26 = por %p24, %p25
    %p27 = scmp.ne.s32.totalorder %s19, %s22
    %p28 = scmp.eq.s32.totalorder %s9, 0
    %p29 = por %p27, %p28
    %p30 = scmp.ne.s32.totalorder %s19, %s22
    %p31 = scmp.eq.s32.totalorder %s14, 1
    %p32 = por %p30, %p31
    %p33 = scmp.ne.s32.totalorder %s22, %s23
    %p34 = scmp.eq.s32.totalorder %s14, 0
    %p35 = por %p33, %p34
    %p36 = scmp.ne.s32.totalorder %s22, %s23
    %p37 = scmp.eq.s32.totalorder %s15, 1
    %p38 = por %p36, %p37
    %p40 = scmp.ne.s32.totalorder %s23, %s39
    %p41 = scmp.eq.s32.totalorder %s15, 0
    %p42 = por %p40, %p41
    %s44 = sadd.s32 %s43, 1
    %p47 = scmp.eq.s32.totalorder %s9, 1
    %p48 = scmp.ne.s32.totalorder %s43, %s45
    %p49 = scmp.eq.s32.totalorder %s9, 0
    %p50 = por %p48, %p49
    %p51 = scmp.ne.s32.totalorder %s43, %s45
    %p52 = scmp.eq.s32.totalorder %s14, 1
    %p53 = por %p51, %p52
    %p54 = scmp.ne.s32.totalorder %s45, %s46
    %p55 = scmp.eq.s32.totalorder %s14, 0
    %p56 = por %p54, %p55
    %p57 = scmp.ne.s32.totalorder %s45, %s46
    %p58 = scmp.eq.s32.totalorder %s15, 1
    %p59 = por %p57, %p58
    %p61 = scmp.ne.s32.totalorder %s46, %s60
    %p62 = scmp.eq.s32.totalorder %s15, 0
    %p63 = por %p61, %p62
    %s65 = sadd.s32 %s64, 1
    %p68 = scmp.eq.s32.totalorder %s9, 1
    %p69 = scmp.ne.s32.totalorder %s64, %s66
    %p70 = scmp.eq.s32.totalorder %s9, 0
    %p71 = por %p69, %p70
    %p72 = scmp.ne.s32.totalorder %s64, %s66
    %p73 = scmp.eq.s32.totalorder %s14, 1
    %p74 = por %p72, %p73
    %p75 = scmp.ne.s32.totalorder %s66, %s67
    %p76 = scmp.eq.s32.totalorder %s14, 0
    %p77 = por %p75, %p76
    %p78 = scmp.ne.s32.totalorder %s66, %s67
    %p79 = scmp.eq.s32.totalorder %s15, 1
    %p80 = por %p78, %p79
    %p82 = scmp.ne.s32.totalorder %s67, %s81
    %p83 = scmp.eq.s32.totalorder %s15, 0
    %p84 = por %p82, %p83
    %s85 = ssub.s32 %s9, %s16
    %p86 = scmp.eq.s32.totalorder %s85, 0
    %s88 = sadd.s32 %s87, 1
    %s89 = scalar_select %p86, %s87, %s88
    %p92 = pneg %p86
    %p93 = scmp.eq.s32.totalorder %s9, 1
    %p94 = por %p92, %p93
    %p95 = scmp.ne.s32.totalorder %s87, %s90
    %p96 = scmp.eq.s32.totalorder %s9, 0
    %p97 = por %p95, %p96
    %p98 = scmp.ne.s32.totalorder %s87, %s90
    %p99 = scmp.eq.s32.totalorder %s14, 1
    %p100 = por %p98, %p99
    %p101 = scmp.ne.s32.totalorder %s90, %s91
    %p102 = scmp.eq.s32.totalorder %s14, 0
    %p103 = por %p101, %p102
    %p104 = scmp.ne.s32.totalorder %s90, %s91
    %p105 = scmp.eq.s32.totalorder %s15, 1
    %p106 = por %p104, %p105
    %p108 = scmp.ne.s32.totalorder %s91, %s107
    %p109 = scmp.eq.s32.totalorder %s15, 0
    %p110 = por %p108, %p109
    %p111 = scmp.le.s32.totalorder 1, %s9
    %p112 = scmp.lt.s32.totalorder %s9, 3
    %p113 = pnand %p111, %p112
    %p114 = pneg %p113
    // Predicated region
    $region9: #{japanese_lipnet_forward.23} parent=5 // pred_check
      _
    $region10: #{japanese_lipnet_forward.23} parent=5 // pred_check_branch
      %116 = sbr.rel (%p113) target = $region12
    $region11: #{japanese_lipnet_forward.23} parent=5 // pred_region
      %s117 = ssub.s32 %s9, 1
      // Predicated region
      $region13: #{japanese_lipnet_forward.23} parent=11 // pred_check
        %p118 = pneg %p56
      $region14: #{japanese_lipnet_forward.23} parent=11 // pred_check_branch
        %120 = sbr.rel (%p118) target = $region16
      $region15: #{japanese_lipnet_forward.23} parent=11 // pred_region
        _
      $region16: #{japanese_lipnet_forward.23} parent=11 // pred_fallthru
        _
      // Predicated region
      $region17: #{japanese_lipnet_forward.23} parent=11 // pred_check
        %p121 = pneg %p77
      $region18: #{japanese_lipnet_forward.23} parent=11 // pred_check_branch
        %123 = sbr.rel (%p121) target = $region20
      $region19: #{japanese_lipnet_forward.23} parent=11 // pred_region
        _
      $region20: #{japanese_lipnet_forward.23} parent=11 // pred_fallthru
        _
    $region12: #{japanese_lipnet_forward.23} parent=5 // pred_fallthru
      _
    %p124 = scmp.lt.s32.totalorder %s9, 2
    // Predicated region
    $region21: #{japanese_lipnet_forward.23} parent=5 // pred_check
      %p125 = pneg %p124
    $region22: #{japanese_lipnet_forward.23} parent=5 // pred_check_branch
      %127 = sbr.rel (%p125) target = $region24
    $region23: #{japanese_lipnet_forward.23} parent=5 // pred_region
      // Predicated region
      $region25: #{japanese_lipnet_forward.23} parent=23 // pred_check
        %p128 = pneg %p29
      $region26: #{japanese_lipnet_forward.23} parent=23 // pred_check_branch
        %130 = sbr.rel (%p128) target = $region28
      $region27: #{japanese_lipnet_forward.23} parent=23 // pred_region
        %s131 = smul.u32 16, %s9
        %p132 = scmp.lt.s32.totalorder %s131, 31
        %s133 = scalar_select %p132, %s131, 31
        %s134 = smul.addr %s133, 5
        %s135 = smul.addr %s134, 8
        %s136 = scalar_lea.vmem %s0, %s135
        %s137 = smul.u32 16, %s9
      $region28: #{japanese_lipnet_forward.23} parent=23 // pred_fallthru
        _
    $region24: #{japanese_lipnet_forward.23} parent=5 // pred_fallthru
      _
    %p138 = scmp.le.s32.totalorder 1, %s9
    %p139 = scmp.lt.s32.totalorder %s9, 3
    %p140 = pnand %p138, %p139
    %p141 = pneg %p140
    // Predicated region
    $region29: #{japanese_lipnet_forward.23} parent=5 // pred_check
      _
    $region30: #{japanese_lipnet_forward.23} parent=5 // pred_check_branch
      %143 = sbr.rel (%p140) target = $region32
    $region31: #{japanese_lipnet_forward.23} parent=5 // pred_region
      %s144 = ssub.s32 %s9, 1
      %s145 = smul.u32 16, %s14
      %p146 = scmp.lt.s32.totalorder %s145, 31
      %s147 = scalar_select %p146, %s145, 31
      %s148 = smul.addr %s147, 5
      %s149 = smul.addr %s148, 8
      %s150 = scalar_lea.vmem %s0, %s149
      %p151 = pneg %p35
      %p152 = pneg %p32
      %p153 = pneg %p56
      %p154 = pneg %p53
      %p155 = pneg %p77
      %p156 = pneg %p74
      %p157 = pneg %p103
      %p158 = pneg %p100
      %s159 = smul.u32 16, %s14
      %p160 = scmp.lt.s32.totalorder %s159, 31
      %s161 = scalar_select %p160, %s159, 31
      %s162 = smul.addr %s161, 8
      %s163 = scalar_lea.vmem %s3, %s162
      %s164 = smul.u32 16, %s14
      %p165 = scmp.lt.s32.totalorder %s164, 31
      %s166 = scalar_select %p165, %s164, 31
      %s167 = smul.addr %s166, 5
      %s168 = smul.addr %s167, 8
      %s169 = scalar_lea.vmem %s0, %s168
      %s170 = smul.u32 16, %s14
      %s171 = smul.u32 16, %s14
      %p172 = scmp.lt.s32.totalorder %s171, 31
      %s173 = scalar_select %p172, %s171, 31
      %s174 = smul.addr %s173, 8
      %s175 = scalar_lea.vmem %s3, %s174
      %s176 = smul.u32 16, %s14
      %v177 = vld [vmem:[%s169] sm:$0xff]
      %v178 = vld [vmem:[%s169 + $0x8] sm:$0xff]
      %v179 = vld [vmem:[%s169 + $0x10] sm:$0xff]
      %v180 = vld [vmem:[%s169 + $0x18] sm:$0xff]
      %v181 = vld [vmem:[%s169 + $0x20] sm:$0xff]
      %v182 = vld [vmem:[%s169 + $0x28] sm:$0xff]
      %v183 = vld [vmem:[%s169 + $0x30] sm:$0xff]
      %v184 = vld [vmem:[%s169 + $0x38] sm:$0xff]
      %v185 = vld [vmem:[%s169 + $0x40] sm:$0xff]
      %v186 = vld [vmem:[%s169 + $0x48] sm:$0xff]
      %v187 = vld [vmem:[%s169 + $0x50] sm:$0xff]
      %v188 = vld [vmem:[%s169 + $0x58] sm:$0xff]
      %v189 = vld [vmem:[%s169 + $0x60] sm:$0xff]
      %v190 = vld [vmem:[%s169 + $0x68] sm:$0xff]
      %v191 = vld [vmem:[%s169 + $0x70] sm:$0xff]
      %v192 = vld [vmem:[%s169 + $0x78] sm:$0xff]
      %v193 = vld [vmem:[%s169 + $0x80] sm:$0xff]
      %v194 = vld [vmem:[%s169 + $0x88] sm:$0xff]
      %v195 = vld [vmem:[%s169 + $0x90] sm:$0xff]
      %v196 = vld [vmem:[%s169 + $0x98] sm:$0xff]
      %v197 = vld [vmem:[%s169 + $0xa0] sm:$0xff]
      %v198 = vld [vmem:[%s169 + $0xa8] sm:$0xff]
      %v199 = vld [vmem:[%s169 + $0xb0] sm:$0xff]
      %v200 = vld [vmem:[%s169 + $0xb8] sm:$0xff]
      %v201 = vld [vmem:[%s169 + $0xc0] sm:$0xff]
      %v202 = vld [vmem:[%s169 + $0xc8] sm:$0xff]
      %v203 = vld [vmem:[%s169 + $0xd0] sm:$0xff]
      %v204 = vld [vmem:[%s169 + $0xd8] sm:$0xff]
      %v205 = vld [vmem:[%s169 + $0xe0] sm:$0xff]
      %v206 = vld [vmem:[%s169 + $0xe8] sm:$0xff]
      %v207 = vld [vmem:[%s169 + $0xf0] sm:$0xff]
      %v208 = vld [vmem:[%s169 + $0xf8] sm:$0xff]
      %v209 = vld [vmem:[%s169 + $0x100] sm:$0xff]
      %v210 = vld [vmem:[%s169 + $0x108] sm:$0xff]
      %v211 = vld [vmem:[%s169 + $0x110] sm:$0xff]
      %v212 = vld [vmem:[%s169 + $0x118] sm:$0xff]
      %v213 = vld [vmem:[%s169 + $0x120] sm:$0xff]
      %v214 = vld [vmem:[%s169 + $0x128] sm:$0xff]
      %v215 = vld [vmem:[%s169 + $0x130] sm:$0xff]
      %v216 = vld [vmem:[%s169 + $0x138] sm:$0xff]
      %v217 = vld [vmem:[%s169 + $0x140] sm:$0xff]
      %v218 = vld [vmem:[%s169 + $0x148] sm:$0xff]
      %v219 = vld [vmem:[%s169 + $0x150] sm:$0xff]
      %v220 = vld [vmem:[%s169 + $0x158] sm:$0xff]
      %v221 = vld [vmem:[%s169 + $0x160] sm:$0xff]
      %v222 = vld [vmem:[%s169 + $0x168] sm:$0xff]
      %v223 = vld [vmem:[%s169 + $0x170] sm:$0xff]
      %v224 = vld [vmem:[%s169 + $0x178] sm:$0xff]
      %v225 = vld [vmem:[%s169 + $0x180] sm:$0xff]
      %v226 = vld [vmem:[%s169 + $0x188] sm:$0xff]
      %v227 = vld [vmem:[%s169 + $0x190] sm:$0xff]
      %v228 = vld [vmem:[%s169 + $0x198] sm:$0xff]
      %v229 = vld [vmem:[%s169 + $0x1a0] sm:$0xff]
      %v230 = vld [vmem:[%s169 + $0x1a8] sm:$0xff]
      %v231 = vld [vmem:[%s169 + $0x1b0] sm:$0xff]
      %v232 = vld [vmem:[%s169 + $0x1b8] sm:$0xff]
      %v233 = vld [vmem:[%s169 + $0x1c0] sm:$0xff]
      %v234 = vld [vmem:[%s169 + $0x1c8] sm:$0xff]
      %v235 = vld [vmem:[%s169 + $0x1d0] sm:$0xff]
      %v236 = vld [vmem:[%s169 + $0x1d8] sm:$0xff]
      %v237 = vld [vmem:[%s169 + $0x1e0] sm:$0xff]
      %v238 = vld [vmem:[%s169 + $0x1e8] sm:$0xff]
      %v239 = vld [vmem:[%s169 + $0x1f0] sm:$0xff]
      %v240 = vld [vmem:[%s169 + $0x1f8] sm:$0xff]
      %v241 = vld [vmem:[%s169 + $0x200] sm:$0xff]
      %v242 = vld [vmem:[%s169 + $0x208] sm:$0xff]
      %v243 = vld [vmem:[%s169 + $0x210] sm:$0xff]
      %v244 = vld [vmem:[%s169 + $0x218] sm:$0xff]
      %v245 = vld [vmem:[%s169 + $0x220] sm:$0xff]
      %v246 = vld [vmem:[%s169 + $0x228] sm:$0xff]
      %v247 = vld [vmem:[%s169 + $0x230] sm:$0xff]
      %v248 = vld [vmem:[%s169 + $0x238] sm:$0xff]
      %v249 = vld [vmem:[%s169 + $0x240] sm:$0xff]
      %v250 = vld [vmem:[%s169 + $0x248] sm:$0xff]
      %v251 = vld [vmem:[%s169 + $0x250] sm:$0xff]
      %v252 = vld [vmem:[%s169 + $0x258] sm:$0xff]
      %v253 = vld [vmem:[%s169 + $0x260] sm:$0xff]
      %v254 = vld [vmem:[%s169 + $0x268] sm:$0xff]
      %v255 = vld [vmem:[%s169 + $0x270] sm:$0xff]
      %v256 = vld [vmem:[%s169 + $0x278] sm:$0xff]
      %v257 = vld [vmem:[%s1] sm:$0xff]
      %v258 = vld [vmem:[%s1 + $0x8] sm:$0xff]
      %v259 = vld [vmem:[%s1 + $0x10] sm:$0xff]
      %v260 = vld [vmem:[%s1 + $0x18] sm:$0xff]
      %v261 = vld [vmem:[%s1 + $0x20] sm:$0xff]
      %v262 = vld [vmem:[%s1 + $0x28] sm:$0xff]
      %v263 = vld [vmem:[%s1 + $0x30] sm:$0xff]
      %v264 = vld [vmem:[%s1 + $0x38] sm:$0xff]
      %v265 = vld [vmem:[%s1 + $0x40] sm:$0xff]
      %v266 = vld [vmem:[%s1 + $0x48] sm:$0xff]
      %v267 = vld [vmem:[%s1 + $0x50] sm:$0xff]
      %v268 = vld [vmem:[%s1 + $0x58] sm:$0xff]
      %v269 = vld [vmem:[%s1 + $0x60] sm:$0xff]
      %v270 = vld [vmem:[%s1 + $0x68] sm:$0xff]
      %v271 = vld [vmem:[%s1 + $0x70] sm:$0xff]
      %v272 = vld [vmem:[%s1 + $0x78] sm:$0xff]
      %v273 = vld [vmem:[%s1 + $0x80] sm:$0xff]
      %v274 = vld [vmem:[%s1 + $0x88] sm:$0xff]
      %v275 = vld [vmem:[%s1 + $0x90] sm:$0xff]
      %v276 = vld [vmem:[%s1 + $0x98] sm:$0xff]
      %v277 = vld [vmem:[%s1 + $0xa0] sm:$0xff]
      %v278 = vld [vmem:[%s1 + $0xa8] sm:$0xff]
      %v279 = vld [vmem:[%s1 + $0xb0] sm:$0xff]
      %v280 = vld [vmem:[%s1 + $0xb8] sm:$0xff]
      %v281 = vld [vmem:[%s1 + $0xc0] sm:$0xff]
      %v282 = vld [vmem:[%s1 + $0xc8] sm:$0xff]
      %v283 = vld [vmem:[%s1 + $0xd0] sm:$0xff]
      %v284 = vld [vmem:[%s1 + $0xd8] sm:$0xff]
      %v285 = vld [vmem:[%s1 + $0xe0] sm:$0xff]
      %v286 = vld [vmem:[%s1 + $0xe8] sm:$0xff]
      %v287 = vld [vmem:[%s1 + $0xf0] sm:$0xff]
      %v288 = vld [vmem:[%s1 + $0xf8] sm:$0xff]
      %v289 = vld [vmem:[%s1 + $0x100] sm:$0xff]
      %v290 = vld [vmem:[%s1 + $0x108] sm:$0xff]
      %v291 = vld [vmem:[%s1 + $0x110] sm:$0xff]
      %v292 = vld [vmem:[%s1 + $0x118] sm:$0xff]
      %v293 = vld [vmem:[%s1 + $0x120] sm:$0xff]
      %v294 = vld [vmem:[%s1 + $0x128] sm:$0xff]
      %v295 = vld [vmem:[%s1 + $0x130] sm:$0xff]
      %v296 = vld [vmem:[%s1 + $0x138] sm:$0xff]
      %v297 = vld [vmem:[%s1 + $0x140] sm:$0xff]
      %v298 = vld [vmem:[%s1 + $0x148] sm:$0xff]
      %v299 = vld [vmem:[%s1 + $0x150] sm:$0xff]
      %v300 = vld [vmem:[%s1 + $0x158] sm:$0xff]
      %v301 = vld [vmem:[%s1 + $0x160] sm:$0xff]
      %v302 = vld [vmem:[%s1 + $0x168] sm:$0xff]
      %v303 = vld [vmem:[%s1 + $0x170] sm:$0xff]
      %v304 = vld [vmem:[%s1 + $0x178] sm:$0xff]
      %v305 = vld [vmem:[%s1 + $0x180] sm:$0xff]
      %v306 = vld [vmem:[%s1 + $0x188] sm:$0xff]
      %v307 = vld [vmem:[%s1 + $0x190] sm:$0xff]
      %v308 = vld [vmem:[%s1 + $0x198] sm:$0xff]
      %v309 = vld [vmem:[%s1 + $0x1a0] sm:$0xff]
      %v310 = vld [vmem:[%s1 + $0x1a8] sm:$0xff]
      %v311 = vld [vmem:[%s1 + $0x1b0] sm:$0xff]
      %v312 = vld [vmem:[%s1 + $0x1b8] sm:$0xff]
      %v313 = vld [vmem:[%s1 + $0x1c0] sm:$0xff]
      %v314 = vld [vmem:[%s1 + $0x1c8] sm:$0xff]
      %v315 = vld [vmem:[%s1 + $0x1d0] sm:$0xff]
      %v316 = vld [vmem:[%s1 + $0x1d8] sm:$0xff]
      %v317 = vld [vmem:[%s1 + $0x1e0] sm:$0xff]
      %v318 = vld [vmem:[%s1 + $0x1e8] sm:$0xff]
      %v319 = vld [vmem:[%s1 + $0x1f0] sm:$0xff]
      %v320 = vld [vmem:[%s1 + $0x1f8] sm:$0xff]
      %v321 = vld [vmem:[%s1 + $0x200] sm:$0xff]
      %v322 = vld [vmem:[%s1 + $0x208] sm:$0xff]
      %v323 = vld [vmem:[%s1 + $0x210] sm:$0xff]
      %v324 = vld [vmem:[%s1 + $0x218] sm:$0xff]
      %v325 = vld [vmem:[%s1 + $0x220] sm:$0xff]
      %v326 = vld [vmem:[%s1 + $0x228] sm:$0xff]
      %v327 = vld [vmem:[%s1 + $0x230] sm:$0xff]
      %v328 = vld [vmem:[%s1 + $0x238] sm:$0xff]
      %v329 = vld [vmem:[%s2] sm:$0x1]
      %v331 = vlaneseq
      %v332 = vshrl.u32 %v331, 7
      %v333 = vsub.s32 0, %v332
      %v334 = vrot.slane %v329, %v333
      %vm336 = vcmask 523264
      %v338 = vsel %vm336, %v181, 0
      %v341 = vsel %vm336, %v186, 0
      %v344 = vsel %vm336, %v191, 0
      %v347 = vsel %vm336, %v196, 0
      %v350 = vsel %vm336, %v201, 0
      %v353 = vsel %vm336, %v206, 0
      %v356 = vsel %vm336, %v211, 0
      %v359 = vsel %vm336, %v216, 0
      %v362 = vsel %vm336, %v221, 0
      %v365 = vsel %vm336, %v226, 0
      %v368 = vsel %vm336, %v231, 0
      %v371 = vsel %vm336, %v236, 0
      %v374 = vsel %vm336, %v241, 0
      %v377 = vsel %vm336, %v246, 0
      %v380 = vsel %vm336, %v251, 0
      %v383 = vsel %vm336, %v256, 0
      %385 = vmatprep.subr.mxu0 0.0
      %386 = vmatpush1.msra.mxu0 %v272
      %387 = vmatprep.subr.mxu0 0.0
      %388 = vmatpush1.msra.mxu0 %v271
      %389 = vmatprep.subr.mxu0 0.0
      %390 = vmatpush1.msra.mxu0 %v270
      %391 = vmatprep.subr.mxu0 0.0
      %392 = vmatpush1.msra.mxu0 %v269
      %393 = vmatprep.subr.mxu0 0.0
      %394 = vmatpush1.msra.mxu0 %v268
      %395 = vmatprep.subr.mxu0 0.0
      %396 = vmatpush1.msra.mxu0 %v267
      %397 = vmatprep.subr.mxu0 0.0
      %398 = vmatpush1.msra.mxu0 %v266
      %399 = vmatprep.subr.mxu0 0.0
      %400 = vmatpush1.msra.mxu0 %v265
      %401 = vmatprep.subr.mxu0 0.0
      %402 = vmatpush1.msra.mxu0 %v264
      %403 = vmatprep.subr.mxu0 0.0
      %404 = vmatpush1.msra.mxu0 %v263
      %405 = vmatprep.subr.mxu0 0.0
      %406 = vmatpush1.msra.mxu0 %v262
      %407 = vmatprep.subr.mxu0 0.0
      %408 = vmatpush1.msra.mxu0 %v261
      %409 = vmatprep.subr.mxu0 0.0
      %410 = vmatpush1.msra.mxu0 %v260
      %411 = vmatprep.subr.mxu0 0.0
      %412 = vmatpush1.msra.mxu0 %v259
      %413 = vmatprep.subr.mxu0 0.0
      %414 = vmatpush1.msra.mxu0 %v258
      %415 = vmatprep.subr.mxu0 0.0
      %416 = vmatpush1.msra.mxu0 %v257
      %417 = vmatprep.subr.mxu0 0.0
      %418 = vmatpush2.msra.mxu0 %v288
      %419 = vmatprep.subr.mxu0 0.0
      %420 = vmatpush2.msra.mxu0 %v287
      %421 = vmatprep.subr.mxu0 0.0
      %422 = vmatpush2.msra.mxu0 %v286
      %423 = vmatprep.subr.mxu0 0.0
      %424 = vmatpush2.msra.mxu0 %v285
      %425 = vmatprep.subr.mxu0 0.0
      %426 = vmatpush2.msra.mxu0 %v284
      %427 = vmatprep.subr.mxu0 0.0
      %428 = vmatpush2.msra.mxu0 %v283
      %429 = vmatprep.subr.mxu0 0.0
      %430 = vmatpush2.msra.mxu0 %v282
      %431 = vmatprep.subr.mxu0 0.0
      %432 = vmatpush2.msra.mxu0 %v281
      %433 = vmatprep.subr.mxu0 0.0
      %434 = vmatpush2.msra.mxu0 %v280
      %435 = vmatprep.subr.mxu0 0.0
      %436 = vmatpush2.msra.mxu0 %v279
      %437 = vmatprep.subr.mxu0 0.0
      %438 = vmatpush2.msra.mxu0 %v278
      %439 = vmatprep.subr.mxu0 0.0
      %440 = vmatpush2.msra.mxu0 %v277
      %441 = vmatprep.subr.mxu0 0.0
      %442 = vmatpush2.msra.mxu0 %v276
      %443 = vmatprep.subr.mxu0 0.0
      %444 = vmatpush2.msra.mxu0 %v275
      %445 = vmatprep.subr.mxu0 0.0
      %446 = vmatpush2.msra.mxu0 %v274
      %447 = vmatprep.subr.mxu0 0.0
      %448 = vmatpush2.msra.mxu0 %v273
      %449 = vmatprep.mubr.f32.mxu0 %v178
      %450 = vmatmul.mubr.f32.gmra.mxu0 %v177
      %v451 = vpop.f32.mrf.mxu0
      %v452 = vadd.f32 %v334, %v451
      %v453 = vpop.f32.mrf.mxu0
      %454 = vmatprep.mubr.f32.mxu0 %v183
      %455 = vmatmul.mubr.f32.gmra.mxu0 %v182
      %v456 = vpop.f32.mrf.mxu0
      %v457 = vadd.f32 %v334, %v456
      %v458 = vpop.f32.mrf.mxu0
      %459 = vmatprep.mubr.f32.mxu0 %v188
      %460 = vmatmul.mubr.f32.gmra.mxu0 %v187
      %v461 = vpop.f32.mrf.mxu0
      %v462 = vadd.f32 %v334, %v461
      %v463 = vpop.f32.mrf.mxu0
      %464 = vmatprep.mubr.f32.mxu0 %v193
      %465 = vmatmul.mubr.f32.gmra.mxu0 %v192
      %v466 = vpop.f32.mrf.mxu0
      %v467 = vadd.f32 %v334, %v466
      %v468 = vpop.f32.mrf.mxu0
      %469 = vmatprep.mubr.f32.mxu0 %v198
      %470 = vmatmul.mubr.f32.gmra.mxu0 %v197
      %v471 = vpop.f32.mrf.mxu0
      %v472 = vadd.f32 %v334, %v471
      %v473 = vpop.f32.mrf.mxu0
      %474 = vmatprep.mubr.f32.mxu0 %v203
      %475 = vmatmul.mubr.f32.gmra.mxu0 %v202
      %v476 = vpop.f32.mrf.mxu0
      %v477 = vadd.f32 %v334, %v476
      %v478 = vpop.f32.mrf.mxu0
      %479 = vmatprep.mubr.f32.mxu0 %v208
      %480 = vmatmul.mubr.f32.gmra.mxu0 %v207
      %v481 = vpop.f32.mrf.mxu0
      %v482 = vadd.f32 %v334, %v481
      %v483 = vpop.f32.mrf.mxu0
      %484 = vmatprep.mubr.f32.mxu0 %v213
      %485 = vmatmul.mubr.f32.gmra.mxu0 %v212
      %v486 = vpop.f32.mrf.mxu0
      %v487 = vadd.f32 %v334, %v486
      %v488 = vpop.f32.mrf.mxu0
      %489 = vmatprep.mubr.f32.mxu0 %v218
      %490 = vmatmul.mubr.f32.gmra.mxu0 %v217
      %v491 = vpop.f32.mrf.mxu0
      %v492 = vadd.f32 %v334, %v491
      %v493 = vpop.f32.mrf.mxu0
      %494 = vmatprep.mubr.f32.mxu0 %v223
      %495 = vmatmul.mubr.f32.gmra.mxu0 %v222
      %v496 = vpop.f32.mrf.mxu0
      %v497 = vadd.f32 %v334, %v496
      %v498 = vpop.f32.mrf.mxu0
      %499 = vmatprep.mubr.f32.mxu0 %v228
      %500 = vmatmul.mubr.f32.gmra.mxu0 %v227
      %v501 = vpop.f32.mrf.mxu0
      %v502 = vadd.f32 %v334, %v501
      %v503 = vpop.f32.mrf.mxu0
      %504 = vmatprep.mubr.f32.mxu0 %v233
      %505 = vmatmul.mubr.f32.gmra.mxu0 %v232
      %v506 = vpop.f32.mrf.mxu0
      %v507 = vadd.f32 %v334, %v506
      %v508 = vpop.f32.mrf.mxu0
      %509 = vmatprep.mubr.f32.mxu0 %v238
      %510 = vmatmul.mubr.f32.gmra.mxu0 %v237
      %v511 = vpop.f32.mrf.mxu0
      %v512 = vadd.f32 %v334, %v511
      %v513 = vpop.f32.mrf.mxu0
      %514 = vmatprep.mubr.f32.mxu0 %v243
      %515 = vmatmul.mubr.f32.gmra.mxu0 %v242
      %v516 = vpop.f32.mrf.mxu0
      %v517 = vadd.f32 %v334, %v516
      %v518 = vpop.f32.mrf.mxu0
      %519 = vmatprep.mubr.f32.mxu0 %v248
      %520 = vmatmul.mubr.f32.gmra.mxu0 %v247
      %v521 = vpop.f32.mrf.mxu0
      %v522 = vadd.f32 %v334, %v521
      %v523 = vpop.f32.mrf.mxu0
      %524 = vmatprep.mubr.f32.mxu0 %v253
      %525 = vmatmul.mubr.f32.gmra.mxu0 %v252
      %v526 = vpop.f32.mrf.mxu0
      %v527 = vadd.f32 %v334, %v526
      %v528 = vpop.f32.mrf.mxu0
      %529 = vdwg.mxu0
      %530 = vmatprep.subr.mxu0 0.0
      %531 = vmatpush1.msra.mxu0 %v304
      %532 = vmatprep.subr.mxu0 0.0
      %533 = vmatpush1.msra.mxu0 %v303
      %534 = vmatprep.subr.mxu0 0.0
      %535 = vmatpush1.msra.mxu0 %v302
      %536 = vmatprep.subr.mxu0 0.0
      %537 = vmatpush1.msra.mxu0 %v301
      %538 = vmatprep.subr.mxu0 0.0
      %539 = vmatpush1.msra.mxu0 %v300
      %540 = vmatprep.subr.mxu0 0.0
      %541 = vmatpush1.msra.mxu0 %v299
      %542 = vmatprep.subr.mxu0 0.0
      %543 = vmatpush1.msra.mxu0 %v298
      %544 = vmatprep.subr.mxu0 0.0
      %545 = vmatpush1.msra.mxu0 %v297
      %546 = vmatprep.subr.mxu0 0.0
      %547 = vmatpush1.msra.mxu0 %v296
      %548 = vmatprep.subr.mxu0 0.0
      %549 = vmatpush1.msra.mxu0 %v295
      %550 = vmatprep.subr.mxu0 0.0
      %551 = vmatpush1.msra.mxu0 %v294
      %552 = vmatprep.subr.mxu0 0.0
      %553 = vmatpush1.msra.mxu0 %v293
      %554 = vmatprep.subr.mxu0 0.0
      %555 = vmatpush1.msra.mxu0 %v292
      %556 = vmatprep.subr.mxu0 0.0
      %557 = vmatpush1.msra.mxu0 %v291
      %558 = vmatprep.subr.mxu0 0.0
      %559 = vmatpush1.msra.mxu0 %v290
      %560 = vmatprep.subr.mxu0 0.0
      %561 = vmatpush1.msra.mxu0 %v289
      %562 = vmatprep.subr.mxu0 0.0
      %563 = vmatpush2.msra.mxu0 %v320
      %564 = vmatprep.subr.mxu0 0.0
      %565 = vmatpush2.msra.mxu0 %v319
      %566 = vmatprep.subr.mxu0 0.0
      %567 = vmatpush2.msra.mxu0 %v318
      %568 = vmatprep.subr.mxu0 0.0
      %569 = vmatpush2.msra.mxu0 %v317
      %570 = vmatprep.subr.mxu0 0.0
      %571 = vmatpush2.msra.mxu0 %v316
      %572 = vmatprep.subr.mxu0 0.0
      %573 = vmatpush2.msra.mxu0 %v315
      %574 = vmatprep.subr.mxu0 0.0
      %575 = vmatpush2.msra.mxu0 %v314
      %576 = vmatprep.subr.mxu0 0.0
      %577 = vmatpush2.msra.mxu0 %v313
      %578 = vmatprep.subr.mxu0 0.0
      %579 = vmatpush2.msra.mxu0 %v312
      %580 = vmatprep.subr.mxu0 0.0
      %581 = vmatpush2.msra.mxu0 %v311
      %582 = vmatprep.subr.mxu0 0.0
      %583 = vmatpush2.msra.mxu0 %v310
      %584 = vmatprep.subr.mxu0 0.0
      %585 = vmatpush2.msra.mxu0 %v309
      %586 = vmatprep.subr.mxu0 0.0
      %587 = vmatpush2.msra.mxu0 %v308
      %588 = vmatprep.subr.mxu0 0.0
      %589 = vmatpush2.msra.mxu0 %v307
      %590 = vmatprep.subr.mxu0 0.0
      %591 = vmatpush2.msra.mxu0 %v306
      %592 = vmatprep.subr.mxu0 0.0
      %593 = vmatpush2.msra.mxu0 %v305
      %594 = vmatprep.mubr.f32.mxu0 %v180
      %595 = vmatmul.mubr.f32.gmra.mxu0 %v179
      %v596 = vpop.f32.mrf.mxu0
      %v597 = vadd.f32 %v452, %v596
      %v598 = vpop.f32.mrf.mxu0
      %599 = vmatprep.mubr.f32.mxu0 %v185
      %600 = vmatmul.mubr.f32.gmra.mxu0 %v184
      %v601 = vpop.f32.mrf.mxu0
      %v602 = vadd.f32 %v457, %v601
      %v603 = vpop.f32.mrf.mxu0
      %604 = vmatprep.mubr.f32.mxu0 %v190
      %605 = vmatmul.mubr.f32.gmra.mxu0 %v189
      %v606 = vpop.f32.mrf.mxu0
      %v607 = vadd.f32 %v462, %v606
      %v608 = vpop.f32.mrf.mxu0
      %609 = vmatprep.mubr.f32.mxu0 %v195
      %610 = vmatmul.mubr.f32.gmra.mxu0 %v194
      %v611 = vpop.f32.mrf.mxu0
      %v612 = vadd.f32 %v467, %v611
      %v613 = vpop.f32.mrf.mxu0
      %614 = vmatprep.mubr.f32.mxu0 %v200
      %615 = vmatmul.mubr.f32.gmra.mxu0 %v199
      %v616 = vpop.f32.mrf.mxu0
      %v617 = vadd.f32 %v472, %v616
      %v618 = vpop.f32.mrf.mxu0
      %619 = vmatprep.mubr.f32.mxu0 %v205
      %620 = vmatmul.mubr.f32.gmra.mxu0 %v204
      %v621 = vpop.f32.mrf.mxu0
      %v622 = vadd.f32 %v477, %v621
      %v623 = vpop.f32.mrf.mxu0
      %624 = vmatprep.mubr.f32.mxu0 %v210
      %625 = vmatmul.mubr.f32.gmra.mxu0 %v209
      %v626 = vpop.f32.mrf.mxu0
      %v627 = vadd.f32 %v482, %v626
      %v628 = vpop.f32.mrf.mxu0
      %629 = vmatprep.mubr.f32.mxu0 %v215
      %630 = vmatmul.mubr.f32.gmra.mxu0 %v214
      %v631 = vpop.f32.mrf.mxu0
      %v632 = vadd.f32 %v487, %v631
      %v633 = vpop.f32.mrf.mxu0
      %634 = vmatprep.mubr.f32.mxu0 %v220
      %635 = vmatmul.mubr.f32.gmra.mxu0 %v219
      %v636 = vpop.f32.mrf.mxu0
      %v637 = vadd.f32 %v492, %v636
      %v638 = vpop.f32.mrf.mxu0
      %639 = vmatprep.mubr.f32.mxu0 %v225
      %640 = vmatmul.mubr.f32.gmra.mxu0 %v224
      %v641 = vpop.f32.mrf.mxu0
      %v642 = vadd.f32 %v497, %v641
      %v643 = vpop.f32.mrf.mxu0
      %644 = vmatprep.mubr.f32.mxu0 %v230
      %645 = vmatmul.mubr.f32.gmra.mxu0 %v229
      %v646 = vpop.f32.mrf.mxu0
      %v647 = vadd.f32 %v502, %v646
      %v648 = vpop.f32.mrf.mxu0
      %649 = vmatprep.mubr.f32.mxu0 %v235
      %650 = vmatmul.mubr.f32.gmra.mxu0 %v234
      %v651 = vpop.f32.mrf.mxu0
      %v652 = vadd.f32 %v507, %v651
      %v653 = vpop.f32.mrf.mxu0
      %654 = vmatprep.mubr.f32.mxu0 %v240
      %655 = vmatmul.mubr.f32.gmra.mxu0 %v239
      %v656 = vpop.f32.mrf.mxu0
      %v657 = vadd.f32 %v512, %v656
      %v658 = vpop.f32.mrf.mxu0
      %659 = vmatprep.mubr.f32.mxu0 %v245
      %660 = vmatmul.mubr.f32.gmra.mxu0 %v244
      %v661 = vpop.f32.mrf.mxu0
      %v662 = vadd.f32 %v517, %v661
      %v663 = vpop.f32.mrf.mxu0
      %664 = vmatprep.mubr.f32.mxu0 %v250
      %665 = vmatmul.mubr.f32.gmra.mxu0 %v249
      %v666 = vpop.f32.mrf.mxu0
      %v667 = vadd.f32 %v522, %v666
      %v668 = vpop.f32.mrf.mxu0
      %669 = vmatprep.mubr.f32.mxu0 %v255
      %670 = vmatmul.mubr.f32.gmra.mxu0 %v254
      %v671 = vpop.f32.mrf.mxu0
      %v672 = vadd.f32 %v527, %v671
      %v673 = vpop.f32.mrf.mxu0
      %674 = vdwg.mxu0
      %675 = vmatprep.subr.mxu0 0.0
      %676 = vmatpush1.msra.mxu0 0.0
      %677 = vmatprep.subr.mxu0 0.0
      %678 = vmatpush1.msra.mxu0 0.0
      %679 = vmatprep.subr.mxu0 0.0
      %680 = vmatpush1.msra.mxu0 0.0
      %681 = vmatprep.subr.mxu0 0.0
      %682 = vmatpush1.msra.mxu0 0.0
      %683 = vmatprep.subr.mxu0 0.0
      %684 = vmatpush1.msra.mxu0 0.0
      %685 = vmatprep.subr.mxu0 0.0
      %686 = vmatpush1.msra.mxu0 0.0
      %687 = vmatprep.subr.mxu0 0.0
      %688 = vmatpush1.msra.mxu0 0.0
      %689 = vmatprep.subr.mxu0 0.0
      %690 = vmatpush1.msra.mxu0 0.0
      %691 = vmatprep.subr.mxu0 0.0
      %692 = vmatpush1.msra.mxu0 %v328
      %693 = vmatprep.subr.mxu0 0.0
      %694 = vmatpush1.msra.mxu0 %v327
      %695 = vmatprep.subr.mxu0 0.0
      %696 = vmatpush1.msra.mxu0 %v326
      %697 = vmatprep.subr.mxu0 0.0
      %698 = vmatpush1.msra.mxu0 %v325
      %699 = vmatprep.subr.mxu0 0.0
      %700 = vmatpush1.msra.mxu0 %v324
      %701 = vmatprep.subr.mxu0 0.0
      %702 = vmatpush1.msra.mxu0 %v323
      %703 = vmatprep.subr.mxu0 0.0
      %704 = vmatpush1.msra.mxu0 %v322
      %705 = vmatprep.subr.mxu0 0.0
      %706 = vmatpush1.msra.mxu0 %v321
      %707 = vmatprep.subr.mxu0 0.0
      %708 = vmatpush2.msra.mxu0 0.0
      %709 = vmatprep.subr.mxu0 0.0
      %710 = vmatpush2.msra.mxu0 0.0
      %711 = vmatprep.subr.mxu0 0.0
      %712 = vmatpush2.msra.mxu0 0.0
      %713 = vmatprep.subr.mxu0 0.0
      %714 = vmatpush2.msra.mxu0 0.0
      %715 = vmatprep.subr.mxu0 0.0
      %716 = vmatpush2.msra.mxu0 0.0
      %717 = vmatprep.subr.mxu0 0.0
      %718 = vmatpush2.msra.mxu0 0.0
      %719 = vmatprep.subr.mxu0 0.0
      %720 = vmatpush2.msra.mxu0 0.0
      %721 = vmatprep.subr.mxu0 0.0
      %722 = vmatpush2.msra.mxu0 0.0
      %723 = vmatprep.subr.mxu0 0.0
      %724 = vmatpush2.msra.mxu0 0.0
      %725 = vmatprep.subr.mxu0 0.0
      %726 = vmatpush2.msra.mxu0 0.0
      %727 = vmatprep.subr.mxu0 0.0
      %728 = vmatpush2.msra.mxu0 0.0
      %729 = vmatprep.subr.mxu0 0.0
      %730 = vmatpush2.msra.mxu0 0.0
      %731 = vmatprep.subr.mxu0 0.0
      %732 = vmatpush2.msra.mxu0 0.0
      %733 = vmatprep.subr.mxu0 0.0
      %734 = vmatpush2.msra.mxu0 0.0
      %735 = vmatprep.subr.mxu0 0.0
      %736 = vmatpush2.msra.mxu0 0.0
      %737 = vmatprep.subr.mxu0 0.0
      %738 = vmatpush2.msra.mxu0 0.0
      %739 = vmatprep.mubr.f32.mxu0 0.0
      %740 = vmatmul.mubr.f32.gmra.mxu0 %v338
      %v741 = vpop.f32.mrf.mxu0
      %v742 = vadd.f32 %v597, %v741
      %v743 = vpop.f32.mrf.mxu0
      %744 = vmatprep.mubr.f32.mxu0 0.0
      %745 = vmatmul.mubr.f32.gmra.mxu0 %v341
      %v746 = vpop.f32.mrf.mxu0
      %v747 = vadd.f32 %v602, %v746
      %v748 = vpop.f32.mrf.mxu0
      %749 = vmatprep.mubr.f32.mxu0 0.0
      %750 = vmatmul.mubr.f32.gmra.mxu0 %v344
      %v751 = vpop.f32.mrf.mxu0
      %v752 = vadd.f32 %v607, %v751
      %v753 = vpop.f32.mrf.mxu0
      %754 = vmatprep.mubr.f32.mxu0 0.0
      %755 = vmatmul.mubr.f32.gmra.mxu0 %v347
      %v756 = vpop.f32.mrf.mxu0
      %v757 = vadd.f32 %v612, %v756
      %v758 = vpop.f32.mrf.mxu0
      %759 = vmatprep.mubr.f32.mxu0 0.0
      %760 = vmatmul.mubr.f32.gmra.mxu0 %v350
      %v761 = vpop.f32.mrf.mxu0
      %v762 = vadd.f32 %v617, %v761
      %v763 = vpop.f32.mrf.mxu0
      %764 = vmatprep.mubr.f32.mxu0 0.0
      %765 = vmatmul.mubr.f32.gmra.mxu0 %v353
      %v766 = vpop.f32.mrf.mxu0
      %v767 = vadd.f32 %v622, %v766
      %v768 = vpop.f32.mrf.mxu0
      %769 = vmatprep.mubr.f32.mxu0 0.0
      %770 = vmatmul.mubr.f32.gmra.mxu0 %v356
      %v771 = vpop.f32.mrf.mxu0
      %v772 = vadd.f32 %v627, %v771
      %v773 = vpop.f32.mrf.mxu0
      %774 = vmatprep.mubr.f32.mxu0 0.0
      %775 = vmatmul.mubr.f32.gmra.mxu0 %v359
      %v776 = vpop.f32.mrf.mxu0
      %v777 = vadd.f32 %v632, %v776
      %v778 = vpop.f32.mrf.mxu0
      %779 = vmatprep.mubr.f32.mxu0 0.0
      %780 = vmatmul.mubr.f32.gmra.mxu0 %v362
      %v781 = vpop.f32.mrf.mxu0
      %v782 = vadd.f32 %v637, %v781
      %v783 = vpop.f32.mrf.mxu0
      %784 = vmatprep.mubr.f32.mxu0 0.0
      %785 = vmatmul.mubr.f32.gmra.mxu0 %v365
      %v786 = vpop.f32.mrf.mxu0
      %v787 = vadd.f32 %v642, %v786
      %v788 = vpop.f32.mrf.mxu0
      %789 = vmatprep.mubr.f32.mxu0 0.0
      %790 = vmatmul.mubr.f32.gmra.mxu0 %v368
      %v791 = vpop.f32.mrf.mxu0
      %v792 = vadd.f32 %v647, %v791
      %v793 = vpop.f32.mrf.mxu0
      %794 = vmatprep.mubr.f32.mxu0 0.0
      %795 = vmatmul.mubr.f32.gmra.mxu0 %v371
      %v796 = vpop.f32.mrf.mxu0
      %v797 = vadd.f32 %v652, %v796
      %v798 = vpop.f32.mrf.mxu0
      %799 = vmatprep.mubr.f32.mxu0 0.0
      %800 = vmatmul.mubr.f32.gmra.mxu0 %v374
      %v801 = vpop.f32.mrf.mxu0
      %v802 = vadd.f32 %v657, %v801
      %v803 = vpop.f32.mrf.mxu0
      %804 = vmatprep.mubr.f32.mxu0 0.0
      %805 = vmatmul.mubr.f32.gmra.mxu0 %v377
      %v806 = vpop.f32.mrf.mxu0
      %v807 = vadd.f32 %v662, %v806
      %v808 = vpop.f32.mrf.mxu0
      %809 = vmatprep.mubr.f32.mxu0 0.0
      %810 = vmatmul.mubr.f32.gmra.mxu0 %v380
      %v811 = vpop.f32.mrf.mxu0
      %v812 = vadd.f32 %v667, %v811
      %v813 = vpop.f32.mrf.mxu0
      %814 = vmatprep.mubr.f32.mxu0 0.0
      %815 = vmatmul.mubr.f32.gmra.mxu0 %v383
      %v816 = vpop.f32.mrf.mxu0
      %v817 = vadd.f32 %v672, %v816
      %v818 = vpop.f32.mrf.mxu0
      %819 = vdwg.mxu0
      %v820 = vmax.f32 %v742, 0.0
      %v821 = vmax.f32 %v747, 0.0
      %v822 = vmax.f32 %v752, 0.0
      %v823 = vmax.f32 %v757, 0.0
      %v824 = vmax.f32 %v762, 0.0
      %v825 = vmax.f32 %v767, 0.0
      %v826 = vmax.f32 %v772, 0.0
      %v827 = vmax.f32 %v777, 0.0
      %v828 = vmax.f32 %v782, 0.0
      %v829 = vmax.f32 %v787, 0.0
      %v830 = vmax.f32 %v792, 0.0
      %v831 = vmax.f32 %v797, 0.0
      %v832 = vmax.f32 %v802, 0.0
      %v833 = vmax.f32 %v807, 0.0
      %v834 = vmax.f32 %v812, 0.0
      %v835 = vmax.f32 %v817, 0.0
      %836 = vst [vmem:[%s175] sm:$0xff] %v820
      %837 = vst [vmem:[%s175 + $0x8] sm:$0xff] %v821
      %838 = vst [vmem:[%s175 + $0x10] sm:$0xff] %v822
      %839 = vst [vmem:[%s175 + $0x18] sm:$0xff] %v823
      %840 = vst [vmem:[%s175 + $0x20] sm:$0xff] %v824
      %841 = vst [vmem:[%s175 + $0x28] sm:$0xff] %v825
      %842 = vst [vmem:[%s175 + $0x30] sm:$0xff] %v826
      %843 = vst [vmem:[%s175 + $0x38] sm:$0xff] %v827
      %844 = vst [vmem:[%s175 + $0x40] sm:$0xff] %v828
      %845 = vst [vmem:[%s175 + $0x48] sm:$0xff] %v829
      %846 = vst [vmem:[%s175 + $0x50] sm:$0xff] %v830
      %847 = vst [vmem:[%s175 + $0x58] sm:$0xff] %v831
      %848 = vst [vmem:[%s175 + $0x60] sm:$0xff] %v832
      %849 = vst [vmem:[%s175 + $0x68] sm:$0xff] %v833
      %850 = vst [vmem:[%s175 + $0x70] sm:$0xff] %v834
      %851 = vst [vmem:[%s175 + $0x78] sm:$0xff] %v835
      %s852 = smul.u32 16, %s14
      %p853 = scmp.lt.s32.totalorder %s852, 31
      %s854 = scalar_select %p853, %s852, 31
      %s855 = smul.addr %s854, 8
      %s856 = scalar_lea.vmem %s3, %s855
      // Predicated region
      $region33: #{japanese_lipnet_forward.23} parent=31 // pred_check
        %p857 = pneg %p100
      $region34: #{japanese_lipnet_forward.23} parent=31 // pred_check_branch
        %859 = sbr.rel (%p857) target = $region36
      $region35: #{japanese_lipnet_forward.23} parent=31 // pred_region
        %s860 = smul.u32 16, %s14
      $region36: #{japanese_lipnet_forward.23} parent=31 // pred_fallthru
        _
    $region32: #{japanese_lipnet_forward.23} parent=5 // pred_fallthru
      _
    %p861 = scmp.le.s32.totalorder 2, %s9
    // Predicated region
    $region37: #{japanese_lipnet_forward.23} parent=5 // pred_check
      %p862 = pneg %p861
    $region38: #{japanese_lipnet_forward.23} parent=5 // pred_check_branch
      %864 = sbr.rel (%p862) target = $region40
    $region39: #{japanese_lipnet_forward.23} parent=5 // pred_region
      %s865 = ssub.s32 %s9, 2
      // Predicated region
      $region41: #{japanese_lipnet_forward.23} parent=39 // pred_check
        %p866 = pneg %p106
      $region42: #{japanese_lipnet_forward.23} parent=39 // pred_check_branch
        %868 = sbr.rel (%p866) target = $region44
      $region43: #{japanese_lipnet_forward.23} parent=39 // pred_region
        %s869 = smul.u32 16, %s15
        %p870 = scmp.lt.s32.totalorder %s869, 31
        %s871 = scalar_select %p870, %s869, 31
        %s872 = smul.addr %s871, 8
        %s873 = scalar_lea.vmem %s3, %s872
      $region44: #{japanese_lipnet_forward.23} parent=39 // pred_fallthru
        _
    $region40: #{japanese_lipnet_forward.23} parent=5 // pred_fallthru
      _
  $region6: #{japanese_lipnet_forward.23} parent=0 // loop_footer
    %s13 = sadd.s32 1, %s9
  $region7: #{japanese_lipnet_forward.23} parent=0 // loop_footer_branch
    %8 = sbr.rel target = $region3
  $region8: #{japanese_lipnet_forward.23} parent=0 // loop_exit
    _

// kernel: japanese_lipnet_forward.24
$region0: #{japanese_lipnet_forward.24}
  #allocation0 [shape = 'u32[]', space=smem, size = 0x4, offset = 0x4, fixed_abs, tag = 'smem constant byte address 0x4 - core index']
  #allocation1 [shape = 'u32[144,128]{1,0:T(1,128)}', space=vmem, size = 0x12000, scoped, tag = 'internal scratch']
  %s0 = inlined_call_operand.vmem [shape: f32[16,16,128], index: 0, kind: input, shape index: {}]
  %s1 = inlined_call_operand.vmem [shape: f32[128,128], index: 1, kind: input, shape index: {}]
  %s2 = inlined_call_operand.vmem [shape: f32[1,128], index: 2, kind: input, shape index: {}]
  %s3 = inlined_call_operand.vmem [shape: f32[16,128], index: 3, kind: input, shape index: {}]
  %s4 = inlined_call_operand.vmem [shape: f32[16,128], index: 4, kind: output, shape index: {}]
  %s5 = sld [smem:[#allocation0]]
  $region49: #{japanese_lipnet_forward.24} parent=0
    _
  %s7 = ssub.s32 1, %s5
  %s8 = scalar_select 0, %s7, %s5
  loop: start=0, step=1, limit=4
  $region2: #{japanese_lipnet_forward.24} parent=0 // loop_pre_header
    _
  $region3: #{japanese_lipnet_forward.24} parent=0 // loop_header
    %s10 = sphi 0, %s14
    %p11 = scmp.ge.s32.totalorder %s10, 4
    %s20 = sphi 0, %s22
    %s23 = sphi 0, %s20
    %s24 = sphi 0, %s23
    %s40 = sphi 0, %s24
    %s44 = sphi 0, %s44
    %s46 = sphi 0, %s44
    %s47 = sphi 0, %s46
    %s61 = sphi 0, %s47
    %s65 = sphi 0, %s65
    %s67 = sphi 0, %s65
    %s68 = sphi 0, %s67
    %s82 = sphi 0, %s68
    %s88 = sphi 0, %s90
    %s91 = sphi 0, %s88
    %s92 = sphi 0, %s91
    %s108 = sphi 0, %s92
    %s114 = sphi 0, %s116
    %s117 = sphi 0, %s114
    %s118 = sphi 0, %s117
    %s134 = sphi 0, %s118
  $region4: #{japanese_lipnet_forward.24} parent=0 // loop_header_branch
    %13 = sbr.rel (%p11) target = $region8
  $region5: #{japanese_lipnet_forward.24} parent=0 // loop_body
    %s15 = ssub.s32 %s10, 1
    %s16 = ssub.s32 %s10, 2
    %s17 = sadd.s32 %s10, 1
    %s18 = ssub.s32 %s10, %s17
    %p19 = scmp.eq.s32.totalorder %s18, 0
    %s21 = sadd.s32 %s20, 1
    %s22 = scalar_select %p19, %s20, %s21
    %p25 = pneg %p19
    %p26 = scmp.eq.s32.totalorder %s10, 1
    %p27 = por %p25, %p26
    %p28 = scmp.ne.s32.totalorder %s20, %s23
    %p29 = scmp.eq.s32.totalorder %s10, 0
    %p30 = por %p28, %p29
    %p31 = scmp.ne.s32.totalorder %s20, %s23
    %p32 = scmp.eq.s32.totalorder %s15, 1
    %p33 = por %p31, %p32
    %p34 = scmp.ne.s32.totalorder %s23, %s24
    %p35 = scmp.eq.s32.totalorder %s15, 0
    %p36 = por %p34, %p35
    %p37 = scmp.ne.s32.totalorder %s23, %s24
    %p38 = scmp.eq.s32.totalorder %s16, 1
    %p39 = por %p37, %p38
    %p41 = scmp.ne.s32.totalorder %s24, %s40
    %p42 = scmp.eq.s32.totalorder %s16, 0
    %p43 = por %p41, %p42
    %s45 = sadd.s32 %s44, 1
    %p48 = scmp.eq.s32.totalorder %s10, 1
    %p49 = scmp.ne.s32.totalorder %s44, %s46
    %p50 = scmp.eq.s32.totalorder %s10, 0
    %p51 = por %p49, %p50
    %p52 = scmp.ne.s32.totalorder %s44, %s46
    %p53 = scmp.eq.s32.totalorder %s15, 1
    %p54 = por %p52, %p53
    %p55 = scmp.ne.s32.totalorder %s46, %s47
    %p56 = scmp.eq.s32.totalorder %s15, 0
    %p57 = por %p55, %p56
    %p58 = scmp.ne.s32.totalorder %s46, %s47
    %p59 = scmp.eq.s32.totalorder %s16, 1
    %p60 = por %p58, %p59
    %p62 = scmp.ne.s32.totalorder %s47, %s61
    %p63 = scmp.eq.s32.totalorder %s16, 0
    %p64 = por %p62, %p63
    %s66 = sadd.s32 %s65, 1
    %p69 = scmp.eq.s32.totalorder %s10, 1
    %p70 = scmp.ne.s32.totalorder %s65, %s67
    %p71 = scmp.eq.s32.totalorder %s10, 0
    %p72 = por %p70, %p71
    %p73 = scmp.ne.s32.totalorder %s65, %s67
    %p74 = scmp.eq.s32.totalorder %s15, 1
    %p75 = por %p73, %p74
    %p76 = scmp.ne.s32.totalorder %s67, %s68
    %p77 = scmp.eq.s32.totalorder %s15, 0
    %p78 = por %p76, %p77
    %p79 = scmp.ne.s32.totalorder %s67, %s68
    %p80 = scmp.eq.s32.totalorder %s16, 1
    %p81 = por %p79, %p80
    %p83 = scmp.ne.s32.totalorder %s68, %s82
    %p84 = scmp.eq.s32.totalorder %s16, 0
    %p85 = por %p83, %p84
    %s86 = ssub.s32 %s10, %s17
    %p87 = scmp.eq.s32.totalorder %s86, 0
    %s89 = sadd.s32 %s88, 1
    %s90 = scalar_select %p87, %s88, %s89
    %p93 = pneg %p87
    %p94 = scmp.eq.s32.totalorder %s10, 1
    %p95 = por %p93, %p94
    %p96 = scmp.ne.s32.totalorder %s88, %s91
    %p97 = scmp.eq.s32.totalorder %s10, 0
    %p98 = por %p96, %p97
    %p99 = scmp.ne.s32.totalorder %s88, %s91
    %p100 = scmp.eq.s32.totalorder %s15, 1
    %p101 = por %p99, %p100
    %p102 = scmp.ne.s32.totalorder %s91, %s92
    %p103 = scmp.eq.s32.totalorder %s15, 0
    %p104 = por %p102, %p103
    %p105 = scmp.ne.s32.totalorder %s91, %s92
    %p106 = scmp.eq.s32.totalorder %s16, 1
    %p107 = por %p105, %p106
    %p109 = scmp.ne.s32.totalorder %s92, %s108
    %p110 = scmp.eq.s32.totalorder %s16, 0
    %p111 = por %p109, %p110
    %s112 = ssub.s32 %s10, %s17
    %p113 = scmp.eq.s32.totalorder %s112, 0
    %s115 = sadd.s32 %s114, 1
    %s116 = scalar_select %p113, %s114, %s115
    %p119 = pneg %p113
    %p120 = scmp.eq.s32.totalorder %s10, 1
    %p121 = por %p119, %p120
    %p122 = scmp.ne.s32.totalorder %s114, %s117
    %p123 = scmp.eq.s32.totalorder %s10, 0
    %p124 = por %p122, %p123
    %p125 = scmp.ne.s32.totalorder %s114, %s117
    %p126 = scmp.eq.s32.totalorder %s15, 1
    %p127 = por %p125, %p126
    %p128 = scmp.ne.s32.totalorder %s117, %s118
    %p129 = scmp.eq.s32.totalorder %s15, 0
    %p130 = por %p128, %p129
    %p131 = scmp.ne.s32.totalorder %s117, %s118
    %p132 = scmp.eq.s32.totalorder %s16, 1
    %p133 = por %p131, %p132
    %p135 = scmp.ne.s32.totalorder %s118, %s134
    %p136 = scmp.eq.s32.totalorder %s16, 0
    %p137 = por %p135, %p136
    %p138 = scmp.le.s32.totalorder 1, %s10
    %p139 = scmp.lt.s32.totalorder %s10, 3
    %p140 = pnand %p138, %p139
    %p141 = pneg %p140
    // Predicated region
    $region9: #{japanese_lipnet_forward.24} parent=5 // pred_check
      _
    $region10: #{japanese_lipnet_forward.24} parent=5 // pred_check_branch
      %143 = sbr.rel (%p140) target = $region12
    $region11: #{japanese_lipnet_forward.24} parent=5 // pred_region
      %s144 = ssub.s32 %s10, 1
      // Predicated region
      $region13: #{japanese_lipnet_forward.24} parent=11 // pred_check
        %p145 = pneg %p57
      $region14: #{japanese_lipnet_forward.24} parent=11 // pred_check_branch
        %147 = sbr.rel (%p145) target = $region16
      $region15: #{japanese_lipnet_forward.24} parent=11 // pred_region
        _
      $region16: #{japanese_lipnet_forward.24} parent=11 // pred_fallthru
        _
      // Predicated region
      $region17: #{japanese_lipnet_forward.24} parent=11 // pred_check
        %p148 = pneg %p78
      $region18: #{japanese_lipnet_forward.24} parent=11 // pred_check_branch
        %150 = sbr.rel (%p148) target = $region20
      $region19: #{japanese_lipnet_forward.24} parent=11 // pred_region
        _
      $region20: #{japanese_lipnet_forward.24} parent=11 // pred_fallthru
        _
    $region12: #{japanese_lipnet_forward.24} parent=5 // pred_fallthru
      _
    %p151 = scmp.lt.s32.totalorder %s10, 2
    // Predicated region
    $region21: #{japanese_lipnet_forward.24} parent=5 // pred_check
      %p152 = pneg %p151
    $region22: #{japanese_lipnet_forward.24} parent=5 // pred_check_branch
      %154 = sbr.rel (%p152) target = $region24
    $region23: #{japanese_lipnet_forward.24} parent=5 // pred_region
      // Predicated region
      $region25: #{japanese_lipnet_forward.24} parent=23 // pred_check
        %p155 = pneg %p30
      $region26: #{japanese_lipnet_forward.24} parent=23 // pred_check_branch
        %157 = sbr.rel (%p155) target = $region28
      $region27: #{japanese_lipnet_forward.24} parent=23 // pred_region
        %s158 = smul.u32 8, %s10
        %p159 = scmp.lt.s32.totalorder %s158, 15
        %s160 = scalar_select %p159, %s158, 15
        %s161 = smul.addr %s160, 2
        %s162 = smul.addr %s161, 8
        %s163 = scalar_lea.vmem %s0, %s162
        %s164 = smul.u32 8, %s10
      $region28: #{japanese_lipnet_forward.24} parent=23 // pred_fallthru
        _
      // Predicated region
      $region29: #{japanese_lipnet_forward.24} parent=23 // pred_check
        %p165 = pneg %p98
      $region30: #{japanese_lipnet_forward.24} parent=23 // pred_check_branch
        %167 = sbr.rel (%p165) target = $region32
      $region31: #{japanese_lipnet_forward.24} parent=23 // pred_region
        %p168 = scmp.lt.s32.totalorder %s10, 1
        %s169 = scalar_select %p168, %s10, 1
        %s170 = smul.addr %s169, 8
        %s171 = scalar_lea.vmem %s3, %s170
      $region32: #{japanese_lipnet_forward.24} parent=23 // pred_fallthru
        _
    $region24: #{japanese_lipnet_forward.24} parent=5 // pred_fallthru
      _
    %p172 = scmp.le.s32.totalorder 1, %s10
    %p173 = scmp.lt.s32.totalorder %s10, 3
    %p174 = pnand %p172, %p173
    %p175 = pneg %p174
    // Predicated region
    $region33: #{japanese_lipnet_forward.24} parent=5 // pred_check
      _
    $region34: #{japanese_lipnet_forward.24} parent=5 // pred_check_branch
      %177 = sbr.rel (%p174) target = $region36
    $region35: #{japanese_lipnet_forward.24} parent=5 // pred_region
      %s178 = ssub.s32 %s10, 1
      %s179 = smul.u32 8, %s15
      %p180 = scmp.lt.s32.totalorder %s179, 15
      %s181 = scalar_select %p180, %s179, 15
      %s182 = smul.addr %s181, 2
      %s183 = smul.addr %s182, 8
      %s184 = scalar_lea.vmem %s0, %s183
      %p185 = pneg %p36
      %p186 = pneg %p33
      %p187 = pneg %p57
      %p188 = pneg %p54
      %p189 = pneg %p78
      %p190 = pneg %p75
      %p191 = scmp.lt.s32.totalorder %s15, 1
      %s192 = scalar_select %p191, %s15, 1
      %s193 = smul.addr %s192, 8
      %s194 = scalar_lea.vmem %s3, %s193
      %p195 = pneg %p104
      %p196 = pneg %p101
      %p197 = pneg %p130
      %p198 = pneg %p127
      %p199 = scmp.lt.s32.totalorder %s15, 1
      %s200 = scalar_select %p199, %s15, 1
      %s201 = smul.addr %s200, 8
      %s202 = scalar_lea.vmem %s4, %s201
      %s203 = smul.u32 8, %s15
      %p204 = scmp.lt.s32.totalorder %s203, 15
      %s205 = scalar_select %p204, %s203, 15
      %s206 = smul.addr %s205, 2
      %s207 = smul.addr %s206, 8
      %s208 = scalar_lea.vmem %s0, %s207
      %s209 = smul.u32 8, %s15
      %p210 = scmp.lt.s32.totalorder %s15, 1
      %s211 = scalar_select %p210, %s15, 1
      %s212 = smul.addr %s211, 8
      %s213 = scalar_lea.vmem %s3, %s212
      %p214 = scmp.lt.s32.totalorder %s15, 1
      %s215 = scalar_select %p214, %s15, 1
      %s216 = smul.addr %s215, 8
      %s217 = scalar_lea.vmem %s4, %s216
      %v218 = vld [vmem:[%s208] sm:$0xff]
      %v219 = vld [vmem:[%s208 + $0x8] sm:$0xff]
      %v220 = vld [vmem:[%s208 + $0x10] sm:$0xff]
      %v221 = vld [vmem:[%s208 + $0x18] sm:$0xff]
      %v222 = vld [vmem:[%s208 + $0x20] sm:$0xff]
      %v223 = vld [vmem:[%s208 + $0x28] sm:$0xff]
      %v224 = vld [vmem:[%s208 + $0x30] sm:$0xff]
      %v225 = vld [vmem:[%s208 + $0x38] sm:$0xff]
      %v226 = vld [vmem:[%s208 + $0x40] sm:$0xff]
      %v227 = vld [vmem:[%s208 + $0x48] sm:$0xff]
      %v228 = vld [vmem:[%s208 + $0x50] sm:$0xff]
      %v229 = vld [vmem:[%s208 + $0x58] sm:$0xff]
      %v230 = vld [vmem:[%s208 + $0x60] sm:$0xff]
      %v231 = vld [vmem:[%s208 + $0x68] sm:$0xff]
      %v232 = vld [vmem:[%s208 + $0x70] sm:$0xff]
      %v233 = vld [vmem:[%s208 + $0x78] sm:$0xff]
      %v234 = vadd.f32 %v218, %v219
      %v235 = vrot.slane %v234, 4
      %v236 = vadd.f32 %v234, %v235
      %v237 = vrot.slane %v236, 2
      %v238 = vadd.f32 %v236, %v237
      %v239 = vrot.slane %v238, 1
      %v240 = vadd.f32 %v238, %v239
      %v241 = vadd.f32 %v220, %v221
      %v242 = vrot.slane %v241, 4
      %v243 = vadd.f32 %v241, %v242
      %v244 = vrot.slane %v243, 2
      %v245 = vadd.f32 %v243, %v244
      %v246 = vrot.slane %v245, 1
      %v247 = vadd.f32 %v245, %v246
      %v248 = vadd.f32 %v222, %v223
      %v249 = vrot.slane %v248, 4
      %v250 = vadd.f32 %v248, %v249
      %v251 = vrot.slane %v250, 2
      %v252 = vadd.f32 %v250, %v251
      %v253 = vrot.slane %v252, 1
      %v254 = vadd.f32 %v252, %v253
      %v255 = vadd.f32 %v224, %v225
      %v256 = vrot.slane %v255, 4
      %v257 = vadd.f32 %v255, %v256
      %v258 = vrot.slane %v257, 2
      %v259 = vadd.f32 %v257, %v258
      %v260 = vrot.slane %v259, 1
      %v261 = vadd.f32 %v259, %v260
      %v262 = vadd.f32 %v226, %v227
      %v263 = vrot.slane %v262, 4
      %v264 = vadd.f32 %v262, %v263
      %v265 = vrot.slane %v264, 2
      %v266 = vadd.f32 %v264, %v265
      %v267 = vrot.slane %v266, 1
      %v268 = vadd.f32 %v266, %v267
      %v269 = vadd.f32 %v228, %v229
      %v270 = vrot.slane %v269, 4
      %v271 = vadd.f32 %v269, %v270
      %v272 = vrot.slane %v271, 2
      %v273 = vadd.f32 %v271, %v272
      %v274 = vrot.slane %v273, 1
      %v275 = vadd.f32 %v273, %v274
      %v276 = vadd.f32 %v230, %v231
      %v277 = vrot.slane %v276, 4
      %v278 = vadd.f32 %v276, %v277
      %v279 = vrot.slane %v278, 2
      %v280 = vadd.f32 %v278, %v279
      %v281 = vrot.slane %v280, 1
      %v282 = vadd.f32 %v280, %v281
      %v283 = vadd.f32 %v232, %v233
      %v284 = vrot.slane %v283, 4
      %v285 = vadd.f32 %v283, %v284
      %v286 = vrot.slane %v285, 2
      %v287 = vadd.f32 %v285, %v286
      %v288 = vrot.slane %v287, 1
      %v289 = vadd.f32 %v287, %v288
      %v290 = vrcp.pop 16.0
      %v291 = vmul.f32 %v240, %v290
      %v292 = vmul.f32 %v247, %v290
      %v293 = vmul.f32 %v254, %v290
      %v294 = vmul.f32 %v261, %v290
      %v295 = vmul.f32 %v268, %v290
      %v296 = vmul.f32 %v275, %v290
      %v297 = vmul.f32 %v282, %v290
      %v298 = vmul.f32 %v289, %v290
      %v299 = vld [vmem:[%s1] sm:$0xff]
      %v300 = vld [vmem:[%s1 + $0x8] sm:$0xff]
      %v301 = vld [vmem:[%s1 + $0x10] sm:$0xff]
      %v302 = vld [vmem:[%s1 + $0x18] sm:$0xff]
      %v303 = vld [vmem:[%s1 + $0x20] sm:$0xff]
      %v304 = vld [vmem:[%s1 + $0x28] sm:$0xff]
      %v305 = vld [vmem:[%s1 + $0x30] sm:$0xff]
      %v306 = vld [vmem:[%s1 + $0x38] sm:$0xff]
      %v307 = vld [vmem:[%s1 + $0x40] sm:$0xff]
      %v308 = vld [vmem:[%s1 + $0x48] sm:$0xff]
      %v309 = vld [vmem:[%s1 + $0x50] sm:$0xff]
      %v310 = vld [vmem:[%s1 + $0x58] sm:$0xff]
      %v311 = vld [vmem:[%s1 + $0x60] sm:$0xff]
      %v312 = vld [vmem:[%s1 + $0x68] sm:$0xff]
      %v313 = vld [vmem:[%s1 + $0x70] sm:$0xff]
      %v314 = vld [vmem:[%s1 + $0x78] sm:$0xff]
      %v315 = vld [vmem:[%s2] sm:$0x1]
      %v317 = vlaneseq
      %v318 = vshrl.u32 %v317, 7
      %v319 = vsub.s32 0, %v318
      %v320 = vrot.slane %v315, %v319
      %vm330 = vcmask 1041409
      %v331 = vsel %vm330, %v292, %v291
      %vm332 = vcmask 1042434
      %v333 = vsel %vm332, %v293, %v331
      %vm334 = vcmask 1043459
      %v335 = vsel %vm334, %v294, %v333
      %vm336 = vcmask 1044484
      %v337 = vsel %vm336, %v295, %v335
      %vm338 = vcmask 1045509
      %v339 = vsel %vm338, %v296, %v337
      %vm340 = vcmask 1046534
      %v341 = vsel %vm340, %v297, %v339
      %vm342 = vcmask 1047559
      %v343 = vsel %vm342, %v298, %v341
      %345 = vmatprep.subr.mxu0 0.0
      %346 = vmatpush1.msra.mxu0 %v314
      %347 = vmatprep.subr.mxu0 0.0
      %348 = vmatpush1.msra.mxu0 %v313
      %349 = vmatprep.subr.mxu0 0.0
      %350 = vmatpush1.msra.mxu0 %v312
      %351 = vmatprep.subr.mxu0 0.0
      %352 = vmatpush1.msra.mxu0 %v311
      %353 = vmatprep.subr.mxu0 0.0
      %354 = vmatpush1.msra.mxu0 %v310
      %355 = vmatprep.subr.mxu0 0.0
      %356 = vmatpush1.msra.mxu0 %v309
      %357 = vmatprep.subr.mxu0 0.0
      %358 = vmatpush1.msra.mxu0 %v308
      %359 = vmatprep.subr.mxu0 0.0
      %360 = vmatpush1.msra.mxu0 %v307
      %361 = vmatprep.subr.mxu0 0.0
      %362 = vmatpush1.msra.mxu0 %v306
      %363 = vmatprep.subr.mxu0 0.0
      %364 = vmatpush1.msra.mxu0 %v305
      %365 = vmatprep.subr.mxu0 0.0
      %366 = vmatpush1.msra.mxu0 %v304
      %367 = vmatprep.subr.mxu0 0.0
      %368 = vmatpush1.msra.mxu0 %v303
      %369 = vmatprep.subr.mxu0 0.0
      %370 = vmatpush1.msra.mxu0 %v302
      %371 = vmatprep.subr.mxu0 0.0
      %372 = vmatpush1.msra.mxu0 %v301
      %373 = vmatprep.subr.mxu0 0.0
      %374 = vmatpush1.msra.mxu0 %v300
      %375 = vmatprep.subr.mxu0 0.0
      %376 = vmatpush1.msra.mxu0 %v299
      %377 = vmatprep.subr.mxu0 0.0
      %378 = vmatpush2.msra.mxu0 0.0
      %379 = vmatprep.subr.mxu0 0.0
      %380 = vmatpush2.msra.mxu0 0.0
      %381 = vmatprep.subr.mxu0 0.0
      %382 = vmatpush2.msra.mxu0 0.0
      %383 = vmatprep.subr.mxu0 0.0
      %384 = vmatpush2.msra.mxu0 0.0
      %385 = vmatprep.subr.mxu0 0.0
      %386 = vmatpush2.msra.mxu0 0.0
      %387 = vmatprep.subr.mxu0 0.0
      %388 = vmatpush2.msra.mxu0 0.0
      %389 = vmatprep.subr.mxu0 0.0
      %390 = vmatpush2.msra.mxu0 0.0
      %391 = vmatprep.subr.mxu0 0.0
      %392 = vmatpush2.msra.mxu0 0.0
      %393 = vmatprep.subr.mxu0 0.0
      %394 = vmatpush2.msra.mxu0 0.0
      %395 = vmatprep.subr.mxu0 0.0
      %396 = vmatpush2.msra.mxu0 0.0
      %397 = vmatprep.subr.mxu0 0.0
      %398 = vmatpush2.msra.mxu0 0.0
      %399 = vmatprep.subr.mxu0 0.0
      %400 = vmatpush2.msra.mxu0 0.0
      %401 = vmatprep.subr.mxu0 0.0
      %402 = vmatpush2.msra.mxu0 0.0
      %403 = vmatprep.subr.mxu0 0.0
      %404 = vmatpush2.msra.mxu0 0.0
      %405 = vmatprep.subr.mxu0 0.0
      %406 = vmatpush2.msra.mxu0 0.0
      %407 = vmatprep.subr.mxu0 0.0
      %408 = vmatpush2.msra.mxu0 0.0
      %409 = vmatprep.mubr.f32.mxu0 0.0
      %410 = vmatmul.mubr.f32.gmra.mxu0 %v343
      %v411 = vpop.f32.mrf.mxu0
      %v412 = vadd.f32 %v320, %v411
      %v413 = vpop.f32.mrf.mxu0
      %414 = vdwg.mxu0
      %v415 = vld [vmem:[%s213] sm:$0xff]
      %v416 = vadd.f32 %v412, %v415
      %417 = vst [vmem:[%s217] sm:$0xff] %v416
      %p418 = scmp.lt.s32.totalorder %s15, 1
      %s419 = scalar_select %p418, %s15, 1
      %s420 = smul.addr %s419, 8
      %s421 = scalar_lea.vmem %s4, %s420
      // Predicated region
      $region37: #{japanese_lipnet_forward.24} parent=35 // pred_check
        %p422 = pneg %p127
      $region38: #{japanese_lipnet_forward.24} parent=35 // pred_check_branch
        %424 = sbr.rel (%p422) target = $region40
      $region39: #{japanese_lipnet_forward.24} parent=35 // pred_region
        _
      $region40: #{japanese_lipnet_forward.24} parent=35 // pred_fallthru
        _
    $region36: #{japanese_lipnet_forward.24} parent=5 // pred_fallthru
      _
    %p425 = scmp.le.s32.totalorder 2, %s10
    // Predicated region
    $region41: #{japanese_lipnet_forward.24} parent=5 // pred_check
      %p426 = pneg %p425
    $region42: #{japanese_lipnet_forward.24} parent=5 // pred_check_branch
      %428 = sbr.rel (%p426) target = $region44
    $region43: #{japanese_lipnet_forward.24} parent=5 // pred_region
      %s429 = ssub.s32 %s10, 2
      // Predicated region
      $region45: #{japanese_lipnet_forward.24} parent=43 // pred_check
        %p430 = pneg %p133
      $region46: #{japanese_lipnet_forward.24} parent=43 // pred_check_branch
        %432 = sbr.rel (%p430) target = $region48
      $region47: #{japanese_lipnet_forward.24} parent=43 // pred_region
        %p433 = scmp.lt.s32.totalorder %s16, 1
        %s434 = scalar_select %p433, %s16, 1
        %s435 = smul.addr %s434, 8
        %s436 = scalar_lea.vmem %s4, %s435
      $region48: #{japanese_lipnet_forward.24} parent=43 // pred_fallthru
        _
    $region44: #{japanese_lipnet_forward.24} parent=5 // pred_fallthru
      _
  $region6: #{japanese_lipnet_forward.24} parent=0 // loop_footer
    %s14 = sadd.s32 1, %s10
  $region7: #{japanese_lipnet_forward.24} parent=0 // loop_footer_branch
    %9 = sbr.rel target = $region3
  $region8: #{japanese_lipnet_forward.24} parent=0 // loop_exit
    _

// kernel: japanese_lipnet_forward.25
$region0: #{japanese_lipnet_forward.25}
  #allocation0 [shape = 'u32[]', space=smem, size = 0x4, offset = 0x4, fixed_abs, tag = 'smem constant byte address 0x4 - core index']
  #allocation1 [shape = 'u32[144,128]{1,0:T(1,128)}', space=vmem, size = 0x12000, scoped, tag = 'internal scratch']
  %s0 = inlined_call_operand.vmem [shape: f32[16,128], index: 0, kind: input, shape index: {}]
  %s1 = inlined_call_operand.vmem [shape: f32[1,128], index: 1, kind: input, shape index: {}]
  %s2 = inlined_call_operand.vmem [shape: f32[1,128], index: 2, kind: input, shape index: {}]
  %s3 = inlined_call_operand.vmem [shape: f32[128,512], index: 3, kind: input, shape index: {}]
  %s4 = inlined_call_operand.vmem [shape: f32[1,512], index: 4, kind: input, shape index: {}]
  %s5 = inlined_call_operand.vmem [shape: f32[16,512], index: 5, kind: output, shape index: {}]
  %s6 = sld [smem:[#allocation0]]
  $region53: #{japanese_lipnet_forward.25} parent=0
    _
  %s8 = ssub.s32 1, %s6
  %s9 = scalar_select 0, %s8, %s6
  loop: start=0, step=1, limit=4
  $region2: #{japanese_lipnet_forward.25} parent=0 // loop_pre_header
    _
  $region3: #{japanese_lipnet_forward.25} parent=0 // loop_header
    %s11 = sphi 0, %s15
    %p12 = scmp.ge.s32.totalorder %s11, 4
    %s21 = sphi 0, %s23
    %s24 = sphi 0, %s21
    %s25 = sphi 0, %s24
    %s41 = sphi 0, %s25
    %s45 = sphi 0, %s45
    %s47 = sphi 0, %s45
    %s48 = sphi 0, %s47
    %s62 = sphi 0, %s48
    %s66 = sphi 0, %s66
    %s68 = sphi 0, %s66
    %s69 = sphi 0, %s68
    %s83 = sphi 0, %s69
    %s87 = sphi 0, %s87
    %s89 = sphi 0, %s87
    %s90 = sphi 0, %s89
    %s104 = sphi 0, %s90
    %s108 = sphi 0, %s108
    %s110 = sphi 0, %s108
    %s111 = sphi 0, %s110
    %s125 = sphi 0, %s111
    %s131 = sphi 0, %s133
    %s134 = sphi 0, %s131
    %s135 = sphi 0, %s134
    %s151 = sphi 0, %s135
  $region4: #{japanese_lipnet_forward.25} parent=0 // loop_header_branch
    %14 = sbr.rel (%p12) target = $region8
  $region5: #{japanese_lipnet_forward.25} parent=0 // loop_body
    %s16 = ssub.s32 %s11, 1
    %s17 = ssub.s32 %s11, 2
    %s18 = sadd.s32 %s11, 1
    %s19 = ssub.s32 %s11, %s18
    %p20 = scmp.eq.s32.totalorder %s19, 0
    %s22 = sadd.s32 %s21, 1
    %s23 = scalar_select %p20, %s21, %s22
    %p26 = pneg %p20
    %p27 = scmp.eq.s32.totalorder %s11, 1
    %p28 = por %p26, %p27
    %p29 = scmp.ne.s32.totalorder %s21, %s24
    %p30 = scmp.eq.s32.totalorder %s11, 0
    %p31 = por %p29, %p30
    %p32 = scmp.ne.s32.totalorder %s21, %s24
    %p33 = scmp.eq.s32.totalorder %s16, 1
    %p34 = por %p32, %p33
    %p35 = scmp.ne.s32.totalorder %s24, %s25
    %p36 = scmp.eq.s32.totalorder %s16, 0
    %p37 = por %p35, %p36
    %p38 = scmp.ne.s32.totalorder %s24, %s25
    %p39 = scmp.eq.s32.totalorder %s17, 1
    %p40 = por %p38, %p39
    %p42 = scmp.ne.s32.totalorder %s25, %s41
    %p43 = scmp.eq.s32.totalorder %s17, 0
    %p44 = por %p42, %p43
    %s46 = sadd.s32 %s45, 1
    %p49 = scmp.eq.s32.totalorder %s11, 1
    %p50 = scmp.ne.s32.totalorder %s45, %s47
    %p51 = scmp.eq.s32.totalorder %s11, 0
    %p52 = por %p50, %p51
    %p53 = scmp.ne.s32.totalorder %s45, %s47
    %p54 = scmp.eq.s32.totalorder %s16, 1
    %p55 = por %p53, %p54
    %p56 = scmp.ne.s32.totalorder %s47, %s48
    %p57 = scmp.eq.s32.totalorder %s16, 0
    %p58 = por %p56, %p57
    %p59 = scmp.ne.s32.totalorder %s47, %s48
    %p60 = scmp.eq.s32.totalorder %s17, 1
    %p61 = por %p59, %p60
    %p63 = scmp.ne.s32.totalorder %s48, %s62
    %p64 = scmp.eq.s32.totalorder %s17, 0
    %p65 = por %p63, %p64
    %s67 = sadd.s32 %s66, 1
    %p70 = scmp.eq.s32.totalorder %s11, 1
    %p71 = scmp.ne.s32.totalorder %s66, %s68
    %p72 = scmp.eq.s32.totalorder %s11, 0
    %p73 = por %p71, %p72
    %p74 = scmp.ne.s32.totalorder %s66, %s68
    %p75 = scmp.eq.s32.totalorder %s16, 1
    %p76 = por %p74, %p75
    %p77 = scmp.ne.s32.totalorder %s68, %s69
    %p78 = scmp.eq.s32.totalorder %s16, 0
    %p79 = por %p77, %p78
    %p80 = scmp.ne.s32.totalorder %s68, %s69
    %p81 = scmp.eq.s32.totalorder %s17, 1
    %p82 = por %p80, %p81
    %p84 = scmp.ne.s32.totalorder %s69, %s83
    %p85 = scmp.eq.s32.totalorder %s17, 0
    %p86 = por %p84, %p85
    %s88 = sadd.s32 %s87, 1
    %p91 = scmp.eq.s32.totalorder %s11, 1
    %p92 = scmp.ne.s32.totalorder %s87, %s89
    %p93 = scmp.eq.s32.totalorder %s11, 0
    %p94 = por %p92, %p93
    %p95 = scmp.ne.s32.totalorder %s87, %s89
    %p96 = scmp.eq.s32.totalorder %s16, 1
    %p97 = por %p95, %p96
    %p98 = scmp.ne.s32.totalorder %s89, %s90
    %p99 = scmp.eq.s32.totalorder %s16, 0
    %p100 = por %p98, %p99
    %p101 = scmp.ne.s32.totalorder %s89, %s90
    %p102 = scmp.eq.s32.totalorder %s17, 1
    %p103 = por %p101, %p102
    %p105 = scmp.ne.s32.totalorder %s90, %s104
    %p106 = scmp.eq.s32.totalorder %s17, 0
    %p107 = por %p105, %p106
    %s109 = sadd.s32 %s108, 1
    %p112 = scmp.eq.s32.totalorder %s11, 1
    %p113 = scmp.ne.s32.totalorder %s108, %s110
    %p114 = scmp.eq.s32.totalorder %s11, 0
    %p115 = por %p113, %p114
    %p116 = scmp.ne.s32.totalorder %s108, %s110
    %p117 = scmp.eq.s32.totalorder %s16, 1
    %p118 = por %p116, %p117
    %p119 = scmp.ne.s32.totalorder %s110, %s111
    %p120 = scmp.eq.s32.totalorder %s16, 0
    %p121 = por %p119, %p120
    %p122 = scmp.ne.s32.totalorder %s110, %s111
    %p123 = scmp.eq.s32.totalorder %s17, 1
    %p124 = por %p122, %p123
    %p126 = scmp.ne.s32.totalorder %s111, %s125
    %p127 = scmp.eq.s32.totalorder %s17, 0
    %p128 = por %p126, %p127
    %s129 = ssub.s32 %s11, %s18
    %p130 = scmp.eq.s32.totalorder %s129, 0
    %s132 = sadd.s32 %s131, 1
    %s133 = scalar_select %p130, %s131, %s132
    %p136 = pneg %p130
    %p137 = scmp.eq.s32.totalorder %s11, 1
    %p138 = por %p136, %p137
    %p139 = scmp.ne.s32.totalorder %s131, %s134
    %p140 = scmp.eq.s32.totalorder %s11, 0
    %p141 = por %p139, %p140
    %p142 = scmp.ne.s32.totalorder %s131, %s134
    %p143 = scmp.eq.s32.totalorder %s16, 1
    %p144 = por %p142, %p143
    %p145 = scmp.ne.s32.totalorder %s134, %s135
    %p146 = scmp.eq.s32.totalorder %s16, 0
    %p147 = por %p145, %p146
    %p148 = scmp.ne.s32.totalorder %s134, %s135
    %p149 = scmp.eq.s32.totalorder %s17, 1
    %p150 = por %p148, %p149
    %p152 = scmp.ne.s32.totalorder %s135, %s151
    %p153 = scmp.eq.s32.totalorder %s17, 0
    %p154 = por %p152, %p153
    %p155 = scmp.le.s32.totalorder 1, %s11
    %p156 = scmp.lt.s32.totalorder %s11, 3
    %p157 = pnand %p155, %p156
    %p158 = pneg %p157
    // Predicated region
    $region9: #{japanese_lipnet_forward.25} parent=5 // pred_check
      _
    $region10: #{japanese_lipnet_forward.25} parent=5 // pred_check_branch
      %160 = sbr.rel (%p157) target = $region12
    $region11: #{japanese_lipnet_forward.25} parent=5 // pred_region
      %s161 = ssub.s32 %s11, 1
      // Predicated region
      $region13: #{japanese_lipnet_forward.25} parent=11 // pred_check
        %p162 = pneg %p58
      $region14: #{japanese_lipnet_forward.25} parent=11 // pred_check_branch
        %164 = sbr.rel (%p162) target = $region16
      $region15: #{japanese_lipnet_forward.25} parent=11 // pred_region
        _
      $region16: #{japanese_lipnet_forward.25} parent=11 // pred_fallthru
        _
      // Predicated region
      $region17: #{japanese_lipnet_forward.25} parent=11 // pred_check
        %p165 = pneg %p79
      $region18: #{japanese_lipnet_forward.25} parent=11 // pred_check_branch
        %167 = sbr.rel (%p165) target = $region20
      $region19: #{japanese_lipnet_forward.25} parent=11 // pred_region
        _
      $region20: #{japanese_lipnet_forward.25} parent=11 // pred_fallthru
        _
      // Predicated region
      $region21: #{japanese_lipnet_forward.25} parent=11 // pred_check
        %p168 = pneg %p100
      $region22: #{japanese_lipnet_forward.25} parent=11 // pred_check_branch
        %170 = sbr.rel (%p168) target = $region24
      $region23: #{japanese_lipnet_forward.25} parent=11 // pred_region
        _
      $region24: #{japanese_lipnet_forward.25} parent=11 // pred_fallthru
        _
      // Predicated region
      $region25: #{japanese_lipnet_forward.25} parent=11 // pred_check
        %p171 = pneg %p121
      $region26: #{japanese_lipnet_forward.25} parent=11 // pred_check_branch
        %173 = sbr.rel (%p171) target = $region28
      $region27: #{japanese_lipnet_forward.25} parent=11 // pred_region
        _
      $region28: #{japanese_lipnet_forward.25} parent=11 // pred_fallthru
        _
    $region12: #{japanese_lipnet_forward.25} parent=5 // pred_fallthru
      _
    %p174 = scmp.lt.s32.totalorder %s11, 2
    // Predicated region
    $region29: #{japanese_lipnet_forward.25} parent=5 // pred_check
      %p175 = pneg %p174
    $region30: #{japanese_lipnet_forward.25} parent=5 // pred_check_branch
      %177 = sbr.rel (%p175) target = $region32
    $region31: #{japanese_lipnet_forward.25} parent=5 // pred_region
      // Predicated region
      $region33: #{japanese_lipnet_forward.25} parent=31 // pred_check
        %p178 = pneg %p31
      $region34: #{japanese_lipnet_forward.25} parent=31 // pred_check_branch
        %180 = sbr.rel (%p178) target = $region36
      $region35: #{japanese_lipnet_forward.25} parent=31 // pred_region
        %p181 = scmp.lt.s32.totalorder %s11, 1
        %s182 = scalar_select %p181, %s11, 1
        %s183 = smul.addr %s182, 8
        %s184 = scalar_lea.vmem %s0, %s183
      $region36: #{japanese_lipnet_forward.25} parent=31 // pred_fallthru
        _
    $region32: #{japanese_lipnet_forward.25} parent=5 // pred_fallthru
      _
    %p185 = scmp.le.s32.totalorder 1, %s11
    %p186 = scmp.lt.s32.totalorder %s11, 3
    %p187 = pnand %p185, %p186
    %p188 = pneg %p187
    // Predicated region
    $region37: #{japanese_lipnet_forward.25} parent=5 // pred_check
      _
    $region38: #{japanese_lipnet_forward.25} parent=5 // pred_check_branch
      %190 = sbr.rel (%p187) target = $region40
    $region39: #{japanese_lipnet_forward.25} parent=5 // pred_region
      %s191 = ssub.s32 %s11, 1
      %p192 = scmp.lt.s32.totalorder %s16, 1
      %s193 = scalar_select %p192, %s16, 1
      %s194 = smul.addr %s193, 8
      %s195 = scalar_lea.vmem %s0, %s194
      %p196 = pneg %p37
      %p197 = pneg %p34
      %p198 = pneg %p58
      %p199 = pneg %p55
      %p200 = pneg %p79
      %p201 = pneg %p76
      %p202 = pneg %p100
      %p203 = pneg %p97
      %p204 = pneg %p121
      %p205 = pneg %p118
      %p206 = pneg %p147
      %p207 = pneg %p144
      %p208 = scmp.lt.s32.totalorder %s16, 1
      %s209 = scalar_select %p208, %s16, 1
      %s210 = smul.addr %s209, 4
      %s211 = smul.addr %s210, 8
      %s212 = scalar_lea.vmem %s5, %s211
      %p213 = scmp.lt.s32.totalorder %s16, 1
      %s214 = scalar_select %p213, %s16, 1
      %s215 = smul.addr %s214, 8
      %s216 = scalar_lea.vmem %s0, %s215
      %p217 = scmp.lt.s32.totalorder %s16, 1
      %s218 = scalar_select %p217, %s16, 1
      %s219 = smul.addr %s218, 4
      %s220 = smul.addr %s219, 8
      %s221 = scalar_lea.vmem %s5, %s220
      %v222 = vld [vmem:[%s216] sm:$0xff]
      %v223 = vld [vmem:[%s1] sm:$0x1]
      %v224 = vld [vmem:[%s2] sm:$0x1]
      %225 = vadd.xlane.f32.xlu0 %v222
      %v226 = vpop.xlane.xlu0 %225
      %v227 = vrcp.pop 128.0
      %v228 = vmul.f32 %v226, %v227
      %v229 = vsub.f32 %v222, %v228
      %v230 = vmul.f32 %v229, %v229
      %231 = vadd.xlane.f32.xlu0 %v230
      %v232 = vpop.xlane.xlu0 %231
      %v233 = vmul.f32 %v232, %v227
      %v234 = vadd.f32 %v233, 1e-05
      %v235 = vrsqrt.pop %v234
      %v236 = vmul.f32 %v229, %v235
      %v238 = vlaneseq
      %v239 = vshrl.u32 %v238, 7
      %v240 = vsub.s32 0, %v239
      %v241 = vrot.slane %v223, %v240
      %v243 = vmul.f32 %v236, %v241
      %v245 = vlaneseq
      %v246 = vshrl.u32 %v245, 7
      %v247 = vsub.s32 0, %v246
      %v248 = vrot.slane %v224, %v247
      %v250 = vadd.f32 %v243, %v248
      %v251 = vld [vmem:[%s3] sm:$0xff]
      %v252 = vld [vmem:[%s3 + $0x8] sm:$0xff]
      %v253 = vld [vmem:[%s3 + $0x10] sm:$0xff]
      %v254 = vld [vmem:[%s3 + $0x18] sm:$0xff]
      %v255 = vld [vmem:[%s3 + $0x20] sm:$0xff]
      %v256 = vld [vmem:[%s3 + $0x28] sm:$0xff]
      %v257 = vld [vmem:[%s3 + $0x30] sm:$0xff]
      %v258 = vld [vmem:[%s3 + $0x38] sm:$0xff]
      %v259 = vld [vmem:[%s3 + $0x40] sm:$0xff]
      %v260 = vld [vmem:[%s3 + $0x48] sm:$0xff]
      %v261 = vld [vmem:[%s3 + $0x50] sm:$0xff]
      %v262 = vld [vmem:[%s3 + $0x58] sm:$0xff]
      %v263 = vld [vmem:[%s3 + $0x60] sm:$0xff]
      %v264 = vld [vmem:[%s3 + $0x68] sm:$0xff]
      %v265 = vld [vmem:[%s3 + $0x70] sm:$0xff]
      %v266 = vld [vmem:[%s3 + $0x78] sm:$0xff]
      %v267 = vld [vmem:[%s3 + $0x80] sm:$0xff]
      %v268 = vld [vmem:[%s3 + $0x88] sm:$0xff]
      %v269 = vld [vmem:[%s3 + $0x90] sm:$0xff]
      %v270 = vld [vmem:[%s3 + $0x98] sm:$0xff]
      %v271 = vld [vmem:[%s3 + $0xa0] sm:$0xff]
      %v272 = vld [vmem:[%s3 + $0xa8] sm:$0xff]
      %v273 = vld [vmem:[%s3 + $0xb0] sm:$0xff]
      %v274 = vld [vmem:[%s3 + $0xb8] sm:$0xff]
      %v275 = vld [vmem:[%s3 + $0xc0] sm:$0xff]
      %v276 = vld [vmem:[%s3 + $0xc8] sm:$0xff]
      %v277 = vld [vmem:[%s3 + $0xd0] sm:$0xff]
      %v278 = vld [vmem:[%s3 + $0xd8] sm:$0xff]
      %v279 = vld [vmem:[%s3 + $0xe0] sm:$0xff]
      %v280 = vld [vmem:[%s3 + $0xe8] sm:$0xff]
      %v281 = vld [vmem:[%s3 + $0xf0] sm:$0xff]
      %v282 = vld [vmem:[%s3 + $0xf8] sm:$0xff]
      %v283 = vld [vmem:[%s3 + $0x100] sm:$0xff]
      %v284 = vld [vmem:[%s3 + $0x108] sm:$0xff]
      %v285 = vld [vmem:[%s3 + $0x110] sm:$0xff]
      %v286 = vld [vmem:[%s3 + $0x118] sm:$0xff]
      %v287 = vld [vmem:[%s3 + $0x120] sm:$0xff]
      %v288 = vld [vmem:[%s3 + $0x128] sm:$0xff]
      %v289 = vld [vmem:[%s3 + $0x130] sm:$0xff]
      %v290 = vld [vmem:[%s3 + $0x138] sm:$0xff]
      %v291 = vld [vmem:[%s3 + $0x140] sm:$0xff]
      %v292 = vld [vmem:[%s3 + $0x148] sm:$0xff]
      %v293 = vld [vmem:[%s3 + $0x150] sm:$0xff]
      %v294 = vld [vmem:[%s3 + $0x158] sm:$0xff]
      %v295 = vld [vmem:[%s3 + $0x160] sm:$0xff]
      %v296 = vld [vmem:[%s3 + $0x168] sm:$0xff]
      %v297 = vld [vmem:[%s3 + $0x170] sm:$0xff]
      %v298 = vld [vmem:[%s3 + $0x178] sm:$0xff]
      %v299 = vld [vmem:[%s3 + $0x180] sm:$0xff]
      %v300 = vld [vmem:[%s3 + $0x188] sm:$0xff]
      %v301 = vld [vmem:[%s3 + $0x190] sm:$0xff]
      %v302 = vld [vmem:[%s3 + $0x198] sm:$0xff]
      %v303 = vld [vmem:[%s3 + $0x1a0] sm:$0xff]
      %v304 = vld [vmem:[%s3 + $0x1a8] sm:$0xff]
      %v305 = vld [vmem:[%s3 + $0x1b0] sm:$0xff]
      %v306 = vld [vmem:[%s3 + $0x1b8] sm:$0xff]
      %v307 = vld [vmem:[%s3 + $0x1c0] sm:$0xff]
      %v308 = vld [vmem:[%s3 + $0x1c8] sm:$0xff]
      %v309 = vld [vmem:[%s3 + $0x1d0] sm:$0xff]
      %v310 = vld [vmem:[%s3 + $0x1d8] sm:$0xff]
      %v311 = vld [vmem:[%s3 + $0x1e0] sm:$0xff]
      %v312 = vld [vmem:[%s3 + $0x1e8] sm:$0xff]
      %v313 = vld [vmem:[%s3 + $0x1f0] sm:$0xff]
      %v314 = vld [vmem:[%s3 + $0x1f8] sm:$0xff]
      %v315 = vld [vmem:[%s4] sm:$0xf]
      %v317 = vlaneseq
      %v318 = vshrl.u32 %v317, 7
      %v319 = vsub.s32 0, %v318
      %v320 = vrot.slane %v315, %v319
      %v321 = vlaneseq
      %v322 = vshrl.u32 %v321, 7
      %v323 = vsub.s32 1, %v322
      %v324 = vrot.slane %v315, %v323
      %v325 = vlaneseq
      %v326 = vshrl.u32 %v325, 7
      %v327 = vsub.s32 2, %v326
      %v328 = vrot.slane %v315, %v327
      %v329 = vlaneseq
      %v330 = vshrl.u32 %v329, 7
      %v331 = vsub.s32 3, %v330
      %v332 = vrot.slane %v315, %v331
      %337 = vmatprep.subr.mxu0 %v312
      %338 = vmatpush1.msra.mxu0 %v311
      %339 = vmatprep.subr.mxu0 %v308
      %340 = vmatpush1.msra.mxu0 %v307
      %341 = vmatprep.subr.mxu0 %v304
      %342 = vmatpush1.msra.mxu0 %v303
      %343 = vmatprep.subr.mxu0 %v300
      %344 = vmatpush1.msra.mxu0 %v299
      %345 = vmatprep.subr.mxu0 %v296
      %346 = vmatpush1.msra.mxu0 %v295
      %347 = vmatprep.subr.mxu0 %v292
      %348 = vmatpush1.msra.mxu0 %v291
      %349 = vmatprep.subr.mxu0 %v288
      %350 = vmatpush1.msra.mxu0 %v287
      %351 = vmatprep.subr.mxu0 %v284
      %352 = vmatpush1.msra.mxu0 %v283
      %353 = vmatprep.subr.mxu0 %v280
      %354 = vmatpush1.msra.mxu0 %v279
      %355 = vmatprep.subr.mxu0 %v276
      %356 = vmatpush1.msra.mxu0 %v275
      %357 = vmatprep.subr.mxu0 %v272
      %358 = vmatpush1.msra.mxu0 %v271
      %359 = vmatprep.subr.mxu0 %v268
      %360 = vmatpush1.msra.mxu0 %v267
      %361 = vmatprep.subr.mxu0 %v264
      %362 = vmatpush1.msra.mxu0 %v263
      %363 = vmatprep.subr.mxu0 %v260
      %364 = vmatpush1.msra.mxu0 %v259
      %365 = vmatprep.subr.mxu0 %v256
      %366 = vmatpush1.msra.mxu0 %v255
      %367 = vmatprep.subr.mxu0 %v252
      %368 = vmatpush1.msra.mxu0 %v251
      %369 = vmatprep.subr.mxu0 0.0
      %370 = vmatpush2.msra.mxu0 0.0
      %371 = vmatprep.subr.mxu0 0.0
      %372 = vmatpush2.msra.mxu0 0.0
      %373 = vmatprep.subr.mxu0 0.0
      %374 = vmatpush2.msra.mxu0 0.0
      %375 = vmatprep.subr.mxu0 0.0
      %376 = vmatpush2.msra.mxu0 0.0
      %377 = vmatprep.subr.mxu0 0.0
      %378 = vmatpush2.msra.mxu0 0.0
      %379 = vmatprep.subr.mxu0 0.0
      %380 = vmatpush2.msra.mxu0 0.0
      %381 = vmatprep.subr.mxu0 0.0
      %382 = vmatpush2.msra.mxu0 0.0
      %383 = vmatprep.subr.mxu0 0.0
      %384 = vmatpush2.msra.mxu0 0.0
      %385 = vmatprep.subr.mxu0 0.0
      %386 = vmatpush2.msra.mxu0 0.0
      %387 = vmatprep.subr.mxu0 0.0
      %388 = vmatpush2.msra.mxu0 0.0
      %389 = vmatprep.subr.mxu0 0.0
      %390 = vmatpush2.msra.mxu0 0.0
      %391 = vmatprep.subr.mxu0 0.0
      %392 = vmatpush2.msra.mxu0 0.0
      %393 = vmatprep.subr.mxu0 0.0
      %394 = vmatpush2.msra.mxu0 0.0
      %395 = vmatprep.subr.mxu0 0.0
      %396 = vmatpush2.msra.mxu0 0.0
      %397 = vmatprep.subr.mxu0 0.0
      %398 = vmatpush2.msra.mxu0 0.0
      %399 = vmatprep.subr.mxu0 0.0
      %400 = vmatpush2.msra.mxu0 0.0
      %401 = vmatprep.mubr.f32.mxu0 0.0
      %402 = vmatmul.mubr.f32.gmra.mxu0 %v250
      %v403 = vpop.f32.mrf.mxu0
      %v404 = vadd.f32 %v320, %v403
      %v405 = vpop.f32.mrf.mxu0
      %v406 = vadd.f32 %v324, %v405
      %407 = vdwg.mxu0
      %408 = vmatprep.subr.mxu0 %v314
      %409 = vmatpush1.msra.mxu0 %v313
      %410 = vmatprep.subr.mxu0 %v310
      %411 = vmatpush1.msra.mxu0 %v309
      %412 = vmatprep.subr.mxu0 %v306
      %413 = vmatpush1.msra.mxu0 %v305
      %414 = vmatprep.subr.mxu0 %v302
      %415 = vmatpush1.msra.mxu0 %v301
      %416 = vmatprep.subr.mxu0 %v298
      %417 = vmatpush1.msra.mxu0 %v297
      %418 = vmatprep.subr.mxu0 %v294
      %419 = vmatpush1.msra.mxu0 %v293
      %420 = vmatprep.subr.mxu0 %v290
      %421 = vmatpush1.msra.mxu0 %v289
      %422 = vmatprep.subr.mxu0 %v286
      %423 = vmatpush1.msra.mxu0 %v285
      %424 = vmatprep.subr.mxu0 %v282
      %425 = vmatpush1.msra.mxu0 %v281
      %426 = vmatprep.subr.mxu0 %v278
      %427 = vmatpush1.msra.mxu0 %v277
      %428 = vmatprep.subr.mxu0 %v274
      %429 = vmatpush1.msra.mxu0 %v273
      %430 = vmatprep.subr.mxu0 %v270
      %431 = vmatpush1.msra.mxu0 %v269
      %432 = vmatprep.subr.mxu0 %v266
      %433 = vmatpush1.msra.mxu0 %v265
      %434 = vmatprep.subr.mxu0 %v262
      %435 = vmatpush1.msra.mxu0 %v261
      %436 = vmatprep.subr.mxu0 %v258
      %437 = vmatpush1.msra.mxu0 %v257
      %438 = vmatprep.subr.mxu0 %v254
      %439 = vmatpush1.msra.mxu0 %v253
      %440 = vmatprep.subr.mxu0 0.0
      %441 = vmatpush2.msra.mxu0 0.0
      %442 = vmatprep.subr.mxu0 0.0
      %443 = vmatpush2.msra.mxu0 0.0
      %444 = vmatprep.subr.mxu0 0.0
      %445 = vmatpush2.msra.mxu0 0.0
      %446 = vmatprep.subr.mxu0 0.0
      %447 = vmatpush2.msra.mxu0 0.0
      %448 = vmatprep.subr.mxu0 0.0
      %449 = vmatpush2.msra.mxu0 0.0
      %450 = vmatprep.subr.mxu0 0.0
      %451 = vmatpush2.msra.mxu0 0.0
      %452 = vmatprep.subr.mxu0 0.0
      %453 = vmatpush2.msra.mxu0 0.0
      %454 = vmatprep.subr.mxu0 0.0
      %455 = vmatpush2.msra.mxu0 0.0
      %456 = vmatprep.subr.mxu0 0.0
      %457 = vmatpush2.msra.mxu0 0.0
      %458 = vmatprep.subr.mxu0 0.0
      %459 = vmatpush2.msra.mxu0 0.0
      %460 = vmatprep.subr.mxu0 0.0
      %461 = vmatpush2.msra.mxu0 0.0
      %462 = vmatprep.subr.mxu0 0.0
      %463 = vmatpush2.msra.mxu0 0.0
      %464 = vmatprep.subr.mxu0 0.0
      %465 = vmatpush2.msra.mxu0 0.0
      %466 = vmatprep.subr.mxu0 0.0
      %467 = vmatpush2.msra.mxu0 0.0
      %468 = vmatprep.subr.mxu0 0.0
      %469 = vmatpush2.msra.mxu0 0.0
      %470 = vmatprep.subr.mxu0 0.0
      %471 = vmatpush2.msra.mxu0 0.0
      %472 = vmatprep.mubr.f32.mxu0 0.0
      %473 = vmatmul.mubr.f32.gmra.mxu0 %v250
      %v474 = vpop.f32.mrf.mxu0
      %v475 = vadd.f32 %v328, %v474
      %v476 = vpop.f32.mrf.mxu0
      %v477 = vadd.f32 %v332, %v476
      %478 = vdwg.mxu0
      %v479 = vxor.u32 %v404, 2147483648
      %v480 = vxor.u32 %v406, 2147483648
      %v481 = vxor.u32 %v475, 2147483648
      %v482 = vxor.u32 %v477, 2147483648
      %v483 = vmul.f32 %v479, 1.442695
      %v484 = vpow.pop %v483
      %v485 = vmul.f32 %v480, 1.442695
      %v486 = vpow.pop %v485
      %v487 = vmul.f32 %v481, 1.442695
      %v488 = vpow.pop %v487
      %v489 = vmul.f32 %v482, 1.442695
      %v490 = vpow.pop %v489
      %v491 = vadd.f32 %v484, 1.0
      %v492 = vadd.f32 %v486, 1.0
      %v493 = vadd.f32 %v488, 1.0
      %v494 = vadd.f32 %v490, 1.0
      %v495 = vrcp.pop %v491
      %v496 = vmul.f32 1.0, %v495
      %v497 = vrcp.pop %v492
      %v498 = vmul.f32 1.0, %v497
      %v499 = vrcp.pop %v493
      %v500 = vmul.f32 1.0, %v499
      %v501 = vrcp.pop %v494
      %v502 = vmul.f32 1.0, %v501
      %v503 = vmul.f32 %v404, %v496
      %v504 = vmul.f32 %v406, %v498
      %v505 = vmul.f32 %v475, %v500
      %v506 = vmul.f32 %v477, %v502
      %507 = vst [vmem:[%s221] sm:$0xff] %v503
      %508 = vst [vmem:[%s221 + $0x8] sm:$0xff] %v504
      %509 = vst [vmem:[%s221 + $0x10] sm:$0xff] %v505
      %510 = vst [vmem:[%s221 + $0x18] sm:$0xff] %v506
      %p511 = scmp.lt.s32.totalorder %s16, 1
      %s512 = scalar_select %p511, %s16, 1
      %s513 = smul.addr %s512, 4
      %s514 = smul.addr %s513, 8
      %s515 = scalar_lea.vmem %s5, %s514
      // Predicated region
      $region41: #{japanese_lipnet_forward.25} parent=39 // pred_check
        %p516 = pneg %p144
      $region42: #{japanese_lipnet_forward.25} parent=39 // pred_check_branch
        %518 = sbr.rel (%p516) target = $region44
      $region43: #{japanese_lipnet_forward.25} parent=39 // pred_region
        _
      $region44: #{japanese_lipnet_forward.25} parent=39 // pred_fallthru
        _
    $region40: #{japanese_lipnet_forward.25} parent=5 // pred_fallthru
      _
    %p519 = scmp.le.s32.totalorder 2, %s11
    // Predicated region
    $region45: #{japanese_lipnet_forward.25} parent=5 // pred_check
      %p520 = pneg %p519
    $region46: #{japanese_lipnet_forward.25} parent=5 // pred_check_branch
      %522 = sbr.rel (%p520) target = $region48
    $region47: #{japanese_lipnet_forward.25} parent=5 // pred_region
      %s523 = ssub.s32 %s11, 2
      // Predicated region
      $region49: #{japanese_lipnet_forward.25} parent=47 // pred_check
        %p524 = pneg %p150
      $region50: #{japanese_lipnet_forward.25} parent=47 // pred_check_branch
        %526 = sbr.rel (%p524) target = $region52
      $region51: #{japanese_lipnet_forward.25} parent=47 // pred_region
        %p527 = scmp.lt.s32.totalorder %s17, 1
        %s528 = scalar_select %p527, %s17, 1
        %s529 = smul.addr %s528, 4
        %s530 = smul.addr %s529, 8
        %s531 = scalar_lea.vmem %s5, %s530
      $region52: #{japanese_lipnet_forward.25} parent=47 // pred_fallthru
        _
    $region48: #{japanese_lipnet_forward.25} parent=5 // pred_fallthru
      _
  $region6: #{japanese_lipnet_forward.25} parent=0 // loop_footer
    %s15 = sadd.s32 1, %s11
  $region7: #{japanese_lipnet_forward.25} parent=0 // loop_footer_branch
    %10 = sbr.rel target = $region3
  $region8: #{japanese_lipnet_forward.25} parent=0 // loop_exit
    _

// kernel: japanese_lipnet_forward.26
$region0: #{japanese_lipnet_forward.26}
  #allocation0 [shape = 'u32[]', space=smem, size = 0x4, offset = 0x4, fixed_abs, tag = 'smem constant byte address 0x4 - core index']
  #allocation1 [shape = 'u32[144,128]{1,0:T(1,128)}', space=vmem, size = 0x12000, scoped, tag = 'internal scratch']
  %s0 = inlined_call_operand.vmem [shape: f32[16,512], index: 0, kind: input, shape index: {}]
  %s1 = inlined_call_operand.vmem [shape: f32[512,128], index: 1, kind: input, shape index: {}]
  %s2 = inlined_call_operand.vmem [shape: f32[1,128], index: 2, kind: input, shape index: {}]
  %s3 = inlined_call_operand.vmem [shape: f32[16,128], index: 3, kind: input, shape index: {}]
  %s4 = inlined_call_operand.vmem [shape: f32[16,128], index: 4, kind: output, shape index: {}]
  %s5 = sld [smem:[#allocation0]]
  $region49: #{japanese_lipnet_forward.26} parent=0
    _
  %s7 = ssub.s32 1, %s5
  %s8 = scalar_select 0, %s7, %s5
  loop: start=0, step=1, limit=4
  $region2: #{japanese_lipnet_forward.26} parent=0 // loop_pre_header
    _
  $region3: #{japanese_lipnet_forward.26} parent=0 // loop_header
    %s10 = sphi 0, %s14
    %p11 = scmp.ge.s32.totalorder %s10, 4
    %s20 = sphi 0, %s22
    %s23 = sphi 0, %s20
    %s24 = sphi 0, %s23
    %s40 = sphi 0, %s24
    %s44 = sphi 0, %s44
    %s46 = sphi 0, %s44
    %s47 = sphi 0, %s46
    %s61 = sphi 0, %s47
    %s65 = sphi 0, %s65
    %s67 = sphi 0, %s65
    %s68 = sphi 0, %s67
    %s82 = sphi 0, %s68
    %s88 = sphi 0, %s90
    %s91 = sphi 0, %s88
    %s92 = sphi 0, %s91
    %s108 = sphi 0, %s92
    %s114 = sphi 0, %s116
    %s117 = sphi 0, %s114
    %s118 = sphi 0, %s117
    %s134 = sphi 0, %s118
  $region4: #{japanese_lipnet_forward.26} parent=0 // loop_header_branch
    %13 = sbr.rel (%p11) target = $region8
  $region5: #{japanese_lipnet_forward.26} parent=0 // loop_body
    %s15 = ssub.s32 %s10, 1
    %s16 = ssub.s32 %s10, 2
    %s17 = sadd.s32 %s10, 1
    %s18 = ssub.s32 %s10, %s17
    %p19 = scmp.eq.s32.totalorder %s18, 0
    %s21 = sadd.s32 %s20, 1
    %s22 = scalar_select %p19, %s20, %s21
    %p25 = pneg %p19
    %p26 = scmp.eq.s32.totalorder %s10, 1
    %p27 = por %p25, %p26
    %p28 = scmp.ne.s32.totalorder %s20, %s23
    %p29 = scmp.eq.s32.totalorder %s10, 0
    %p30 = por %p28, %p29
    %p31 = scmp.ne.s32.totalorder %s20, %s23
    %p32 = scmp.eq.s32.totalorder %s15, 1
    %p33 = por %p31, %p32
    %p34 = scmp.ne.s32.totalorder %s23, %s24
    %p35 = scmp.eq.s32.totalorder %s15, 0
    %p36 = por %p34, %p35
    %p37 = scmp.ne.s32.totalorder %s23, %s24
    %p38 = scmp.eq.s32.totalorder %s16, 1
    %p39 = por %p37, %p38
    %p41 = scmp.ne.s32.totalorder %s24, %s40
    %p42 = scmp.eq.s32.totalorder %s16, 0
    %p43 = por %p41, %p42
    %s45 = sadd.s32 %s44, 1
    %p48 = scmp.eq.s32.totalorder %s10, 1
    %p49 = scmp.ne.s32.totalorder %s44, %s46
    %p50 = scmp.eq.s32.totalorder %s10, 0
    %p51 = por %p49, %p50
    %p52 = scmp.ne.s32.totalorder %s44, %s46
    %p53 = scmp.eq.s32.totalorder %s15, 1
    %p54 = por %p52, %p53
    %p55 = scmp.ne.s32.totalorder %s46, %s47
    %p56 = scmp.eq.s32.totalorder %s15, 0
    %p57 = por %p55, %p56
    %p58 = scmp.ne.s32.totalorder %s46, %s47
    %p59 = scmp.eq.s32.totalorder %s16, 1
    %p60 = por %p58, %p59
    %p62 = scmp.ne.s32.totalorder %s47, %s61
    %p63 = scmp.eq.s32.totalorder %s16, 0
    %p64 = por %p62, %p63
    %s66 = sadd.s32 %s65, 1
    %p69 = scmp.eq.s32.totalorder %s10, 1
    %p70 = scmp.ne.s32.totalorder %s65, %s67
    %p71 = scmp.eq.s32.totalorder %s10, 0
    %p72 = por %p70, %p71
    %p73 = scmp.ne.s32.totalorder %s65, %s67
    %p74 = scmp.eq.s32.totalorder %s15, 1
    %p75 = por %p73, %p74
    %p76 = scmp.ne.s32.totalorder %s67, %s68
    %p77 = scmp.eq.s32.totalorder %s15, 0
    %p78 = por %p76, %p77
    %p79 = scmp.ne.s32.totalorder %s67, %s68
    %p80 = scmp.eq.s32.totalorder %s16, 1
    %p81 = por %p79, %p80
    %p83 = scmp.ne.s32.totalorder %s68, %s82
    %p84 = scmp.eq.s32.totalorder %s16, 0
    %p85 = por %p83, %p84
    %s86 = ssub.s32 %s10, %s17
    %p87 = scmp.eq.s32.totalorder %s86, 0
    %s89 = sadd.s32 %s88, 1
    %s90 = scalar_select %p87, %s88, %s89
    %p93 = pneg %p87
    %p94 = scmp.eq.s32.totalorder %s10, 1
    %p95 = por %p93, %p94
    %p96 = scmp.ne.s32.totalorder %s88, %s91
    %p97 = scmp.eq.s32.totalorder %s10, 0
    %p98 = por %p96, %p97
    %p99 = scmp.ne.s32.totalorder %s88, %s91
    %p100 = scmp.eq.s32.totalorder %s15, 1
    %p101 = por %p99, %p100
    %p102 = scmp.ne.s32.totalorder %s91, %s92
    %p103 = scmp.eq.s32.totalorder %s15, 0
    %p104 = por %p102, %p103
    %p105 = scmp.ne.s32.totalorder %s91, %s92
    %p106 = scmp.eq.s32.totalorder %s16, 1
    %p107 = por %p105, %p106
    %p109 = scmp.ne.s32.totalorder %s92, %s108
    %p110 = scmp.eq.s32.totalorder %s16, 0
    %p111 = por %p109, %p110
    %s112 = ssub.s32 %s10, %s17
    %p113 = scmp.eq.s32.totalorder %s112, 0
    %s115 = sadd.s32 %s114, 1
    %s116 = scalar_select %p113, %s114, %s115
    %p119 = pneg %p113
    %p120 = scmp.eq.s32.totalorder %s10, 1
    %p121 = por %p119, %p120
    %p122 = scmp.ne.s32.totalorder %s114, %s117
    %p123 = scmp.eq.s32.totalorder %s10, 0
    %p124 = por %p122, %p123
    %p125 = scmp.ne.s32.totalorder %s114, %s117
    %p126 = scmp.eq.s32.totalorder %s15, 1
    %p127 = por %p125, %p126
    %p128 = scmp.ne.s32.totalorder %s117, %s118
    %p129 = scmp.eq.s32.totalorder %s15, 0
    %p130 = por %p128, %p129
    %p131 = scmp.ne.s32.totalorder %s117, %s118
    %p132 = scmp.eq.s32.totalorder %s16, 1
    %p133 = por %p131, %p132
    %p135 = scmp.ne.s32.totalorder %s118, %s134
    %p136 = scmp.eq.s32.totalorder %s16, 0
    %p137 = por %p135, %p136
    %p138 = scmp.le.s32.totalorder 1, %s10
    %p139 = scmp.lt.s32.totalorder %s10, 3
    %p140 = pnand %p138, %p139
    %p141 = pneg %p140
    // Predicated region
    $region9: #{japanese_lipnet_forward.26} parent=5 // pred_check
      _
    $region10: #{japanese_lipnet_forward.26} parent=5 // pred_check_branch
      %143 = sbr.rel (%p140) target = $region12
    $region11: #{japanese_lipnet_forward.26} parent=5 // pred_region
      %s144 = ssub.s32 %s10, 1
      // Predicated region
      $region13: #{japanese_lipnet_forward.26} parent=11 // pred_check
        %p145 = pneg %p57
      $region14: #{japanese_lipnet_forward.26} parent=11 // pred_check_branch
        %147 = sbr.rel (%p145) target = $region16
      $region15: #{japanese_lipnet_forward.26} parent=11 // pred_region
        _
      $region16: #{japanese_lipnet_forward.26} parent=11 // pred_fallthru
        _
      // Predicated region
      $region17: #{japanese_lipnet_forward.26} parent=11 // pred_check
        %p148 = pneg %p78
      $region18: #{japanese_lipnet_forward.26} parent=11 // pred_check_branch
        %150 = sbr.rel (%p148) target = $region20
      $region19: #{japanese_lipnet_forward.26} parent=11 // pred_region
        _
      $region20: #{japanese_lipnet_forward.26} parent=11 // pred_fallthru
        _
    $region12: #{japanese_lipnet_forward.26} parent=5 // pred_fallthru
      _
    %p151 = scmp.lt.s32.totalorder %s10, 2
    // Predicated region
    $region21: #{japanese_lipnet_forward.26} parent=5 // pred_check
      %p152 = pneg %p151
    $region22: #{japanese_lipnet_forward.26} parent=5 // pred_check_branch
      %154 = sbr.rel (%p152) target = $region24
    $region23: #{japanese_lipnet_forward.26} parent=5 // pred_region
      // Predicated region
      $region25: #{japanese_lipnet_forward.26} parent=23 // pred_check
        %p155 = pneg %p30
      $region26: #{japanese_lipnet_forward.26} parent=23 // pred_check_branch
        %157 = sbr.rel (%p155) target = $region28
      $region27: #{japanese_lipnet_forward.26} parent=23 // pred_region
        %p158 = scmp.lt.s32.totalorder %s10, 1
        %s159 = scalar_select %p158, %s10, 1
        %s160 = smul.addr %s159, 4
        %s161 = smul.addr %s160, 8
        %s162 = scalar_lea.vmem %s0, %s161
      $region28: #{japanese_lipnet_forward.26} parent=23 // pred_fallthru
        _
      // Predicated region
      $region29: #{japanese_lipnet_forward.26} parent=23 // pred_check
        %p163 = pneg %p98
      $region30: #{japanese_lipnet_forward.26} parent=23 // pred_check_branch
        %165 = sbr.rel (%p163) target = $region32
      $region31: #{japanese_lipnet_forward.26} parent=23 // pred_region
        %p166 = scmp.lt.s32.totalorder %s10, 1
        %s167 = scalar_select %p166, %s10, 1
        %s168 = smul.addr %s167, 8
        %s169 = scalar_lea.vmem %s3, %s168
      $region32: #{japanese_lipnet_forward.26} parent=23 // pred_fallthru
        _
    $region24: #{japanese_lipnet_forward.26} parent=5 // pred_fallthru
      _
    %p170 = scmp.le.s32.totalorder 1, %s10
    %p171 = scmp.lt.s32.totalorder %s10, 3
    %p172 = pnand %p170, %p171
    %p173 = pneg %p172
    // Predicated region
    $region33: #{japanese_lipnet_forward.26} parent=5 // pred_check
      _
    $region34: #{japanese_lipnet_forward.26} parent=5 // pred_check_branch
      %175 = sbr.rel (%p172) target = $region36
    $region35: #{japanese_lipnet_forward.26} parent=5 // pred_region
      %s176 = ssub.s32 %s10, 1
      %p177 = scmp.lt.s32.totalorder %s15, 1
      %s178 = scalar_select %p177, %s15, 1
      %s179 = smul.addr %s178, 4
      %s180 = smul.addr %s179, 8
      %s181 = scalar_lea.vmem %s0, %s180
      %p182 = pneg %p36
      %p183 = pneg %p33
      %p184 = pneg %p57
      %p185 = pneg %p54
      %p186 = pneg %p78
      %p187 = pneg %p75
      %p188 = scmp.lt.s32.totalorder %s15, 1
      %s189 = scalar_select %p188, %s15, 1
      %s190 = smul.addr %s189, 8
      %s191 = scalar_lea.vmem %s3, %s190
      %p192 = pneg %p104
      %p193 = pneg %p101
      %p194 = pneg %p130
      %p195 = pneg %p127
      %p196 = scmp.lt.s32.totalorder %s15, 1
      %s197 = scalar_select %p196, %s15, 1
      %s198 = smul.addr %s197, 8
      %s199 = scalar_lea.vmem %s4, %s198
      %p200 = scmp.lt.s32.totalorder %s15, 1
      %s201 = scalar_select %p200, %s15, 1
      %s202 = smul.addr %s201, 4
      %s203 = smul.addr %s202, 8
      %s204 = scalar_lea.vmem %s0, %s203
      %p205 = scmp.lt.s32.totalorder %s15, 1
      %s206 = scalar_select %p205, %s15, 1
      %s207 = smul.addr %s206, 8
      %s208 = scalar_lea.vmem %s3, %s207
      %p209 = scmp.lt.s32.totalorder %s15, 1
      %s210 = scalar_select %p209, %s15, 1
      %s211 = smul.addr %s210, 8
      %s212 = scalar_lea.vmem %s4, %s211
      %v213 = vld [vmem:[%s204] sm:$0xff]
      %v214 = vld [vmem:[%s204 + $0x8] sm:$0xff]
      %v215 = vld [vmem:[%s204 + $0x10] sm:$0xff]
      %v216 = vld [vmem:[%s204 + $0x18] sm:$0xff]
      %v217 = vld [vmem:[%s1] sm:$0xff]
      %v218 = vld [vmem:[%s1 + $0x8] sm:$0xff]
      %v219 = vld [vmem:[%s1 + $0x10] sm:$0xff]
      %v220 = vld [vmem:[%s1 + $0x18] sm:$0xff]
      %v221 = vld [vmem:[%s1 + $0x20] sm:$0xff]
      %v222 = vld [vmem:[%s1 + $0x28] sm:$0xff]
      %v223 = vld [vmem:[%s1 + $0x30] sm:$0xff]
      %v224 = vld [vmem:[%s1 + $0x38] sm:$0xff]
      %v225 = vld [vmem:[%s1 + $0x40] sm:$0xff]
      %v226 = vld [vmem:[%s1 + $0x48] sm:$0xff]
      %v227 = vld [vmem:[%s1 + $0x50] sm:$0xff]
      %v228 = vld [vmem:[%s1 + $0x58] sm:$0xff]
      %v229 = vld [vmem:[%s1 + $0x60] sm:$0xff]
      %v230 = vld [vmem:[%s1 + $0x68] sm:$0xff]
      %v231 = vld [vmem:[%s1 + $0x70] sm:$0xff]
      %v232 = vld [vmem:[%s1 + $0x78] sm:$0xff]
      %v233 = vld [vmem:[%s1 + $0x80] sm:$0xff]
      %v234 = vld [vmem:[%s1 + $0x88] sm:$0xff]
      %v235 = vld [vmem:[%s1 + $0x90] sm:$0xff]
      %v236 = vld [vmem:[%s1 + $0x98] sm:$0xff]
      %v237 = vld [vmem:[%s1 + $0xa0] sm:$0xff]
      %v238 = vld [vmem:[%s1 + $0xa8] sm:$0xff]
      %v239 = vld [vmem:[%s1 + $0xb0] sm:$0xff]
      %v240 = vld [vmem:[%s1 + $0xb8] sm:$0xff]
      %v241 = vld [vmem:[%s1 + $0xc0] sm:$0xff]
      %v242 = vld [vmem:[%s1 + $0xc8] sm:$0xff]
      %v243 = vld [vmem:[%s1 + $0xd0] sm:$0xff]
      %v244 = vld [vmem:[%s1 + $0xd8] sm:$0xff]
      %v245 = vld [vmem:[%s1 + $0xe0] sm:$0xff]
      %v246 = vld [vmem:[%s1 + $0xe8] sm:$0xff]
      %v247 = vld [vmem:[%s1 + $0xf0] sm:$0xff]
      %v248 = vld [vmem:[%s1 + $0xf8] sm:$0xff]
      %v249 = vld [vmem:[%s1 + $0x100] sm:$0xff]
      %v250 = vld [vmem:[%s1 + $0x108] sm:$0xff]
      %v251 = vld [vmem:[%s1 + $0x110] sm:$0xff]
      %v252 = vld [vmem:[%s1 + $0x118] sm:$0xff]
      %v253 = vld [vmem:[%s1 + $0x120] sm:$0xff]
      %v254 = vld [vmem:[%s1 + $0x128] sm:$0xff]
      %v255 = vld [vmem:[%s1 + $0x130] sm:$0xff]
      %v256 = vld [vmem:[%s1 + $0x138] sm:$0xff]
      %v257 = vld [vmem:[%s1 + $0x140] sm:$0xff]
      %v258 = vld [vmem:[%s1 + $0x148] sm:$0xff]
      %v259 = vld [vmem:[%s1 + $0x150] sm:$0xff]
      %v260 = vld [vmem:[%s1 + $0x158] sm:$0xff]
      %v261 = vld [vmem:[%s1 + $0x160] sm:$0xff]
      %v262 = vld [vmem:[%s1 + $0x168] sm:$0xff]
      %v263 = vld [vmem:[%s1 + $0x170] sm:$0xff]
      %v264 = vld [vmem:[%s1 + $0x178] sm:$0xff]
      %v265 = vld [vmem:[%s1 + $0x180] sm:$0xff]
      %v266 = vld [vmem:[%s1 + $0x188] sm:$0xff]
      %v267 = vld [vmem:[%s1 + $0x190] sm:$0xff]
      %v268 = vld [vmem:[%s1 + $0x198] sm:$0xff]
      %v269 = vld [vmem:[%s1 + $0x1a0] sm:$0xff]
      %v270 = vld [vmem:[%s1 + $0x1a8] sm:$0xff]
      %v271 = vld [vmem:[%s1 + $0x1b0] sm:$0xff]
      %v272 = vld [vmem:[%s1 + $0x1b8] sm:$0xff]
      %v273 = vld [vmem:[%s1 + $0x1c0] sm:$0xff]
      %v274 = vld [vmem:[%s1 + $0x1c8] sm:$0xff]
      %v275 = vld [vmem:[%s1 + $0x1d0] sm:$0xff]
      %v276 = vld [vmem:[%s1 + $0x1d8] sm:$0xff]
      %v277 = vld [vmem:[%s1 + $0x1e0] sm:$0xff]
      %v278 = vld [vmem:[%s1 + $0x1e8] sm:$0xff]
      %v279 = vld [vmem:[%s1 + $0x1f0] sm:$0xff]
      %v280 = vld [vmem:[%s1 + $0x1f8] sm:$0xff]
      %v281 = vld [vmem:[%s2] sm:$0x1]
      %v283 = vlaneseq
      %v284 = vshrl.u32 %v283, 7
      %v285 = vsub.s32 0, %v284
      %v286 = vrot.slane %v281, %v285
      %288 = vmatprep.subr.mxu0 0.0
      %289 = vmatpush1.msra.mxu0 %v232
      %290 = vmatprep.subr.mxu0 0.0
      %291 = vmatpush1.msra.mxu0 %v231
      %292 = vmatprep.subr.mxu0 0.0
      %293 = vmatpush1.msra.mxu0 %v230
      %294 = vmatprep.subr.mxu0 0.0
      %295 = vmatpush1.msra.mxu0 %v229
      %296 = vmatprep.subr.mxu0 0.0
      %297 = vmatpush1.msra.mxu0 %v228
      %298 = vmatprep.subr.mxu0 0.0
      %299 = vmatpush1.msra.mxu0 %v227
      %300 = vmatprep.subr.mxu0 0.0
      %301 = vmatpush1.msra.mxu0 %v226
      %302 = vmatprep.subr.mxu0 0.0
      %303 = vmatpush1.msra.mxu0 %v225
      %304 = vmatprep.subr.mxu0 0.0
      %305 = vmatpush1.msra.mxu0 %v224
      %306 = vmatprep.subr.mxu0 0.0
      %307 = vmatpush1.msra.mxu0 %v223
      %308 = vmatprep.subr.mxu0 0.0
      %309 = vmatpush1.msra.mxu0 %v222
      %310 = vmatprep.subr.mxu0 0.0
      %311 = vmatpush1.msra.mxu0 %v221
      %312 = vmatprep.subr.mxu0 0.0
      %313 = vmatpush1.msra.mxu0 %v220
      %314 = vmatprep.subr.mxu0 0.0
      %315 = vmatpush1.msra.mxu0 %v219
      %316 = vmatprep.subr.mxu0 0.0
      %317 = vmatpush1.msra.mxu0 %v218
      %318 = vmatprep.subr.mxu0 0.0
      %319 = vmatpush1.msra.mxu0 %v217
      %320 = vmatprep.subr.mxu0 0.0
      %321 = vmatpush2.msra.mxu0 %v248
      %322 = vmatprep.subr.mxu0 0.0
      %323 = vmatpush2.msra.mxu0 %v247
      %324 = vmatprep.subr.mxu0 0.0
      %325 = vmatpush2.msra.mxu0 %v246
      %326 = vmatprep.subr.mxu0 0.0
      %327 = vmatpush2.msra.mxu0 %v245
      %328 = vmatprep.subr.mxu0 0.0
      %329 = vmatpush2.msra.mxu0 %v244
      %330 = vmatprep.subr.mxu0 0.0
      %331 = vmatpush2.msra.mxu0 %v243
      %332 = vmatprep.subr.mxu0 0.0
      %333 = vmatpush2.msra.mxu0 %v242
      %334 = vmatprep.subr.mxu0 0.0
      %335 = vmatpush2.msra.mxu0 %v241
      %336 = vmatprep.subr.mxu0 0.0
      %337 = vmatpush2.msra.mxu0 %v240
      %338 = vmatprep.subr.mxu0 0.0
      %339 = vmatpush2.msra.mxu0 %v239
      %340 = vmatprep.subr.mxu0 0.0
      %341 = vmatpush2.msra.mxu0 %v238
      %342 = vmatprep.subr.mxu0 0.0
      %343 = vmatpush2.msra.mxu0 %v237
      %344 = vmatprep.subr.mxu0 0.0
      %345 = vmatpush2.msra.mxu0 %v236
      %346 = vmatprep.subr.mxu0 0.0
      %347 = vmatpush2.msra.mxu0 %v235
      %348 = vmatprep.subr.mxu0 0.0
      %349 = vmatpush2.msra.mxu0 %v234
      %350 = vmatprep.subr.mxu0 0.0
      %351 = vmatpush2.msra.mxu0 %v233
      %352 = vmatprep.mubr.f32.mxu0 %v214
      %353 = vmatmul.mubr.f32.gmra.mxu0 %v213
      %v354 = vpop.f32.mrf.mxu0
      %v355 = vadd.f32 %v286, %v354
      %v356 = vpop.f32.mrf.mxu0
      %357 = vdwg.mxu0
      %358 = vmatprep.subr.mxu0 0.0
      %359 = vmatpush1.msra.mxu0 %v264
      %360 = vmatprep.subr.mxu0 0.0
      %361 = vmatpush1.msra.mxu0 %v263
      %362 = vmatprep.subr.mxu0 0.0
      %363 = vmatpush1.msra.mxu0 %v262
      %364 = vmatprep.subr.mxu0 0.0
      %365 = vmatpush1.msra.mxu0 %v261
      %366 = vmatprep.subr.mxu0 0.0
      %367 = vmatpush1.msra.mxu0 %v260
      %368 = vmatprep.subr.mxu0 0.0
      %369 = vmatpush1.msra.mxu0 %v259
      %370 = vmatprep.subr.mxu0 0.0
      %371 = vmatpush1.msra.mxu0 %v258
      %372 = vmatprep.subr.mxu0 0.0
      %373 = vmatpush1.msra.mxu0 %v257
      %374 = vmatprep.subr.mxu0 0.0
      %375 = vmatpush1.msra.mxu0 %v256
      %376 = vmatprep.subr.mxu0 0.0
      %377 = vmatpush1.msra.mxu0 %v255
      %378 = vmatprep.subr.mxu0 0.0
      %379 = vmatpush1.msra.mxu0 %v254
      %380 = vmatprep.subr.mxu0 0.0
      %381 = vmatpush1.msra.mxu0 %v253
      %382 = vmatprep.subr.mxu0 0.0
      %383 = vmatpush1.msra.mxu0 %v252
      %384 = vmatprep.subr.mxu0 0.0
      %385 = vmatpush1.msra.mxu0 %v251
      %386 = vmatprep.subr.mxu0 0.0
      %387 = vmatpush1.msra.mxu0 %v250
      %388 = vmatprep.subr.mxu0 0.0
      %389 = vmatpush1.msra.mxu0 %v249
      %390 = vmatprep.subr.mxu0 0.0
      %391 = vmatpush2.msra.mxu0 %v280
      %392 = vmatprep.subr.mxu0 0.0
      %393 = vmatpush2.msra.mxu0 %v279
      %394 = vmatprep.subr.mxu0 0.0
      %395 = vmatpush2.msra.mxu0 %v278
      %396 = vmatprep.subr.mxu0 0.0
      %397 = vmatpush2.msra.mxu0 %v277
      %398 = vmatprep.subr.mxu0 0.0
      %399 = vmatpush2.msra.mxu0 %v276
      %400 = vmatprep.subr.mxu0 0.0
      %401 = vmatpush2.msra.mxu0 %v275
      %402 = vmatprep.subr.mxu0 0.0
      %403 = vmatpush2.msra.mxu0 %v274
      %404 = vmatprep.subr.mxu0 0.0
      %405 = vmatpush2.msra.mxu0 %v273
      %406 = vmatprep.subr.mxu0 0.0
      %407 = vmatpush2.msra.mxu0 %v272
      %408 = vmatprep.subr.mxu0 0.0
      %409 = vmatpush2.msra.mxu0 %v271
      %410 = vmatprep.subr.mxu0 0.0
      %411 = vmatpush2.msra.mxu0 %v270
      %412 = vmatprep.subr.mxu0 0.0
      %413 = vmatpush2.msra.mxu0 %v269
      %414 = vmatprep.subr.mxu0 0.0
      %415 = vmatpush2.msra.mxu0 %v268
      %416 = vmatprep.subr.mxu0 0.0
      %417 = vmatpush2.msra.mxu0 %v267
      %418 = vmatprep.subr.mxu0 0.0
      %419 = vmatpush2.msra.mxu0 %v266
      %420 = vmatprep.subr.mxu0 0.0
      %421 = vmatpush2.msra.mxu0 %v265
      %422 = vmatprep.mubr.f32.mxu0 %v216
      %423 = vmatmul.mubr.f32.gmra.mxu0 %v215
      %v424 = vpop.f32.mrf.mxu0
      %v425 = vadd.f32 %v355, %v424
      %v426 = vpop.f32.mrf.mxu0
      %427 = vdwg.mxu0
      %v428 = vld [vmem:[%s208] sm:$0xff]
      %v429 = vmul.f32 %v425, 0.5
      %v430 = vadd.f32 %v428, %v429
      %431 = vst [vmem:[%s212] sm:$0xff] %v430
      %p432 = scmp.lt.s32.totalorder %s15, 1
      %s433 = scalar_select %p432, %s15, 1
      %s434 = smul.addr %s433, 8
      %s435 = scalar_lea.vmem %s4, %s434
      // Predicated region
      $region37: #{japanese_lipnet_forward.26} parent=35 // pred_check
        %p436 = pneg %p127
      $region38: #{japanese_lipnet_forward.26} parent=35 // pred_check_branch
        %438 = sbr.rel (%p436) target = $region40
      $region39: #{japanese_lipnet_forward.26} parent=35 // pred_region
        _
      $region40: #{japanese_lipnet_forward.26} parent=35 // pred_fallthru
        _
    $region36: #{japanese_lipnet_forward.26} parent=5 // pred_fallthru
      _
    %p439 = scmp.le.s32.totalorder 2, %s10
    // Predicated region
    $region41: #{japanese_lipnet_forward.26} parent=5 // pred_check
      %p440 = pneg %p439
    $region42: #{japanese_lipnet_forward.26} parent=5 // pred_check_branch
      %442 = sbr.rel (%p440) target = $region44
    $region43: #{japanese_lipnet_forward.26} parent=5 // pred_region
      %s443 = ssub.s32 %s10, 2
      // Predicated region
      $region45: #{japanese_lipnet_forward.26} parent=43 // pred_check
        %p444 = pneg %p133
      $region46: #{japanese_lipnet_forward.26} parent=43 // pred_check_branch
        %446 = sbr.rel (%p444) target = $region48
      $region47: #{japanese_lipnet_forward.26} parent=43 // pred_region
        %p447 = scmp.lt.s32.totalorder %s16, 1
        %s448 = scalar_select %p447, %s16, 1
        %s449 = smul.addr %s448, 8
        %s450 = scalar_lea.vmem %s4, %s449
      $region48: #{japanese_lipnet_forward.26} parent=43 // pred_fallthru
        _
    $region44: #{japanese_lipnet_forward.26} parent=5 // pred_fallthru
      _
  $region6: #{japanese_lipnet_forward.26} parent=0 // loop_footer
    %s14 = sadd.s32 1, %s10
  $region7: #{japanese_lipnet_forward.26} parent=0 // loop_footer_branch
    %9 = sbr.rel target = $region3
  $region8: #{japanese_lipnet_forward.26} parent=0 // loop_exit
    _

// kernel: japanese_lipnet_forward.27
$region0: #{japanese_lipnet_forward.27}
  #allocation0 [shape = 'u32[]', space=smem, size = 0x4, offset = 0x4, fixed_abs, tag = 'smem constant byte address 0x4 - core index']
  #allocation1 [shape = 'u32[144,128]{1,0:T(1,128)}', space=vmem, size = 0x12000, scoped, tag = 'internal scratch']
  %s0 = inlined_call_operand.vmem [shape: f32[16,128], index: 0, kind: input, shape index: {}]
  %s1 = inlined_call_operand.vmem [shape: f32[1,128], index: 1, kind: input, shape index: {}]
  %s2 = inlined_call_operand.vmem [shape: f32[1,128], index: 2, kind: input, shape index: {}]
  %s3 = inlined_call_operand.vmem [shape: f32[128,384], index: 3, kind: input, shape index: {}]
  %s4 = inlined_call_operand.vmem [shape: f32[1,384], index: 4, kind: input, shape index: {}]
  %s5 = inlined_call_operand.vmem [shape: f32[16,384], index: 5, kind: output, shape index: {}]
  %s6 = sld [smem:[#allocation0]]
  $region53: #{japanese_lipnet_forward.27} parent=0
    _
  %s8 = ssub.s32 1, %s6
  %s9 = scalar_select 0, %s8, %s6
  loop: start=0, step=1, limit=4
  $region2: #{japanese_lipnet_forward.27} parent=0 // loop_pre_header
    _
  $region3: #{japanese_lipnet_forward.27} parent=0 // loop_header
    %s11 = sphi 0, %s15
    %p12 = scmp.ge.s32.totalorder %s11, 4
    %s21 = sphi 0, %s23
    %s24 = sphi 0, %s21
    %s25 = sphi 0, %s24
    %s41 = sphi 0, %s25
    %s45 = sphi 0, %s45
    %s47 = sphi 0, %s45
    %s48 = sphi 0, %s47
    %s62 = sphi 0, %s48
    %s66 = sphi 0, %s66
    %s68 = sphi 0, %s66
    %s69 = sphi 0, %s68
    %s83 = sphi 0, %s69
    %s87 = sphi 0, %s87
    %s89 = sphi 0, %s87
    %s90 = sphi 0, %s89
    %s104 = sphi 0, %s90
    %s108 = sphi 0, %s108
    %s110 = sphi 0, %s108
    %s111 = sphi 0, %s110
    %s125 = sphi 0, %s111
    %s131 = sphi 0, %s133
    %s134 = sphi 0, %s131
    %s135 = sphi 0, %s134
    %s151 = sphi 0, %s135
  $region4: #{japanese_lipnet_forward.27} parent=0 // loop_header_branch
    %14 = sbr.rel (%p12) target = $region8
  $region5: #{japanese_lipnet_forward.27} parent=0 // loop_body
    %s16 = ssub.s32 %s11, 1
    %s17 = ssub.s32 %s11, 2
    %s18 = sadd.s32 %s11, 1
    %s19 = ssub.s32 %s11, %s18
    %p20 = scmp.eq.s32.totalorder %s19, 0
    %s22 = sadd.s32 %s21, 1
    %s23 = scalar_select %p20, %s21, %s22
    %p26 = pneg %p20
    %p27 = scmp.eq.s32.totalorder %s11, 1
    %p28 = por %p26, %p27
    %p29 = scmp.ne.s32.totalorder %s21, %s24
    %p30 = scmp.eq.s32.totalorder %s11, 0
    %p31 = por %p29, %p30
    %p32 = scmp.ne.s32.totalorder %s21, %s24
    %p33 = scmp.eq.s32.totalorder %s16, 1
    %p34 = por %p32, %p33
    %p35 = scmp.ne.s32.totalorder %s24, %s25
    %p36 = scmp.eq.s32.totalorder %s16, 0
    %p37 = por %p35, %p36
    %p38 = scmp.ne.s32.totalorder %s24, %s25
    %p39 = scmp.eq.s32.totalorder %s17, 1
    %p40 = por %p38, %p39
    %p42 = scmp.ne.s32.totalorder %s25, %s41
    %p43 = scmp.eq.s32.totalorder %s17, 0
    %p44 = por %p42, %p43
    %s46 = sadd.s32 %s45, 1
    %p49 = scmp.eq.s32.totalorder %s11, 1
    %p50 = scmp.ne.s32.totalorder %s45, %s47
    %p51 = scmp.eq.s32.totalorder %s11, 0
    %p52 = por %p50, %p51
    %p53 = scmp.ne.s32.totalorder %s45, %s47
    %p54 = scmp.eq.s32.totalorder %s16, 1
    %p55 = por %p53, %p54
    %p56 = scmp.ne.s32.totalorder %s47, %s48
    %p57 = scmp.eq.s32.totalorder %s16, 0
    %p58 = por %p56, %p57
    %p59 = scmp.ne.s32.totalorder %s47, %s48
    %p60 = scmp.eq.s32.totalorder %s17, 1
    %p61 = por %p59, %p60
    %p63 = scmp.ne.s32.totalorder %s48, %s62
    %p64 = scmp.eq.s32.totalorder %s17, 0
    %p65 = por %p63, %p64
    %s67 = sadd.s32 %s66, 1
    %p70 = scmp.eq.s32.totalorder %s11, 1
    %p71 = scmp.ne.s32.totalorder %s66, %s68
    %p72 = scmp.eq.s32.totalorder %s11, 0
    %p73 = por %p71, %p72
    %p74 = scmp.ne.s32.totalorder %s66, %s68
    %p75 = scmp.eq.s32.totalorder %s16, 1
    %p76 = por %p74, %p75
    %p77 = scmp.ne.s32.totalorder %s68, %s69
    %p78 = scmp.eq.s32.totalorder %s16, 0
    %p79 = por %p77, %p78
    %p80 = scmp.ne.s32.totalorder %s68, %s69
    %p81 = scmp.eq.s32.totalorder %s17, 1
    %p82 = por %p80, %p81
    %p84 = scmp.ne.s32.totalorder %s69, %s83
    %p85 = scmp.eq.s32.totalorder %s17, 0
    %p86 = por %p84, %p85
    %s88 = sadd.s32 %s87, 1
    %p91 = scmp.eq.s32.totalorder %s11, 1
    %p92 = scmp.ne.s32.totalorder %s87, %s89
    %p93 = scmp.eq.s32.totalorder %s11, 0
    %p94 = por %p92, %p93
    %p95 = scmp.ne.s32.totalorder %s87, %s89
    %p96 = scmp.eq.s32.totalorder %s16, 1
    %p97 = por %p95, %p96
    %p98 = scmp.ne.s32.totalorder %s89, %s90
    %p99 = scmp.eq.s32.totalorder %s16, 0
    %p100 = por %p98, %p99
    %p101 = scmp.ne.s32.totalorder %s89, %s90
    %p102 = scmp.eq.s32.totalorder %s17, 1
    %p103 = por %p101, %p102
    %p105 = scmp.ne.s32.totalorder %s90, %s104
    %p106 = scmp.eq.s32.totalorder %s17, 0
    %p107 = por %p105, %p106
    %s109 = sadd.s32 %s108, 1
    %p112 = scmp.eq.s32.totalorder %s11, 1
    %p113 = scmp.ne.s32.totalorder %s108, %s110
    %p114 = scmp.eq.s32.totalorder %s11, 0
    %p115 = por %p113, %p114
    %p116 = scmp.ne.s32.totalorder %s108, %s110
    %p117 = scmp.eq.s32.totalorder %s16, 1
    %p118 = por %p116, %p117
    %p119 = scmp.ne.s32.totalorder %s110, %s111
    %p120 = scmp.eq.s32.totalorder %s16, 0
    %p121 = por %p119, %p120
    %p122 = scmp.ne.s32.totalorder %s110, %s111
    %p123 = scmp.eq.s32.totalorder %s17, 1
    %p124 = por %p122, %p123
    %p126 = scmp.ne.s32.totalorder %s111, %s125
    %p127 = scmp.eq.s32.totalorder %s17, 0
    %p128 = por %p126, %p127
    %s129 = ssub.s32 %s11, %s18
    %p130 = scmp.eq.s32.totalorder %s129, 0
    %s132 = sadd.s32 %s131, 1
    %s133 = scalar_select %p130, %s131, %s132
    %p136 = pneg %p130
    %p137 = scmp.eq.s32.totalorder %s11, 1
    %p138 = por %p136, %p137
    %p139 = scmp.ne.s32.totalorder %s131, %s134
    %p140 = scmp.eq.s32.totalorder %s11, 0
    %p141 = por %p139, %p140
    %p142 = scmp.ne.s32.totalorder %s131, %s134
    %p143 = scmp.eq.s32.totalorder %s16, 1
    %p144 = por %p142, %p143
    %p145 = scmp.ne.s32.totalorder %s134, %s135
    %p146 = scmp.eq.s32.totalorder %s16, 0
    %p147 = por %p145, %p146
    %p148 = scmp.ne.s32.totalorder %s134, %s135
    %p149 = scmp.eq.s32.totalorder %s17, 1
    %p150 = por %p148, %p149
    %p152 = scmp.ne.s32.totalorder %s135, %s151
    %p153 = scmp.eq.s32.totalorder %s17, 0
    %p154 = por %p152, %p153
    %p155 = scmp.le.s32.totalorder 1, %s11
    %p156 = scmp.lt.s32.totalorder %s11, 3
    %p157 = pnand %p155, %p156
    %p158 = pneg %p157
    // Predicated region
    $region9: #{japanese_lipnet_forward.27} parent=5 // pred_check
      _
    $region10: #{japanese_lipnet_forward.27} parent=5 // pred_check_branch
      %160 = sbr.rel (%p157) target = $region12
    $region11: #{japanese_lipnet_forward.27} parent=5 // pred_region
      %s161 = ssub.s32 %s11, 1
      // Predicated region
      $region13: #{japanese_lipnet_forward.27} parent=11 // pred_check
        %p162 = pneg %p58
      $region14: #{japanese_lipnet_forward.27} parent=11 // pred_check_branch
        %164 = sbr.rel (%p162) target = $region16
      $region15: #{japanese_lipnet_forward.27} parent=11 // pred_region
        _
      $region16: #{japanese_lipnet_forward.27} parent=11 // pred_fallthru
        _
      // Predicated region
      $region17: #{japanese_lipnet_forward.27} parent=11 // pred_check
        %p165 = pneg %p79
      $region18: #{japanese_lipnet_forward.27} parent=11 // pred_check_branch
        %167 = sbr.rel (%p165) target = $region20
      $region19: #{japanese_lipnet_forward.27} parent=11 // pred_region
        _
      $region20: #{japanese_lipnet_forward.27} parent=11 // pred_fallthru
        _
      // Predicated region
      $region21: #{japanese_lipnet_forward.27} parent=11 // pred_check
        %p168 = pneg %p100
      $region22: #{japanese_lipnet_forward.27} parent=11 // pred_check_branch
        %170 = sbr.rel (%p168) target = $region24
      $region23: #{japanese_lipnet_forward.27} parent=11 // pred_region
        _
      $region24: #{japanese_lipnet_forward.27} parent=11 // pred_fallthru
        _
      // Predicated region
      $region25: #{japanese_lipnet_forward.27} parent=11 // pred_check
        %p171 = pneg %p121
      $region26: #{japanese_lipnet_forward.27} parent=11 // pred_check_branch
        %173 = sbr.rel (%p171) target = $region28
      $region27: #{japanese_lipnet_forward.27} parent=11 // pred_region
        _
      $region28: #{japanese_lipnet_forward.27} parent=11 // pred_fallthru
        _
    $region12: #{japanese_lipnet_forward.27} parent=5 // pred_fallthru
      _
    %p174 = scmp.lt.s32.totalorder %s11, 2
    // Predicated region
    $region29: #{japanese_lipnet_forward.27} parent=5 // pred_check
      %p175 = pneg %p174
    $region30: #{japanese_lipnet_forward.27} parent=5 // pred_check_branch
      %177 = sbr.rel (%p175) target = $region32
    $region31: #{japanese_lipnet_forward.27} parent=5 // pred_region
      // Predicated region
      $region33: #{japanese_lipnet_forward.27} parent=31 // pred_check
        %p178 = pneg %p31
      $region34: #{japanese_lipnet_forward.27} parent=31 // pred_check_branch
        %180 = sbr.rel (%p178) target = $region36
      $region35: #{japanese_lipnet_forward.27} parent=31 // pred_region
        %p181 = scmp.lt.s32.totalorder %s11, 1
        %s182 = scalar_select %p181, %s11, 1
        %s183 = smul.addr %s182, 8
        %s184 = scalar_lea.vmem %s0, %s183
      $region36: #{japanese_lipnet_forward.27} parent=31 // pred_fallthru
        _
    $region32: #{japanese_lipnet_forward.27} parent=5 // pred_fallthru
      _
    %p185 = scmp.le.s32.totalorder 1, %s11
    %p186 = scmp.lt.s32.totalorder %s11, 3
    %p187 = pnand %p185, %p186
    %p188 = pneg %p187
    // Predicated region
    $region37: #{japanese_lipnet_forward.27} parent=5 // pred_check
      _
    $region38: #{japanese_lipnet_forward.27} parent=5 // pred_check_branch
      %190 = sbr.rel (%p187) target = $region40
    $region39: #{japanese_lipnet_forward.27} parent=5 // pred_region
      %s191 = ssub.s32 %s11, 1
      %p192 = scmp.lt.s32.totalorder %s16, 1
      %s193 = scalar_select %p192, %s16, 1
      %s194 = smul.addr %s193, 8
      %s195 = scalar_lea.vmem %s0, %s194
      %p196 = pneg %p37
      %p197 = pneg %p34
      %p198 = pneg %p58
      %p199 = pneg %p55
      %p200 = pneg %p79
      %p201 = pneg %p76
      %p202 = pneg %p100
      %p203 = pneg %p97
      %p204 = pneg %p121
      %p205 = pneg %p118
      %p206 = pneg %p147
      %p207 = pneg %p144
      %p208 = scmp.lt.s32.totalorder %s16, 1
      %s209 = scalar_select %p208, %s16, 1
      %s210 = smul.addr %s209, 3
      %s211 = smul.addr %s210, 8
      %s212 = scalar_lea.vmem %s5, %s211
      %p213 = scmp.lt.s32.totalorder %s16, 1
      %s214 = scalar_select %p213, %s16, 1
      %s215 = smul.addr %s214, 8
      %s216 = scalar_lea.vmem %s0, %s215
      %p217 = scmp.lt.s32.totalorder %s16, 1
      %s218 = scalar_select %p217, %s16, 1
      %s219 = smul.addr %s218, 3
      %s220 = smul.addr %s219, 8
      %s221 = scalar_lea.vmem %s5, %s220
      %v222 = vld [vmem:[%s216] sm:$0xff]
      %v223 = vld [vmem:[%s1] sm:$0x1]
      %v224 = vld [vmem:[%s2] sm:$0x1]
      %225 = vadd.xlane.f32.xlu0 %v222
      %v226 = vpop.xlane.xlu0 %225
      %v227 = vrcp.pop 128.0
      %v228 = vmul.f32 %v226, %v227
      %v229 = vsub.f32 %v222, %v228
      %v230 = vmul.f32 %v229, %v229
      %231 = vadd.xlane.f32.xlu0 %v230
      %v232 = vpop.xlane.xlu0 %231
      %v233 = vmul.f32 %v232, %v227
      %v234 = vadd.f32 %v233, 1e-05
      %v235 = vrsqrt.pop %v234
      %v236 = vmul.f32 %v229, %v235
      %v238 = vlaneseq
      %v239 = vshrl.u32 %v238, 7
      %v240 = vsub.s32 0, %v239
      %v241 = vrot.slane %v223, %v240
      %v243 = vmul.f32 %v236, %v241
      %v245 = vlaneseq
      %v246 = vshrl.u32 %v245, 7
      %v247 = vsub.s32 0, %v246
      %v248 = vrot.slane %v224, %v247
      %v250 = vadd.f32 %v243, %v248
      %v251 = vld [vmem:[%s3] sm:$0xff]
      %v252 = vld [vmem:[%s3 + $0x8] sm:$0xff]
      %v253 = vld [vmem:[%s3 + $0x10] sm:$0xff]
      %v254 = vld [vmem:[%s3 + $0x18] sm:$0xff]
      %v255 = vld [vmem:[%s3 + $0x20] sm:$0xff]
      %v256 = vld [vmem:[%s3 + $0x28] sm:$0xff]
      %v257 = vld [vmem:[%s3 + $0x30] sm:$0xff]
      %v258 = vld [vmem:[%s3 + $0x38] sm:$0xff]
      %v259 = vld [vmem:[%s3 + $0x40] sm:$0xff]
      %v260 = vld [vmem:[%s3 + $0x48] sm:$0xff]
      %v261 = vld [vmem:[%s3 + $0x50] sm:$0xff]
      %v262 = vld [vmem:[%s3 + $0x58] sm:$0xff]
      %v263 = vld [vmem:[%s3 + $0x60] sm:$0xff]
      %v264 = vld [vmem:[%s3 + $0x68] sm:$0xff]
      %v265 = vld [vmem:[%s3 + $0x70] sm:$0xff]
      %v266 = vld [vmem:[%s3 + $0x78] sm:$0xff]
      %v267 = vld [vmem:[%s3 + $0x80] sm:$0xff]
      %v268 = vld [vmem:[%s3 + $0x88] sm:$0xff]
      %v269 = vld [vmem:[%s3 + $0x90] sm:$0xff]
      %v270 = vld [vmem:[%s3 + $0x98] sm:$0xff]
      %v271 = vld [vmem:[%s3 + $0xa0] sm:$0xff]
      %v272 = vld [vmem:[%s3 + $0xa8] sm:$0xff]
      %v273 = vld [vmem:[%s3 + $0xb0] sm:$0xff]
      %v274 = vld [vmem:[%s3 + $0xb8] sm:$0xff]
      %v275 = vld [vmem:[%s3 + $0xc0] sm:$0xff]
      %v276 = vld [vmem:[%s3 + $0xc8] sm:$0xff]
      %v277 = vld [vmem:[%s3 + $0xd0] sm:$0xff]
      %v278 = vld [vmem:[%s3 + $0xd8] sm:$0xff]
      %v279 = vld [vmem:[%s3 + $0xe0] sm:$0xff]
      %v280 = vld [vmem:[%s3 + $0xe8] sm:$0xff]
      %v281 = vld [vmem:[%s3 + $0xf0] sm:$0xff]
      %v282 = vld [vmem:[%s3 + $0xf8] sm:$0xff]
      %v283 = vld [vmem:[%s3 + $0x100] sm:$0xff]
      %v284 = vld [vmem:[%s3 + $0x108] sm:$0xff]
      %v285 = vld [vmem:[%s3 + $0x110] sm:$0xff]
      %v286 = vld [vmem:[%s3 + $0x118] sm:$0xff]
      %v287 = vld [vmem:[%s3 + $0x120] sm:$0xff]
      %v288 = vld [vmem:[%s3 + $0x128] sm:$0xff]
      %v289 = vld [vmem:[%s3 + $0x130] sm:$0xff]
      %v290 = vld [vmem:[%s3 + $0x138] sm:$0xff]
      %v291 = vld [vmem:[%s3 + $0x140] sm:$0xff]
      %v292 = vld [vmem:[%s3 + $0x148] sm:$0xff]
      %v293 = vld [vmem:[%s3 + $0x150] sm:$0xff]
      %v294 = vld [vmem:[%s3 + $0x158] sm:$0xff]
      %v295 = vld [vmem:[%s3 + $0x160] sm:$0xff]
      %v296 = vld [vmem:[%s3 + $0x168] sm:$0xff]
      %v297 = vld [vmem:[%s3 + $0x170] sm:$0xff]
      %v298 = vld [vmem:[%s3 + $0x178] sm:$0xff]
      %v299 = vld [vmem:[%s4] sm:$0x7]
      %v301 = vlaneseq
      %v302 = vshrl.u32 %v301, 7
      %v303 = vsub.s32 0, %v302
      %v304 = vrot.slane %v299, %v303
      %v305 = vlaneseq
      %v306 = vshrl.u32 %v305, 7
      %v307 = vsub.s32 1, %v306
      %v308 = vrot.slane %v299, %v307
      %v309 = vlaneseq
      %v310 = vshrl.u32 %v309, 7
      %v311 = vsub.s32 2, %v310
      %v312 = vrot.slane %v299, %v311
      %316 = vmatprep.subr.mxu0 %v297
      %317 = vmatpush1.msra.mxu0 %v296
      %318 = vmatprep.subr.mxu0 %v294
      %319 = vmatpush1.msra.mxu0 %v293
      %320 = vmatprep.subr.mxu0 %v291
      %321 = vmatpush1.msra.mxu0 %v290
      %322 = vmatprep.subr.mxu0 %v288
      %323 = vmatpush1.msra.mxu0 %v287
      %324 = vmatprep.subr.mxu0 %v285
      %325 = vmatpush1.msra.mxu0 %v284
      %326 = vmatprep.subr.mxu0 %v282
      %327 = vmatpush1.msra.mxu0 %v281
      %328 = vmatprep.subr.mxu0 %v279
      %329 = vmatpush1.msra.mxu0 %v278
      %330 = vmatprep.subr.mxu0 %v276
      %331 = vmatpush1.msra.mxu0 %v275
      %332 = vmatprep.subr.mxu0 %v273
      %333 = vmatpush1.msra.mxu0 %v272
      %334 = vmatprep.subr.mxu0 %v270
      %335 = vmatpush1.msra.mxu0 %v269
      %336 = vmatprep.subr.mxu0 %v267
      %337 = vmatpush1.msra.mxu0 %v266
      %338 = vmatprep.subr.mxu0 %v264
      %339 = vmatpush1.msra.mxu0 %v263
      %340 = vmatprep.subr.mxu0 %v261
      %341 = vmatpush1.msra.mxu0 %v260
      %342 = vmatprep.subr.mxu0 %v258
      %343 = vmatpush1.msra.mxu0 %v257
      %344 = vmatprep.subr.mxu0 %v255
      %345 = vmatpush1.msra.mxu0 %v254
      %346 = vmatprep.subr.mxu0 %v252
      %347 = vmatpush1.msra.mxu0 %v251
      %348 = vmatprep.subr.mxu0 0.0
      %349 = vmatpush2.msra.mxu0 0.0
      %350 = vmatprep.subr.mxu0 0.0
      %351 = vmatpush2.msra.mxu0 0.0
      %352 = vmatprep.subr.mxu0 0.0
      %353 = vmatpush2.msra.mxu0 0.0
      %354 = vmatprep.subr.mxu0 0.0
      %355 = vmatpush2.msra.mxu0 0.0
      %356 = vmatprep.subr.mxu0 0.0
      %357 = vmatpush2.msra.mxu0 0.0
      %358 = vmatprep.subr.mxu0 0.0
      %359 = vmatpush2.msra.mxu0 0.0
      %360 = vmatprep.subr.mxu0 0.0
      %361 = vmatpush2.msra.mxu0 0.0
      %362 = vmatprep.subr.mxu0 0.0
      %363 = vmatpush2.msra.mxu0 0.0
      %364 = vmatprep.subr.mxu0 0.0
      %365 = vmatpush2.msra.mxu0 0.0
      %366 = vmatprep.subr.mxu0 0.0
      %367 = vmatpush2.msra.mxu0 0.0
      %368 = vmatprep.subr.mxu0 0.0
      %369 = vmatpush2.msra.mxu0 0.0
      %370 = vmatprep.subr.mxu0 0.0
      %371 = vmatpush2.msra.mxu0 0.0
      %372 = vmatprep.subr.mxu0 0.0
      %373 = vmatpush2.msra.mxu0 0.0
      %374 = vmatprep.subr.mxu0 0.0
      %375 = vmatpush2.msra.mxu0 0.0
      %376 = vmatprep.subr.mxu0 0.0
      %377 = vmatpush2.msra.mxu0 0.0
      %378 = vmatprep.subr.mxu0 0.0
      %379 = vmatpush2.msra.mxu0 0.0
      %380 = vmatprep.mubr.f32.mxu0 0.0
      %381 = vmatmul.mubr.f32.gmra.mxu0 %v250
      %v382 = vpop.f32.mrf.mxu0
      %v383 = vadd.f32 %v304, %v382
      %v384 = vpop.f32.mrf.mxu0
      %v385 = vadd.f32 %v308, %v384
      %386 = vdwg.mxu0
      %387 = vmatprep.subr.mxu0 0.0
      %388 = vmatpush1.msra.mxu0 %v298
      %389 = vmatprep.subr.mxu0 0.0
      %390 = vmatpush1.msra.mxu0 %v295
      %391 = vmatprep.subr.mxu0 0.0
      %392 = vmatpush1.msra.mxu0 %v292
      %393 = vmatprep.subr.mxu0 0.0
      %394 = vmatpush1.msra.mxu0 %v289
      %395 = vmatprep.subr.mxu0 0.0
      %396 = vmatpush1.msra.mxu0 %v286
      %397 = vmatprep.subr.mxu0 0.0
      %398 = vmatpush1.msra.mxu0 %v283
      %399 = vmatprep.subr.mxu0 0.0
      %400 = vmatpush1.msra.mxu0 %v280
      %401 = vmatprep.subr.mxu0 0.0
      %402 = vmatpush1.msra.mxu0 %v277
      %403 = vmatprep.subr.mxu0 0.0
      %404 = vmatpush1.msra.mxu0 %v274
      %405 = vmatprep.subr.mxu0 0.0
      %406 = vmatpush1.msra.mxu0 %v271
      %407 = vmatprep.subr.mxu0 0.0
      %408 = vmatpush1.msra.mxu0 %v268
      %409 = vmatprep.subr.mxu0 0.0
      %410 = vmatpush1.msra.mxu0 %v265
      %411 = vmatprep.subr.mxu0 0.0
      %412 = vmatpush1.msra.mxu0 %v262
      %413 = vmatprep.subr.mxu0 0.0
      %414 = vmatpush1.msra.mxu0 %v259
      %415 = vmatprep.subr.mxu0 0.0
      %416 = vmatpush1.msra.mxu0 %v256
      %417 = vmatprep.subr.mxu0 0.0
      %418 = vmatpush1.msra.mxu0 %v253
      %419 = vmatprep.subr.mxu0 0.0
      %420 = vmatpush2.msra.mxu0 0.0
      %421 = vmatprep.subr.mxu0 0.0
      %422 = vmatpush2.msra.mxu0 0.0
      %423 = vmatprep.subr.mxu0 0.0
      %424 = vmatpush2.msra.mxu0 0.0
      %425 = vmatprep.subr.mxu0 0.0
      %426 = vmatpush2.msra.mxu0 0.0
      %427 = vmatprep.subr.mxu0 0.0
      %428 = vmatpush2.msra.mxu0 0.0
      %429 = vmatprep.subr.mxu0 0.0
      %430 = vmatpush2.msra.mxu0 0.0
      %431 = vmatprep.subr.mxu0 0.0
      %432 = vmatpush2.msra.mxu0 0.0
      %433 = vmatprep.subr.mxu0 0.0
      %434 = vmatpush2.msra.mxu0 0.0
      %435 = vmatprep.subr.mxu0 0.0
      %436 = vmatpush2.msra.mxu0 0.0
      %437 = vmatprep.subr.mxu0 0.0
      %438 = vmatpush2.msra.mxu0 0.0
      %439 = vmatprep.subr.mxu0 0.0
      %440 = vmatpush2.msra.mxu0 0.0
      %441 = vmatprep.subr.mxu0 0.0
      %442 = vmatpush2.msra.mxu0 0.0
      %443 = vmatprep.subr.mxu0 0.0
      %444 = vmatpush2.msra.mxu0 0.0
      %445 = vmatprep.subr.mxu0 0.0
      %446 = vmatpush2.msra.mxu0 0.0
      %447 = vmatprep.subr.mxu0 0.0
      %448 = vmatpush2.msra.mxu0 0.0
      %449 = vmatprep.subr.mxu0 0.0
      %450 = vmatpush2.msra.mxu0 0.0
      %451 = vmatprep.mubr.f32.mxu0 0.0
      %452 = vmatmul.mubr.f32.gmra.mxu0 %v250
      %v453 = vpop.f32.mrf.mxu0
      %v454 = vadd.f32 %v312, %v453
      %v455 = vpop.f32.mrf.mxu0
      %456 = vdwg.mxu0
      %457 = vst [vmem:[%s221] sm:$0xff] %v383
      %458 = vst [vmem:[%s221 + $0x8] sm:$0xff] %v385
      %459 = vst [vmem:[%s221 + $0x10] sm:$0xff] %v454
      %p460 = scmp.lt.s32.totalorder %s16, 1
      %s461 = scalar_select %p460, %s16, 1
      %s462 = smul.addr %s461, 3
      %s463 = smul.addr %s462, 8
      %s464 = scalar_lea.vmem %s5, %s463
      // Predicated region
      $region41: #{japanese_lipnet_forward.27} parent=39 // pred_check
        %p465 = pneg %p144
      $region42: #{japanese_lipnet_forward.27} parent=39 // pred_check_branch
        %467 = sbr.rel (%p465) target = $region44
      $region43: #{japanese_lipnet_forward.27} parent=39 // pred_region
        _
      $region44: #{japanese_lipnet_forward.27} parent=39 // pred_fallthru
        _
    $region40: #{japanese_lipnet_forward.27} parent=5 // pred_fallthru
      _
    %p468 = scmp.le.s32.totalorder 2, %s11
    // Predicated region
    $region45: #{japanese_lipnet_forward.27} parent=5 // pred_check
      %p469 = pneg %p468
    $region46: #{japanese_lipnet_forward.27} parent=5 // pred_check_branch
      %471 = sbr.rel (%p469) target = $region48
    $region47: #{japanese_lipnet_forward.27} parent=5 // pred_region
      %s472 = ssub.s32 %s11, 2
      // Predicated region
      $region49: #{japanese_lipnet_forward.27} parent=47 // pred_check
        %p473 = pneg %p150
      $region50: #{japanese_lipnet_forward.27} parent=47 // pred_check_branch
        %475 = sbr.rel (%p473) target = $region52
      $region51: #{japanese_lipnet_forward.27} parent=47 // pred_region
        %p476 = scmp.lt.s32.totalorder %s17, 1
        %s477 = scalar_select %p476, %s17, 1
        %s478 = smul.addr %s477, 3
        %s479 = smul.addr %s478, 8
        %s480 = scalar_lea.vmem %s5, %s479
      $region52: #{japanese_lipnet_forward.27} parent=47 // pred_fallthru
        _
    $region48: #{japanese_lipnet_forward.27} parent=5 // pred_fallthru
      _
  $region6: #{japanese_lipnet_forward.27} parent=0 // loop_footer
    %s15 = sadd.s32 1, %s11
  $region7: #{japanese_lipnet_forward.27} parent=0 // loop_footer_branch
    %10 = sbr.rel target = $region3
  $region8: #{japanese_lipnet_forward.27} parent=0 // loop_exit
    _

// kernel: japanese_lipnet_forward.29
$region0: #{japanese_lipnet_forward.29}
  #allocation0 [shape = 'u32[]', space=smem, size = 0x4, offset = 0x4, fixed_abs, tag = 'smem constant byte address 0x4 - core index']
  #allocation1 [shape = 'u32[144,128]{1,0:T(1,128)}', space=vmem, size = 0x12000, scoped, tag = 'internal scratch']
  %s0 = inlined_call_operand.vmem [shape: f32[16,128], index: 0, kind: input, shape index: {}]
  %s1 = inlined_call_operand.vmem [shape: f32[128,128], index: 1, kind: input, shape index: {}]
  %s2 = inlined_call_operand.vmem [shape: f32[1,128], index: 2, kind: input, shape index: {}]
  %s3 = inlined_call_operand.vmem [shape: f32[16,128], index: 3, kind: input, shape index: {}]
  %s4 = inlined_call_operand.vmem [shape: f32[16,128], index: 4, kind: output, shape index: {}]
  %s5 = sld [smem:[#allocation0]]
  $region49: #{japanese_lipnet_forward.29} parent=0
    _
  %s7 = ssub.s32 1, %s5
  %s8 = scalar_select 0, %s7, %s5
  loop: start=0, step=1, limit=4
  $region2: #{japanese_lipnet_forward.29} parent=0 // loop_pre_header
    _
  $region3: #{japanese_lipnet_forward.29} parent=0 // loop_header
    %s10 = sphi 0, %s14
    %p11 = scmp.ge.s32.totalorder %s10, 4
    %s20 = sphi 0, %s22
    %s23 = sphi 0, %s20
    %s24 = sphi 0, %s23
    %s40 = sphi 0, %s24
    %s44 = sphi 0, %s44
    %s46 = sphi 0, %s44
    %s47 = sphi 0, %s46
    %s61 = sphi 0, %s47
    %s65 = sphi 0, %s65
    %s67 = sphi 0, %s65
    %s68 = sphi 0, %s67
    %s82 = sphi 0, %s68
    %s88 = sphi 0, %s90
    %s91 = sphi 0, %s88
    %s92 = sphi 0, %s91
    %s108 = sphi 0, %s92
    %s114 = sphi 0, %s116
    %s117 = sphi 0, %s114
    %s118 = sphi 0, %s117
    %s134 = sphi 0, %s118
  $region4: #{japanese_lipnet_forward.29} parent=0 // loop_header_branch
    %13 = sbr.rel (%p11) target = $region8
  $region5: #{japanese_lipnet_forward.29} parent=0 // loop_body
    %s15 = ssub.s32 %s10, 1
    %s16 = ssub.s32 %s10, 2
    %s17 = sadd.s32 %s10, 1
    %s18 = ssub.s32 %s10, %s17
    %p19 = scmp.eq.s32.totalorder %s18, 0
    %s21 = sadd.s32 %s20, 1
    %s22 = scalar_select %p19, %s20, %s21
    %p25 = pneg %p19
    %p26 = scmp.eq.s32.totalorder %s10, 1
    %p27 = por %p25, %p26
    %p28 = scmp.ne.s32.totalorder %s20, %s23
    %p29 = scmp.eq.s32.totalorder %s10, 0
    %p30 = por %p28, %p29
    %p31 = scmp.ne.s32.totalorder %s20, %s23
    %p32 = scmp.eq.s32.totalorder %s15, 1
    %p33 = por %p31, %p32
    %p34 = scmp.ne.s32.totalorder %s23, %s24
    %p35 = scmp.eq.s32.totalorder %s15, 0
    %p36 = por %p34, %p35
    %p37 = scmp.ne.s32.totalorder %s23, %s24
    %p38 = scmp.eq.s32.totalorder %s16, 1
    %p39 = por %p37, %p38
    %p41 = scmp.ne.s32.totalorder %s24, %s40
    %p42 = scmp.eq.s32.totalorder %s16, 0
    %p43 = por %p41, %p42
    %s45 = sadd.s32 %s44, 1
    %p48 = scmp.eq.s32.totalorder %s10, 1
    %p49 = scmp.ne.s32.totalorder %s44, %s46
    %p50 = scmp.eq.s32.totalorder %s10, 0
    %p51 = por %p49, %p50
    %p52 = scmp.ne.s32.totalorder %s44, %s46
    %p53 = scmp.eq.s32.totalorder %s15, 1
    %p54 = por %p52, %p53
    %p55 = scmp.ne.s32.totalorder %s46, %s47
    %p56 = scmp.eq.s32.totalorder %s15, 0
    %p57 = por %p55, %p56
    %p58 = scmp.ne.s32.totalorder %s46, %s47
    %p59 = scmp.eq.s32.totalorder %s16, 1
    %p60 = por %p58, %p59
    %p62 = scmp.ne.s32.totalorder %s47, %s61
    %p63 = scmp.eq.s32.totalorder %s16, 0
    %p64 = por %p62, %p63
    %s66 = sadd.s32 %s65, 1
    %p69 = scmp.eq.s32.totalorder %s10, 1
    %p70 = scmp.ne.s32.totalorder %s65, %s67
    %p71 = scmp.eq.s32.totalorder %s10, 0
    %p72 = por %p70, %p71
    %p73 = scmp.ne.s32.totalorder %s65, %s67
    %p74 = scmp.eq.s32.totalorder %s15, 1
    %p75 = por %p73, %p74
    %p76 = scmp.ne.s32.totalorder %s67, %s68
    %p77 = scmp.eq.s32.totalorder %s15, 0
    %p78 = por %p76, %p77
    %p79 = scmp.ne.s32.totalorder %s67, %s68
    %p80 = scmp.eq.s32.totalorder %s16, 1
    %p81 = por %p79, %p80
    %p83 = scmp.ne.s32.totalorder %s68, %s82
    %p84 = scmp.eq.s32.totalorder %s16, 0
    %p85 = por %p83, %p84
    %s86 = ssub.s32 %s10, %s17
    %p87 = scmp.eq.s32.totalorder %s86, 0
    %s89 = sadd.s32 %s88, 1
    %s90 = scalar_select %p87, %s88, %s89
    %p93 = pneg %p87
    %p94 = scmp.eq.s32.totalorder %s10, 1
    %p95 = por %p93, %p94
    %p96 = scmp.ne.s32.totalorder %s88, %s91
    %p97 = scmp.eq.s32.totalorder %s10, 0
    %p98 = por %p96, %p97
    %p99 = scmp.ne.s32.totalorder %s88, %s91
    %p100 = scmp.eq.s32.totalorder %s15, 1
    %p101 = por %p99, %p100
    %p102 = scmp.ne.s32.totalorder %s91, %s92
    %p103 = scmp.eq.s32.totalorder %s15, 0
    %p104 = por %p102, %p103
    %p105 = scmp.ne.s32.totalorder %s91, %s92
    %p106 = scmp.eq.s32.totalorder %s16, 1
    %p107 = por %p105, %p106
    %p109 = scmp.ne.s32.totalorder %s92, %s108
    %p110 = scmp.eq.s32.totalorder %s16, 0
    %p111 = por %p109, %p110
    %s112 = ssub.s32 %s10, %s17
    %p113 = scmp.eq.s32.totalorder %s112, 0
    %s115 = sadd.s32 %s114, 1
    %s116 = scalar_select %p113, %s114, %s115
    %p119 = pneg %p113
    %p120 = scmp.eq.s32.totalorder %s10, 1
    %p121 = por %p119, %p120
    %p122 = scmp.ne.s32.totalorder %s114, %s117
    %p123 = scmp.eq.s32.totalorder %s10, 0
    %p124 = por %p122, %p123
    %p125 = scmp.ne.s32.totalorder %s114, %s117
    %p126 = scmp.eq.s32.totalorder %s15, 1
    %p127 = por %p125, %p126
    %p128 = scmp.ne.s32.totalorder %s117, %s118
    %p129 = scmp.eq.s32.totalorder %s15, 0
    %p130 = por %p128, %p129
    %p131 = scmp.ne.s32.totalorder %s117, %s118
    %p132 = scmp.eq.s32.totalorder %s16, 1
    %p133 = por %p131, %p132
    %p135 = scmp.ne.s32.totalorder %s118, %s134
    %p136 = scmp.eq.s32.totalorder %s16, 0
    %p137 = por %p135, %p136
    %p138 = scmp.le.s32.totalorder 1, %s10
    %p139 = scmp.lt.s32.totalorder %s10, 3
    %p140 = pnand %p138, %p139
    %p141 = pneg %p140
    // Predicated region
    $region9: #{japanese_lipnet_forward.29} parent=5 // pred_check
      _
    $region10: #{japanese_lipnet_forward.29} parent=5 // pred_check_branch
      %143 = sbr.rel (%p140) target = $region12
    $region11: #{japanese_lipnet_forward.29} parent=5 // pred_region
      %s144 = ssub.s32 %s10, 1
      // Predicated region
      $region13: #{japanese_lipnet_forward.29} parent=11 // pred_check
        %p145 = pneg %p57
      $region14: #{japanese_lipnet_forward.29} parent=11 // pred_check_branch
        %147 = sbr.rel (%p145) target = $region16
      $region15: #{japanese_lipnet_forward.29} parent=11 // pred_region
        _
      $region16: #{japanese_lipnet_forward.29} parent=11 // pred_fallthru
        _
      // Predicated region
      $region17: #{japanese_lipnet_forward.29} parent=11 // pred_check
        %p148 = pneg %p78
      $region18: #{japanese_lipnet_forward.29} parent=11 // pred_check_branch
        %150 = sbr.rel (%p148) target = $region20
      $region19: #{japanese_lipnet_forward.29} parent=11 // pred_region
        _
      $region20: #{japanese_lipnet_forward.29} parent=11 // pred_fallthru
        _
    $region12: #{japanese_lipnet_forward.29} parent=5 // pred_fallthru
      _
    %p151 = scmp.lt.s32.totalorder %s10, 2
    // Predicated region
    $region21: #{japanese_lipnet_forward.29} parent=5 // pred_check
      %p152 = pneg %p151
    $region22: #{japanese_lipnet_forward.29} parent=5 // pred_check_branch
      %154 = sbr.rel (%p152) target = $region24
    $region23: #{japanese_lipnet_forward.29} parent=5 // pred_region
      // Predicated region
      $region25: #{japanese_lipnet_forward.29} parent=23 // pred_check
        %p155 = pneg %p30
      $region26: #{japanese_lipnet_forward.29} parent=23 // pred_check_branch
        %157 = sbr.rel (%p155) target = $region28
      $region27: #{japanese_lipnet_forward.29} parent=23 // pred_region
        %p158 = scmp.lt.s32.totalorder %s10, 1
        %s159 = scalar_select %p158, %s10, 1
        %s160 = smul.addr %s159, 8
        %s161 = scalar_lea.vmem %s0, %s160
      $region28: #{japanese_lipnet_forward.29} parent=23 // pred_fallthru
        _
      // Predicated region
      $region29: #{japanese_lipnet_forward.29} parent=23 // pred_check
        %p162 = pneg %p98
      $region30: #{japanese_lipnet_forward.29} parent=23 // pred_check_branch
        %164 = sbr.rel (%p162) target = $region32
      $region31: #{japanese_lipnet_forward.29} parent=23 // pred_region
        %p165 = scmp.lt.s32.totalorder %s10, 1
        %s166 = scalar_select %p165, %s10, 1
        %s167 = smul.addr %s166, 8
        %s168 = scalar_lea.vmem %s3, %s167
      $region32: #{japanese_lipnet_forward.29} parent=23 // pred_fallthru
        _
    $region24: #{japanese_lipnet_forward.29} parent=5 // pred_fallthru
      _
    %p169 = scmp.le.s32.totalorder 1, %s10
    %p170 = scmp.lt.s32.totalorder %s10, 3
    %p171 = pnand %p169, %p170
    %p172 = pneg %p171
    // Predicated region
    $region33: #{japanese_lipnet_forward.29} parent=5 // pred_check
      _
    $region34: #{japanese_lipnet_forward.29} parent=5 // pred_check_branch
      %174 = sbr.rel (%p171) target = $region36
    $region35: #{japanese_lipnet_forward.29} parent=5 // pred_region
      %s175 = ssub.s32 %s10, 1
      %p176 = scmp.lt.s32.totalorder %s15, 1
      %s177 = scalar_select %p176, %s15, 1
      %s178 = smul.addr %s177, 8
      %s179 = scalar_lea.vmem %s0, %s178
      %p180 = pneg %p36
      %p181 = pneg %p33
      %p182 = pneg %p57
      %p183 = pneg %p54
      %p184 = pneg %p78
      %p185 = pneg %p75
      %p186 = scmp.lt.s32.totalorder %s15, 1
      %s187 = scalar_select %p186, %s15, 1
      %s188 = smul.addr %s187, 8
      %s189 = scalar_lea.vmem %s3, %s188
      %p190 = pneg %p104
      %p191 = pneg %p101
      %p192 = pneg %p130
      %p193 = pneg %p127
      %p194 = scmp.lt.s32.totalorder %s15, 1
      %s195 = scalar_select %p194, %s15, 1
      %s196 = smul.addr %s195, 8
      %s197 = scalar_lea.vmem %s4, %s196
      %p198 = scmp.lt.s32.totalorder %s15, 1
      %s199 = scalar_select %p198, %s15, 1
      %s200 = smul.addr %s199, 8
      %s201 = scalar_lea.vmem %s0, %s200
      %p202 = scmp.lt.s32.totalorder %s15, 1
      %s203 = scalar_select %p202, %s15, 1
      %s204 = smul.addr %s203, 8
      %s205 = scalar_lea.vmem %s3, %s204
      %p206 = scmp.lt.s32.totalorder %s15, 1
      %s207 = scalar_select %p206, %s15, 1
      %s208 = smul.addr %s207, 8
      %s209 = scalar_lea.vmem %s4, %s208
      %v210 = vld [vmem:[%s201] sm:$0xff]
      %v211 = vld [vmem:[%s1] sm:$0xff]
      %v212 = vld [vmem:[%s1 + $0x8] sm:$0xff]
      %v213 = vld [vmem:[%s1 + $0x10] sm:$0xff]
      %v214 = vld [vmem:[%s1 + $0x18] sm:$0xff]
      %v215 = vld [vmem:[%s1 + $0x20] sm:$0xff]
      %v216 = vld [vmem:[%s1 + $0x28] sm:$0xff]
      %v217 = vld [vmem:[%s1 + $0x30] sm:$0xff]
      %v218 = vld [vmem:[%s1 + $0x38] sm:$0xff]
      %v219 = vld [vmem:[%s1 + $0x40] sm:$0xff]
      %v220 = vld [vmem:[%s1 + $0x48] sm:$0xff]
      %v221 = vld [vmem:[%s1 + $0x50] sm:$0xff]
      %v222 = vld [vmem:[%s1 + $0x58] sm:$0xff]
      %v223 = vld [vmem:[%s1 + $0x60] sm:$0xff]
      %v224 = vld [vmem:[%s1 + $0x68] sm:$0xff]
      %v225 = vld [vmem:[%s1 + $0x70] sm:$0xff]
      %v226 = vld [vmem:[%s1 + $0x78] sm:$0xff]
      %v227 = vld [vmem:[%s2] sm:$0x1]
      %v229 = vlaneseq
      %v230 = vshrl.u32 %v229, 7
      %v231 = vsub.s32 0, %v230
      %v232 = vrot.slane %v227, %v231
      %234 = vmatprep.subr.mxu0 0.0
      %235 = vmatpush1.msra.mxu0 %v226
      %236 = vmatprep.subr.mxu0 0.0
      %237 = vmatpush1.msra.mxu0 %v225
      %238 = vmatprep.subr.mxu0 0.0
      %239 = vmatpush1.msra.mxu0 %v224
      %240 = vmatprep.subr.mxu0 0.0
      %241 = vmatpush1.msra.mxu0 %v223
      %242 = vmatprep.subr.mxu0 0.0
      %243 = vmatpush1.msra.mxu0 %v222
      %244 = vmatprep.subr.mxu0 0.0
      %245 = vmatpush1.msra.mxu0 %v221
      %246 = vmatprep.subr.mxu0 0.0
      %247 = vmatpush1.msra.mxu0 %v220
      %248 = vmatprep.subr.mxu0 0.0
      %249 = vmatpush1.msra.mxu0 %v219
      %250 = vmatprep.subr.mxu0 0.0
      %251 = vmatpush1.msra.mxu0 %v218
      %252 = vmatprep.subr.mxu0 0.0
      %253 = vmatpush1.msra.mxu0 %v217
      %254 = vmatprep.subr.mxu0 0.0
      %255 = vmatpush1.msra.mxu0 %v216
      %256 = vmatprep.subr.mxu0 0.0
      %257 = vmatpush1.msra.mxu0 %v215
      %258 = vmatprep.subr.mxu0 0.0
      %259 = vmatpush1.msra.mxu0 %v214
      %260 = vmatprep.subr.mxu0 0.0
      %261 = vmatpush1.msra.mxu0 %v213
      %262 = vmatprep.subr.mxu0 0.0
      %263 = vmatpush1.msra.mxu0 %v212
      %264 = vmatprep.subr.mxu0 0.0
      %265 = vmatpush1.msra.mxu0 %v211
      %266 = vmatprep.subr.mxu0 0.0
      %267 = vmatpush2.msra.mxu0 0.0
      %268 = vmatprep.subr.mxu0 0.0
      %269 = vmatpush2.msra.mxu0 0.0
      %270 = vmatprep.subr.mxu0 0.0
      %271 = vmatpush2.msra.mxu0 0.0
      %272 = vmatprep.subr.mxu0 0.0
      %273 = vmatpush2.msra.mxu0 0.0
      %274 = vmatprep.subr.mxu0 0.0
      %275 = vmatpush2.msra.mxu0 0.0
      %276 = vmatprep.subr.mxu0 0.0
      %277 = vmatpush2.msra.mxu0 0.0
      %278 = vmatprep.subr.mxu0 0.0
      %279 = vmatpush2.msra.mxu0 0.0
      %280 = vmatprep.subr.mxu0 0.0
      %281 = vmatpush2.msra.mxu0 0.0
      %282 = vmatprep.subr.mxu0 0.0
      %283 = vmatpush2.msra.mxu0 0.0
      %284 = vmatprep.subr.mxu0 0.0
      %285 = vmatpush2.msra.mxu0 0.0
      %286 = vmatprep.subr.mxu0 0.0
      %287 = vmatpush2.msra.mxu0 0.0
      %288 = vmatprep.subr.mxu0 0.0
      %289 = vmatpush2.msra.mxu0 0.0
      %290 = vmatprep.subr.mxu0 0.0
      %291 = vmatpush2.msra.mxu0 0.0
      %292 = vmatprep.subr.mxu0 0.0
      %293 = vmatpush2.msra.mxu0 0.0
      %294 = vmatprep.subr.mxu0 0.0
      %295 = vmatpush2.msra.mxu0 0.0
      %296 = vmatprep.subr.mxu0 0.0
      %297 = vmatpush2.msra.mxu0 0.0
      %298 = vmatprep.mubr.f32.mxu0 0.0
      %299 = vmatmul.mubr.f32.gmra.mxu0 %v210
      %v300 = vpop.f32.mrf.mxu0
      %v301 = vadd.f32 %v232, %v300
      %v302 = vpop.f32.mrf.mxu0
      %303 = vdwg.mxu0
      %v304 = vld [vmem:[%s205] sm:$0xff]
      %v305 = vadd.f32 %v304, %v301
      %306 = vst [vmem:[%s209] sm:$0xff] %v305
      %p307 = scmp.lt.s32.totalorder %s15, 1
      %s308 = scalar_select %p307, %s15, 1
      %s309 = smul.addr %s308, 8
      %s310 = scalar_lea.vmem %s4, %s309
      // Predicated region
      $region37: #{japanese_lipnet_forward.29} parent=35 // pred_check
        %p311 = pneg %p127
      $region38: #{japanese_lipnet_forward.29} parent=35 // pred_check_branch
        %313 = sbr.rel (%p311) target = $region40
      $region39: #{japanese_lipnet_forward.29} parent=35 // pred_region
        _
      $region40: #{japanese_lipnet_forward.29} parent=35 // pred_fallthru
        _
    $region36: #{japanese_lipnet_forward.29} parent=5 // pred_fallthru
      _
    %p314 = scmp.le.s32.totalorder 2, %s10
    // Predicated region
    $region41: #{japanese_lipnet_forward.29} parent=5 // pred_check
      %p315 = pneg %p314
    $region42: #{japanese_lipnet_forward.29} parent=5 // pred_check_branch
      %317 = sbr.rel (%p315) target = $region44
    $region43: #{japanese_lipnet_forward.29} parent=5 // pred_region
      %s318 = ssub.s32 %s10, 2
      // Predicated region
      $region45: #{japanese_lipnet_forward.29} parent=43 // pred_check
        %p319 = pneg %p133
      $region46: #{japanese_lipnet_forward.29} parent=43 // pred_check_branch
        %321 = sbr.rel (%p319) target = $region48
      $region47: #{japanese_lipnet_forward.29} parent=43 // pred_region
        %p322 = scmp.lt.s32.totalorder %s16, 1
        %s323 = scalar_select %p322, %s16, 1
        %s324 = smul.addr %s323, 8
        %s325 = scalar_lea.vmem %s4, %s324
      $region48: #{japanese_lipnet_forward.29} parent=43 // pred_fallthru
        _
    $region44: #{japanese_lipnet_forward.29} parent=5 // pred_fallthru
      _
  $region6: #{japanese_lipnet_forward.29} parent=0 // loop_footer
    %s14 = sadd.s32 1, %s10
  $region7: #{japanese_lipnet_forward.29} parent=0 // loop_footer_branch
    %9 = sbr.rel target = $region3
  $region8: #{japanese_lipnet_forward.29} parent=0 // loop_exit
    _

// kernel: japanese_lipnet_forward.28
$region0: #{japanese_lipnet_forward.28}
  #allocation0 [shape = 'u32[]', space=smem, size = 0x4, offset = 0x4, fixed_abs, tag = 'smem constant byte address 0x4 - core index']
  #allocation1 [shape = 'u32[144,128]{1,0:T(1,128)}', space=vmem, size = 0x12000, scoped, tag = 'internal scratch']
  %s0 = inlined_call_operand.vmem [shape: f32[2,8,8,16], index: 0, kind: input, shape index: {}]
  %s1 = inlined_call_operand.vmem [shape: f32[2,8,8,16], index: 1, kind: input, shape index: {}]
  %s2 = inlined_call_operand.vmem [shape: f32[2,8,8,16], index: 2, kind: input, shape index: {}]
  %s3 = inlined_call_operand.vmem [shape: f32[2,8,8,16], index: 3, kind: output, shape index: {}]
  %s4 = sld [smem:[#allocation0]]
  $region45: #{japanese_lipnet_forward.28} parent=0
    _
  %s6 = ssub.s32 1, %s4
  %s7 = scalar_select 0, %s6, %s4
  loop: start=0, step=1, limit=4
  $region2: #{japanese_lipnet_forward.28} parent=0 // loop_pre_header
    _
  $region3: #{japanese_lipnet_forward.28} parent=0 // loop_header
    %s9 = sphi 0, %s13
    %p10 = scmp.ge.s32.totalorder %s9, 4
    %s19 = sphi 0, %s21
    %s22 = sphi 0, %s19
    %s23 = sphi 0, %s22
    %s39 = sphi 0, %s23
    %s45 = sphi 0, %s47
    %s48 = sphi 0, %s45
    %s49 = sphi 0, %s48
    %s65 = sphi 0, %s49
    %s71 = sphi 0, %s73
    %s74 = sphi 0, %s71
    %s75 = sphi 0, %s74
    %s91 = sphi 0, %s75
    %s97 = sphi 0, %s99
    %s100 = sphi 0, %s97
    %s101 = sphi 0, %s100
    %s117 = sphi 0, %s101
  $region4: #{japanese_lipnet_forward.28} parent=0 // loop_header_branch
    %12 = sbr.rel (%p10) target = $region8
  $region5: #{japanese_lipnet_forward.28} parent=0 // loop_body
    %s14 = ssub.s32 %s9, 1
    %s15 = ssub.s32 %s9, 2
    %s16 = sadd.s32 %s9, 1
    %s17 = ssub.s32 %s9, %s16
    %p18 = scmp.eq.s32.totalorder %s17, 0
    %s20 = sadd.s32 %s19, 1
    %s21 = scalar_select %p18, %s19, %s20
    %p24 = pneg %p18
    %p25 = scmp.eq.s32.totalorder %s9, 1
    %p26 = por %p24, %p25
    %p27 = scmp.ne.s32.totalorder %s19, %s22
    %p28 = scmp.eq.s32.totalorder %s9, 0
    %p29 = por %p27, %p28
    %p30 = scmp.ne.s32.totalorder %s19, %s22
    %p31 = scmp.eq.s32.totalorder %s14, 1
    %p32 = por %p30, %p31
    %p33 = scmp.ne.s32.totalorder %s22, %s23
    %p34 = scmp.eq.s32.totalorder %s14, 0
    %p35 = por %p33, %p34
    %p36 = scmp.ne.s32.totalorder %s22, %s23
    %p37 = scmp.eq.s32.totalorder %s15, 1
    %p38 = por %p36, %p37
    %p40 = scmp.ne.s32.totalorder %s23, %s39
    %p41 = scmp.eq.s32.totalorder %s15, 0
    %p42 = por %p40, %p41
    %s43 = ssub.s32 %s9, %s16
    %p44 = scmp.eq.s32.totalorder %s43, 0
    %s46 = sadd.s32 %s45, 1
    %s47 = scalar_select %p44, %s45, %s46
    %p50 = pneg %p44
    %p51 = scmp.eq.s32.totalorder %s9, 1
    %p52 = por %p50, %p51
    %p53 = scmp.ne.s32.totalorder %s45, %s48
    %p54 = scmp.eq.s32.totalorder %s9, 0
    %p55 = por %p53, %p54
    %p56 = scmp.ne.s32.totalorder %s45, %s48
    %p57 = scmp.eq.s32.totalorder %s14, 1
    %p58 = por %p56, %p57
    %p59 = scmp.ne.s32.totalorder %s48, %s49
    %p60 = scmp.eq.s32.totalorder %s14, 0
    %p61 = por %p59, %p60
    %p62 = scmp.ne.s32.totalorder %s48, %s49
    %p63 = scmp.eq.s32.totalorder %s15, 1
    %p64 = por %p62, %p63
    %p66 = scmp.ne.s32.totalorder %s49, %s65
    %p67 = scmp.eq.s32.totalorder %s15, 0
    %p68 = por %p66, %p67
    %s69 = ssub.s32 %s9, %s16
    %p70 = scmp.eq.s32.totalorder %s69, 0
    %s72 = sadd.s32 %s71, 1
    %s73 = scalar_select %p70, %s71, %s72
    %p76 = pneg %p70
    %p77 = scmp.eq.s32.totalorder %s9, 1
    %p78 = por %p76, %p77
    %p79 = scmp.ne.s32.totalorder %s71, %s74
    %p80 = scmp.eq.s32.totalorder %s9, 0
    %p81 = por %p79, %p80
    %p82 = scmp.ne.s32.totalorder %s71, %s74
    %p83 = scmp.eq.s32.totalorder %s14, 1
    %p84 = por %p82, %p83
    %p85 = scmp.ne.s32.totalorder %s74, %s75
    %p86 = scmp.eq.s32.totalorder %s14, 0
    %p87 = por %p85, %p86
    %p88 = scmp.ne.s32.totalorder %s74, %s75
    %p89 = scmp.eq.s32.totalorder %s15, 1
    %p90 = por %p88, %p89
    %p92 = scmp.ne.s32.totalorder %s75, %s91
    %p93 = scmp.eq.s32.totalorder %s15, 0
    %p94 = por %p92, %p93
    %s95 = ssub.s32 %s9, %s16
    %p96 = scmp.eq.s32.totalorder %s95, 0
    %s98 = sadd.s32 %s97, 1
    %s99 = scalar_select %p96, %s97, %s98
    %p102 = pneg %p96
    %p103 = scmp.eq.s32.totalorder %s9, 1
    %p104 = por %p102, %p103
    %p105 = scmp.ne.s32.totalorder %s97, %s100
    %p106 = scmp.eq.s32.totalorder %s9, 0
    %p107 = por %p105, %p106
    %p108 = scmp.ne.s32.totalorder %s97, %s100
    %p109 = scmp.eq.s32.totalorder %s14, 1
    %p110 = por %p108, %p109
    %p111 = scmp.ne.s32.totalorder %s100, %s101
    %p112 = scmp.eq.s32.totalorder %s14, 0
    %p113 = por %p111, %p112
    %p114 = scmp.ne.s32.totalorder %s100, %s101
    %p115 = scmp.eq.s32.totalorder %s15, 1
    %p116 = por %p114, %p115
    %p118 = scmp.ne.s32.totalorder %s101, %s117
    %p119 = scmp.eq.s32.totalorder %s15, 0
    %p120 = por %p118, %p119
    %p121 = scmp.le.s32.totalorder 1, %s9
    %p122 = scmp.lt.s32.totalorder %s9, 3
    %p123 = pnand %p121, %p122
    %p124 = pneg %p123
    // Predicated region
    $region9: #{japanese_lipnet_forward.28} parent=5 // pred_check
      _
    $region10: #{japanese_lipnet_forward.28} parent=5 // pred_check_branch
      %126 = sbr.rel (%p123) target = $region12
    $region11: #{japanese_lipnet_forward.28} parent=5 // pred_region
      %s127 = ssub.s32 %s9, 1
    $region12: #{japanese_lipnet_forward.28} parent=5 // pred_fallthru
      _
    %p128 = scmp.lt.s32.totalorder %s9, 2
    // Predicated region
    $region13: #{japanese_lipnet_forward.28} parent=5 // pred_check
      %p129 = pneg %p128
    $region14: #{japanese_lipnet_forward.28} parent=5 // pred_check_branch
      %131 = sbr.rel (%p129) target = $region16
    $region15: #{japanese_lipnet_forward.28} parent=5 // pred_region
      // Predicated region
      $region17: #{japanese_lipnet_forward.28} parent=15 // pred_check
        %p132 = pneg %p29
      $region18: #{japanese_lipnet_forward.28} parent=15 // pred_check_branch
        %134 = sbr.rel (%p132) target = $region20
      $region19: #{japanese_lipnet_forward.28} parent=15 // pred_region
        %p135 = scmp.lt.s32.totalorder %s9, 1
        %s136 = scalar_select %p135, %s9, 1
        %s137 = smul.addr %s136, 8
        %s138 = smul.addr %s137, 8
        %s139 = scalar_lea.vmem %s0, %s138
      $region20: #{japanese_lipnet_forward.28} parent=15 // pred_fallthru
        _
      // Predicated region
      $region21: #{japanese_lipnet_forward.28} parent=15 // pred_check
        %p140 = pneg %p55
      $region22: #{japanese_lipnet_forward.28} parent=15 // pred_check_branch
        %142 = sbr.rel (%p140) target = $region24
      $region23: #{japanese_lipnet_forward.28} parent=15 // pred_region
        %p143 = scmp.lt.s32.totalorder %s9, 1
        %s144 = scalar_select %p143, %s9, 1
        %s145 = smul.addr %s144, 8
        %s146 = smul.addr %s145, 8
        %s147 = scalar_lea.vmem %s1, %s146
      $region24: #{japanese_lipnet_forward.28} parent=15 // pred_fallthru
        _
      // Predicated region
      $region25: #{japanese_lipnet_forward.28} parent=15 // pred_check
        %p148 = pneg %p81
      $region26: #{japanese_lipnet_forward.28} parent=15 // pred_check_branch
        %150 = sbr.rel (%p148) target = $region28
      $region27: #{japanese_lipnet_forward.28} parent=15 // pred_region
        %p151 = scmp.lt.s32.totalorder %s9, 1
        %s152 = scalar_select %p151, %s9, 1
        %s153 = smul.addr %s152, 8
        %s154 = smul.addr %s153, 8
        %s155 = scalar_lea.vmem %s2, %s154
      $region28: #{japanese_lipnet_forward.28} parent=15 // pred_fallthru
        _
    $region16: #{japanese_lipnet_forward.28} parent=5 // pred_fallthru
      _
    %p156 = scmp.le.s32.totalorder 1, %s9
    %p157 = scmp.lt.s32.totalorder %s9, 3
    %p158 = pnand %p156, %p157
    %p159 = pneg %p158
    // Predicated region
    $region29: #{japanese_lipnet_forward.28} parent=5 // pred_check
      _
    $region30: #{japanese_lipnet_forward.28} parent=5 // pred_check_branch
      %161 = sbr.rel (%p158) target = $region32
    $region31: #{japanese_lipnet_forward.28} parent=5 // pred_region
      %s162 = ssub.s32 %s9, 1
      %p163 = scmp.lt.s32.totalorder %s14, 1
      %s164 = scalar_select %p163, %s14, 1
      %s165 = smul.addr %s164, 8
      %s166 = smul.addr %s165, 8
      %s167 = scalar_lea.vmem %s0, %s166
      %p168 = pneg %p35
      %p169 = pneg %p32
      %p170 = scmp.lt.s32.totalorder %s14, 1
      %s171 = scalar_select %p170, %s14, 1
      %s172 = smul.addr %s171, 8
      %s173 = smul.addr %s172, 8
      %s174 = scalar_lea.vmem %s1, %s173
      %p175 = pneg %p61
      %p176 = pneg %p58
      %p177 = scmp.lt.s32.totalorder %s14, 1
      %s178 = scalar_select %p177, %s14, 1
      %s179 = smul.addr %s178, 8
      %s180 = smul.addr %s179, 8
      %s181 = scalar_lea.vmem %s2, %s180
      %p182 = pneg %p87
      %p183 = pneg %p84
      %p184 = pneg %p113
      %p185 = pneg %p110
      %p186 = scmp.lt.s32.totalorder %s14, 1
      %s187 = scalar_select %p186, %s14, 1
      %s188 = smul.addr %s187, 8
      %s189 = smul.addr %s188, 8
      %s190 = scalar_lea.vmem %s3, %s189
      %p191 = scmp.lt.s32.totalorder %s14, 1
      %s192 = scalar_select %p191, %s14, 1
      %s193 = smul.addr %s192, 8
      %s194 = smul.addr %s193, 8
      %s195 = scalar_lea.vmem %s0, %s194
      %p196 = scmp.lt.s32.totalorder %s14, 1
      %s197 = scalar_select %p196, %s14, 1
      %s198 = smul.addr %s197, 8
      %s199 = smul.addr %s198, 8
      %s200 = scalar_lea.vmem %s1, %s199
      %p201 = scmp.lt.s32.totalorder %s14, 1
      %s202 = scalar_select %p201, %s14, 1
      %s203 = smul.addr %s202, 8
      %s204 = smul.addr %s203, 8
      %s205 = scalar_lea.vmem %s2, %s204
      %p206 = scmp.lt.s32.totalorder %s14, 1
      %s207 = scalar_select %p206, %s14, 1
      %s208 = smul.addr %s207, 8
      %s209 = smul.addr %s208, 8
      %s210 = scalar_lea.vmem %s3, %s209
      %v211 = vld [vmem:[%s195] sm:$0xff]
      %v212 = vld [vmem:[%s195 + $0x8] sm:$0xff]
      %v213 = vld [vmem:[%s195 + $0x10] sm:$0xff]
      %v214 = vld [vmem:[%s195 + $0x18] sm:$0xff]
      %v215 = vld [vmem:[%s195 + $0x20] sm:$0xff]
      %v216 = vld [vmem:[%s195 + $0x28] sm:$0xff]
      %v217 = vld [vmem:[%s195 + $0x30] sm:$0xff]
      %v218 = vld [vmem:[%s195 + $0x38] sm:$0xff]
      %v219 = vld [vmem:[%s200] sm:$0xff]
      %v220 = vld [vmem:[%s200 + $0x8] sm:$0xff]
      %v221 = vld [vmem:[%s200 + $0x10] sm:$0xff]
      %v222 = vld [vmem:[%s200 + $0x18] sm:$0xff]
      %v223 = vld [vmem:[%s200 + $0x20] sm:$0xff]
      %v224 = vld [vmem:[%s200 + $0x28] sm:$0xff]
      %v225 = vld [vmem:[%s200 + $0x30] sm:$0xff]
      %v226 = vld [vmem:[%s200 + $0x38] sm:$0xff]
      %v227 = vld [vmem:[%s205] sm:$0xff]
      %v228 = vld [vmem:[%s205 + $0x8] sm:$0xff]
      %v229 = vld [vmem:[%s205 + $0x10] sm:$0xff]
      %v230 = vld [vmem:[%s205 + $0x18] sm:$0xff]
      %v231 = vld [vmem:[%s205 + $0x20] sm:$0xff]
      %v232 = vld [vmem:[%s205 + $0x28] sm:$0xff]
      %v233 = vld [vmem:[%s205 + $0x30] sm:$0xff]
      %v234 = vld [vmem:[%s205 + $0x38] sm:$0xff]
      %vm235 = vcmask 130048
      %v237 = vsel %vm235, %v211, 0
      %v240 = vsel %vm235, %v219, 0
      %242 = vmatprep.subr.mxu0 0.0
      %243 = vmatpush1.xpose.msra.mxu0 0.0
      %244 = vmatprep.subr.mxu0 0.0
      %245 = vmatpush1.xpose.msra.mxu0 0.0
      %246 = vmatprep.subr.mxu0 0.0
      %247 = vmatpush1.xpose.msra.mxu0 0.0
      %248 = vmatprep.subr.mxu0 0.0
      %249 = vmatpush1.xpose.msra.mxu0 0.0
      %250 = vmatprep.subr.mxu0 0.0
      %251 = vmatpush1.xpose.msra.mxu0 0.0
      %252 = vmatprep.subr.mxu0 0.0
      %253 = vmatpush1.xpose.msra.mxu0 0.0
      %254 = vmatprep.subr.mxu0 0.0
      %255 = vmatpush1.xpose.msra.mxu0 0.0
      %256 = vmatprep.subr.mxu0 0.0
      %257 = vmatpush1.xpose.msra.mxu0 0.0
      %258 = vmatprep.subr.mxu0 0.0
      %259 = vmatpush1.xpose.msra.mxu0 0.0
      %260 = vmatprep.subr.mxu0 0.0
      %261 = vmatpush1.xpose.msra.mxu0 0.0
      %262 = vmatprep.subr.mxu0 0.0
      %263 = vmatpush1.xpose.msra.mxu0 0.0
      %264 = vmatprep.subr.mxu0 0.0
      %265 = vmatpush1.xpose.msra.mxu0 0.0
      %266 = vmatprep.subr.mxu0 0.0
      %267 = vmatpush1.xpose.msra.mxu0 0.0
      %268 = vmatprep.subr.mxu0 0.0
      %269 = vmatpush1.xpose.msra.mxu0 0.0
      %270 = vmatprep.subr.mxu0 0.0
      %271 = vmatpush1.xpose.msra.mxu0 0.0
      %272 = vmatprep.subr.mxu0 0.0
      %273 = vmatpush1.xpose.msra.mxu0 %v240
      %274 = vmatprep.subr.mxu0 0.0
      %275 = vmatpush2.xpose.msra.mxu0 0.0
      %276 = vmatprep.subr.mxu0 0.0
      %277 = vmatpush2.xpose.msra.mxu0 0.0
      %278 = vmatprep.subr.mxu0 0.0
      %279 = vmatpush2.xpose.msra.mxu0 0.0
      %280 = vmatprep.subr.mxu0 0.0
      %281 = vmatpush2.xpose.msra.mxu0 0.0
      %282 = vmatprep.subr.mxu0 0.0
      %283 = vmatpush2.xpose.msra.mxu0 0.0
      %284 = vmatprep.subr.mxu0 0.0
      %285 = vmatpush2.xpose.msra.mxu0 0.0
      %286 = vmatprep.subr.mxu0 0.0
      %287 = vmatpush2.xpose.msra.mxu0 0.0
      %288 = vmatprep.subr.mxu0 0.0
      %289 = vmatpush2.xpose.msra.mxu0 0.0
      %290 = vmatprep.subr.mxu0 0.0
      %291 = vmatpush2.xpose.msra.mxu0 0.0
      %292 = vmatprep.subr.mxu0 0.0
      %293 = vmatpush2.xpose.msra.mxu0 0.0
      %294 = vmatprep.subr.mxu0 0.0
      %295 = vmatpush2.xpose.msra.mxu0 0.0
      %296 = vmatprep.subr.mxu0 0.0
      %297 = vmatpush2.xpose.msra.mxu0 0.0
      %298 = vmatprep.subr.mxu0 0.0
      %299 = vmatpush2.xpose.msra.mxu0 0.0
      %300 = vmatprep.subr.mxu0 0.0
      %301 = vmatpush2.xpose.msra.mxu0 0.0
      %302 = vmatprep.subr.mxu0 0.0
      %303 = vmatpush2.xpose.msra.mxu0 0.0
      %304 = vmatprep.subr.mxu0 0.0
      %305 = vmatpush2.xpose.msra.mxu0 0.0
      %306 = vmatprep.mubr.f32.mxu0 0.0
      %307 = vmatmul.mubr.f32.gmra.mxu0 %v237
      %v308 = vpop.f32.mrf.mxu0
      %v309 = vadd.f32 0.0, %v308
      %v310 = vpop.f32.mrf.mxu0
      %311 = vdwg.mxu0
      %v313 = vsel %vm235, %v212, 0
      %v316 = vsel %vm235, %v220, 0
      %318 = vmatprep.subr.mxu0 0.0
      %319 = vmatpush1.xpose.msra.mxu0 0.0
      %320 = vmatprep.subr.mxu0 0.0
      %321 = vmatpush1.xpose.msra.mxu0 0.0
      %322 = vmatprep.subr.mxu0 0.0
      %323 = vmatpush1.xpose.msra.mxu0 0.0
      %324 = vmatprep.subr.mxu0 0.0
      %325 = vmatpush1.xpose.msra.mxu0 0.0
      %326 = vmatprep.subr.mxu0 0.0
      %327 = vmatpush1.xpose.msra.mxu0 0.0
      %328 = vmatprep.subr.mxu0 0.0
      %329 = vmatpush1.xpose.msra.mxu0 0.0
      %330 = vmatprep.subr.mxu0 0.0
      %331 = vmatpush1.xpose.msra.mxu0 0.0
      %332 = vmatprep.subr.mxu0 0.0
      %333 = vmatpush1.xpose.msra.mxu0 0.0
      %334 = vmatprep.subr.mxu0 0.0
      %335 = vmatpush1.xpose.msra.mxu0 0.0
      %336 = vmatprep.subr.mxu0 0.0
      %337 = vmatpush1.xpose.msra.mxu0 0.0
      %338 = vmatprep.subr.mxu0 0.0
      %339 = vmatpush1.xpose.msra.mxu0 0.0
      %340 = vmatprep.subr.mxu0 0.0
      %341 = vmatpush1.xpose.msra.mxu0 0.0
      %342 = vmatprep.subr.mxu0 0.0
      %343 = vmatpush1.xpose.msra.mxu0 0.0
      %344 = vmatprep.subr.mxu0 0.0
      %345 = vmatpush1.xpose.msra.mxu0 0.0
      %346 = vmatprep.subr.mxu0 0.0
      %347 = vmatpush1.xpose.msra.mxu0 0.0
      %348 = vmatprep.subr.mxu0 0.0
      %349 = vmatpush1.xpose.msra.mxu0 %v316
      %350 = vmatprep.subr.mxu0 0.0
      %351 = vmatpush2.xpose.msra.mxu0 0.0
      %352 = vmatprep.subr.mxu0 0.0
      %353 = vmatpush2.xpose.msra.mxu0 0.0
      %354 = vmatprep.subr.mxu0 0.0
      %355 = vmatpush2.xpose.msra.mxu0 0.0
      %356 = vmatprep.subr.mxu0 0.0
      %357 = vmatpush2.xpose.msra.mxu0 0.0
      %358 = vmatprep.subr.mxu0 0.0
      %359 = vmatpush2.xpose.msra.mxu0 0.0
      %360 = vmatprep.subr.mxu0 0.0
      %361 = vmatpush2.xpose.msra.mxu0 0.0
      %362 = vmatprep.subr.mxu0 0.0
      %363 = vmatpush2.xpose.msra.mxu0 0.0
      %364 = vmatprep.subr.mxu0 0.0
      %365 = vmatpush2.xpose.msra.mxu0 0.0
      %366 = vmatprep.subr.mxu0 0.0
      %367 = vmatpush2.xpose.msra.mxu0 0.0
      %368 = vmatprep.subr.mxu0 0.0
      %369 = vmatpush2.xpose.msra.mxu0 0.0
      %370 = vmatprep.subr.mxu0 0.0
      %371 = vmatpush2.xpose.msra.mxu0 0.0
      %372 = vmatprep.subr.mxu0 0.0
      %373 = vmatpush2.xpose.msra.mxu0 0.0
      %374 = vmatprep.subr.mxu0 0.0
      %375 = vmatpush2.xpose.msra.mxu0 0.0
      %376 = vmatprep.subr.mxu0 0.0
      %377 = vmatpush2.xpose.msra.mxu0 0.0
      %378 = vmatprep.subr.mxu0 0.0
      %379 = vmatpush2.xpose.msra.mxu0 0.0
      %380 = vmatprep.subr.mxu0 0.0
      %381 = vmatpush2.xpose.msra.mxu0 0.0
      %382 = vmatprep.mubr.f32.mxu0 0.0
      %383 = vmatmul.mubr.f32.gmra.mxu0 %v313
      %v384 = vpop.f32.mrf.mxu0
      %v385 = vadd.f32 0.0, %v384
      %v386 = vpop.f32.mrf.mxu0
      %387 = vdwg.mxu0
      %v389 = vsel %vm235, %v213, 0
      %v392 = vsel %vm235, %v221, 0
      %394 = vmatprep.subr.mxu0 0.0
      %395 = vmatpush1.xpose.msra.mxu0 0.0
      %396 = vmatprep.subr.mxu0 0.0
      %397 = vmatpush1.xpose.msra.mxu0 0.0
      %398 = vmatprep.subr.mxu0 0.0
      %399 = vmatpush1.xpose.msra.mxu0 0.0
      %400 = vmatprep.subr.mxu0 0.0
      %401 = vmatpush1.xpose.msra.mxu0 0.0
      %402 = vmatprep.subr.mxu0 0.0
      %403 = vmatpush1.xpose.msra.mxu0 0.0
      %404 = vmatprep.subr.mxu0 0.0
      %405 = vmatpush1.xpose.msra.mxu0 0.0
      %406 = vmatprep.subr.mxu0 0.0
      %407 = vmatpush1.xpose.msra.mxu0 0.0
      %408 = vmatprep.subr.mxu0 0.0
      %409 = vmatpush1.xpose.msra.mxu0 0.0
      %410 = vmatprep.subr.mxu0 0.0
      %411 = vmatpush1.xpose.msra.mxu0 0.0
      %412 = vmatprep.subr.mxu0 0.0
      %413 = vmatpush1.xpose.msra.mxu0 0.0
      %414 = vmatprep.subr.mxu0 0.0
      %415 = vmatpush1.xpose.msra.mxu0 0.0
      %416 = vmatprep.subr.mxu0 0.0
      %417 = vmatpush1.xpose.msra.mxu0 0.0
      %418 = vmatprep.subr.mxu0 0.0
      %419 = vmatpush1.xpose.msra.mxu0 0.0
      %420 = vmatprep.subr.mxu0 0.0
      %421 = vmatpush1.xpose.msra.mxu0 0.0
      %422 = vmatprep.subr.mxu0 0.0
      %423 = vmatpush1.xpose.msra.mxu0 0.0
      %424 = vmatprep.subr.mxu0 0.0
      %425 = vmatpush1.xpose.msra.mxu0 %v392
      %426 = vmatprep.subr.mxu0 0.0
      %427 = vmatpush2.xpose.msra.mxu0 0.0
      %428 = vmatprep.subr.mxu0 0.0
      %429 = vmatpush2.xpose.msra.mxu0 0.0
      %430 = vmatprep.subr.mxu0 0.0
      %431 = vmatpush2.xpose.msra.mxu0 0.0
      %432 = vmatprep.subr.mxu0 0.0
      %433 = vmatpush2.xpose.msra.mxu0 0.0
      %434 = vmatprep.subr.mxu0 0.0
      %435 = vmatpush2.xpose.msra.mxu0 0.0
      %436 = vmatprep.subr.mxu0 0.0
      %437 = vmatpush2.xpose.msra.mxu0 0.0
      %438 = vmatprep.subr.mxu0 0.0
      %439 = vmatpush2.xpose.msra.mxu0 0.0
      %440 = vmatprep.subr.mxu0 0.0
      %441 = vmatpush2.xpose.msra.mxu0 0.0
      %442 = vmatprep.subr.mxu0 0.0
      %443 = vmatpush2.xpose.msra.mxu0 0.0
      %444 = vmatprep.subr.mxu0 0.0
      %445 = vmatpush2.xpose.msra.mxu0 0.0
      %446 = vmatprep.subr.mxu0 0.0
      %447 = vmatpush2.xpose.msra.mxu0 0.0
      %448 = vmatprep.subr.mxu0 0.0
      %449 = vmatpush2.xpose.msra.mxu0 0.0
      %450 = vmatprep.subr.mxu0 0.0
      %451 = vmatpush2.xpose.msra.mxu0 0.0
      %452 = vmatprep.subr.mxu0 0.0
      %453 = vmatpush2.xpose.msra.mxu0 0.0
      %454 = vmatprep.subr.mxu0 0.0
      %455 = vmatpush2.xpose.msra.mxu0 0.0
      %456 = vmatprep.subr.mxu0 0.0
      %457 = vmatpush2.xpose.msra.mxu0 0.0
      %458 = vmatprep.mubr.f32.mxu0 0.0
      %459 = vmatmul.mubr.f32.gmra.mxu0 %v389
      %v460 = vpop.f32.mrf.mxu0
      %v461 = vadd.f32 0.0, %v460
      %v462 = vpop.f32.mrf.mxu0
      %463 = vdwg.mxu0
      %v465 = vsel %vm235, %v214, 0
      %v468 = vsel %vm235, %v222, 0
      %470 = vmatprep.subr.mxu0 0.0
      %471 = vmatpush1.xpose.msra.mxu0 0.0
      %472 = vmatprep.subr.mxu0 0.0
      %473 = vmatpush1.xpose.msra.mxu0 0.0
      %474 = vmatprep.subr.mxu0 0.0
      %475 = vmatpush1.xpose.msra.mxu0 0.0
      %476 = vmatprep.subr.mxu0 0.0
      %477 = vmatpush1.xpose.msra.mxu0 0.0
      %478 = vmatprep.subr.mxu0 0.0
      %479 = vmatpush1.xpose.msra.mxu0 0.0
      %480 = vmatprep.subr.mxu0 0.0
      %481 = vmatpush1.xpose.msra.mxu0 0.0
      %482 = vmatprep.subr.mxu0 0.0
      %483 = vmatpush1.xpose.msra.mxu0 0.0
      %484 = vmatprep.subr.mxu0 0.0
      %485 = vmatpush1.xpose.msra.mxu0 0.0
      %486 = vmatprep.subr.mxu0 0.0
      %487 = vmatpush1.xpose.msra.mxu0 0.0
      %488 = vmatprep.subr.mxu0 0.0
      %489 = vmatpush1.xpose.msra.mxu0 0.0
      %490 = vmatprep.subr.mxu0 0.0
      %491 = vmatpush1.xpose.msra.mxu0 0.0
      %492 = vmatprep.subr.mxu0 0.0
      %493 = vmatpush1.xpose.msra.mxu0 0.0
      %494 = vmatprep.subr.mxu0 0.0
      %495 = vmatpush1.xpose.msra.mxu0 0.0
      %496 = vmatprep.subr.mxu0 0.0
      %497 = vmatpush1.xpose.msra.mxu0 0.0
      %498 = vmatprep.subr.mxu0 0.0
      %499 = vmatpush1.xpose.msra.mxu0 0.0
      %500 = vmatprep.subr.mxu0 0.0
      %501 = vmatpush1.xpose.msra.mxu0 %v468
      %502 = vmatprep.subr.mxu0 0.0
      %503 = vmatpush2.xpose.msra.mxu0 0.0
      %504 = vmatprep.subr.mxu0 0.0
      %505 = vmatpush2.xpose.msra.mxu0 0.0
      %506 = vmatprep.subr.mxu0 0.0
      %507 = vmatpush2.xpose.msra.mxu0 0.0
      %508 = vmatprep.subr.mxu0 0.0
      %509 = vmatpush2.xpose.msra.mxu0 0.0
      %510 = vmatprep.subr.mxu0 0.0
      %511 = vmatpush2.xpose.msra.mxu0 0.0
      %512 = vmatprep.subr.mxu0 0.0
      %513 = vmatpush2.xpose.msra.mxu0 0.0
      %514 = vmatprep.subr.mxu0 0.0
      %515 = vmatpush2.xpose.msra.mxu0 0.0
      %516 = vmatprep.subr.mxu0 0.0
      %517 = vmatpush2.xpose.msra.mxu0 0.0
      %518 = vmatprep.subr.mxu0 0.0
      %519 = vmatpush2.xpose.msra.mxu0 0.0
      %520 = vmatprep.subr.mxu0 0.0
      %521 = vmatpush2.xpose.msra.mxu0 0.0
      %522 = vmatprep.subr.mxu0 0.0
      %523 = vmatpush2.xpose.msra.mxu0 0.0
      %524 = vmatprep.subr.mxu0 0.0
      %525 = vmatpush2.xpose.msra.mxu0 0.0
      %526 = vmatprep.subr.mxu0 0.0
      %527 = vmatpush2.xpose.msra.mxu0 0.0
      %528 = vmatprep.subr.mxu0 0.0
      %529 = vmatpush2.xpose.msra.mxu0 0.0
      %530 = vmatprep.subr.mxu0 0.0
      %531 = vmatpush2.xpose.msra.mxu0 0.0
      %532 = vmatprep.subr.mxu0 0.0
      %533 = vmatpush2.xpose.msra.mxu0 0.0
      %534 = vmatprep.mubr.f32.mxu0 0.0
      %535 = vmatmul.mubr.f32.gmra.mxu0 %v465
      %v536 = vpop.f32.mrf.mxu0
      %v537 = vadd.f32 0.0, %v536
      %v538 = vpop.f32.mrf.mxu0
      %539 = vdwg.mxu0
      %v541 = vsel %vm235, %v215, 0
      %v544 = vsel %vm235, %v223, 0
      %546 = vmatprep.subr.mxu0 0.0
      %547 = vmatpush1.xpose.msra.mxu0 0.0
      %548 = vmatprep.subr.mxu0 0.0
      %549 = vmatpush1.xpose.msra.mxu0 0.0
      %550 = vmatprep.subr.mxu0 0.0
      %551 = vmatpush1.xpose.msra.mxu0 0.0
      %552 = vmatprep.subr.mxu0 0.0
      %553 = vmatpush1.xpose.msra.mxu0 0.0
      %554 = vmatprep.subr.mxu0 0.0
      %555 = vmatpush1.xpose.msra.mxu0 0.0
      %556 = vmatprep.subr.mxu0 0.0
      %557 = vmatpush1.xpose.msra.mxu0 0.0
      %558 = vmatprep.subr.mxu0 0.0
      %559 = vmatpush1.xpose.msra.mxu0 0.0
      %560 = vmatprep.subr.mxu0 0.0
      %561 = vmatpush1.xpose.msra.mxu0 0.0
      %562 = vmatprep.subr.mxu0 0.0
      %563 = vmatpush1.xpose.msra.mxu0 0.0
      %564 = vmatprep.subr.mxu0 0.0
      %565 = vmatpush1.xpose.msra.mxu0 0.0
      %566 = vmatprep.subr.mxu0 0.0
      %567 = vmatpush1.xpose.msra.mxu0 0.0
      %568 = vmatprep.subr.mxu0 0.0
      %569 = vmatpush1.xpose.msra.mxu0 0.0
      %570 = vmatprep.subr.mxu0 0.0
      %571 = vmatpush1.xpose.msra.mxu0 0.0
      %572 = vmatprep.subr.mxu0 0.0
      %573 = vmatpush1.xpose.msra.mxu0 0.0
      %574 = vmatprep.subr.mxu0 0.0
      %575 = vmatpush1.xpose.msra.mxu0 0.0
      %576 = vmatprep.subr.mxu0 0.0
      %577 = vmatpush1.xpose.msra.mxu0 %v544
      %578 = vmatprep.subr.mxu0 0.0
      %579 = vmatpush2.xpose.msra.mxu0 0.0
      %580 = vmatprep.subr.mxu0 0.0
      %581 = vmatpush2.xpose.msra.mxu0 0.0
      %582 = vmatprep.subr.mxu0 0.0
      %583 = vmatpush2.xpose.msra.mxu0 0.0
      %584 = vmatprep.subr.mxu0 0.0
      %585 = vmatpush2.xpose.msra.mxu0 0.0
      %586 = vmatprep.subr.mxu0 0.0
      %587 = vmatpush2.xpose.msra.mxu0 0.0
      %588 = vmatprep.subr.mxu0 0.0
      %589 = vmatpush2.xpose.msra.mxu0 0.0
      %590 = vmatprep.subr.mxu0 0.0
      %591 = vmatpush2.xpose.msra.mxu0 0.0
      %592 = vmatprep.subr.mxu0 0.0
      %593 = vmatpush2.xpose.msra.mxu0 0.0
      %594 = vmatprep.subr.mxu0 0.0
      %595 = vmatpush2.xpose.msra.mxu0 0.0
      %596 = vmatprep.subr.mxu0 0.0
      %597 = vmatpush2.xpose.msra.mxu0 0.0
      %598 = vmatprep.subr.mxu0 0.0
      %599 = vmatpush2.xpose.msra.mxu0 0.0
      %600 = vmatprep.subr.mxu0 0.0
      %601 = vmatpush2.xpose.msra.mxu0 0.0
      %602 = vmatprep.subr.mxu0 0.0
      %603 = vmatpush2.xpose.msra.mxu0 0.0
      %604 = vmatprep.subr.mxu0 0.0
      %605 = vmatpush2.xpose.msra.mxu0 0.0
      %606 = vmatprep.subr.mxu0 0.0
      %607 = vmatpush2.xpose.msra.mxu0 0.0
      %608 = vmatprep.subr.mxu0 0.0
      %609 = vmatpush2.xpose.msra.mxu0 0.0
      %610 = vmatprep.mubr.f32.mxu0 0.0
      %611 = vmatmul.mubr.f32.gmra.mxu0 %v541
      %v612 = vpop.f32.mrf.mxu0
      %v613 = vadd.f32 0.0, %v612
      %v614 = vpop.f32.mrf.mxu0
      %615 = vdwg.mxu0
      %v617 = vsel %vm235, %v216, 0
      %v620 = vsel %vm235, %v224, 0
      %622 = vmatprep.subr.mxu0 0.0
      %623 = vmatpush1.xpose.msra.mxu0 0.0
      %624 = vmatprep.subr.mxu0 0.0
      %625 = vmatpush1.xpose.msra.mxu0 0.0
      %626 = vmatprep.subr.mxu0 0.0
      %627 = vmatpush1.xpose.msra.mxu0 0.0
      %628 = vmatprep.subr.mxu0 0.0
      %629 = vmatpush1.xpose.msra.mxu0 0.0
      %630 = vmatprep.subr.mxu0 0.0
      %631 = vmatpush1.xpose.msra.mxu0 0.0
      %632 = vmatprep.subr.mxu0 0.0
      %633 = vmatpush1.xpose.msra.mxu0 0.0
      %634 = vmatprep.subr.mxu0 0.0
      %635 = vmatpush1.xpose.msra.mxu0 0.0
      %636 = vmatprep.subr.mxu0 0.0
      %637 = vmatpush1.xpose.msra.mxu0 0.0
      %638 = vmatprep.subr.mxu0 0.0
      %639 = vmatpush1.xpose.msra.mxu0 0.0
      %640 = vmatprep.subr.mxu0 0.0
      %641 = vmatpush1.xpose.msra.mxu0 0.0
      %642 = vmatprep.subr.mxu0 0.0
      %643 = vmatpush1.xpose.msra.mxu0 0.0
      %644 = vmatprep.subr.mxu0 0.0
      %645 = vmatpush1.xpose.msra.mxu0 0.0
      %646 = vmatprep.subr.mxu0 0.0
      %647 = vmatpush1.xpose.msra.mxu0 0.0
      %648 = vmatprep.subr.mxu0 0.0
      %649 = vmatpush1.xpose.msra.mxu0 0.0
      %650 = vmatprep.subr.mxu0 0.0
      %651 = vmatpush1.xpose.msra.mxu0 0.0
      %652 = vmatprep.subr.mxu0 0.0
      %653 = vmatpush1.xpose.msra.mxu0 %v620
      %654 = vmatprep.subr.mxu0 0.0
      %655 = vmatpush2.xpose.msra.mxu0 0.0
      %656 = vmatprep.subr.mxu0 0.0
      %657 = vmatpush2.xpose.msra.mxu0 0.0
      %658 = vmatprep.subr.mxu0 0.0
      %659 = vmatpush2.xpose.msra.mxu0 0.0
      %660 = vmatprep.subr.mxu0 0.0
      %661 = vmatpush2.xpose.msra.mxu0 0.0
      %662 = vmatprep.subr.mxu0 0.0
      %663 = vmatpush2.xpose.msra.mxu0 0.0
      %664 = vmatprep.subr.mxu0 0.0
      %665 = vmatpush2.xpose.msra.mxu0 0.0
      %666 = vmatprep.subr.mxu0 0.0
      %667 = vmatpush2.xpose.msra.mxu0 0.0
      %668 = vmatprep.subr.mxu0 0.0
      %669 = vmatpush2.xpose.msra.mxu0 0.0
      %670 = vmatprep.subr.mxu0 0.0
      %671 = vmatpush2.xpose.msra.mxu0 0.0
      %672 = vmatprep.subr.mxu0 0.0
      %673 = vmatpush2.xpose.msra.mxu0 0.0
      %674 = vmatprep.subr.mxu0 0.0
      %675 = vmatpush2.xpose.msra.mxu0 0.0
      %676 = vmatprep.subr.mxu0 0.0
      %677 = vmatpush2.xpose.msra.mxu0 0.0
      %678 = vmatprep.subr.mxu0 0.0
      %679 = vmatpush2.xpose.msra.mxu0 0.0
      %680 = vmatprep.subr.mxu0 0.0
      %681 = vmatpush2.xpose.msra.mxu0 0.0
      %682 = vmatprep.subr.mxu0 0.0
      %683 = vmatpush2.xpose.msra.mxu0 0.0
      %684 = vmatprep.subr.mxu0 0.0
      %685 = vmatpush2.xpose.msra.mxu0 0.0
      %686 = vmatprep.mubr.f32.mxu0 0.0
      %687 = vmatmul.mubr.f32.gmra.mxu0 %v617
      %v688 = vpop.f32.mrf.mxu0
      %v689 = vadd.f32 0.0, %v688
      %v690 = vpop.f32.mrf.mxu0
      %691 = vdwg.mxu0
      %v693 = vsel %vm235, %v217, 0
      %v696 = vsel %vm235, %v225, 0
      %698 = vmatprep.subr.mxu0 0.0
      %699 = vmatpush1.xpose.msra.mxu0 0.0
      %700 = vmatprep.subr.mxu0 0.0
      %701 = vmatpush1.xpose.msra.mxu0 0.0
      %702 = vmatprep.subr.mxu0 0.0
      %703 = vmatpush1.xpose.msra.mxu0 0.0
      %704 = vmatprep.subr.mxu0 0.0
      %705 = vmatpush1.xpose.msra.mxu0 0.0
      %706 = vmatprep.subr.mxu0 0.0
      %707 = vmatpush1.xpose.msra.mxu0 0.0
      %708 = vmatprep.subr.mxu0 0.0
      %709 = vmatpush1.xpose.msra.mxu0 0.0
      %710 = vmatprep.subr.mxu0 0.0
      %711 = vmatpush1.xpose.msra.mxu0 0.0
      %712 = vmatprep.subr.mxu0 0.0
      %713 = vmatpush1.xpose.msra.mxu0 0.0
      %714 = vmatprep.subr.mxu0 0.0
      %715 = vmatpush1.xpose.msra.mxu0 0.0
      %716 = vmatprep.subr.mxu0 0.0
      %717 = vmatpush1.xpose.msra.mxu0 0.0
      %718 = vmatprep.subr.mxu0 0.0
      %719 = vmatpush1.xpose.msra.mxu0 0.0
      %720 = vmatprep.subr.mxu0 0.0
      %721 = vmatpush1.xpose.msra.mxu0 0.0
      %722 = vmatprep.subr.mxu0 0.0
      %723 = vmatpush1.xpose.msra.mxu0 0.0
      %724 = vmatprep.subr.mxu0 0.0
      %725 = vmatpush1.xpose.msra.mxu0 0.0
      %726 = vmatprep.subr.mxu0 0.0
      %727 = vmatpush1.xpose.msra.mxu0 0.0
      %728 = vmatprep.subr.mxu0 0.0
      %729 = vmatpush1.xpose.msra.mxu0 %v696
      %730 = vmatprep.subr.mxu0 0.0
      %731 = vmatpush2.xpose.msra.mxu0 0.0
      %732 = vmatprep.subr.mxu0 0.0
      %733 = vmatpush2.xpose.msra.mxu0 0.0
      %734 = vmatprep.subr.mxu0 0.0
      %735 = vmatpush2.xpose.msra.mxu0 0.0
      %736 = vmatprep.subr.mxu0 0.0
      %737 = vmatpush2.xpose.msra.mxu0 0.0
      %738 = vmatprep.subr.mxu0 0.0
      %739 = vmatpush2.xpose.msra.mxu0 0.0
      %740 = vmatprep.subr.mxu0 0.0
      %741 = vmatpush2.xpose.msra.mxu0 0.0
      %742 = vmatprep.subr.mxu0 0.0
      %743 = vmatpush2.xpose.msra.mxu0 0.0
      %744 = vmatprep.subr.mxu0 0.0
      %745 = vmatpush2.xpose.msra.mxu0 0.0
      %746 = vmatprep.subr.mxu0 0.0
      %747 = vmatpush2.xpose.msra.mxu0 0.0
      %748 = vmatprep.subr.mxu0 0.0
      %749 = vmatpush2.xpose.msra.mxu0 0.0
      %750 = vmatprep.subr.mxu0 0.0
      %751 = vmatpush2.xpose.msra.mxu0 0.0
      %752 = vmatprep.subr.mxu0 0.0
      %753 = vmatpush2.xpose.msra.mxu0 0.0
      %754 = vmatprep.subr.mxu0 0.0
      %755 = vmatpush2.xpose.msra.mxu0 0.0
      %756 = vmatprep.subr.mxu0 0.0
      %757 = vmatpush2.xpose.msra.mxu0 0.0
      %758 = vmatprep.subr.mxu0 0.0
      %759 = vmatpush2.xpose.msra.mxu0 0.0
      %760 = vmatprep.subr.mxu0 0.0
      %761 = vmatpush2.xpose.msra.mxu0 0.0
      %762 = vmatprep.mubr.f32.mxu0 0.0
      %763 = vmatmul.mubr.f32.gmra.mxu0 %v693
      %v764 = vpop.f32.mrf.mxu0
      %v765 = vadd.f32 0.0, %v764
      %v766 = vpop.f32.mrf.mxu0
      %767 = vdwg.mxu0
      %v769 = vsel %vm235, %v218, 0
      %v772 = vsel %vm235, %v226, 0
      %774 = vmatprep.subr.mxu0 0.0
      %775 = vmatpush1.xpose.msra.mxu0 0.0
      %776 = vmatprep.subr.mxu0 0.0
      %777 = vmatpush1.xpose.msra.mxu0 0.0
      %778 = vmatprep.subr.mxu0 0.0
      %779 = vmatpush1.xpose.msra.mxu0 0.0
      %780 = vmatprep.subr.mxu0 0.0
      %781 = vmatpush1.xpose.msra.mxu0 0.0
      %782 = vmatprep.subr.mxu0 0.0
      %783 = vmatpush1.xpose.msra.mxu0 0.0
      %784 = vmatprep.subr.mxu0 0.0
      %785 = vmatpush1.xpose.msra.mxu0 0.0
      %786 = vmatprep.subr.mxu0 0.0
      %787 = vmatpush1.xpose.msra.mxu0 0.0
      %788 = vmatprep.subr.mxu0 0.0
      %789 = vmatpush1.xpose.msra.mxu0 0.0
      %790 = vmatprep.subr.mxu0 0.0
      %791 = vmatpush1.xpose.msra.mxu0 0.0
      %792 = vmatprep.subr.mxu0 0.0
      %793 = vmatpush1.xpose.msra.mxu0 0.0
      %794 = vmatprep.subr.mxu0 0.0
      %795 = vmatpush1.xpose.msra.mxu0 0.0
      %796 = vmatprep.subr.mxu0 0.0
      %797 = vmatpush1.xpose.msra.mxu0 0.0
      %798 = vmatprep.subr.mxu0 0.0
      %799 = vmatpush1.xpose.msra.mxu0 0.0
      %800 = vmatprep.subr.mxu0 0.0
      %801 = vmatpush1.xpose.msra.mxu0 0.0
      %802 = vmatprep.subr.mxu0 0.0
      %803 = vmatpush1.xpose.msra.mxu0 0.0
      %804 = vmatprep.subr.mxu0 0.0
      %805 = vmatpush1.xpose.msra.mxu0 %v772
      %806 = vmatprep.subr.mxu0 0.0
      %807 = vmatpush2.xpose.msra.mxu0 0.0
      %808 = vmatprep.subr.mxu0 0.0
      %809 = vmatpush2.xpose.msra.mxu0 0.0
      %810 = vmatprep.subr.mxu0 0.0
      %811 = vmatpush2.xpose.msra.mxu0 0.0
      %812 = vmatprep.subr.mxu0 0.0
      %813 = vmatpush2.xpose.msra.mxu0 0.0
      %814 = vmatprep.subr.mxu0 0.0
      %815 = vmatpush2.xpose.msra.mxu0 0.0
      %816 = vmatprep.subr.mxu0 0.0
      %817 = vmatpush2.xpose.msra.mxu0 0.0
      %818 = vmatprep.subr.mxu0 0.0
      %819 = vmatpush2.xpose.msra.mxu0 0.0
      %820 = vmatprep.subr.mxu0 0.0
      %821 = vmatpush2.xpose.msra.mxu0 0.0
      %822 = vmatprep.subr.mxu0 0.0
      %823 = vmatpush2.xpose.msra.mxu0 0.0
      %824 = vmatprep.subr.mxu0 0.0
      %825 = vmatpush2.xpose.msra.mxu0 0.0
      %826 = vmatprep.subr.mxu0 0.0
      %827 = vmatpush2.xpose.msra.mxu0 0.0
      %828 = vmatprep.subr.mxu0 0.0
      %829 = vmatpush2.xpose.msra.mxu0 0.0
      %830 = vmatprep.subr.mxu0 0.0
      %831 = vmatpush2.xpose.msra.mxu0 0.0
      %832 = vmatprep.subr.mxu0 0.0
      %833 = vmatpush2.xpose.msra.mxu0 0.0
      %834 = vmatprep.subr.mxu0 0.0
      %835 = vmatpush2.xpose.msra.mxu0 0.0
      %836 = vmatprep.subr.mxu0 0.0
      %837 = vmatpush2.xpose.msra.mxu0 0.0
      %838 = vmatprep.mubr.f32.mxu0 0.0
      %839 = vmatmul.mubr.f32.gmra.mxu0 %v769
      %v840 = vpop.f32.mrf.mxu0
      %v841 = vadd.f32 0.0, %v840
      %v842 = vpop.f32.mrf.mxu0
      %843 = vdwg.mxu0
      %v844 = vmul.f32 %v309, 0.25
      %v845 = vmul.f32 %v385, 0.25
      %v846 = vmul.f32 %v461, 0.25
      %v847 = vmul.f32 %v537, 0.25
      %v848 = vmul.f32 %v613, 0.25
      %v849 = vmul.f32 %v689, 0.25
      %v850 = vmul.f32 %v765, 0.25
      %v851 = vmul.f32 %v841, 0.25
      %vm852 = vcmask 64512
      %v853 = vsel %vm852, %v844, -inf
      %854 = vmax.xlane.f32.xlu0 %v853
      %v855 = vpop.xlane.xlu0 %854
      %v856 = vsel %vm852, %v845, -inf
      %857 = vmax.xlane.f32.xlu0 %v856
      %v858 = vpop.xlane.xlu0 %857
      %v859 = vsel %vm852, %v846, -inf
      %860 = vmax.xlane.f32.xlu0 %v859
      %v861 = vpop.xlane.xlu0 %860
      %v862 = vsel %vm852, %v847, -inf
      %863 = vmax.xlane.f32.xlu0 %v862
      %v864 = vpop.xlane.xlu0 %863
      %v865 = vsel %vm852, %v848, -inf
      %866 = vmax.xlane.f32.xlu0 %v865
      %v867 = vpop.xlane.xlu0 %866
      %v868 = vsel %vm852, %v849, -inf
      %869 = vmax.xlane.f32.xlu0 %v868
      %v870 = vpop.xlane.xlu0 %869
      %v871 = vsel %vm852, %v850, -inf
      %872 = vmax.xlane.f32.xlu0 %v871
      %v873 = vpop.xlane.xlu0 %872
      %v874 = vsel %vm852, %v851, -inf
      %875 = vmax.xlane.f32.xlu0 %v874
      %v876 = vpop.xlane.xlu0 %875
      %v877 = vsub.f32 %v844, %v855
      %v878 = vsub.f32 %v845, %v858
      %v879 = vsub.f32 %v846, %v861
      %v880 = vsub.f32 %v847, %v864
      %v881 = vsub.f32 %v848, %v867
      %v882 = vsub.f32 %v849, %v870
      %v883 = vsub.f32 %v850, %v873
      %v884 = vsub.f32 %v851, %v876
      %v885 = vmul.f32 %v877, 1.442695
      %v886 = vpow.pop %v885
      %v887 = vmul.f32 %v878, 1.442695
      %v888 = vpow.pop %v887
      %v889 = vmul.f32 %v879, 1.442695
      %v890 = vpow.pop %v889
      %v891 = vmul.f32 %v880, 1.442695
      %v892 = vpow.pop %v891
      %v893 = vmul.f32 %v881, 1.442695
      %v894 = vpow.pop %v893
      %v895 = vmul.f32 %v882, 1.442695
      %v896 = vpow.pop %v895
      %v897 = vmul.f32 %v883, 1.442695
      %v898 = vpow.pop %v897
      %v899 = vmul.f32 %v884, 1.442695
      %v900 = vpow.pop %v899
      %v901 = vsel %vm852, %v886, 0.0
      %902 = vadd.xlane.f32.xlu0 %v901
      %v903 = vpop.xlane.xlu0 %902
      %v904 = vsel %vm852, %v888, 0.0
      %905 = vadd.xlane.f32.xlu0 %v904
      %v906 = vpop.xlane.xlu0 %905
      %v907 = vsel %vm852, %v890, 0.0
      %908 = vadd.xlane.f32.xlu0 %v907
      %v909 = vpop.xlane.xlu0 %908
      %v910 = vsel %vm852, %v892, 0.0
      %911 = vadd.xlane.f32.xlu0 %v910
      %v912 = vpop.xlane.xlu0 %911
      %v913 = vsel %vm852, %v894, 0.0
      %914 = vadd.xlane.f32.xlu0 %v913
      %v915 = vpop.xlane.xlu0 %914
      %v916 = vsel %vm852, %v896, 0.0
      %917 = vadd.xlane.f32.xlu0 %v916
      %v918 = vpop.xlane.xlu0 %917
      %v919 = vsel %vm852, %v898, 0.0
      %920 = vadd.xlane.f32.xlu0 %v919
      %v921 = vpop.xlane.xlu0 %920
      %v922 = vsel %vm852, %v900, 0.0
      %923 = vadd.xlane.f32.xlu0 %v922
      %v924 = vpop.xlane.xlu0 %923
      %v925 = vrcp.pop %v903
      %v926 = vmul.f32 %v886, %v925
      %v927 = vrcp.pop %v906
      %v928 = vmul.f32 %v888, %v927
      %v929 = vrcp.pop %v909
      %v930 = vmul.f32 %v890, %v929
      %v931 = vrcp.pop %v912
      %v932 = vmul.f32 %v892, %v931
      %v933 = vrcp.pop %v915
      %v934 = vmul.f32 %v894, %v933
      %v935 = vrcp.pop %v918
      %v936 = vmul.f32 %v896, %v935
      %v937 = vrcp.pop %v921
      %v938 = vmul.f32 %v898, %v937
      %v939 = vrcp.pop %v924
      %v940 = vmul.f32 %v900, %v939
      %v942 = vsel %vm852, %v926, 0
      %944 = vmatprep.subr.mxu0 0.0
      %945 = vmatpush1.msra.mxu0 0.0
      %946 = vmatprep.subr.mxu0 0.0
      %947 = vmatpush1.msra.mxu0 0.0
      %948 = vmatprep.subr.mxu0 0.0
      %949 = vmatpush1.msra.mxu0 0.0
      %950 = vmatprep.subr.mxu0 0.0
      %951 = vmatpush1.msra.mxu0 0.0
      %952 = vmatprep.subr.mxu0 0.0
      %953 = vmatpush1.msra.mxu0 0.0
      %954 = vmatprep.subr.mxu0 0.0
      %955 = vmatpush1.msra.mxu0 0.0
      %956 = vmatprep.subr.mxu0 0.0
      %957 = vmatpush1.msra.mxu0 0.0
      %958 = vmatprep.subr.mxu0 0.0
      %959 = vmatpush1.msra.mxu0 0.0
      %960 = vmatprep.subr.mxu0 0.0
      %961 = vmatpush1.msra.mxu0 0.0
      %962 = vmatprep.subr.mxu0 0.0
      %963 = vmatpush1.msra.mxu0 0.0
      %964 = vmatprep.subr.mxu0 0.0
      %965 = vmatpush1.msra.mxu0 0.0
      %966 = vmatprep.subr.mxu0 0.0
      %967 = vmatpush1.msra.mxu0 0.0
      %968 = vmatprep.subr.mxu0 0.0
      %969 = vmatpush1.msra.mxu0 0.0
      %970 = vmatprep.subr.mxu0 0.0
      %971 = vmatpush1.msra.mxu0 0.0
      %972 = vmatprep.subr.mxu0 0.0
      %973 = vmatpush1.msra.mxu0 0.0
      %974 = vmatprep.subr.mxu0 0.0
      %975 = vmatpush1.msra.mxu0 %v227
      %976 = vmatprep.subr.mxu0 0.0
      %977 = vmatpush2.msra.mxu0 0.0
      %978 = vmatprep.subr.mxu0 0.0
      %979 = vmatpush2.msra.mxu0 0.0
      %980 = vmatprep.subr.mxu0 0.0
      %981 = vmatpush2.msra.mxu0 0.0
      %982 = vmatprep.subr.mxu0 0.0
      %983 = vmatpush2.msra.mxu0 0.0
      %984 = vmatprep.subr.mxu0 0.0
      %985 = vmatpush2.msra.mxu0 0.0
      %986 = vmatprep.subr.mxu0 0.0
      %987 = vmatpush2.msra.mxu0 0.0
      %988 = vmatprep.subr.mxu0 0.0
      %989 = vmatpush2.msra.mxu0 0.0
      %990 = vmatprep.subr.mxu0 0.0
      %991 = vmatpush2.msra.mxu0 0.0
      %992 = vmatprep.subr.mxu0 0.0
      %993 = vmatpush2.msra.mxu0 0.0
      %994 = vmatprep.subr.mxu0 0.0
      %995 = vmatpush2.msra.mxu0 0.0
      %996 = vmatprep.subr.mxu0 0.0
      %997 = vmatpush2.msra.mxu0 0.0
      %998 = vmatprep.subr.mxu0 0.0
      %999 = vmatpush2.msra.mxu0 0.0
      %1000 = vmatprep.subr.mxu0 0.0
      %1001 = vmatpush2.msra.mxu0 0.0
      %1002 = vmatprep.subr.mxu0 0.0
      %1003 = vmatpush2.msra.mxu0 0.0
      %1004 = vmatprep.subr.mxu0 0.0
      %1005 = vmatpush2.msra.mxu0 0.0
      %1006 = vmatprep.subr.mxu0 0.0
      %1007 = vmatpush2.msra.mxu0 0.0
      %1008 = vmatprep.mubr.f32.mxu0 0.0
      %1009 = vmatmul.mubr.f32.gmra.mxu0 %v942
      %v1010 = vpop.f32.mrf.mxu0
      %v1011 = vadd.f32 0.0, %v1010
      %v1012 = vpop.f32.mrf.mxu0
      %1013 = vdwg.mxu0
      %v1015 = vsel %vm852, %v928, 0
      %1017 = vmatprep.subr.mxu0 0.0
      %1018 = vmatpush1.msra.mxu0 0.0
      %1019 = vmatprep.subr.mxu0 0.0
      %1020 = vmatpush1.msra.mxu0 0.0
      %1021 = vmatprep.subr.mxu0 0.0
      %1022 = vmatpush1.msra.mxu0 0.0
      %1023 = vmatprep.subr.mxu0 0.0
      %1024 = vmatpush1.msra.mxu0 0.0
      %1025 = vmatprep.subr.mxu0 0.0
      %1026 = vmatpush1.msra.mxu0 0.0
      %1027 = vmatprep.subr.mxu0 0.0
      %1028 = vmatpush1.msra.mxu0 0.0
      %1029 = vmatprep.subr.mxu0 0.0
      %1030 = vmatpush1.msra.mxu0 0.0
      %1031 = vmatprep.subr.mxu0 0.0
      %1032 = vmatpush1.msra.mxu0 0.0
      %1033 = vmatprep.subr.mxu0 0.0
      %1034 = vmatpush1.msra.mxu0 0.0
      %1035 = vmatprep.subr.mxu0 0.0
      %1036 = vmatpush1.msra.mxu0 0.0
      %1037 = vmatprep.subr.mxu0 0.0
      %1038 = vmatpush1.msra.mxu0 0.0
      %1039 = vmatprep.subr.mxu0 0.0
      %1040 = vmatpush1.msra.mxu0 0.0
      %1041 = vmatprep.subr.mxu0 0.0
      %1042 = vmatpush1.msra.mxu0 0.0
      %1043 = vmatprep.subr.mxu0 0.0
      %1044 = vmatpush1.msra.mxu0 0.0
      %1045 = vmatprep.subr.mxu0 0.0
      %1046 = vmatpush1.msra.mxu0 0.0
      %1047 = vmatprep.subr.mxu0 0.0
      %1048 = vmatpush1.msra.mxu0 %v228
      %1049 = vmatprep.subr.mxu0 0.0
      %1050 = vmatpush2.msra.mxu0 0.0
      %1051 = vmatprep.subr.mxu0 0.0
      %1052 = vmatpush2.msra.mxu0 0.0
      %1053 = vmatprep.subr.mxu0 0.0
      %1054 = vmatpush2.msra.mxu0 0.0
      %1055 = vmatprep.subr.mxu0 0.0
      %1056 = vmatpush2.msra.mxu0 0.0
      %1057 = vmatprep.subr.mxu0 0.0
      %1058 = vmatpush2.msra.mxu0 0.0
      %1059 = vmatprep.subr.mxu0 0.0
      %1060 = vmatpush2.msra.mxu0 0.0
      %1061 = vmatprep.subr.mxu0 0.0
      %1062 = vmatpush2.msra.mxu0 0.0
      %1063 = vmatprep.subr.mxu0 0.0
      %1064 = vmatpush2.msra.mxu0 0.0
      %1065 = vmatprep.subr.mxu0 0.0
      %1066 = vmatpush2.msra.mxu0 0.0
      %1067 = vmatprep.subr.mxu0 0.0
      %1068 = vmatpush2.msra.mxu0 0.0
      %1069 = vmatprep.subr.mxu0 0.0
      %1070 = vmatpush2.msra.mxu0 0.0
      %1071 = vmatprep.subr.mxu0 0.0
      %1072 = vmatpush2.msra.mxu0 0.0
      %1073 = vmatprep.subr.mxu0 0.0
      %1074 = vmatpush2.msra.mxu0 0.0
      %1075 = vmatprep.subr.mxu0 0.0
      %1076 = vmatpush2.msra.mxu0 0.0
      %1077 = vmatprep.subr.mxu0 0.0
      %1078 = vmatpush2.msra.mxu0 0.0
      %1079 = vmatprep.subr.mxu0 0.0
      %1080 = vmatpush2.msra.mxu0 0.0
      %1081 = vmatprep.mubr.f32.mxu0 0.0
      %1082 = vmatmul.mubr.f32.gmra.mxu0 %v1015
      %v1083 = vpop.f32.mrf.mxu0
      %v1084 = vadd.f32 0.0, %v1083
      %v1085 = vpop.f32.mrf.mxu0
      %1086 = vdwg.mxu0
      %v1088 = vsel %vm852, %v930, 0
      %1090 = vmatprep.subr.mxu0 0.0
      %1091 = vmatpush1.msra.mxu0 0.0
      %1092 = vmatprep.subr.mxu0 0.0
      %1093 = vmatpush1.msra.mxu0 0.0
      %1094 = vmatprep.subr.mxu0 0.0
      %1095 = vmatpush1.msra.mxu0 0.0
      %1096 = vmatprep.subr.mxu0 0.0
      %1097 = vmatpush1.msra.mxu0 0.0
      %1098 = vmatprep.subr.mxu0 0.0
      %1099 = vmatpush1.msra.mxu0 0.0
      %1100 = vmatprep.subr.mxu0 0.0
      %1101 = vmatpush1.msra.mxu0 0.0
      %1102 = vmatprep.subr.mxu0 0.0
      %1103 = vmatpush1.msra.mxu0 0.0
      %1104 = vmatprep.subr.mxu0 0.0
      %1105 = vmatpush1.msra.mxu0 0.0
      %1106 = vmatprep.subr.mxu0 0.0
      %1107 = vmatpush1.msra.mxu0 0.0
      %1108 = vmatprep.subr.mxu0 0.0
      %1109 = vmatpush1.msra.mxu0 0.0
      %1110 = vmatprep.subr.mxu0 0.0
      %1111 = vmatpush1.msra.mxu0 0.0
      %1112 = vmatprep.subr.mxu0 0.0
      %1113 = vmatpush1.msra.mxu0 0.0
      %1114 = vmatprep.subr.mxu0 0.0
      %1115 = vmatpush1.msra.mxu0 0.0
      %1116 = vmatprep.subr.mxu0 0.0
      %1117 = vmatpush1.msra.mxu0 0.0
      %1118 = vmatprep.subr.mxu0 0.0
      %1119 = vmatpush1.msra.mxu0 0.0
      %1120 = vmatprep.subr.mxu0 0.0
      %1121 = vmatpush1.msra.mxu0 %v229
      %1122 = vmatprep.subr.mxu0 0.0
      %1123 = vmatpush2.msra.mxu0 0.0
      %1124 = vmatprep.subr.mxu0 0.0
      %1125 = vmatpush2.msra.mxu0 0.0
      %1126 = vmatprep.subr.mxu0 0.0
      %1127 = vmatpush2.msra.mxu0 0.0
      %1128 = vmatprep.subr.mxu0 0.0
      %1129 = vmatpush2.msra.mxu0 0.0
      %1130 = vmatprep.subr.mxu0 0.0
      %1131 = vmatpush2.msra.mxu0 0.0
      %1132 = vmatprep.subr.mxu0 0.0
      %1133 = vmatpush2.msra.mxu0 0.0
      %1134 = vmatprep.subr.mxu0 0.0
      %1135 = vmatpush2.msra.mxu0 0.0
      %1136 = vmatprep.subr.mxu0 0.0
      %1137 = vmatpush2.msra.mxu0 0.0
      %1138 = vmatprep.subr.mxu0 0.0
      %1139 = vmatpush2.msra.mxu0 0.0
      %1140 = vmatprep.subr.mxu0 0.0
      %1141 = vmatpush2.msra.mxu0 0.0
      %1142 = vmatprep.subr.mxu0 0.0
      %1143 = vmatpush2.msra.mxu0 0.0
      %1144 = vmatprep.subr.mxu0 0.0
      %1145 = vmatpush2.msra.mxu0 0.0
      %1146 = vmatprep.subr.mxu0 0.0
      %1147 = vmatpush2.msra.mxu0 0.0
      %1148 = vmatprep.subr.mxu0 0.0
      %1149 = vmatpush2.msra.mxu0 0.0
      %1150 = vmatprep.subr.mxu0 0.0
      %1151 = vmatpush2.msra.mxu0 0.0
      %1152 = vmatprep.subr.mxu0 0.0
      %1153 = vmatpush2.msra.mxu0 0.0
      %1154 = vmatprep.mubr.f32.mxu0 0.0
      %1155 = vmatmul.mubr.f32.gmra.mxu0 %v1088
      %v1156 = vpop.f32.mrf.mxu0
      %v1157 = vadd.f32 0.0, %v1156
      %v1158 = vpop.f32.mrf.mxu0
      %1159 = vdwg.mxu0
      %v1161 = vsel %vm852, %v932, 0
      %1163 = vmatprep.subr.mxu0 0.0
      %1164 = vmatpush1.msra.mxu0 0.0
      %1165 = vmatprep.subr.mxu0 0.0
      %1166 = vmatpush1.msra.mxu0 0.0
      %1167 = vmatprep.subr.mxu0 0.0
      %1168 = vmatpush1.msra.mxu0 0.0
      %1169 = vmatprep.subr.mxu0 0.0
      %1170 = vmatpush1.msra.mxu0 0.0
      %1171 = vmatprep.subr.mxu0 0.0
      %1172 = vmatpush1.msra.mxu0 0.0
      %1173 = vmatprep.subr.mxu0 0.0
      %1174 = vmatpush1.msra.mxu0 0.0
      %1175 = vmatprep.subr.mxu0 0.0
      %1176 = vmatpush1.msra.mxu0 0.0
      %1177 = vmatprep.subr.mxu0 0.0
      %1178 = vmatpush1.msra.mxu0 0.0
      %1179 = vmatprep.subr.mxu0 0.0
      %1180 = vmatpush1.msra.mxu0 0.0
      %1181 = vmatprep.subr.mxu0 0.0
      %1182 = vmatpush1.msra.mxu0 0.0
      %1183 = vmatprep.subr.mxu0 0.0
      %1184 = vmatpush1.msra.mxu0 0.0
      %1185 = vmatprep.subr.mxu0 0.0
      %1186 = vmatpush1.msra.mxu0 0.0
      %1187 = vmatprep.subr.mxu0 0.0
      %1188 = vmatpush1.msra.mxu0 0.0
      %1189 = vmatprep.subr.mxu0 0.0
      %1190 = vmatpush1.msra.mxu0 0.0
      %1191 = vmatprep.subr.mxu0 0.0
      %1192 = vmatpush1.msra.mxu0 0.0
      %1193 = vmatprep.subr.mxu0 0.0
      %1194 = vmatpush1.msra.mxu0 %v230
      %1195 = vmatprep.subr.mxu0 0.0
      %1196 = vmatpush2.msra.mxu0 0.0
      %1197 = vmatprep.subr.mxu0 0.0
      %1198 = vmatpush2.msra.mxu0 0.0
      %1199 = vmatprep.subr.mxu0 0.0
      %1200 = vmatpush2.msra.mxu0 0.0
      %1201 = vmatprep.subr.mxu0 0.0
      %1202 = vmatpush2.msra.mxu0 0.0
      %1203 = vmatprep.subr.mxu0 0.0
      %1204 = vmatpush2.msra.mxu0 0.0
      %1205 = vmatprep.subr.mxu0 0.0
      %1206 = vmatpush2.msra.mxu0 0.0
      %1207 = vmatprep.subr.mxu0 0.0
      %1208 = vmatpush2.msra.mxu0 0.0
      %1209 = vmatprep.subr.mxu0 0.0
      %1210 = vmatpush2.msra.mxu0 0.0
      %1211 = vmatprep.subr.mxu0 0.0
      %1212 = vmatpush2.msra.mxu0 0.0
      %1213 = vmatprep.subr.mxu0 0.0
      %1214 = vmatpush2.msra.mxu0 0.0
      %1215 = vmatprep.subr.mxu0 0.0
      %1216 = vmatpush2.msra.mxu0 0.0
      %1217 = vmatprep.subr.mxu0 0.0
      %1218 = vmatpush2.msra.mxu0 0.0
      %1219 = vmatprep.subr.mxu0 0.0
      %1220 = vmatpush2.msra.mxu0 0.0
      %1221 = vmatprep.subr.mxu0 0.0
      %1222 = vmatpush2.msra.mxu0 0.0
      %1223 = vmatprep.subr.mxu0 0.0
      %1224 = vmatpush2.msra.mxu0 0.0
      %1225 = vmatprep.subr.mxu0 0.0
      %1226 = vmatpush2.msra.mxu0 0.0
      %1227 = vmatprep.mubr.f32.mxu0 0.0
      %1228 = vmatmul.mubr.f32.gmra.mxu0 %v1161
      %v1229 = vpop.f32.mrf.mxu0
      %v1230 = vadd.f32 0.0, %v1229
      %v1231 = vpop.f32.mrf.mxu0
      %1232 = vdwg.mxu0
      %v1234 = vsel %vm852, %v934, 0
      %1236 = vmatprep.subr.mxu0 0.0
      %1237 = vmatpush1.msra.mxu0 0.0
      %1238 = vmatprep.subr.mxu0 0.0
      %1239 = vmatpush1.msra.mxu0 0.0
      %1240 = vmatprep.subr.mxu0 0.0
      %1241 = vmatpush1.msra.mxu0 0.0
      %1242 = vmatprep.subr.mxu0 0.0
      %1243 = vmatpush1.msra.mxu0 0.0
      %1244 = vmatprep.subr.mxu0 0.0
      %1245 = vmatpush1.msra.mxu0 0.0
      %1246 = vmatprep.subr.mxu0 0.0
      %1247 = vmatpush1.msra.mxu0 0.0
      %1248 = vmatprep.subr.mxu0 0.0
      %1249 = vmatpush1.msra.mxu0 0.0
      %1250 = vmatprep.subr.mxu0 0.0
      %1251 = vmatpush1.msra.mxu0 0.0
      %1252 = vmatprep.subr.mxu0 0.0
      %1253 = vmatpush1.msra.mxu0 0.0
      %1254 = vmatprep.subr.mxu0 0.0
      %1255 = vmatpush1.msra.mxu0 0.0
      %1256 = vmatprep.subr.mxu0 0.0
      %1257 = vmatpush1.msra.mxu0 0.0
      %1258 = vmatprep.subr.mxu0 0.0
      %1259 = vmatpush1.msra.mxu0 0.0
      %1260 = vmatprep.subr.mxu0 0.0
      %1261 = vmatpush1.msra.mxu0 0.0
      %1262 = vmatprep.subr.mxu0 0.0
      %1263 = vmatpush1.msra.mxu0 0.0
      %1264 = vmatprep.subr.mxu0 0.0
      %1265 = vmatpush1.msra.mxu0 0.0
      %1266 = vmatprep.subr.mxu0 0.0
      %1267 = vmatpush1.msra.mxu0 %v231
      %1268 = vmatprep.subr.mxu0 0.0
      %1269 = vmatpush2.msra.mxu0 0.0
      %1270 = vmatprep.subr.mxu0 0.0
      %1271 = vmatpush2.msra.mxu0 0.0
      %1272 = vmatprep.subr.mxu0 0.0
      %1273 = vmatpush2.msra.mxu0 0.0
      %1274 = vmatprep.subr.mxu0 0.0
      %1275 = vmatpush2.msra.mxu0 0.0
      %1276 = vmatprep.subr.mxu0 0.0
      %1277 = vmatpush2.msra.mxu0 0.0
      %1278 = vmatprep.subr.mxu0 0.0
      %1279 = vmatpush2.msra.mxu0 0.0
      %1280 = vmatprep.subr.mxu0 0.0
      %1281 = vmatpush2.msra.mxu0 0.0
      %1282 = vmatprep.subr.mxu0 0.0
      %1283 = vmatpush2.msra.mxu0 0.0
      %1284 = vmatprep.subr.mxu0 0.0
      %1285 = vmatpush2.msra.mxu0 0.0
      %1286 = vmatprep.subr.mxu0 0.0
      %1287 = vmatpush2.msra.mxu0 0.0
      %1288 = vmatprep.subr.mxu0 0.0
      %1289 = vmatpush2.msra.mxu0 0.0
      %1290 = vmatprep.subr.mxu0 0.0
      %1291 = vmatpush2.msra.mxu0 0.0
      %1292 = vmatprep.subr.mxu0 0.0
      %1293 = vmatpush2.msra.mxu0 0.0
      %1294 = vmatprep.subr.mxu0 0.0
      %1295 = vmatpush2.msra.mxu0 0.0
      %1296 = vmatprep.subr.mxu0 0.0
      %1297 = vmatpush2.msra.mxu0 0.0
      %1298 = vmatprep.subr.mxu0 0.0
      %1299 = vmatpush2.msra.mxu0 0.0
      %1300 = vmatprep.mubr.f32.mxu0 0.0
      %1301 = vmatmul.mubr.f32.gmra.mxu0 %v1234
      %v1302 = vpop.f32.mrf.mxu0
      %v1303 = vadd.f32 0.0, %v1302
      %v1304 = vpop.f32.mrf.mxu0
      %1305 = vdwg.mxu0
      %v1307 = vsel %vm852, %v936, 0
      %1309 = vmatprep.subr.mxu0 0.0
      %1310 = vmatpush1.msra.mxu0 0.0
      %1311 = vmatprep.subr.mxu0 0.0
      %1312 = vmatpush1.msra.mxu0 0.0
      %1313 = vmatprep.subr.mxu0 0.0
      %1314 = vmatpush1.msra.mxu0 0.0
      %1315 = vmatprep.subr.mxu0 0.0
      %1316 = vmatpush1.msra.mxu0 0.0
      %1317 = vmatprep.subr.mxu0 0.0
      %1318 = vmatpush1.msra.mxu0 0.0
      %1319 = vmatprep.subr.mxu0 0.0
      %1320 = vmatpush1.msra.mxu0 0.0
      %1321 = vmatprep.subr.mxu0 0.0
      %1322 = vmatpush1.msra.mxu0 0.0
      %1323 = vmatprep.subr.mxu0 0.0
      %1324 = vmatpush1.msra.mxu0 0.0
      %1325 = vmatprep.subr.mxu0 0.0
      %1326 = vmatpush1.msra.mxu0 0.0
      %1327 = vmatprep.subr.mxu0 0.0
      %1328 = vmatpush1.msra.mxu0 0.0
      %1329 = vmatprep.subr.mxu0 0.0
      %1330 = vmatpush1.msra.mxu0 0.0
      %1331 = vmatprep.subr.mxu0 0.0
      %1332 = vmatpush1.msra.mxu0 0.0
      %1333 = vmatprep.subr.mxu0 0.0
      %1334 = vmatpush1.msra.mxu0 0.0
      %1335 = vmatprep.subr.mxu0 0.0
      %1336 = vmatpush1.msra.mxu0 0.0
      %1337 = vmatprep.subr.mxu0 0.0
      %1338 = vmatpush1.msra.mxu0 0.0
      %1339 = vmatprep.subr.mxu0 0.0
      %1340 = vmatpush1.msra.mxu0 %v232
      %1341 = vmatprep.subr.mxu0 0.0
      %1342 = vmatpush2.msra.mxu0 0.0
      %1343 = vmatprep.subr.mxu0 0.0
      %1344 = vmatpush2.msra.mxu0 0.0
      %1345 = vmatprep.subr.mxu0 0.0
      %1346 = vmatpush2.msra.mxu0 0.0
      %1347 = vmatprep.subr.mxu0 0.0
      %1348 = vmatpush2.msra.mxu0 0.0
      %1349 = vmatprep.subr.mxu0 0.0
      %1350 = vmatpush2.msra.mxu0 0.0
      %1351 = vmatprep.subr.mxu0 0.0
      %1352 = vmatpush2.msra.mxu0 0.0
      %1353 = vmatprep.subr.mxu0 0.0
      %1354 = vmatpush2.msra.mxu0 0.0
      %1355 = vmatprep.subr.mxu0 0.0
      %1356 = vmatpush2.msra.mxu0 0.0
      %1357 = vmatprep.subr.mxu0 0.0
      %1358 = vmatpush2.msra.mxu0 0.0
      %1359 = vmatprep.subr.mxu0 0.0
      %1360 = vmatpush2.msra.mxu0 0.0
      %1361 = vmatprep.subr.mxu0 0.0
      %1362 = vmatpush2.msra.mxu0 0.0
      %1363 = vmatprep.subr.mxu0 0.0
      %1364 = vmatpush2.msra.mxu0 0.0
      %1365 = vmatprep.subr.mxu0 0.0
      %1366 = vmatpush2.msra.mxu0 0.0
      %1367 = vmatprep.subr.mxu0 0.0
      %1368 = vmatpush2.msra.mxu0 0.0
      %1369 = vmatprep.subr.mxu0 0.0
      %1370 = vmatpush2.msra.mxu0 0.0
      %1371 = vmatprep.subr.mxu0 0.0
      %1372 = vmatpush2.msra.mxu0 0.0
      %1373 = vmatprep.mubr.f32.mxu0 0.0
      %1374 = vmatmul.mubr.f32.gmra.mxu0 %v1307
      %v1375 = vpop.f32.mrf.mxu0
      %v1376 = vadd.f32 0.0, %v1375
      %v1377 = vpop.f32.mrf.mxu0
      %1378 = vdwg.mxu0
      %v1380 = vsel %vm852, %v938, 0
      %1382 = vmatprep.subr.mxu0 0.0
      %1383 = vmatpush1.msra.mxu0 0.0
      %1384 = vmatprep.subr.mxu0 0.0
      %1385 = vmatpush1.msra.mxu0 0.0
      %1386 = vmatprep.subr.mxu0 0.0
      %1387 = vmatpush1.msra.mxu0 0.0
      %1388 = vmatprep.subr.mxu0 0.0
      %1389 = vmatpush1.msra.mxu0 0.0
      %1390 = vmatprep.subr.mxu0 0.0
      %1391 = vmatpush1.msra.mxu0 0.0
      %1392 = vmatprep.subr.mxu0 0.0
      %1393 = vmatpush1.msra.mxu0 0.0
      %1394 = vmatprep.subr.mxu0 0.0
      %1395 = vmatpush1.msra.mxu0 0.0
      %1396 = vmatprep.subr.mxu0 0.0
      %1397 = vmatpush1.msra.mxu0 0.0
      %1398 = vmatprep.subr.mxu0 0.0
      %1399 = vmatpush1.msra.mxu0 0.0
      %1400 = vmatprep.subr.mxu0 0.0
      %1401 = vmatpush1.msra.mxu0 0.0
      %1402 = vmatprep.subr.mxu0 0.0
      %1403 = vmatpush1.msra.mxu0 0.0
      %1404 = vmatprep.subr.mxu0 0.0
      %1405 = vmatpush1.msra.mxu0 0.0
      %1406 = vmatprep.subr.mxu0 0.0
      %1407 = vmatpush1.msra.mxu0 0.0
      %1408 = vmatprep.subr.mxu0 0.0
      %1409 = vmatpush1.msra.mxu0 0.0
      %1410 = vmatprep.subr.mxu0 0.0
      %1411 = vmatpush1.msra.mxu0 0.0
      %1412 = vmatprep.subr.mxu0 0.0
      %1413 = vmatpush1.msra.mxu0 %v233
      %1414 = vmatprep.subr.mxu0 0.0
      %1415 = vmatpush2.msra.mxu0 0.0
      %1416 = vmatprep.subr.mxu0 0.0
      %1417 = vmatpush2.msra.mxu0 0.0
      %1418 = vmatprep.subr.mxu0 0.0
      %1419 = vmatpush2.msra.mxu0 0.0
      %1420 = vmatprep.subr.mxu0 0.0
      %1421 = vmatpush2.msra.mxu0 0.0
      %1422 = vmatprep.subr.mxu0 0.0
      %1423 = vmatpush2.msra.mxu0 0.0
      %1424 = vmatprep.subr.mxu0 0.0
      %1425 = vmatpush2.msra.mxu0 0.0
      %1426 = vmatprep.subr.mxu0 0.0
      %1427 = vmatpush2.msra.mxu0 0.0
      %1428 = vmatprep.subr.mxu0 0.0
      %1429 = vmatpush2.msra.mxu0 0.0
      %1430 = vmatprep.subr.mxu0 0.0
      %1431 = vmatpush2.msra.mxu0 0.0
      %1432 = vmatprep.subr.mxu0 0.0
      %1433 = vmatpush2.msra.mxu0 0.0
      %1434 = vmatprep.subr.mxu0 0.0
      %1435 = vmatpush2.msra.mxu0 0.0
      %1436 = vmatprep.subr.mxu0 0.0
      %1437 = vmatpush2.msra.mxu0 0.0
      %1438 = vmatprep.subr.mxu0 0.0
      %1439 = vmatpush2.msra.mxu0 0.0
      %1440 = vmatprep.subr.mxu0 0.0
      %1441 = vmatpush2.msra.mxu0 0.0
      %1442 = vmatprep.subr.mxu0 0.0
      %1443 = vmatpush2.msra.mxu0 0.0
      %1444 = vmatprep.subr.mxu0 0.0
      %1445 = vmatpush2.msra.mxu0 0.0
      %1446 = vmatprep.mubr.f32.mxu0 0.0
      %1447 = vmatmul.mubr.f32.gmra.mxu0 %v1380
      %v1448 = vpop.f32.mrf.mxu0
      %v1449 = vadd.f32 0.0, %v1448
      %v1450 = vpop.f32.mrf.mxu0
      %1451 = vdwg.mxu0
      %v1453 = vsel %vm852, %v940, 0
      %1455 = vmatprep.subr.mxu0 0.0
      %1456 = vmatpush1.msra.mxu0 0.0
      %1457 = vmatprep.subr.mxu0 0.0
      %1458 = vmatpush1.msra.mxu0 0.0
      %1459 = vmatprep.subr.mxu0 0.0
      %1460 = vmatpush1.msra.mxu0 0.0
      %1461 = vmatprep.subr.mxu0 0.0
      %1462 = vmatpush1.msra.mxu0 0.0
      %1463 = vmatprep.subr.mxu0 0.0
      %1464 = vmatpush1.msra.mxu0 0.0
      %1465 = vmatprep.subr.mxu0 0.0
      %1466 = vmatpush1.msra.mxu0 0.0
      %1467 = vmatprep.subr.mxu0 0.0
      %1468 = vmatpush1.msra.mxu0 0.0
      %1469 = vmatprep.subr.mxu0 0.0
      %1470 = vmatpush1.msra.mxu0 0.0
      %1471 = vmatprep.subr.mxu0 0.0
      %1472 = vmatpush1.msra.mxu0 0.0
      %1473 = vmatprep.subr.mxu0 0.0
      %1474 = vmatpush1.msra.mxu0 0.0
      %1475 = vmatprep.subr.mxu0 0.0
      %1476 = vmatpush1.msra.mxu0 0.0
      %1477 = vmatprep.subr.mxu0 0.0
      %1478 = vmatpush1.msra.mxu0 0.0
      %1479 = vmatprep.subr.mxu0 0.0
      %1480 = vmatpush1.msra.mxu0 0.0
      %1481 = vmatprep.subr.mxu0 0.0
      %1482 = vmatpush1.msra.mxu0 0.0
      %1483 = vmatprep.subr.mxu0 0.0
      %1484 = vmatpush1.msra.mxu0 0.0
      %1485 = vmatprep.subr.mxu0 0.0
      %1486 = vmatpush1.msra.mxu0 %v234
      %1487 = vmatprep.subr.mxu0 0.0
      %1488 = vmatpush2.msra.mxu0 0.0
      %1489 = vmatprep.subr.mxu0 0.0
      %1490 = vmatpush2.msra.mxu0 0.0
      %1491 = vmatprep.subr.mxu0 0.0
      %1492 = vmatpush2.msra.mxu0 0.0
      %1493 = vmatprep.subr.mxu0 0.0
      %1494 = vmatpush2.msra.mxu0 0.0
      %1495 = vmatprep.subr.mxu0 0.0
      %1496 = vmatpush2.msra.mxu0 0.0
      %1497 = vmatprep.subr.mxu0 0.0
      %1498 = vmatpush2.msra.mxu0 0.0
      %1499 = vmatprep.subr.mxu0 0.0
      %1500 = vmatpush2.msra.mxu0 0.0
      %1501 = vmatprep.subr.mxu0 0.0
      %1502 = vmatpush2.msra.mxu0 0.0
      %1503 = vmatprep.subr.mxu0 0.0
      %1504 = vmatpush2.msra.mxu0 0.0
      %1505 = vmatprep.subr.mxu0 0.0
      %1506 = vmatpush2.msra.mxu0 0.0
      %1507 = vmatprep.subr.mxu0 0.0
      %1508 = vmatpush2.msra.mxu0 0.0
      %1509 = vmatprep.subr.mxu0 0.0
      %1510 = vmatpush2.msra.mxu0 0.0
      %1511 = vmatprep.subr.mxu0 0.0
      %1512 = vmatpush2.msra.mxu0 0.0
      %1513 = vmatprep.subr.mxu0 0.0
      %1514 = vmatpush2.msra.mxu0 0.0
      %1515 = vmatprep.subr.mxu0 0.0
      %1516 = vmatpush2.msra.mxu0 0.0
      %1517 = vmatprep.subr.mxu0 0.0
      %1518 = vmatpush2.msra.mxu0 0.0
      %1519 = vmatprep.mubr.f32.mxu0 0.0
      %1520 = vmatmul.mubr.f32.gmra.mxu0 %v1453
      %v1521 = vpop.f32.mrf.mxu0
      %v1522 = vadd.f32 0.0, %v1521
      %v1523 = vpop.f32.mrf.mxu0
      %1524 = vdwg.mxu0
      %1525 = vst.msk [vmem:[%s210] sm:$0xff] %vm235, %v1011
      %1526 = vst.msk [vmem:[%s210 + $0x8] sm:$0xff] %vm235, %v1084
      %1527 = vst.msk [vmem:[%s210 + $0x10] sm:$0xff] %vm235, %v1157
      %1528 = vst.msk [vmem:[%s210 + $0x18] sm:$0xff] %vm235, %v1230
      %1529 = vst.msk [vmem:[%s210 + $0x20] sm:$0xff] %vm235, %v1303
      %1530 = vst.msk [vmem:[%s210 + $0x28] sm:$0xff] %vm235, %v1376
      %1531 = vst.msk [vmem:[%s210 + $0x30] sm:$0xff] %vm235, %v1449
      %1532 = vst.msk [vmem:[%s210 + $0x38] sm:$0xff] %vm235, %v1522
      %p1533 = scmp.lt.s32.totalorder %s14, 1
      %s1534 = scalar_select %p1533, %s14, 1
      %s1535 = smul.addr %s1534, 8
      %s1536 = smul.addr %s1535, 8
      %s1537 = scalar_lea.vmem %s3, %s1536
      // Predicated region
      $region33: #{japanese_lipnet_forward.28} parent=31 // pred_check
        %p1538 = pneg %p110
      $region34: #{japanese_lipnet_forward.28} parent=31 // pred_check_branch
        %1540 = sbr.rel (%p1538) target = $region36
      $region35: #{japanese_lipnet_forward.28} parent=31 // pred_region
        _
      $region36: #{japanese_lipnet_forward.28} parent=31 // pred_fallthru
        _
    $region32: #{japanese_lipnet_forward.28} parent=5 // pred_fallthru
      _
    %p1541 = scmp.le.s32.totalorder 2, %s9
    // Predicated region
    $region37: #{japanese_lipnet_forward.28} parent=5 // pred_check
      %p1542 = pneg %p1541
    $region38: #{japanese_lipnet_forward.28} parent=5 // pred_check_branch
      %1544 = sbr.rel (%p1542) target = $region40
    $region39: #{japanese_lipnet_forward.28} parent=5 // pred_region
      %s1545 = ssub.s32 %s9, 2
      // Predicated region
      $region41: #{japanese_lipnet_forward.28} parent=39 // pred_check
        %p1546 = pneg %p116
      $region42: #{japanese_lipnet_forward.28} parent=39 // pred_check_branch
        %1548 = sbr.rel (%p1546) target = $region44
      $region43: #{japanese_lipnet_forward.28} parent=39 // pred_region
        %p1549 = scmp.lt.s32.totalorder %s15, 1
        %s1550 = scalar_select %p1549, %s15, 1
        %s1551 = smul.addr %s1550, 8
        %s1552 = smul.addr %s1551, 8
        %s1553 = scalar_lea.vmem %s3, %s1552
      $region44: #{japanese_lipnet_forward.28} parent=39 // pred_fallthru
        _
    $region40: #{japanese_lipnet_forward.28} parent=5 // pred_fallthru
      _
  $region6: #{japanese_lipnet_forward.28} parent=0 // loop_footer
    %s13 = sadd.s32 1, %s9
  $region7: #{japanese_lipnet_forward.28} parent=0 // loop_footer_branch
    %8 = sbr.rel target = $region3
  $region8: #{japanese_lipnet_forward.28} parent=0 // loop_exit
    _

// kernel: japanese_lipnet_forward.30
$region0: #{japanese_lipnet_forward.30}
  #allocation0 [shape = 'u32[]', space=smem, size = 0x4, offset = 0x4, fixed_abs, tag = 'smem constant byte address 0x4 - core index']
  #allocation1 [shape = 'u32[144,128]{1,0:T(1,128)}', space=vmem, size = 0x12000, scoped, tag = 'internal scratch']
  %s0 = inlined_call_operand.vmem [shape: f32[2,8,128], index: 0, kind: input, shape index: {}]
  %s1 = inlined_call_operand.vmem [shape: f32[1,128], index: 1, kind: input, shape index: {}]
  %s2 = inlined_call_operand.vmem [shape: f32[1,128], index: 2, kind: input, shape index: {}]
  %s3 = inlined_call_operand.vmem [shape: f32[128,128], index: 3, kind: input, shape index: {}]
  %s4 = inlined_call_operand.vmem [shape: f32[1,128], index: 4, kind: input, shape index: {}]
  %s5 = inlined_call_operand.vmem [shape: f32[128,128], index: 5, kind: input, shape index: {}]
  %s6 = inlined_call_operand.vmem [shape: f32[1,128], index: 6, kind: input, shape index: {}]
  %s7 = inlined_call_operand.vmem [shape: f32[3,128], index: 7, kind: input, shape index: {}]
  %s8 = inlined_call_operand.vmem [shape: f32[2,8,128], index: 8, kind: output, shape index: {}]
  %s9 = sld [smem:[#allocation0]]
  $region65: #{japanese_lipnet_forward.30} parent=0
    _
  %s11 = ssub.s32 1, %s9
  %s12 = scalar_select 0, %s11, %s9
  loop: start=0, step=1, limit=4
  $region2: #{japanese_lipnet_forward.30} parent=0 // loop_pre_header
    _
  $region3: #{japanese_lipnet_forward.30} parent=0 // loop_header
    %s14 = sphi 0, %s18
    %p15 = scmp.ge.s32.totalorder %s14, 4
    %s24 = sphi 0, %s26
    %s27 = sphi 0, %s24
    %s28 = sphi 0, %s27
    %s44 = sphi 0, %s28
    %s48 = sphi 0, %s48
    %s50 = sphi 0, %s48
    %s51 = sphi 0, %s50
    %s65 = sphi 0, %s51
    %s69 = sphi 0, %s69
    %s71 = sphi 0, %s69
    %s72 = sphi 0, %s71
    %s86 = sphi 0, %s72
    %s90 = sphi 0, %s90
    %s92 = sphi 0, %s90
    %s93 = sphi 0, %s92
    %s107 = sphi 0, %s93
    %s111 = sphi 0, %s111
    %s113 = sphi 0, %s111
    %s114 = sphi 0, %s113
    %s128 = sphi 0, %s114
    %s132 = sphi 0, %s132
    %s134 = sphi 0, %s132
    %s135 = sphi 0, %s134
    %s149 = sphi 0, %s135
    %s153 = sphi 0, %s153
    %s155 = sphi 0, %s153
    %s156 = sphi 0, %s155
    %s170 = sphi 0, %s156
    %s174 = sphi 0, %s174
    %s176 = sphi 0, %s174
    %s177 = sphi 0, %s176
    %s191 = sphi 0, %s177
    %s197 = sphi 0, %s199
    %s200 = sphi 0, %s197
    %s201 = sphi 0, %s200
    %s217 = sphi 0, %s201
  $region4: #{japanese_lipnet_forward.30} parent=0 // loop_header_branch
    %17 = sbr.rel (%p15) target = $region8
  $region5: #{japanese_lipnet_forward.30} parent=0 // loop_body
    %s19 = ssub.s32 %s14, 1
    %s20 = ssub.s32 %s14, 2
    %s21 = sadd.s32 %s14, 1
    %s22 = ssub.s32 %s14, %s21
    %p23 = scmp.eq.s32.totalorder %s22, 0
    %s25 = sadd.s32 %s24, 1
    %s26 = scalar_select %p23, %s24, %s25
    %p29 = pneg %p23
    %p30 = scmp.eq.s32.totalorder %s14, 1
    %p31 = por %p29, %p30
    %p32 = scmp.ne.s32.totalorder %s24, %s27
    %p33 = scmp.eq.s32.totalorder %s14, 0
    %p34 = por %p32, %p33
    %p35 = scmp.ne.s32.totalorder %s24, %s27
    %p36 = scmp.eq.s32.totalorder %s19, 1
    %p37 = por %p35, %p36
    %p38 = scmp.ne.s32.totalorder %s27, %s28
    %p39 = scmp.eq.s32.totalorder %s19, 0
    %p40 = por %p38, %p39
    %p41 = scmp.ne.s32.totalorder %s27, %s28
    %p42 = scmp.eq.s32.totalorder %s20, 1
    %p43 = por %p41, %p42
    %p45 = scmp.ne.s32.totalorder %s28, %s44
    %p46 = scmp.eq.s32.totalorder %s20, 0
    %p47 = por %p45, %p46
    %s49 = sadd.s32 %s48, 1
    %p52 = scmp.eq.s32.totalorder %s14, 1
    %p53 = scmp.ne.s32.totalorder %s48, %s50
    %p54 = scmp.eq.s32.totalorder %s14, 0
    %p55 = por %p53, %p54
    %p56 = scmp.ne.s32.totalorder %s48, %s50
    %p57 = scmp.eq.s32.totalorder %s19, 1
    %p58 = por %p56, %p57
    %p59 = scmp.ne.s32.totalorder %s50, %s51
    %p60 = scmp.eq.s32.totalorder %s19, 0
    %p61 = por %p59, %p60
    %p62 = scmp.ne.s32.totalorder %s50, %s51
    %p63 = scmp.eq.s32.totalorder %s20, 1
    %p64 = por %p62, %p63
    %p66 = scmp.ne.s32.totalorder %s51, %s65
    %p67 = scmp.eq.s32.totalorder %s20, 0
    %p68 = por %p66, %p67
    %s70 = sadd.s32 %s69, 1
    %p73 = scmp.eq.s32.totalorder %s14, 1
    %p74 = scmp.ne.s32.totalorder %s69, %s71
    %p75 = scmp.eq.s32.totalorder %s14, 0
    %p76 = por %p74, %p75
    %p77 = scmp.ne.s32.totalorder %s69, %s71
    %p78 = scmp.eq.s32.totalorder %s19, 1
    %p79 = por %p77, %p78
    %p80 = scmp.ne.s32.totalorder %s71, %s72
    %p81 = scmp.eq.s32.totalorder %s19, 0
    %p82 = por %p80, %p81
    %p83 = scmp.ne.s32.totalorder %s71, %s72
    %p84 = scmp.eq.s32.totalorder %s20, 1
    %p85 = por %p83, %p84
    %p87 = scmp.ne.s32.totalorder %s72, %s86
    %p88 = scmp.eq.s32.totalorder %s20, 0
    %p89 = por %p87, %p88
    %s91 = sadd.s32 %s90, 1
    %p94 = scmp.eq.s32.totalorder %s14, 1
    %p95 = scmp.ne.s32.totalorder %s90, %s92
    %p96 = scmp.eq.s32.totalorder %s14, 0
    %p97 = por %p95, %p96
    %p98 = scmp.ne.s32.totalorder %s90, %s92
    %p99 = scmp.eq.s32.totalorder %s19, 1
    %p100 = por %p98, %p99
    %p101 = scmp.ne.s32.totalorder %s92, %s93
    %p102 = scmp.eq.s32.totalorder %s19, 0
    %p103 = por %p101, %p102
    %p104 = scmp.ne.s32.totalorder %s92, %s93
    %p105 = scmp.eq.s32.totalorder %s20, 1
    %p106 = por %p104, %p105
    %p108 = scmp.ne.s32.totalorder %s93, %s107
    %p109 = scmp.eq.s32.totalorder %s20, 0
    %p110 = por %p108, %p109
    %s112 = sadd.s32 %s111, 1
    %p115 = scmp.eq.s32.totalorder %s14, 1
    %p116 = scmp.ne.s32.totalorder %s111, %s113
    %p117 = scmp.eq.s32.totalorder %s14, 0
    %p118 = por %p116, %p117
    %p119 = scmp.ne.s32.totalorder %s111, %s113
    %p120 = scmp.eq.s32.totalorder %s19, 1
    %p121 = por %p119, %p120
    %p122 = scmp.ne.s32.totalorder %s113, %s114
    %p123 = scmp.eq.s32.totalorder %s19, 0
    %p124 = por %p122, %p123
    %p125 = scmp.ne.s32.totalorder %s113, %s114
    %p126 = scmp.eq.s32.totalorder %s20, 1
    %p127 = por %p125, %p126
    %p129 = scmp.ne.s32.totalorder %s114, %s128
    %p130 = scmp.eq.s32.totalorder %s20, 0
    %p131 = por %p129, %p130
    %s133 = sadd.s32 %s132, 1
    %p136 = scmp.eq.s32.totalorder %s14, 1
    %p137 = scmp.ne.s32.totalorder %s132, %s134
    %p138 = scmp.eq.s32.totalorder %s14, 0
    %p139 = por %p137, %p138
    %p140 = scmp.ne.s32.totalorder %s132, %s134
    %p141 = scmp.eq.s32.totalorder %s19, 1
    %p142 = por %p140, %p141
    %p143 = scmp.ne.s32.totalorder %s134, %s135
    %p144 = scmp.eq.s32.totalorder %s19, 0
    %p145 = por %p143, %p144
    %p146 = scmp.ne.s32.totalorder %s134, %s135
    %p147 = scmp.eq.s32.totalorder %s20, 1
    %p148 = por %p146, %p147
    %p150 = scmp.ne.s32.totalorder %s135, %s149
    %p151 = scmp.eq.s32.totalorder %s20, 0
    %p152 = por %p150, %p151
    %s154 = sadd.s32 %s153, 1
    %p157 = scmp.eq.s32.totalorder %s14, 1
    %p158 = scmp.ne.s32.totalorder %s153, %s155
    %p159 = scmp.eq.s32.totalorder %s14, 0
    %p160 = por %p158, %p159
    %p161 = scmp.ne.s32.totalorder %s153, %s155
    %p162 = scmp.eq.s32.totalorder %s19, 1
    %p163 = por %p161, %p162
    %p164 = scmp.ne.s32.totalorder %s155, %s156
    %p165 = scmp.eq.s32.totalorder %s19, 0
    %p166 = por %p164, %p165
    %p167 = scmp.ne.s32.totalorder %s155, %s156
    %p168 = scmp.eq.s32.totalorder %s20, 1
    %p169 = por %p167, %p168
    %p171 = scmp.ne.s32.totalorder %s156, %s170
    %p172 = scmp.eq.s32.totalorder %s20, 0
    %p173 = por %p171, %p172
    %s175 = sadd.s32 %s174, 1
    %p178 = scmp.eq.s32.totalorder %s14, 1
    %p179 = scmp.ne.s32.totalorder %s174, %s176
    %p180 = scmp.eq.s32.totalorder %s14, 0
    %p181 = por %p179, %p180
    %p182 = scmp.ne.s32.totalorder %s174, %s176
    %p183 = scmp.eq.s32.totalorder %s19, 1
    %p184 = por %p182, %p183
    %p185 = scmp.ne.s32.totalorder %s176, %s177
    %p186 = scmp.eq.s32.totalorder %s19, 0
    %p187 = por %p185, %p186
    %p188 = scmp.ne.s32.totalorder %s176, %s177
    %p189 = scmp.eq.s32.totalorder %s20, 1
    %p190 = por %p188, %p189
    %p192 = scmp.ne.s32.totalorder %s177, %s191
    %p193 = scmp.eq.s32.totalorder %s20, 0
    %p194 = por %p192, %p193
    %s195 = ssub.s32 %s14, %s21
    %p196 = scmp.eq.s32.totalorder %s195, 0
    %s198 = sadd.s32 %s197, 1
    %s199 = scalar_select %p196, %s197, %s198
    %p202 = pneg %p196
    %p203 = scmp.eq.s32.totalorder %s14, 1
    %p204 = por %p202, %p203
    %p205 = scmp.ne.s32.totalorder %s197, %s200
    %p206 = scmp.eq.s32.totalorder %s14, 0
    %p207 = por %p205, %p206
    %p208 = scmp.ne.s32.totalorder %s197, %s200
    %p209 = scmp.eq.s32.totalorder %s19, 1
    %p210 = por %p208, %p209
    %p211 = scmp.ne.s32.totalorder %s200, %s201
    %p212 = scmp.eq.s32.totalorder %s19, 0
    %p213 = por %p211, %p212
    %p214 = scmp.ne.s32.totalorder %s200, %s201
    %p215 = scmp.eq.s32.totalorder %s20, 1
    %p216 = por %p214, %p215
    %p218 = scmp.ne.s32.totalorder %s201, %s217
    %p219 = scmp.eq.s32.totalorder %s20, 0
    %p220 = por %p218, %p219
    %p221 = scmp.le.s32.totalorder 1, %s14
    %p222 = scmp.lt.s32.totalorder %s14, 3
    %p223 = pnand %p221, %p222
    %p224 = pneg %p223
    // Predicated region
    $region9: #{japanese_lipnet_forward.30} parent=5 // pred_check
      _
    $region10: #{japanese_lipnet_forward.30} parent=5 // pred_check_branch
      %226 = sbr.rel (%p223) target = $region12
    $region11: #{japanese_lipnet_forward.30} parent=5 // pred_region
      %s227 = ssub.s32 %s14, 1
      // Predicated region
      $region13: #{japanese_lipnet_forward.30} parent=11 // pred_check
        %p228 = pneg %p61
      $region14: #{japanese_lipnet_forward.30} parent=11 // pred_check_branch
        %230 = sbr.rel (%p228) target = $region16
      $region15: #{japanese_lipnet_forward.30} parent=11 // pred_region
        _
      $region16: #{japanese_lipnet_forward.30} parent=11 // pred_fallthru
        _
      // Predicated region
      $region17: #{japanese_lipnet_forward.30} parent=11 // pred_check
        %p231 = pneg %p82
      $region18: #{japanese_lipnet_forward.30} parent=11 // pred_check_branch
        %233 = sbr.rel (%p231) target = $region20
      $region19: #{japanese_lipnet_forward.30} parent=11 // pred_region
        _
      $region20: #{japanese_lipnet_forward.30} parent=11 // pred_fallthru
        _
      // Predicated region
      $region21: #{japanese_lipnet_forward.30} parent=11 // pred_check
        %p234 = pneg %p103
      $region22: #{japanese_lipnet_forward.30} parent=11 // pred_check_branch
        %236 = sbr.rel (%p234) target = $region24
      $region23: #{japanese_lipnet_forward.30} parent=11 // pred_region
        _
      $region24: #{japanese_lipnet_forward.30} parent=11 // pred_fallthru
        _
      // Predicated region
      $region25: #{japanese_lipnet_forward.30} parent=11 // pred_check
        %p237 = pneg %p124
      $region26: #{japanese_lipnet_forward.30} parent=11 // pred_check_branch
        %239 = sbr.rel (%p237) target = $region28
      $region27: #{japanese_lipnet_forward.30} parent=11 // pred_region
        _
      $region28: #{japanese_lipnet_forward.30} parent=11 // pred_fallthru
        _
      // Predicated region
      $region29: #{japanese_lipnet_forward.30} parent=11 // pred_check
        %p240 = pneg %p145
      $region30: #{japanese_lipnet_forward.30} parent=11 // pred_check_branch
        %242 = sbr.rel (%p240) target = $region32
      $region31: #{japanese_lipnet_forward.30} parent=11 // pred_region
        _
      $region32: #{japanese_lipnet_forward.30} parent=11 // pred_fallthru
        _
      // Predicated region
      $region33: #{japanese_lipnet_forward.30} parent=11 // pred_check
        %p243 = pneg %p166
      $region34: #{japanese_lipnet_forward.30} parent=11 // pred_check_branch
        %245 = sbr.rel (%p243) target = $region36
      $region35: #{japanese_lipnet_forward.30} parent=11 // pred_region
        _
      $region36: #{japanese_lipnet_forward.30} parent=11 // pred_fallthru
        _
      // Predicated region
      $region37: #{japanese_lipnet_forward.30} parent=11 // pred_check
        %p246 = pneg %p187
      $region38: #{japanese_lipnet_forward.30} parent=11 // pred_check_branch
        %248 = sbr.rel (%p246) target = $region40
      $region39: #{japanese_lipnet_forward.30} parent=11 // pred_region
        _
      $region40: #{japanese_lipnet_forward.30} parent=11 // pred_fallthru
        _
    $region12: #{japanese_lipnet_forward.30} parent=5 // pred_fallthru
      _
    %p249 = scmp.lt.s32.totalorder %s14, 2
    // Predicated region
    $region41: #{japanese_lipnet_forward.30} parent=5 // pred_check
      %p250 = pneg %p249
    $region42: #{japanese_lipnet_forward.30} parent=5 // pred_check_branch
      %252 = sbr.rel (%p250) target = $region44
    $region43: #{japanese_lipnet_forward.30} parent=5 // pred_region
      // Predicated region
      $region45: #{japanese_lipnet_forward.30} parent=43 // pred_check
        %p253 = pneg %p34
      $region46: #{japanese_lipnet_forward.30} parent=43 // pred_check_branch
        %255 = sbr.rel (%p253) target = $region48
      $region47: #{japanese_lipnet_forward.30} parent=43 // pred_region
        %p256 = scmp.lt.s32.totalorder %s14, 1
        %s257 = scalar_select %p256, %s14, 1
        %s258 = smul.addr %s257, 8
        %s259 = scalar_lea.vmem %s0, %s258
      $region48: #{japanese_lipnet_forward.30} parent=43 // pred_fallthru
        _
    $region44: #{japanese_lipnet_forward.30} parent=5 // pred_fallthru
      _
    %p260 = scmp.le.s32.totalorder 1, %s14
    %p261 = scmp.lt.s32.totalorder %s14, 3
    %p262 = pnand %p260, %p261
    %p263 = pneg %p262
    // Predicated region
    $region49: #{japanese_lipnet_forward.30} parent=5 // pred_check
      _
    $region50: #{japanese_lipnet_forward.30} parent=5 // pred_check_branch
      %265 = sbr.rel (%p262) target = $region52
    $region51: #{japanese_lipnet_forward.30} parent=5 // pred_region
      %s266 = ssub.s32 %s14, 1
      %p267 = scmp.lt.s32.totalorder %s19, 1
      %s268 = scalar_select %p267, %s19, 1
      %s269 = smul.addr %s268, 8
      %s270 = scalar_lea.vmem %s0, %s269
      %p271 = pneg %p40
      %p272 = pneg %p37
      %p273 = pneg %p61
      %p274 = pneg %p58
      %p275 = pneg %p82
      %p276 = pneg %p79
      %p277 = pneg %p103
      %p278 = pneg %p100
      %p279 = pneg %p124
      %p280 = pneg %p121
      %p281 = pneg %p145
      %p282 = pneg %p142
      %p283 = pneg %p166
      %p284 = pneg %p163
      %p285 = pneg %p187
      %p286 = pneg %p184
      %p287 = pneg %p213
      %p288 = pneg %p210
      %p289 = scmp.lt.s32.totalorder %s19, 1
      %s290 = scalar_select %p289, %s19, 1
      %s291 = smul.addr %s290, 8
      %s292 = scalar_lea.vmem %s8, %s291
      %p293 = scmp.lt.s32.totalorder %s19, 1
      %s294 = scalar_select %p293, %s19, 1
      %s295 = smul.addr %s294, 8
      %s296 = scalar_lea.vmem %s0, %s295
      %p297 = scmp.lt.s32.totalorder %s19, 1
      %s298 = scalar_select %p297, %s19, 1
      %s299 = smul.addr %s298, 8
      %s300 = scalar_lea.vmem %s8, %s299
      %v301 = vld [vmem:[%s296] sm:$0xff]
      %v302 = vld [vmem:[%s1] sm:$0x1]
      %v303 = vld [vmem:[%s2] sm:$0x1]
      %304 = vadd.xlane.f32.xlu0 %v301
      %v305 = vpop.xlane.xlu0 %304
      %v306 = vrcp.pop 128.0
      %v307 = vmul.f32 %v305, %v306
      %v308 = vsub.f32 %v301, %v307
      %v309 = vmul.f32 %v308, %v308
      %310 = vadd.xlane.f32.xlu0 %v309
      %v311 = vpop.xlane.xlu0 %310
      %v312 = vmul.f32 %v311, %v306
      %v313 = vadd.f32 %v312, 1e-05
      %v314 = vrsqrt.pop %v313
      %v315 = vmul.f32 %v308, %v314
      %v317 = vlaneseq
      %v318 = vshrl.u32 %v317, 7
      %v319 = vsub.s32 0, %v318
      %v320 = vrot.slane %v302, %v319
      %v322 = vmul.f32 %v315, %v320
      %v324 = vlaneseq
      %v325 = vshrl.u32 %v324, 7
      %v326 = vsub.s32 0, %v325
      %v327 = vrot.slane %v303, %v326
      %v329 = vadd.f32 %v322, %v327
      %v330 = vld [vmem:[%s3] sm:$0xff]
      %v331 = vld [vmem:[%s3 + $0x8] sm:$0xff]
      %v332 = vld [vmem:[%s3 + $0x10] sm:$0xff]
      %v333 = vld [vmem:[%s3 + $0x18] sm:$0xff]
      %v334 = vld [vmem:[%s3 + $0x20] sm:$0xff]
      %v335 = vld [vmem:[%s3 + $0x28] sm:$0xff]
      %v336 = vld [vmem:[%s3 + $0x30] sm:$0xff]
      %v337 = vld [vmem:[%s3 + $0x38] sm:$0xff]
      %v338 = vld [vmem:[%s3 + $0x40] sm:$0xff]
      %v339 = vld [vmem:[%s3 + $0x48] sm:$0xff]
      %v340 = vld [vmem:[%s3 + $0x50] sm:$0xff]
      %v341 = vld [vmem:[%s3 + $0x58] sm:$0xff]
      %v342 = vld [vmem:[%s3 + $0x60] sm:$0xff]
      %v343 = vld [vmem:[%s3 + $0x68] sm:$0xff]
      %v344 = vld [vmem:[%s3 + $0x70] sm:$0xff]
      %v345 = vld [vmem:[%s3 + $0x78] sm:$0xff]
      %v346 = vld [vmem:[%s4] sm:$0x1]
      %v348 = vlaneseq
      %v349 = vshrl.u32 %v348, 7
      %v350 = vsub.s32 0, %v349
      %v351 = vrot.slane %v346, %v350
      %353 = vmatprep.subr.mxu0 0.0
      %354 = vmatpush1.msra.mxu0 %v345
      %355 = vmatprep.subr.mxu0 0.0
      %356 = vmatpush1.msra.mxu0 %v344
      %357 = vmatprep.subr.mxu0 0.0
      %358 = vmatpush1.msra.mxu0 %v343
      %359 = vmatprep.subr.mxu0 0.0
      %360 = vmatpush1.msra.mxu0 %v342
      %361 = vmatprep.subr.mxu0 0.0
      %362 = vmatpush1.msra.mxu0 %v341
      %363 = vmatprep.subr.mxu0 0.0
      %364 = vmatpush1.msra.mxu0 %v340
      %365 = vmatprep.subr.mxu0 0.0
      %366 = vmatpush1.msra.mxu0 %v339
      %367 = vmatprep.subr.mxu0 0.0
      %368 = vmatpush1.msra.mxu0 %v338
      %369 = vmatprep.subr.mxu0 0.0
      %370 = vmatpush1.msra.mxu0 %v337
      %371 = vmatprep.subr.mxu0 0.0
      %372 = vmatpush1.msra.mxu0 %v336
      %373 = vmatprep.subr.mxu0 0.0
      %374 = vmatpush1.msra.mxu0 %v335
      %375 = vmatprep.subr.mxu0 0.0
      %376 = vmatpush1.msra.mxu0 %v334
      %377 = vmatprep.subr.mxu0 0.0
      %378 = vmatpush1.msra.mxu0 %v333
      %379 = vmatprep.subr.mxu0 0.0
      %380 = vmatpush1.msra.mxu0 %v332
      %381 = vmatprep.subr.mxu0 0.0
      %382 = vmatpush1.msra.mxu0 %v331
      %383 = vmatprep.subr.mxu0 0.0
      %384 = vmatpush1.msra.mxu0 %v330
      %385 = vmatprep.subr.mxu0 0.0
      %386 = vmatpush2.msra.mxu0 0.0
      %387 = vmatprep.subr.mxu0 0.0
      %388 = vmatpush2.msra.mxu0 0.0
      %389 = vmatprep.subr.mxu0 0.0
      %390 = vmatpush2.msra.mxu0 0.0
      %391 = vmatprep.subr.mxu0 0.0
      %392 = vmatpush2.msra.mxu0 0.0
      %393 = vmatprep.subr.mxu0 0.0
      %394 = vmatpush2.msra.mxu0 0.0
      %395 = vmatprep.subr.mxu0 0.0
      %396 = vmatpush2.msra.mxu0 0.0
      %397 = vmatprep.subr.mxu0 0.0
      %398 = vmatpush2.msra.mxu0 0.0
      %399 = vmatprep.subr.mxu0 0.0
      %400 = vmatpush2.msra.mxu0 0.0
      %401 = vmatprep.subr.mxu0 0.0
      %402 = vmatpush2.msra.mxu0 0.0
      %403 = vmatprep.subr.mxu0 0.0
      %404 = vmatpush2.msra.mxu0 0.0
      %405 = vmatprep.subr.mxu0 0.0
      %406 = vmatpush2.msra.mxu0 0.0
      %407 = vmatprep.subr.mxu0 0.0
      %408 = vmatpush2.msra.mxu0 0.0
      %409 = vmatprep.subr.mxu0 0.0
      %410 = vmatpush2.msra.mxu0 0.0
      %411 = vmatprep.subr.mxu0 0.0
      %412 = vmatpush2.msra.mxu0 0.0
      %413 = vmatprep.subr.mxu0 0.0
      %414 = vmatpush2.msra.mxu0 0.0
      %415 = vmatprep.subr.mxu0 0.0
      %416 = vmatpush2.msra.mxu0 0.0
      %417 = vmatprep.mubr.f32.mxu0 0.0
      %418 = vmatmul.mubr.f32.gmra.mxu0 %v329
      %v419 = vpop.f32.mrf.mxu0
      %v420 = vadd.f32 %v351, %v419
      %v421 = vpop.f32.mrf.mxu0
      %422 = vdwg.mxu0
      %v423 = vld [vmem:[%s5] sm:$0xff]
      %v424 = vld [vmem:[%s5 + $0x8] sm:$0xff]
      %v425 = vld [vmem:[%s5 + $0x10] sm:$0xff]
      %v426 = vld [vmem:[%s5 + $0x18] sm:$0xff]
      %v427 = vld [vmem:[%s5 + $0x20] sm:$0xff]
      %v428 = vld [vmem:[%s5 + $0x28] sm:$0xff]
      %v429 = vld [vmem:[%s5 + $0x30] sm:$0xff]
      %v430 = vld [vmem:[%s5 + $0x38] sm:$0xff]
      %v431 = vld [vmem:[%s5 + $0x40] sm:$0xff]
      %v432 = vld [vmem:[%s5 + $0x48] sm:$0xff]
      %v433 = vld [vmem:[%s5 + $0x50] sm:$0xff]
      %v434 = vld [vmem:[%s5 + $0x58] sm:$0xff]
      %v435 = vld [vmem:[%s5 + $0x60] sm:$0xff]
      %v436 = vld [vmem:[%s5 + $0x68] sm:$0xff]
      %v437 = vld [vmem:[%s5 + $0x70] sm:$0xff]
      %v438 = vld [vmem:[%s5 + $0x78] sm:$0xff]
      %v439 = vld [vmem:[%s6] sm:$0x1]
      %v441 = vlaneseq
      %v442 = vshrl.u32 %v441, 7
      %v443 = vsub.s32 0, %v442
      %v444 = vrot.slane %v439, %v443
      %446 = vmatprep.subr.mxu0 0.0
      %447 = vmatpush1.msra.mxu0 %v438
      %448 = vmatprep.subr.mxu0 0.0
      %449 = vmatpush1.msra.mxu0 %v437
      %450 = vmatprep.subr.mxu0 0.0
      %451 = vmatpush1.msra.mxu0 %v436
      %452 = vmatprep.subr.mxu0 0.0
      %453 = vmatpush1.msra.mxu0 %v435
      %454 = vmatprep.subr.mxu0 0.0
      %455 = vmatpush1.msra.mxu0 %v434
      %456 = vmatprep.subr.mxu0 0.0
      %457 = vmatpush1.msra.mxu0 %v433
      %458 = vmatprep.subr.mxu0 0.0
      %459 = vmatpush1.msra.mxu0 %v432
      %460 = vmatprep.subr.mxu0 0.0
      %461 = vmatpush1.msra.mxu0 %v431
      %462 = vmatprep.subr.mxu0 0.0
      %463 = vmatpush1.msra.mxu0 %v430
      %464 = vmatprep.subr.mxu0 0.0
      %465 = vmatpush1.msra.mxu0 %v429
      %466 = vmatprep.subr.mxu0 0.0
      %467 = vmatpush1.msra.mxu0 %v428
      %468 = vmatprep.subr.mxu0 0.0
      %469 = vmatpush1.msra.mxu0 %v427
      %470 = vmatprep.subr.mxu0 0.0
      %471 = vmatpush1.msra.mxu0 %v426
      %472 = vmatprep.subr.mxu0 0.0
      %473 = vmatpush1.msra.mxu0 %v425
      %474 = vmatprep.subr.mxu0 0.0
      %475 = vmatpush1.msra.mxu0 %v424
      %476 = vmatprep.subr.mxu0 0.0
      %477 = vmatpush1.msra.mxu0 %v423
      %478 = vmatprep.subr.mxu0 0.0
      %479 = vmatpush2.msra.mxu0 0.0
      %480 = vmatprep.subr.mxu0 0.0
      %481 = vmatpush2.msra.mxu0 0.0
      %482 = vmatprep.subr.mxu0 0.0
      %483 = vmatpush2.msra.mxu0 0.0
      %484 = vmatprep.subr.mxu0 0.0
      %485 = vmatpush2.msra.mxu0 0.0
      %486 = vmatprep.subr.mxu0 0.0
      %487 = vmatpush2.msra.mxu0 0.0
      %488 = vmatprep.subr.mxu0 0.0
      %489 = vmatpush2.msra.mxu0 0.0
      %490 = vmatprep.subr.mxu0 0.0
      %491 = vmatpush2.msra.mxu0 0.0
      %492 = vmatprep.subr.mxu0 0.0
      %493 = vmatpush2.msra.mxu0 0.0
      %494 = vmatprep.subr.mxu0 0.0
      %495 = vmatpush2.msra.mxu0 0.0
      %496 = vmatprep.subr.mxu0 0.0
      %497 = vmatpush2.msra.mxu0 0.0
      %498 = vmatprep.subr.mxu0 0.0
      %499 = vmatpush2.msra.mxu0 0.0
      %500 = vmatprep.subr.mxu0 0.0
      %501 = vmatpush2.msra.mxu0 0.0
      %502 = vmatprep.subr.mxu0 0.0
      %503 = vmatpush2.msra.mxu0 0.0
      %504 = vmatprep.subr.mxu0 0.0
      %505 = vmatpush2.msra.mxu0 0.0
      %506 = vmatprep.subr.mxu0 0.0
      %507 = vmatpush2.msra.mxu0 0.0
      %508 = vmatprep.subr.mxu0 0.0
      %509 = vmatpush2.msra.mxu0 0.0
      %510 = vmatprep.mubr.f32.mxu0 0.0
      %511 = vmatmul.mubr.f32.gmra.mxu0 %v329
      %v512 = vpop.f32.mrf.mxu0
      %v513 = vadd.f32 %v444, %v512
      %v514 = vpop.f32.mrf.mxu0
      %515 = vdwg.mxu0
      %v516 = vxor.u32 %v513, 2147483648
      %v517 = vmul.f32 %v516, 1.442695
      %v518 = vpow.pop %v517
      %v519 = vadd.f32 %v518, 1.0
      %v520 = vrcp.pop %v519
      %v521 = vmul.f32 1.0, %v520
      %v522 = vmul.f32 %v420, %v521
      %v523 = vld [vmem:[%s7] sm:$0x7]
      %v524 = vlaneseq
      %v525 = vshrl.u32 %v524, 7
      %vm526 = vcmp.ge.s32.totalorder %v525, 1
      %v527 = vrot.slane %v522, 7
      %v528 = vsel %vm526, %v527, 0.0
      %vm529 = vcmp.lt.s32.totalorder %v525, 7
      %v530 = vrot.slane %v522, 1
      %v531 = vsel %vm529, %v530, 0.0
      %v532 = vlaneseq
      %v533 = vshrl.u32 %v532, 7
      %v534 = vsub.s32 0, %v533
      %v535 = vrot.slane %v523, %v534
      %v536 = vmul.f32 %v528, %v535
      %v537 = vlaneseq
      %v538 = vshrl.u32 %v537, 7
      %v539 = vsub.s32 1, %v538
      %v540 = vrot.slane %v523, %v539
      %v541 = vmul.f32 %v522, %v540
      %v542 = vadd.f32 %v536, %v541
      %v543 = vlaneseq
      %v544 = vshrl.u32 %v543, 7
      %v545 = vsub.s32 2, %v544
      %v546 = vrot.slane %v523, %v545
      %v547 = vmul.f32 %v531, %v546
      %v548 = vadd.f32 %v542, %v547
      %v549 = vxor.u32 %v548, 2147483648
      %v550 = vmul.f32 %v549, 1.442695
      %v551 = vpow.pop %v550
      %v552 = vadd.f32 %v551, 1.0
      %v553 = vrcp.pop %v552
      %v554 = vmul.f32 1.0, %v553
      %v555 = vmul.f32 %v548, %v554
      %556 = vst [vmem:[%s300] sm:$0xff] %v555
      %p557 = scmp.lt.s32.totalorder %s19, 1
      %s558 = scalar_select %p557, %s19, 1
      %s559 = smul.addr %s558, 8
      %s560 = scalar_lea.vmem %s8, %s559
      // Predicated region
      $region53: #{japanese_lipnet_forward.30} parent=51 // pred_check
        %p561 = pneg %p210
      $region54: #{japanese_lipnet_forward.30} parent=51 // pred_check_branch
        %563 = sbr.rel (%p561) target = $region56
      $region55: #{japanese_lipnet_forward.30} parent=51 // pred_region
        _
      $region56: #{japanese_lipnet_forward.30} parent=51 // pred_fallthru
        _
    $region52: #{japanese_lipnet_forward.30} parent=5 // pred_fallthru
      _
    %p564 = scmp.le.s32.totalorder 2, %s14
    // Predicated region
    $region57: #{japanese_lipnet_forward.30} parent=5 // pred_check
      %p565 = pneg %p564
    $region58: #{japanese_lipnet_forward.30} parent=5 // pred_check_branch
      %567 = sbr.rel (%p565) target = $region60
    $region59: #{japanese_lipnet_forward.30} parent=5 // pred_region
      %s568 = ssub.s32 %s14, 2
      // Predicated region
      $region61: #{japanese_lipnet_forward.30} parent=59 // pred_check
        %p569 = pneg %p216
      $region62: #{japanese_lipnet_forward.30} parent=59 // pred_check_branch
        %571 = sbr.rel (%p569) target = $region64
      $region63: #{japanese_lipnet_forward.30} parent=59 // pred_region
        %p572 = scmp.lt.s32.totalorder %s20, 1
        %s573 = scalar_select %p572, %s20, 1
        %s574 = smul.addr %s573, 8
        %s575 = scalar_lea.vmem %s8, %s574
      $region64: #{japanese_lipnet_forward.30} parent=59 // pred_fallthru
        _
    $region60: #{japanese_lipnet_forward.30} parent=5 // pred_fallthru
      _
  $region6: #{japanese_lipnet_forward.30} parent=0 // loop_footer
    %s18 = sadd.s32 1, %s14
  $region7: #{japanese_lipnet_forward.30} parent=0 // loop_footer_branch
    %13 = sbr.rel target = $region3
  $region8: #{japanese_lipnet_forward.30} parent=0 // loop_exit
    _

// kernel: japanese_lipnet_forward.33
$region0: #{japanese_lipnet_forward.33}
  #allocation0 [shape = 'u32[]', space=smem, size = 0x4, offset = 0x4, fixed_abs, tag = 'smem constant byte address 0x4 - core index']
  #allocation1 [shape = 'u32[144,128]{1,0:T(1,128)}', space=vmem, size = 0x12000, scoped, tag = 'internal scratch']
  %s0 = inlined_call_operand.vmem [shape: f32[16,512], index: 0, kind: input, shape index: {}]
  %s1 = inlined_call_operand.vmem [shape: f32[512,128], index: 1, kind: input, shape index: {}]
  %s2 = inlined_call_operand.vmem [shape: f32[1,128], index: 2, kind: input, shape index: {}]
  %s3 = inlined_call_operand.vmem [shape: f32[16,128], index: 3, kind: input, shape index: {}]
  %s4 = inlined_call_operand.vmem [shape: f32[1,128], index: 4, kind: input, shape index: {}]
  %s5 = inlined_call_operand.vmem [shape: f32[1,128], index: 5, kind: input, shape index: {}]
  %s6 = inlined_call_operand.vmem [shape: f32[16,128], index: 6, kind: output, shape index: {}]
  %s7 = sld [smem:[#allocation0]]
  $region57: #{japanese_lipnet_forward.33} parent=0
    _
  %s9 = ssub.s32 1, %s7
  %s10 = scalar_select 0, %s9, %s7
  loop: start=0, step=1, limit=4
  $region2: #{japanese_lipnet_forward.33} parent=0 // loop_pre_header
    _
  $region3: #{japanese_lipnet_forward.33} parent=0 // loop_header
    %s12 = sphi 0, %s16
    %p13 = scmp.ge.s32.totalorder %s12, 4
    %s22 = sphi 0, %s24
    %s25 = sphi 0, %s22
    %s26 = sphi 0, %s25
    %s42 = sphi 0, %s26
    %s46 = sphi 0, %s46
    %s48 = sphi 0, %s46
    %s49 = sphi 0, %s48
    %s63 = sphi 0, %s49
    %s67 = sphi 0, %s67
    %s69 = sphi 0, %s67
    %s70 = sphi 0, %s69
    %s84 = sphi 0, %s70
    %s90 = sphi 0, %s92
    %s93 = sphi 0, %s90
    %s94 = sphi 0, %s93
    %s110 = sphi 0, %s94
    %s114 = sphi 0, %s114
    %s116 = sphi 0, %s114
    %s117 = sphi 0, %s116
    %s131 = sphi 0, %s117
    %s135 = sphi 0, %s135
    %s137 = sphi 0, %s135
    %s138 = sphi 0, %s137
    %s152 = sphi 0, %s138
    %s158 = sphi 0, %s160
    %s161 = sphi 0, %s158
    %s162 = sphi 0, %s161
    %s178 = sphi 0, %s162
  $region4: #{japanese_lipnet_forward.33} parent=0 // loop_header_branch
    %15 = sbr.rel (%p13) target = $region8
  $region5: #{japanese_lipnet_forward.33} parent=0 // loop_body
    %s17 = ssub.s32 %s12, 1
    %s18 = ssub.s32 %s12, 2
    %s19 = sadd.s32 %s12, 1
    %s20 = ssub.s32 %s12, %s19
    %p21 = scmp.eq.s32.totalorder %s20, 0
    %s23 = sadd.s32 %s22, 1
    %s24 = scalar_select %p21, %s22, %s23
    %p27 = pneg %p21
    %p28 = scmp.eq.s32.totalorder %s12, 1
    %p29 = por %p27, %p28
    %p30 = scmp.ne.s32.totalorder %s22, %s25
    %p31 = scmp.eq.s32.totalorder %s12, 0
    %p32 = por %p30, %p31
    %p33 = scmp.ne.s32.totalorder %s22, %s25
    %p34 = scmp.eq.s32.totalorder %s17, 1
    %p35 = por %p33, %p34
    %p36 = scmp.ne.s32.totalorder %s25, %s26
    %p37 = scmp.eq.s32.totalorder %s17, 0
    %p38 = por %p36, %p37
    %p39 = scmp.ne.s32.totalorder %s25, %s26
    %p40 = scmp.eq.s32.totalorder %s18, 1
    %p41 = por %p39, %p40
    %p43 = scmp.ne.s32.totalorder %s26, %s42
    %p44 = scmp.eq.s32.totalorder %s18, 0
    %p45 = por %p43, %p44
    %s47 = sadd.s32 %s46, 1
    %p50 = scmp.eq.s32.totalorder %s12, 1
    %p51 = scmp.ne.s32.totalorder %s46, %s48
    %p52 = scmp.eq.s32.totalorder %s12, 0
    %p53 = por %p51, %p52
    %p54 = scmp.ne.s32.totalorder %s46, %s48
    %p55 = scmp.eq.s32.totalorder %s17, 1
    %p56 = por %p54, %p55
    %p57 = scmp.ne.s32.totalorder %s48, %s49
    %p58 = scmp.eq.s32.totalorder %s17, 0
    %p59 = por %p57, %p58
    %p60 = scmp.ne.s32.totalorder %s48, %s49
    %p61 = scmp.eq.s32.totalorder %s18, 1
    %p62 = por %p60, %p61
    %p64 = scmp.ne.s32.totalorder %s49, %s63
    %p65 = scmp.eq.s32.totalorder %s18, 0
    %p66 = por %p64, %p65
    %s68 = sadd.s32 %s67, 1
    %p71 = scmp.eq.s32.totalorder %s12, 1
    %p72 = scmp.ne.s32.totalorder %s67, %s69
    %p73 = scmp.eq.s32.totalorder %s12, 0
    %p74 = por %p72, %p73
    %p75 = scmp.ne.s32.totalorder %s67, %s69
    %p76 = scmp.eq.s32.totalorder %s17, 1
    %p77 = por %p75, %p76
    %p78 = scmp.ne.s32.totalorder %s69, %s70
    %p79 = scmp.eq.s32.totalorder %s17, 0
    %p80 = por %p78, %p79
    %p81 = scmp.ne.s32.totalorder %s69, %s70
    %p82 = scmp.eq.s32.totalorder %s18, 1
    %p83 = por %p81, %p82
    %p85 = scmp.ne.s32.totalorder %s70, %s84
    %p86 = scmp.eq.s32.totalorder %s18, 0
    %p87 = por %p85, %p86
    %s88 = ssub.s32 %s12, %s19
    %p89 = scmp.eq.s32.totalorder %s88, 0
    %s91 = sadd.s32 %s90, 1
    %s92 = scalar_select %p89, %s90, %s91
    %p95 = pneg %p89
    %p96 = scmp.eq.s32.totalorder %s12, 1
    %p97 = por %p95, %p96
    %p98 = scmp.ne.s32.totalorder %s90, %s93
    %p99 = scmp.eq.s32.totalorder %s12, 0
    %p100 = por %p98, %p99
    %p101 = scmp.ne.s32.totalorder %s90, %s93
    %p102 = scmp.eq.s32.totalorder %s17, 1
    %p103 = por %p101, %p102
    %p104 = scmp.ne.s32.totalorder %s93, %s94
    %p105 = scmp.eq.s32.totalorder %s17, 0
    %p106 = por %p104, %p105
    %p107 = scmp.ne.s32.totalorder %s93, %s94
    %p108 = scmp.eq.s32.totalorder %s18, 1
    %p109 = por %p107, %p108
    %p111 = scmp.ne.s32.totalorder %s94, %s110
    %p112 = scmp.eq.s32.totalorder %s18, 0
    %p113 = por %p111, %p112
    %s115 = sadd.s32 %s114, 1
    %p118 = scmp.eq.s32.totalorder %s12, 1
    %p119 = scmp.ne.s32.totalorder %s114, %s116
    %p120 = scmp.eq.s32.totalorder %s12, 0
    %p121 = por %p119, %p120
    %p122 = scmp.ne.s32.totalorder %s114, %s116
    %p123 = scmp.eq.s32.totalorder %s17, 1
    %p124 = por %p122, %p123
    %p125 = scmp.ne.s32.totalorder %s116, %s117
    %p126 = scmp.eq.s32.totalorder %s17, 0
    %p127 = por %p125, %p126
    %p128 = scmp.ne.s32.totalorder %s116, %s117
    %p129 = scmp.eq.s32.totalorder %s18, 1
    %p130 = por %p128, %p129
    %p132 = scmp.ne.s32.totalorder %s117, %s131
    %p133 = scmp.eq.s32.totalorder %s18, 0
    %p134 = por %p132, %p133
    %s136 = sadd.s32 %s135, 1
    %p139 = scmp.eq.s32.totalorder %s12, 1
    %p140 = scmp.ne.s32.totalorder %s135, %s137
    %p141 = scmp.eq.s32.totalorder %s12, 0
    %p142 = por %p140, %p141
    %p143 = scmp.ne.s32.totalorder %s135, %s137
    %p144 = scmp.eq.s32.totalorder %s17, 1
    %p145 = por %p143, %p144
    %p146 = scmp.ne.s32.totalorder %s137, %s138
    %p147 = scmp.eq.s32.totalorder %s17, 0
    %p148 = por %p146, %p147
    %p149 = scmp.ne.s32.totalorder %s137, %s138
    %p150 = scmp.eq.s32.totalorder %s18, 1
    %p151 = por %p149, %p150
    %p153 = scmp.ne.s32.totalorder %s138, %s152
    %p154 = scmp.eq.s32.totalorder %s18, 0
    %p155 = por %p153, %p154
    %s156 = ssub.s32 %s12, %s19
    %p157 = scmp.eq.s32.totalorder %s156, 0
    %s159 = sadd.s32 %s158, 1
    %s160 = scalar_select %p157, %s158, %s159
    %p163 = pneg %p157
    %p164 = scmp.eq.s32.totalorder %s12, 1
    %p165 = por %p163, %p164
    %p166 = scmp.ne.s32.totalorder %s158, %s161
    %p167 = scmp.eq.s32.totalorder %s12, 0
    %p168 = por %p166, %p167
    %p169 = scmp.ne.s32.totalorder %s158, %s161
    %p170 = scmp.eq.s32.totalorder %s17, 1
    %p171 = por %p169, %p170
    %p172 = scmp.ne.s32.totalorder %s161, %s162
    %p173 = scmp.eq.s32.totalorder %s17, 0
    %p174 = por %p172, %p173
    %p175 = scmp.ne.s32.totalorder %s161, %s162
    %p176 = scmp.eq.s32.totalorder %s18, 1
    %p177 = por %p175, %p176
    %p179 = scmp.ne.s32.totalorder %s162, %s178
    %p180 = scmp.eq.s32.totalorder %s18, 0
    %p181 = por %p179, %p180
    %p182 = scmp.le.s32.totalorder 1, %s12
    %p183 = scmp.lt.s32.totalorder %s12, 3
    %p184 = pnand %p182, %p183
    %p185 = pneg %p184
    // Predicated region
    $region9: #{japanese_lipnet_forward.33} parent=5 // pred_check
      _
    $region10: #{japanese_lipnet_forward.33} parent=5 // pred_check_branch
      %187 = sbr.rel (%p184) target = $region12
    $region11: #{japanese_lipnet_forward.33} parent=5 // pred_region
      %s188 = ssub.s32 %s12, 1
      // Predicated region
      $region13: #{japanese_lipnet_forward.33} parent=11 // pred_check
        %p189 = pneg %p59
      $region14: #{japanese_lipnet_forward.33} parent=11 // pred_check_branch
        %191 = sbr.rel (%p189) target = $region16
      $region15: #{japanese_lipnet_forward.33} parent=11 // pred_region
        _
      $region16: #{japanese_lipnet_forward.33} parent=11 // pred_fallthru
        _
      // Predicated region
      $region17: #{japanese_lipnet_forward.33} parent=11 // pred_check
        %p192 = pneg %p80
      $region18: #{japanese_lipnet_forward.33} parent=11 // pred_check_branch
        %194 = sbr.rel (%p192) target = $region20
      $region19: #{japanese_lipnet_forward.33} parent=11 // pred_region
        _
      $region20: #{japanese_lipnet_forward.33} parent=11 // pred_fallthru
        _
      // Predicated region
      $region21: #{japanese_lipnet_forward.33} parent=11 // pred_check
        %p195 = pneg %p127
      $region22: #{japanese_lipnet_forward.33} parent=11 // pred_check_branch
        %197 = sbr.rel (%p195) target = $region24
      $region23: #{japanese_lipnet_forward.33} parent=11 // pred_region
        _
      $region24: #{japanese_lipnet_forward.33} parent=11 // pred_fallthru
        _
      // Predicated region
      $region25: #{japanese_lipnet_forward.33} parent=11 // pred_check
        %p198 = pneg %p148
      $region26: #{japanese_lipnet_forward.33} parent=11 // pred_check_branch
        %200 = sbr.rel (%p198) target = $region28
      $region27: #{japanese_lipnet_forward.33} parent=11 // pred_region
        _
      $region28: #{japanese_lipnet_forward.33} parent=11 // pred_fallthru
        _
    $region12: #{japanese_lipnet_forward.33} parent=5 // pred_fallthru
      _
    %p201 = scmp.lt.s32.totalorder %s12, 2
    // Predicated region
    $region29: #{japanese_lipnet_forward.33} parent=5 // pred_check
      %p202 = pneg %p201
    $region30: #{japanese_lipnet_forward.33} parent=5 // pred_check_branch
      %204 = sbr.rel (%p202) target = $region32
    $region31: #{japanese_lipnet_forward.33} parent=5 // pred_region
      // Predicated region
      $region33: #{japanese_lipnet_forward.33} parent=31 // pred_check
        %p205 = pneg %p32
      $region34: #{japanese_lipnet_forward.33} parent=31 // pred_check_branch
        %207 = sbr.rel (%p205) target = $region36
      $region35: #{japanese_lipnet_forward.33} parent=31 // pred_region
        %p208 = scmp.lt.s32.totalorder %s12, 1
        %s209 = scalar_select %p208, %s12, 1
        %s210 = smul.addr %s209, 4
        %s211 = smul.addr %s210, 8
        %s212 = scalar_lea.vmem %s0, %s211
      $region36: #{japanese_lipnet_forward.33} parent=31 // pred_fallthru
        _
      // Predicated region
      $region37: #{japanese_lipnet_forward.33} parent=31 // pred_check
        %p213 = pneg %p100
      $region38: #{japanese_lipnet_forward.33} parent=31 // pred_check_branch
        %215 = sbr.rel (%p213) target = $region40
      $region39: #{japanese_lipnet_forward.33} parent=31 // pred_region
        %p216 = scmp.lt.s32.totalorder %s12, 1
        %s217 = scalar_select %p216, %s12, 1
        %s218 = smul.addr %s217, 8
        %s219 = scalar_lea.vmem %s3, %s218
      $region40: #{japanese_lipnet_forward.33} parent=31 // pred_fallthru
        _
    $region32: #{japanese_lipnet_forward.33} parent=5 // pred_fallthru
      _
    %p220 = scmp.le.s32.totalorder 1, %s12
    %p221 = scmp.lt.s32.totalorder %s12, 3
    %p222 = pnand %p220, %p221
    %p223 = pneg %p222
    // Predicated region
    $region41: #{japanese_lipnet_forward.33} parent=5 // pred_check
      _
    $region42: #{japanese_lipnet_forward.33} parent=5 // pred_check_branch
      %225 = sbr.rel (%p222) target = $region44
    $region43: #{japanese_lipnet_forward.33} parent=5 // pred_region
      %s226 = ssub.s32 %s12, 1
      %p227 = scmp.lt.s32.totalorder %s17, 1
      %s228 = scalar_select %p227, %s17, 1
      %s229 = smul.addr %s228, 4
      %s230 = smul.addr %s229, 8
      %s231 = scalar_lea.vmem %s0, %s230
      %p232 = pneg %p38
      %p233 = pneg %p35
      %p234 = pneg %p59
      %p235 = pneg %p56
      %p236 = pneg %p80
      %p237 = pneg %p77
      %p238 = scmp.lt.s32.totalorder %s17, 1
      %s239 = scalar_select %p238, %s17, 1
      %s240 = smul.addr %s239, 8
      %s241 = scalar_lea.vmem %s3, %s240
      %p242 = pneg %p106
      %p243 = pneg %p103
      %p244 = pneg %p127
      %p245 = pneg %p124
      %p246 = pneg %p148
      %p247 = pneg %p145
      %p248 = pneg %p174
      %p249 = pneg %p171
      %p250 = scmp.lt.s32.totalorder %s17, 1
      %s251 = scalar_select %p250, %s17, 1
      %s252 = smul.addr %s251, 8
      %s253 = scalar_lea.vmem %s6, %s252
      %p254 = scmp.lt.s32.totalorder %s17, 1
      %s255 = scalar_select %p254, %s17, 1
      %s256 = smul.addr %s255, 4
      %s257 = smul.addr %s256, 8
      %s258 = scalar_lea.vmem %s0, %s257
      %p259 = scmp.lt.s32.totalorder %s17, 1
      %s260 = scalar_select %p259, %s17, 1
      %s261 = smul.addr %s260, 8
      %s262 = scalar_lea.vmem %s3, %s261
      %p263 = scmp.lt.s32.totalorder %s17, 1
      %s264 = scalar_select %p263, %s17, 1
      %s265 = smul.addr %s264, 8
      %s266 = scalar_lea.vmem %s6, %s265
      %v267 = vld [vmem:[%s258] sm:$0xff]
      %v268 = vld [vmem:[%s258 + $0x8] sm:$0xff]
      %v269 = vld [vmem:[%s258 + $0x10] sm:$0xff]
      %v270 = vld [vmem:[%s258 + $0x18] sm:$0xff]
      %v271 = vld [vmem:[%s1] sm:$0xff]
      %v272 = vld [vmem:[%s1 + $0x8] sm:$0xff]
      %v273 = vld [vmem:[%s1 + $0x10] sm:$0xff]
      %v274 = vld [vmem:[%s1 + $0x18] sm:$0xff]
      %v275 = vld [vmem:[%s1 + $0x20] sm:$0xff]
      %v276 = vld [vmem:[%s1 + $0x28] sm:$0xff]
      %v277 = vld [vmem:[%s1 + $0x30] sm:$0xff]
      %v278 = vld [vmem:[%s1 + $0x38] sm:$0xff]
      %v279 = vld [vmem:[%s1 + $0x40] sm:$0xff]
      %v280 = vld [vmem:[%s1 + $0x48] sm:$0xff]
      %v281 = vld [vmem:[%s1 + $0x50] sm:$0xff]
      %v282 = vld [vmem:[%s1 + $0x58] sm:$0xff]
      %v283 = vld [vmem:[%s1 + $0x60] sm:$0xff]
      %v284 = vld [vmem:[%s1 + $0x68] sm:$0xff]
      %v285 = vld [vmem:[%s1 + $0x70] sm:$0xff]
      %v286 = vld [vmem:[%s1 + $0x78] sm:$0xff]
      %v287 = vld [vmem:[%s1 + $0x80] sm:$0xff]
      %v288 = vld [vmem:[%s1 + $0x88] sm:$0xff]
      %v289 = vld [vmem:[%s1 + $0x90] sm:$0xff]
      %v290 = vld [vmem:[%s1 + $0x98] sm:$0xff]
      %v291 = vld [vmem:[%s1 + $0xa0] sm:$0xff]
      %v292 = vld [vmem:[%s1 + $0xa8] sm:$0xff]
      %v293 = vld [vmem:[%s1 + $0xb0] sm:$0xff]
      %v294 = vld [vmem:[%s1 + $0xb8] sm:$0xff]
      %v295 = vld [vmem:[%s1 + $0xc0] sm:$0xff]
      %v296 = vld [vmem:[%s1 + $0xc8] sm:$0xff]
      %v297 = vld [vmem:[%s1 + $0xd0] sm:$0xff]
      %v298 = vld [vmem:[%s1 + $0xd8] sm:$0xff]
      %v299 = vld [vmem:[%s1 + $0xe0] sm:$0xff]
      %v300 = vld [vmem:[%s1 + $0xe8] sm:$0xff]
      %v301 = vld [vmem:[%s1 + $0xf0] sm:$0xff]
      %v302 = vld [vmem:[%s1 + $0xf8] sm:$0xff]
      %v303 = vld [vmem:[%s1 + $0x100] sm:$0xff]
      %v304 = vld [vmem:[%s1 + $0x108] sm:$0xff]
      %v305 = vld [vmem:[%s1 + $0x110] sm:$0xff]
      %v306 = vld [vmem:[%s1 + $0x118] sm:$0xff]
      %v307 = vld [vmem:[%s1 + $0x120] sm:$0xff]
      %v308 = vld [vmem:[%s1 + $0x128] sm:$0xff]
      %v309 = vld [vmem:[%s1 + $0x130] sm:$0xff]
      %v310 = vld [vmem:[%s1 + $0x138] sm:$0xff]
      %v311 = vld [vmem:[%s1 + $0x140] sm:$0xff]
      %v312 = vld [vmem:[%s1 + $0x148] sm:$0xff]
      %v313 = vld [vmem:[%s1 + $0x150] sm:$0xff]
      %v314 = vld [vmem:[%s1 + $0x158] sm:$0xff]
      %v315 = vld [vmem:[%s1 + $0x160] sm:$0xff]
      %v316 = vld [vmem:[%s1 + $0x168] sm:$0xff]
      %v317 = vld [vmem:[%s1 + $0x170] sm:$0xff]
      %v318 = vld [vmem:[%s1 + $0x178] sm:$0xff]
      %v319 = vld [vmem:[%s1 + $0x180] sm:$0xff]
      %v320 = vld [vmem:[%s1 + $0x188] sm:$0xff]
      %v321 = vld [vmem:[%s1 + $0x190] sm:$0xff]
      %v322 = vld [vmem:[%s1 + $0x198] sm:$0xff]
      %v323 = vld [vmem:[%s1 + $0x1a0] sm:$0xff]
      %v324 = vld [vmem:[%s1 + $0x1a8] sm:$0xff]
      %v325 = vld [vmem:[%s1 + $0x1b0] sm:$0xff]
      %v326 = vld [vmem:[%s1 + $0x1b8] sm:$0xff]
      %v327 = vld [vmem:[%s1 + $0x1c0] sm:$0xff]
      %v328 = vld [vmem:[%s1 + $0x1c8] sm:$0xff]
      %v329 = vld [vmem:[%s1 + $0x1d0] sm:$0xff]
      %v330 = vld [vmem:[%s1 + $0x1d8] sm:$0xff]
      %v331 = vld [vmem:[%s1 + $0x1e0] sm:$0xff]
      %v332 = vld [vmem:[%s1 + $0x1e8] sm:$0xff]
      %v333 = vld [vmem:[%s1 + $0x1f0] sm:$0xff]
      %v334 = vld [vmem:[%s1 + $0x1f8] sm:$0xff]
      %v335 = vld [vmem:[%s2] sm:$0x1]
      %v337 = vlaneseq
      %v338 = vshrl.u32 %v337, 7
      %v339 = vsub.s32 0, %v338
      %v340 = vrot.slane %v335, %v339
      %342 = vmatprep.subr.mxu0 0.0
      %343 = vmatpush1.msra.mxu0 %v286
      %344 = vmatprep.subr.mxu0 0.0
      %345 = vmatpush1.msra.mxu0 %v285
      %346 = vmatprep.subr.mxu0 0.0
      %347 = vmatpush1.msra.mxu0 %v284
      %348 = vmatprep.subr.mxu0 0.0
      %349 = vmatpush1.msra.mxu0 %v283
      %350 = vmatprep.subr.mxu0 0.0
      %351 = vmatpush1.msra.mxu0 %v282
      %352 = vmatprep.subr.mxu0 0.0
      %353 = vmatpush1.msra.mxu0 %v281
      %354 = vmatprep.subr.mxu0 0.0
      %355 = vmatpush1.msra.mxu0 %v280
      %356 = vmatprep.subr.mxu0 0.0
      %357 = vmatpush1.msra.mxu0 %v279
      %358 = vmatprep.subr.mxu0 0.0
      %359 = vmatpush1.msra.mxu0 %v278
      %360 = vmatprep.subr.mxu0 0.0
      %361 = vmatpush1.msra.mxu0 %v277
      %362 = vmatprep.subr.mxu0 0.0
      %363 = vmatpush1.msra.mxu0 %v276
      %364 = vmatprep.subr.mxu0 0.0
      %365 = vmatpush1.msra.mxu0 %v275
      %366 = vmatprep.subr.mxu0 0.0
      %367 = vmatpush1.msra.mxu0 %v274
      %368 = vmatprep.subr.mxu0 0.0
      %369 = vmatpush1.msra.mxu0 %v273
      %370 = vmatprep.subr.mxu0 0.0
      %371 = vmatpush1.msra.mxu0 %v272
      %372 = vmatprep.subr.mxu0 0.0
      %373 = vmatpush1.msra.mxu0 %v271
      %374 = vmatprep.subr.mxu0 0.0
      %375 = vmatpush2.msra.mxu0 %v302
      %376 = vmatprep.subr.mxu0 0.0
      %377 = vmatpush2.msra.mxu0 %v301
      %378 = vmatprep.subr.mxu0 0.0
      %379 = vmatpush2.msra.mxu0 %v300
      %380 = vmatprep.subr.mxu0 0.0
      %381 = vmatpush2.msra.mxu0 %v299
      %382 = vmatprep.subr.mxu0 0.0
      %383 = vmatpush2.msra.mxu0 %v298
      %384 = vmatprep.subr.mxu0 0.0
      %385 = vmatpush2.msra.mxu0 %v297
      %386 = vmatprep.subr.mxu0 0.0
      %387 = vmatpush2.msra.mxu0 %v296
      %388 = vmatprep.subr.mxu0 0.0
      %389 = vmatpush2.msra.mxu0 %v295
      %390 = vmatprep.subr.mxu0 0.0
      %391 = vmatpush2.msra.mxu0 %v294
      %392 = vmatprep.subr.mxu0 0.0
      %393 = vmatpush2.msra.mxu0 %v293
      %394 = vmatprep.subr.mxu0 0.0
      %395 = vmatpush2.msra.mxu0 %v292
      %396 = vmatprep.subr.mxu0 0.0
      %397 = vmatpush2.msra.mxu0 %v291
      %398 = vmatprep.subr.mxu0 0.0
      %399 = vmatpush2.msra.mxu0 %v290
      %400 = vmatprep.subr.mxu0 0.0
      %401 = vmatpush2.msra.mxu0 %v289
      %402 = vmatprep.subr.mxu0 0.0
      %403 = vmatpush2.msra.mxu0 %v288
      %404 = vmatprep.subr.mxu0 0.0
      %405 = vmatpush2.msra.mxu0 %v287
      %406 = vmatprep.mubr.f32.mxu0 %v268
      %407 = vmatmul.mubr.f32.gmra.mxu0 %v267
      %v408 = vpop.f32.mrf.mxu0
      %v409 = vadd.f32 %v340, %v408
      %v410 = vpop.f32.mrf.mxu0
      %411 = vdwg.mxu0
      %412 = vmatprep.subr.mxu0 0.0
      %413 = vmatpush1.msra.mxu0 %v318
      %414 = vmatprep.subr.mxu0 0.0
      %415 = vmatpush1.msra.mxu0 %v317
      %416 = vmatprep.subr.mxu0 0.0
      %417 = vmatpush1.msra.mxu0 %v316
      %418 = vmatprep.subr.mxu0 0.0
      %419 = vmatpush1.msra.mxu0 %v315
      %420 = vmatprep.subr.mxu0 0.0
      %421 = vmatpush1.msra.mxu0 %v314
      %422 = vmatprep.subr.mxu0 0.0
      %423 = vmatpush1.msra.mxu0 %v313
      %424 = vmatprep.subr.mxu0 0.0
      %425 = vmatpush1.msra.mxu0 %v312
      %426 = vmatprep.subr.mxu0 0.0
      %427 = vmatpush1.msra.mxu0 %v311
      %428 = vmatprep.subr.mxu0 0.0
      %429 = vmatpush1.msra.mxu0 %v310
      %430 = vmatprep.subr.mxu0 0.0
      %431 = vmatpush1.msra.mxu0 %v309
      %432 = vmatprep.subr.mxu0 0.0
      %433 = vmatpush1.msra.mxu0 %v308
      %434 = vmatprep.subr.mxu0 0.0
      %435 = vmatpush1.msra.mxu0 %v307
      %436 = vmatprep.subr.mxu0 0.0
      %437 = vmatpush1.msra.mxu0 %v306
      %438 = vmatprep.subr.mxu0 0.0
      %439 = vmatpush1.msra.mxu0 %v305
      %440 = vmatprep.subr.mxu0 0.0
      %441 = vmatpush1.msra.mxu0 %v304
      %442 = vmatprep.subr.mxu0 0.0
      %443 = vmatpush1.msra.mxu0 %v303
      %444 = vmatprep.subr.mxu0 0.0
      %445 = vmatpush2.msra.mxu0 %v334
      %446 = vmatprep.subr.mxu0 0.0
      %447 = vmatpush2.msra.mxu0 %v333
      %448 = vmatprep.subr.mxu0 0.0
      %449 = vmatpush2.msra.mxu0 %v332
      %450 = vmatprep.subr.mxu0 0.0
      %451 = vmatpush2.msra.mxu0 %v331
      %452 = vmatprep.subr.mxu0 0.0
      %453 = vmatpush2.msra.mxu0 %v330
      %454 = vmatprep.subr.mxu0 0.0
      %455 = vmatpush2.msra.mxu0 %v329
      %456 = vmatprep.subr.mxu0 0.0
      %457 = vmatpush2.msra.mxu0 %v328
      %458 = vmatprep.subr.mxu0 0.0
      %459 = vmatpush2.msra.mxu0 %v327
      %460 = vmatprep.subr.mxu0 0.0
      %461 = vmatpush2.msra.mxu0 %v326
      %462 = vmatprep.subr.mxu0 0.0
      %463 = vmatpush2.msra.mxu0 %v325
      %464 = vmatprep.subr.mxu0 0.0
      %465 = vmatpush2.msra.mxu0 %v324
      %466 = vmatprep.subr.mxu0 0.0
      %467 = vmatpush2.msra.mxu0 %v323
      %468 = vmatprep.subr.mxu0 0.0
      %469 = vmatpush2.msra.mxu0 %v322
      %470 = vmatprep.subr.mxu0 0.0
      %471 = vmatpush2.msra.mxu0 %v321
      %472 = vmatprep.subr.mxu0 0.0
      %473 = vmatpush2.msra.mxu0 %v320
      %474 = vmatprep.subr.mxu0 0.0
      %475 = vmatpush2.msra.mxu0 %v319
      %476 = vmatprep.mubr.f32.mxu0 %v270
      %477 = vmatmul.mubr.f32.gmra.mxu0 %v269
      %v478 = vpop.f32.mrf.mxu0
      %v479 = vadd.f32 %v409, %v478
      %v480 = vpop.f32.mrf.mxu0
      %481 = vdwg.mxu0
      %v482 = vld [vmem:[%s262] sm:$0xff]
      %v483 = vmul.f32 %v479, 0.5
      %v484 = vadd.f32 %v482, %v483
      %v485 = vld [vmem:[%s4] sm:$0x1]
      %v486 = vld [vmem:[%s5] sm:$0x1]
      %487 = vadd.xlane.f32.xlu0 %v484
      %v488 = vpop.xlane.xlu0 %487
      %v489 = vrcp.pop 128.0
      %v490 = vmul.f32 %v488, %v489
      %v491 = vsub.f32 %v484, %v490
      %v492 = vmul.f32 %v491, %v491
      %493 = vadd.xlane.f32.xlu0 %v492
      %v494 = vpop.xlane.xlu0 %493
      %v495 = vmul.f32 %v494, %v489
      %v496 = vadd.f32 %v495, 1e-05
      %v497 = vrsqrt.pop %v496
      %v498 = vmul.f32 %v491, %v497
      %v500 = vlaneseq
      %v501 = vshrl.u32 %v500, 7
      %v502 = vsub.s32 0, %v501
      %v503 = vrot.slane %v485, %v502
      %v505 = vmul.f32 %v498, %v503
      %v507 = vlaneseq
      %v508 = vshrl.u32 %v507, 7
      %v509 = vsub.s32 0, %v508
      %v510 = vrot.slane %v486, %v509
      %v512 = vadd.f32 %v505, %v510
      %513 = vst [vmem:[%s266] sm:$0xff] %v512
      %p514 = scmp.lt.s32.totalorder %s17, 1
      %s515 = scalar_select %p514, %s17, 1
      %s516 = smul.addr %s515, 8
      %s517 = scalar_lea.vmem %s6, %s516
      // Predicated region
      $region45: #{japanese_lipnet_forward.33} parent=43 // pred_check
        %p518 = pneg %p171
      $region46: #{japanese_lipnet_forward.33} parent=43 // pred_check_branch
        %520 = sbr.rel (%p518) target = $region48
      $region47: #{japanese_lipnet_forward.33} parent=43 // pred_region
        _
      $region48: #{japanese_lipnet_forward.33} parent=43 // pred_fallthru
        _
    $region44: #{japanese_lipnet_forward.33} parent=5 // pred_fallthru
      _
    %p521 = scmp.le.s32.totalorder 2, %s12
    // Predicated region
    $region49: #{japanese_lipnet_forward.33} parent=5 // pred_check
      %p522 = pneg %p521
    $region50: #{japanese_lipnet_forward.33} parent=5 // pred_check_branch
      %524 = sbr.rel (%p522) target = $region52
    $region51: #{japanese_lipnet_forward.33} parent=5 // pred_region
      %s525 = ssub.s32 %s12, 2
      // Predicated region
      $region53: #{japanese_lipnet_forward.33} parent=51 // pred_check
        %p526 = pneg %p177
      $region54: #{japanese_lipnet_forward.33} parent=51 // pred_check_branch
        %528 = sbr.rel (%p526) target = $region56
      $region55: #{japanese_lipnet_forward.33} parent=51 // pred_region
        %p529 = scmp.lt.s32.totalorder %s18, 1
        %s530 = scalar_select %p529, %s18, 1
        %s531 = smul.addr %s530, 8
        %s532 = scalar_lea.vmem %s6, %s531
      $region56: #{japanese_lipnet_forward.33} parent=51 // pred_fallthru
        _
    $region52: #{japanese_lipnet_forward.33} parent=5 // pred_fallthru
      _
  $region6: #{japanese_lipnet_forward.33} parent=0 // loop_footer
    %s16 = sadd.s32 1, %s12
  $region7: #{japanese_lipnet_forward.33} parent=0 // loop_footer_branch
    %11 = sbr.rel target = $region3
  $region8: #{japanese_lipnet_forward.33} parent=0 // loop_exit
    _

// kernel: japanese_lipnet_forward.34
$region0: #{japanese_lipnet_forward.34}
  #allocation0 [shape = 'u32[]', space=smem, size = 0x4, offset = 0x4, fixed_abs, tag = 'smem constant byte address 0x4 - core index']
  #allocation1 [shape = 'u32[144,128]{1,0:T(1,128)}', space=vmem, size = 0x12000, scoped, tag = 'internal scratch']
  %s0 = inlined_call_operand.vmem [shape: f32[16,128], index: 0, kind: input, shape index: {}]
  %s1 = inlined_call_operand.hbm [shape: f32[1,128], index: 1, kind: input, shape index: {}]
  %s2 = inlined_call_operand.hbm [shape: f32[1,128], index: 2, kind: input, shape index: {}]
  %s3 = inlined_call_operand.vmem [shape: f32[128,512], index: 3, kind: input, shape index: {}]
  %s4 = inlined_call_operand.vmem [shape: f32[1,512], index: 4, kind: input, shape index: {}]
  %s5 = inlined_call_operand.vmem [shape: f32[16,512], index: 5, kind: output, shape index: {}]
  %s6 = sld [smem:[#allocation0]]
  $region61: #{japanese_lipnet_forward.34} parent=0
    _
  %s8 = ssub.s32 1, %s6
  %s9 = scalar_select 0, %s8, %s6
  $region1: #{japanese_lipnet_forward.34} parent=0
    #allocation2 [shape = 'u8[512]{0}', space=vmem, size = 0x400, scoped, tag = 'input window, operand 1, single buffered']
    #allocation3 [shape = 's32[2]{0}', space=sflag, size = 0x8, scoped, tag = 'scoped memory for japanese_lipnet_forward.34']
    #allocation4 [shape = 'u8[512]{0}', space=vmem, size = 0x400, scoped, tag = 'input window, operand 2, single buffered']
    #allocation5 [shape = 's32[1]{0}', space=sflag, size = 0x4, scoped, tag = 'scoped memory for japanese_lipnet_forward.34']
    %10 = vsyncpa [#allocation3], 0
    %11 = vsyncpa [#allocation5], 0
    loop: start=0, step=1, limit=4
    $region2: #{japanese_lipnet_forward.34} parent=1 // loop_pre_header
      _
    $region3: #{japanese_lipnet_forward.34} parent=1 // loop_header
      %s13 = sphi 0, %s17
      %p14 = scmp.ge.s32.totalorder %s13, 4
      %s23 = sphi 0, %s25
      %s26 = sphi 0, %s23
      %s27 = sphi 0, %s26
      %s43 = sphi 0, %s27
      %s47 = sphi 0, %s47
      %s49 = sphi 0, %s47
      %s50 = sphi 0, %s49
      %s64 = sphi 0, %s50
      %s68 = sphi 0, %s68
      %s70 = sphi 0, %s68
      %s71 = sphi 0, %s70
      %s85 = sphi 0, %s71
      %s89 = sphi 0, %s89
      %s91 = sphi 0, %s89
      %s92 = sphi 0, %s91
      %s106 = sphi 0, %s92
      %s110 = sphi 0, %s110
      %s112 = sphi 0, %s110
      %s113 = sphi 0, %s112
      %s127 = sphi 0, %s113
      %s133 = sphi 0, %s135
      %s136 = sphi 0, %s133
      %s137 = sphi 0, %s136
      %s153 = sphi 0, %s137
    $region4: #{japanese_lipnet_forward.34} parent=1 // loop_header_branch
      %16 = sbr.rel (%p14) target = $region8
    $region5: #{japanese_lipnet_forward.34} parent=1 // loop_body
      %s18 = ssub.s32 %s13, 1
      %s19 = ssub.s32 %s13, 2
      %s20 = sadd.s32 %s13, 1
      %s21 = ssub.s32 %s13, %s20
      %p22 = scmp.eq.s32.totalorder %s21, 0
      %s24 = sadd.s32 %s23, 1
      %s25 = scalar_select %p22, %s23, %s24
      %p28 = pneg %p22
      %p29 = scmp.eq.s32.totalorder %s13, 1
      %p30 = por %p28, %p29
      %p31 = scmp.ne.s32.totalorder %s23, %s26
      %p32 = scmp.eq.s32.totalorder %s13, 0
      %p33 = por %p31, %p32
      %p34 = scmp.ne.s32.totalorder %s23, %s26
      %p35 = scmp.eq.s32.totalorder %s18, 1
      %p36 = por %p34, %p35
      %p37 = scmp.ne.s32.totalorder %s26, %s27
      %p38 = scmp.eq.s32.totalorder %s18, 0
      %p39 = por %p37, %p38
      %p40 = scmp.ne.s32.totalorder %s26, %s27
      %p41 = scmp.eq.s32.totalorder %s19, 1
      %p42 = por %p40, %p41
      %p44 = scmp.ne.s32.totalorder %s27, %s43
      %p45 = scmp.eq.s32.totalorder %s19, 0
      %p46 = por %p44, %p45
      %s48 = sadd.s32 %s47, 1
      %p51 = scmp.eq.s32.totalorder %s13, 1
      %p52 = scmp.ne.s32.totalorder %s47, %s49
      %p53 = scmp.eq.s32.totalorder %s13, 0
      %p54 = por %p52, %p53
      %p55 = scmp.ne.s32.totalorder %s47, %s49
      %p56 = scmp.eq.s32.totalorder %s18, 1
      %p57 = por %p55, %p56
      %p58 = scmp.ne.s32.totalorder %s49, %s50
      %p59 = scmp.eq.s32.totalorder %s18, 0
      %p60 = por %p58, %p59
      %p61 = scmp.ne.s32.totalorder %s49, %s50
      %p62 = scmp.eq.s32.totalorder %s19, 1
      %p63 = por %p61, %p62
      %p65 = scmp.ne.s32.totalorder %s50, %s64
      %p66 = scmp.eq.s32.totalorder %s19, 0
      %p67 = por %p65, %p66
      %s69 = sadd.s32 %s68, 1
      %p72 = scmp.eq.s32.totalorder %s13, 1
      %p73 = scmp.ne.s32.totalorder %s68, %s70
      %p74 = scmp.eq.s32.totalorder %s13, 0
      %p75 = por %p73, %p74
      %p76 = scmp.ne.s32.totalorder %s68, %s70
      %p77 = scmp.eq.s32.totalorder %s18, 1
      %p78 = por %p76, %p77
      %p79 = scmp.ne.s32.totalorder %s70, %s71
      %p80 = scmp.eq.s32.totalorder %s18, 0
      %p81 = por %p79, %p80
      %p82 = scmp.ne.s32.totalorder %s70, %s71
      %p83 = scmp.eq.s32.totalorder %s19, 1
      %p84 = por %p82, %p83
      %p86 = scmp.ne.s32.totalorder %s71, %s85
      %p87 = scmp.eq.s32.totalorder %s19, 0
      %p88 = por %p86, %p87
      %s90 = sadd.s32 %s89, 1
      %p93 = scmp.eq.s32.totalorder %s13, 1
      %p94 = scmp.ne.s32.totalorder %s89, %s91
      %p95 = scmp.eq.s32.totalorder %s13, 0
      %p96 = por %p94, %p95
      %p97 = scmp.ne.s32.totalorder %s89, %s91
      %p98 = scmp.eq.s32.totalorder %s18, 1
      %p99 = por %p97, %p98
      %p100 = scmp.ne.s32.totalorder %s91, %s92
      %p101 = scmp.eq.s32.totalorder %s18, 0
      %p102 = por %p100, %p101
      %p103 = scmp.ne.s32.totalorder %s91, %s92
      %p104 = scmp.eq.s32.totalorder %s19, 1
      %p105 = por %p103, %p104
      %p107 = scmp.ne.s32.totalorder %s92, %s106
      %p108 = scmp.eq.s32.totalorder %s19, 0
      %p109 = por %p107, %p108
      %s111 = sadd.s32 %s110, 1
      %p114 = scmp.eq.s32.totalorder %s13, 1
      %p115 = scmp.ne.s32.totalorder %s110, %s112
      %p116 = scmp.eq.s32.totalorder %s13, 0
      %p117 = por %p115, %p116
      %p118 = scmp.ne.s32.totalorder %s110, %s112
      %p119 = scmp.eq.s32.totalorder %s18, 1
      %p120 = por %p118, %p119
      %p121 = scmp.ne.s32.totalorder %s112, %s113
      %p122 = scmp.eq.s32.totalorder %s18, 0
      %p123 = por %p121, %p122
      %p124 = scmp.ne.s32.totalorder %s112, %s113
      %p125 = scmp.eq.s32.totalorder %s19, 1
      %p126 = por %p124, %p125
      %p128 = scmp.ne.s32.totalorder %s113, %s127
      %p129 = scmp.eq.s32.totalorder %s19, 0
      %p130 = por %p128, %p129
      %s131 = ssub.s32 %s13, %s20
      %p132 = scmp.eq.s32.totalorder %s131, 0
      %s134 = sadd.s32 %s133, 1
      %s135 = scalar_select %p132, %s133, %s134
      %p138 = pneg %p132
      %p139 = scmp.eq.s32.totalorder %s13, 1
      %p140 = por %p138, %p139
      %p141 = scmp.ne.s32.totalorder %s133, %s136
      %p142 = scmp.eq.s32.totalorder %s13, 0
      %p143 = por %p141, %p142
      %p144 = scmp.ne.s32.totalorder %s133, %s136
      %p145 = scmp.eq.s32.totalorder %s18, 1
      %p146 = por %p144, %p145
      %p147 = scmp.ne.s32.totalorder %s136, %s137
      %p148 = scmp.eq.s32.totalorder %s18, 0
      %p149 = por %p147, %p148
      %p150 = scmp.ne.s32.totalorder %s136, %s137
      %p151 = scmp.eq.s32.totalorder %s19, 1
      %p152 = por %p150, %p151
      %p154 = scmp.ne.s32.totalorder %s137, %s153
      %p155 = scmp.eq.s32.totalorder %s19, 0
      %p156 = por %p154, %p155
      %p157 = scmp.le.s32.totalorder 1, %s13
      %p158 = scmp.lt.s32.totalorder %s13, 3
      %p159 = pnand %p157, %p158
      %p160 = pneg %p159
      // Predicated region
      $region9: #{japanese_lipnet_forward.34} parent=5 // pred_check
        _
      $region10: #{japanese_lipnet_forward.34} parent=5 // pred_check_branch
        %162 = sbr.rel (%p159) target = $region12
      $region11: #{japanese_lipnet_forward.34} parent=5 // pred_region
        %s163 = ssub.s32 %s13, 1
        // Predicated region
        $region13: #{japanese_lipnet_forward.34} parent=11 // pred_check
          %p164 = pneg %p60
        $region14: #{japanese_lipnet_forward.34} parent=11 // pred_check_branch
          %166 = sbr.rel (%p164) target = $region16
        $region15: #{japanese_lipnet_forward.34} parent=11 // pred_region
          %s168 = ssub.s32 16, 16
          %169 = vsyncadd [#allocation3], %s168
          %s171 = sshll.u32 [#allocation2], 4
          %s172 = int_to_ptr.vmem [resolvable:$true] %s171
          %174 = dma.hbm_to_vmem [thread:$0]  %s1, 16, %s172, [#allocation3]
        $region16: #{japanese_lipnet_forward.34} parent=11 // pred_fallthru
          _
        // Predicated region
        $region17: #{japanese_lipnet_forward.34} parent=11 // pred_check
          %p175 = pneg %p81
        $region18: #{japanese_lipnet_forward.34} parent=11 // pred_check_branch
          %177 = sbr.rel (%p175) target = $region20
        $region19: #{japanese_lipnet_forward.34} parent=11 // pred_region
          %s179 = ssub.s32 16, 16
          %180 = vsyncadd [#allocation5], %s179
          %s182 = sshll.u32 [#allocation4], 4
          %s183 = int_to_ptr.vmem [resolvable:$true] %s182
          %185 = dma.hbm_to_vmem [thread:$0]  %s2, 16, %s183, [#allocation5]
        $region20: #{japanese_lipnet_forward.34} parent=11 // pred_fallthru
          _
        // Predicated region
        $region21: #{japanese_lipnet_forward.34} parent=11 // pred_check
          %p186 = pneg %p102
        $region22: #{japanese_lipnet_forward.34} parent=11 // pred_check_branch
          %188 = sbr.rel (%p186) target = $region24
        $region23: #{japanese_lipnet_forward.34} parent=11 // pred_region
          _
        $region24: #{japanese_lipnet_forward.34} parent=11 // pred_fallthru
          _
        // Predicated region
        $region25: #{japanese_lipnet_forward.34} parent=11 // pred_check
          %p189 = pneg %p123
        $region26: #{japanese_lipnet_forward.34} parent=11 // pred_check_branch
          %191 = sbr.rel (%p189) target = $region28
        $region27: #{japanese_lipnet_forward.34} parent=11 // pred_region
          _
        $region28: #{japanese_lipnet_forward.34} parent=11 // pred_fallthru
          _
      $region12: #{japanese_lipnet_forward.34} parent=5 // pred_fallthru
        _
      %p192 = scmp.lt.s32.totalorder %s13, 2
      // Predicated region
      $region29: #{japanese_lipnet_forward.34} parent=5 // pred_check
        %p193 = pneg %p192
      $region30: #{japanese_lipnet_forward.34} parent=5 // pred_check_branch
        %195 = sbr.rel (%p193) target = $region32
      $region31: #{japanese_lipnet_forward.34} parent=5 // pred_region
        // Predicated region
        $region33: #{japanese_lipnet_forward.34} parent=31 // pred_check
          %p196 = pneg %p33
        $region34: #{japanese_lipnet_forward.34} parent=31 // pred_check_branch
          %198 = sbr.rel (%p196) target = $region36
        $region35: #{japanese_lipnet_forward.34} parent=31 // pred_region
          %p199 = scmp.lt.s32.totalorder %s13, 1
          %s200 = scalar_select %p199, %s13, 1
          %s201 = smul.addr %s200, 8
          %s202 = scalar_lea.vmem %s0, %s201
        $region36: #{japanese_lipnet_forward.34} parent=31 // pred_fallthru
          _
      $region32: #{japanese_lipnet_forward.34} parent=5 // pred_fallthru
        _
      %p203 = scmp.le.s32.totalorder 1, %s13
      %p204 = scmp.lt.s32.totalorder %s13, 3
      %p205 = pnand %p203, %p204
      %p206 = pneg %p205
      // Predicated region
      $region37: #{japanese_lipnet_forward.34} parent=5 // pred_check
        _
      $region38: #{japanese_lipnet_forward.34} parent=5 // pred_check_branch
        %208 = sbr.rel (%p205) target = $region40
      $region39: #{japanese_lipnet_forward.34} parent=5 // pred_region
        %s209 = ssub.s32 %s13, 1
        // Predicated region
        $region41: #{japanese_lipnet_forward.34} parent=39 // pred_check
          %p210 = pneg %p60
        $region42: #{japanese_lipnet_forward.34} parent=39 // pred_check_branch
          %212 = sbr.rel (%p210) target = $region44
        $region43: #{japanese_lipnet_forward.34} parent=39 // pred_region
          %213 = dma.done [#allocation3], 16
        $region44: #{japanese_lipnet_forward.34} parent=39 // pred_fallthru
          _
        // Predicated region
        $region45: #{japanese_lipnet_forward.34} parent=39 // pred_check
          %p214 = pneg %p81
        $region46: #{japanese_lipnet_forward.34} parent=39 // pred_check_branch
          %216 = sbr.rel (%p214) target = $region48
        $region47: #{japanese_lipnet_forward.34} parent=39 // pred_region
          %217 = dma.done [#allocation5], 16
        $region48: #{japanese_lipnet_forward.34} parent=39 // pred_fallthru
          _
        %p218 = scmp.lt.s32.totalorder %s18, 1
        %s219 = scalar_select %p218, %s18, 1
        %s220 = smul.addr %s219, 8
        %s221 = scalar_lea.vmem %s0, %s220
        %p222 = pneg %p39
        %p223 = pneg %p36
        %p224 = pneg %p60
        %p225 = pneg %p57
        %p226 = pneg %p81
        %p227 = pneg %p78
        %p228 = pneg %p102
        %p229 = pneg %p99
        %p230 = pneg %p123
        %p231 = pneg %p120
        %p232 = pneg %p149
        %p233 = pneg %p146
        %p234 = scmp.lt.s32.totalorder %s18, 1
        %s235 = scalar_select %p234, %s18, 1
        %s236 = smul.addr %s235, 4
        %s237 = smul.addr %s236, 8
        %s238 = scalar_lea.vmem %s5, %s237
        %p239 = scmp.lt.s32.totalorder %s18, 1
        %s240 = scalar_select %p239, %s18, 1
        %s241 = smul.addr %s240, 8
        %s242 = scalar_lea.vmem %s0, %s241
        %p243 = scmp.lt.s32.totalorder %s18, 1
        %s244 = scalar_select %p243, %s18, 1
        %s245 = smul.addr %s244, 4
        %s246 = smul.addr %s245, 8
        %s247 = scalar_lea.vmem %s5, %s246
        %v248 = vld [vmem:[%s242] sm:$0xff]
        %v249 = vld [vmem:[#allocation2] sm:$0x1]
        %v250 = vld [vmem:[#allocation4] sm:$0x1]
        %251 = vadd.xlane.f32.xlu0 %v248
        %v252 = vpop.xlane.xlu0 %251
        %v253 = vrcp.pop 128.0
        %v254 = vmul.f32 %v252, %v253
        %v255 = vsub.f32 %v248, %v254
        %v256 = vmul.f32 %v255, %v255
        %257 = vadd.xlane.f32.xlu0 %v256
        %v258 = vpop.xlane.xlu0 %257
        %v259 = vmul.f32 %v258, %v253
        %v260 = vadd.f32 %v259, 1e-05
        %v261 = vrsqrt.pop %v260
        %v262 = vmul.f32 %v255, %v261
        %v264 = vlaneseq
        %v265 = vshrl.u32 %v264, 7
        %v266 = vsub.s32 0, %v265
        %v267 = vrot.slane %v249, %v266
        %v269 = vmul.f32 %v262, %v267
        %v271 = vlaneseq
        %v272 = vshrl.u32 %v271, 7
        %v273 = vsub.s32 0, %v272
        %v274 = vrot.slane %v250, %v273
        %v276 = vadd.f32 %v269, %v274
        %v277 = vld [vmem:[%s3] sm:$0xff]
        %v278 = vld [vmem:[%s3 + $0x8] sm:$0xff]
        %v279 = vld [vmem:[%s3 + $0x10] sm:$0xff]
        %v280 = vld [vmem:[%s3 + $0x18] sm:$0xff]
        %v281 = vld [vmem:[%s3 + $0x20] sm:$0xff]
        %v282 = vld [vmem:[%s3 + $0x28] sm:$0xff]
        %v283 = vld [vmem:[%s3 + $0x30] sm:$0xff]
        %v284 = vld [vmem:[%s3 + $0x38] sm:$0xff]
        %v285 = vld [vmem:[%s3 + $0x40] sm:$0xff]
        %v286 = vld [vmem:[%s3 + $0x48] sm:$0xff]
        %v287 = vld [vmem:[%s3 + $0x50] sm:$0xff]
        %v288 = vld [vmem:[%s3 + $0x58] sm:$0xff]
        %v289 = vld [vmem:[%s3 + $0x60] sm:$0xff]
        %v290 = vld [vmem:[%s3 + $0x68] sm:$0xff]
        %v291 = vld [vmem:[%s3 + $0x70] sm:$0xff]
        %v292 = vld [vmem:[%s3 + $0x78] sm:$0xff]
        %v293 = vld [vmem:[%s3 + $0x80] sm:$0xff]
        %v294 = vld [vmem:[%s3 + $0x88] sm:$0xff]
        %v295 = vld [vmem:[%s3 + $0x90] sm:$0xff]
        %v296 = vld [vmem:[%s3 + $0x98] sm:$0xff]
        %v297 = vld [vmem:[%s3 + $0xa0] sm:$0xff]
        %v298 = vld [vmem:[%s3 + $0xa8] sm:$0xff]
        %v299 = vld [vmem:[%s3 + $0xb0] sm:$0xff]
        %v300 = vld [vmem:[%s3 + $0xb8] sm:$0xff]
        %v301 = vld [vmem:[%s3 + $0xc0] sm:$0xff]
        %v302 = vld [vmem:[%s3 + $0xc8] sm:$0xff]
        %v303 = vld [vmem:[%s3 + $0xd0] sm:$0xff]
        %v304 = vld [vmem:[%s3 + $0xd8] sm:$0xff]
        %v305 = vld [vmem:[%s3 + $0xe0] sm:$0xff]
        %v306 = vld [vmem:[%s3 + $0xe8] sm:$0xff]
        %v307 = vld [vmem:[%s3 + $0xf0] sm:$0xff]
        %v308 = vld [vmem:[%s3 + $0xf8] sm:$0xff]
        %v309 = vld [vmem:[%s3 + $0x100] sm:$0xff]
        %v310 = vld [vmem:[%s3 + $0x108] sm:$0xff]
        %v311 = vld [vmem:[%s3 + $0x110] sm:$0xff]
        %v312 = vld [vmem:[%s3 + $0x118] sm:$0xff]
        %v313 = vld [vmem:[%s3 + $0x120] sm:$0xff]
        %v314 = vld [vmem:[%s3 + $0x128] sm:$0xff]
        %v315 = vld [vmem:[%s3 + $0x130] sm:$0xff]
        %v316 = vld [vmem:[%s3 + $0x138] sm:$0xff]
        %v317 = vld [vmem:[%s3 + $0x140] sm:$0xff]
        %v318 = vld [vmem:[%s3 + $0x148] sm:$0xff]
        %v319 = vld [vmem:[%s3 + $0x150] sm:$0xff]
        %v320 = vld [vmem:[%s3 + $0x158] sm:$0xff]
        %v321 = vld [vmem:[%s3 + $0x160] sm:$0xff]
        %v322 = vld [vmem:[%s3 + $0x168] sm:$0xff]
        %v323 = vld [vmem:[%s3 + $0x170] sm:$0xff]
        %v324 = vld [vmem:[%s3 + $0x178] sm:$0xff]
        %v325 = vld [vmem:[%s3 + $0x180] sm:$0xff]
        %v326 = vld [vmem:[%s3 + $0x188] sm:$0xff]
        %v327 = vld [vmem:[%s3 + $0x190] sm:$0xff]
        %v328 = vld [vmem:[%s3 + $0x198] sm:$0xff]
        %v329 = vld [vmem:[%s3 + $0x1a0] sm:$0xff]
        %v330 = vld [vmem:[%s3 + $0x1a8] sm:$0xff]
        %v331 = vld [vmem:[%s3 + $0x1b0] sm:$0xff]
        %v332 = vld [vmem:[%s3 + $0x1b8] sm:$0xff]
        %v333 = vld [vmem:[%s3 + $0x1c0] sm:$0xff]
        %v334 = vld [vmem:[%s3 + $0x1c8] sm:$0xff]
        %v335 = vld [vmem:[%s3 + $0x1d0] sm:$0xff]
        %v336 = vld [vmem:[%s3 + $0x1d8] sm:$0xff]
        %v337 = vld [vmem:[%s3 + $0x1e0] sm:$0xff]
        %v338 = vld [vmem:[%s3 + $0x1e8] sm:$0xff]
        %v339 = vld [vmem:[%s3 + $0x1f0] sm:$0xff]
        %v340 = vld [vmem:[%s3 + $0x1f8] sm:$0xff]
        %v341 = vld [vmem:[%s4] sm:$0xf]
        %v343 = vlaneseq
        %v344 = vshrl.u32 %v343, 7
        %v345 = vsub.s32 0, %v344
        %v346 = vrot.slane %v341, %v345
        %v347 = vlaneseq
        %v348 = vshrl.u32 %v347, 7
        %v349 = vsub.s32 1, %v348
        %v350 = vrot.slane %v341, %v349
        %v351 = vlaneseq
        %v352 = vshrl.u32 %v351, 7
        %v353 = vsub.s32 2, %v352
        %v354 = vrot.slane %v341, %v353
        %v355 = vlaneseq
        %v356 = vshrl.u32 %v355, 7
        %v357 = vsub.s32 3, %v356
        %v358 = vrot.slane %v341, %v357
        %363 = vmatprep.subr.mxu0 %v338
        %364 = vmatpush1.msra.mxu0 %v337
        %365 = vmatprep.subr.mxu0 %v334
        %366 = vmatpush1.msra.mxu0 %v333
        %367 = vmatprep.subr.mxu0 %v330
        %368 = vmatpush1.msra.mxu0 %v329
        %369 = vmatprep.subr.mxu0 %v326
        %370 = vmatpush1.msra.mxu0 %v325
        %371 = vmatprep.subr.mxu0 %v322
        %372 = vmatpush1.msra.mxu0 %v321
        %373 = vmatprep.subr.mxu0 %v318
        %374 = vmatpush1.msra.mxu0 %v317
        %375 = vmatprep.subr.mxu0 %v314
        %376 = vmatpush1.msra.mxu0 %v313
        %377 = vmatprep.subr.mxu0 %v310
        %378 = vmatpush1.msra.mxu0 %v309
        %379 = vmatprep.subr.mxu0 %v306
        %380 = vmatpush1.msra.mxu0 %v305
        %381 = vmatprep.subr.mxu0 %v302
        %382 = vmatpush1.msra.mxu0 %v301
        %383 = vmatprep.subr.mxu0 %v298
        %384 = vmatpush1.msra.mxu0 %v297
        %385 = vmatprep.subr.mxu0 %v294
        %386 = vmatpush1.msra.mxu0 %v293
        %387 = vmatprep.subr.mxu0 %v290
        %388 = vmatpush1.msra.mxu0 %v289
        %389 = vmatprep.subr.mxu0 %v286
        %390 = vmatpush1.msra.mxu0 %v285
        %391 = vmatprep.subr.mxu0 %v282
        %392 = vmatpush1.msra.mxu0 %v281
        %393 = vmatprep.subr.mxu0 %v278
        %394 = vmatpush1.msra.mxu0 %v277
        %395 = vmatprep.subr.mxu0 0.0
        %396 = vmatpush2.msra.mxu0 0.0
        %397 = vmatprep.subr.mxu0 0.0
        %398 = vmatpush2.msra.mxu0 0.0
        %399 = vmatprep.subr.mxu0 0.0
        %400 = vmatpush2.msra.mxu0 0.0
        %401 = vmatprep.subr.mxu0 0.0
        %402 = vmatpush2.msra.mxu0 0.0
        %403 = vmatprep.subr.mxu0 0.0
        %404 = vmatpush2.msra.mxu0 0.0
        %405 = vmatprep.subr.mxu0 0.0
        %406 = vmatpush2.msra.mxu0 0.0
        %407 = vmatprep.subr.mxu0 0.0
        %408 = vmatpush2.msra.mxu0 0.0
        %409 = vmatprep.subr.mxu0 0.0
        %410 = vmatpush2.msra.mxu0 0.0
        %411 = vmatprep.subr.mxu0 0.0
        %412 = vmatpush2.msra.mxu0 0.0
        %413 = vmatprep.subr.mxu0 0.0
        %414 = vmatpush2.msra.mxu0 0.0
        %415 = vmatprep.subr.mxu0 0.0
        %416 = vmatpush2.msra.mxu0 0.0
        %417 = vmatprep.subr.mxu0 0.0
        %418 = vmatpush2.msra.mxu0 0.0
        %419 = vmatprep.subr.mxu0 0.0
        %420 = vmatpush2.msra.mxu0 0.0
        %421 = vmatprep.subr.mxu0 0.0
        %422 = vmatpush2.msra.mxu0 0.0
        %423 = vmatprep.subr.mxu0 0.0
        %424 = vmatpush2.msra.mxu0 0.0
        %425 = vmatprep.subr.mxu0 0.0
        %426 = vmatpush2.msra.mxu0 0.0
        %427 = vmatprep.mubr.f32.mxu0 0.0
        %428 = vmatmul.mubr.f32.gmra.mxu0 %v276
        %v429 = vpop.f32.mrf.mxu0
        %v430 = vadd.f32 %v346, %v429
        %v431 = vpop.f32.mrf.mxu0
        %v432 = vadd.f32 %v350, %v431
        %433 = vdwg.mxu0
        %434 = vmatprep.subr.mxu0 %v340
        %435 = vmatpush1.msra.mxu0 %v339
        %436 = vmatprep.subr.mxu0 %v336
        %437 = vmatpush1.msra.mxu0 %v335
        %438 = vmatprep.subr.mxu0 %v332
        %439 = vmatpush1.msra.mxu0 %v331
        %440 = vmatprep.subr.mxu0 %v328
        %441 = vmatpush1.msra.mxu0 %v327
        %442 = vmatprep.subr.mxu0 %v324
        %443 = vmatpush1.msra.mxu0 %v323
        %444 = vmatprep.subr.mxu0 %v320
        %445 = vmatpush1.msra.mxu0 %v319
        %446 = vmatprep.subr.mxu0 %v316
        %447 = vmatpush1.msra.mxu0 %v315
        %448 = vmatprep.subr.mxu0 %v312
        %449 = vmatpush1.msra.mxu0 %v311
        %450 = vmatprep.subr.mxu0 %v308
        %451 = vmatpush1.msra.mxu0 %v307
        %452 = vmatprep.subr.mxu0 %v304
        %453 = vmatpush1.msra.mxu0 %v303
        %454 = vmatprep.subr.mxu0 %v300
        %455 = vmatpush1.msra.mxu0 %v299
        %456 = vmatprep.subr.mxu0 %v296
        %457 = vmatpush1.msra.mxu0 %v295
        %458 = vmatprep.subr.mxu0 %v292
        %459 = vmatpush1.msra.mxu0 %v291
        %460 = vmatprep.subr.mxu0 %v288
        %461 = vmatpush1.msra.mxu0 %v287
        %462 = vmatprep.subr.mxu0 %v284
        %463 = vmatpush1.msra.mxu0 %v283
        %464 = vmatprep.subr.mxu0 %v280
        %465 = vmatpush1.msra.mxu0 %v279
        %466 = vmatprep.subr.mxu0 0.0
        %467 = vmatpush2.msra.mxu0 0.0
        %468 = vmatprep.subr.mxu0 0.0
        %469 = vmatpush2.msra.mxu0 0.0
        %470 = vmatprep.subr.mxu0 0.0
        %471 = vmatpush2.msra.mxu0 0.0
        %472 = vmatprep.subr.mxu0 0.0
        %473 = vmatpush2.msra.mxu0 0.0
        %474 = vmatprep.subr.mxu0 0.0
        %475 = vmatpush2.msra.mxu0 0.0
        %476 = vmatprep.subr.mxu0 0.0
        %477 = vmatpush2.msra.mxu0 0.0
        %478 = vmatprep.subr.mxu0 0.0
        %479 = vmatpush2.msra.mxu0 0.0
        %480 = vmatprep.subr.mxu0 0.0
        %481 = vmatpush2.msra.mxu0 0.0
        %482 = vmatprep.subr.mxu0 0.0
        %483 = vmatpush2.msra.mxu0 0.0
        %484 = vmatprep.subr.mxu0 0.0
        %485 = vmatpush2.msra.mxu0 0.0
        %486 = vmatprep.subr.mxu0 0.0
        %487 = vmatpush2.msra.mxu0 0.0
        %488 = vmatprep.subr.mxu0 0.0
        %489 = vmatpush2.msra.mxu0 0.0
        %490 = vmatprep.subr.mxu0 0.0
        %491 = vmatpush2.msra.mxu0 0.0
        %492 = vmatprep.subr.mxu0 0.0
        %493 = vmatpush2.msra.mxu0 0.0
        %494 = vmatprep.subr.mxu0 0.0
        %495 = vmatpush2.msra.mxu0 0.0
        %496 = vmatprep.subr.mxu0 0.0
        %497 = vmatpush2.msra.mxu0 0.0
        %498 = vmatprep.mubr.f32.mxu0 0.0
        %499 = vmatmul.mubr.f32.gmra.mxu0 %v276
        %v500 = vpop.f32.mrf.mxu0
        %v501 = vadd.f32 %v354, %v500
        %v502 = vpop.f32.mrf.mxu0
        %v503 = vadd.f32 %v358, %v502
        %504 = vdwg.mxu0
        %v505 = vxor.u32 %v430, 2147483648
        %v506 = vxor.u32 %v432, 2147483648
        %v507 = vxor.u32 %v501, 2147483648
        %v508 = vxor.u32 %v503, 2147483648
        %v509 = vmul.f32 %v505, 1.442695
        %v510 = vpow.pop %v509
        %v511 = vmul.f32 %v506, 1.442695
        %v512 = vpow.pop %v511
        %v513 = vmul.f32 %v507, 1.442695
        %v514 = vpow.pop %v513
        %v515 = vmul.f32 %v508, 1.442695
        %v516 = vpow.pop %v515
        %v517 = vadd.f32 %v510, 1.0
        %v518 = vadd.f32 %v512, 1.0
        %v519 = vadd.f32 %v514, 1.0
        %v520 = vadd.f32 %v516, 1.0
        %v521 = vrcp.pop %v517
        %v522 = vmul.f32 1.0, %v521
        %v523 = vrcp.pop %v518
        %v524 = vmul.f32 1.0, %v523
        %v525 = vrcp.pop %v519
        %v526 = vmul.f32 1.0, %v525
        %v527 = vrcp.pop %v520
        %v528 = vmul.f32 1.0, %v527
        %v529 = vmul.f32 %v430, %v522
        %v530 = vmul.f32 %v432, %v524
        %v531 = vmul.f32 %v501, %v526
        %v532 = vmul.f32 %v503, %v528
        %533 = vst [vmem:[%s247] sm:$0xff] %v529
        %534 = vst [vmem:[%s247 + $0x8] sm:$0xff] %v530
        %535 = vst [vmem:[%s247 + $0x10] sm:$0xff] %v531
        %536 = vst [vmem:[%s247 + $0x18] sm:$0xff] %v532
        %p537 = scmp.lt.s32.totalorder %s18, 1
        %s538 = scalar_select %p537, %s18, 1
        %s539 = smul.addr %s538, 4
        %s540 = smul.addr %s539, 8
        %s541 = scalar_lea.vmem %s5, %s540
        // Predicated region
        $region49: #{japanese_lipnet_forward.34} parent=39 // pred_check
          %p542 = pneg %p146
        $region50: #{japanese_lipnet_forward.34} parent=39 // pred_check_branch
          %544 = sbr.rel (%p542) target = $region52
        $region51: #{japanese_lipnet_forward.34} parent=39 // pred_region
          _
        $region52: #{japanese_lipnet_forward.34} parent=39 // pred_fallthru
          _
      $region40: #{japanese_lipnet_forward.34} parent=5 // pred_fallthru
        _
      %p545 = scmp.le.s32.totalorder 2, %s13
      // Predicated region
      $region53: #{japanese_lipnet_forward.34} parent=5 // pred_check
        %p546 = pneg %p545
      $region54: #{japanese_lipnet_forward.34} parent=5 // pred_check_branch
        %548 = sbr.rel (%p546) target = $region56
      $region55: #{japanese_lipnet_forward.34} parent=5 // pred_region
        %s549 = ssub.s32 %s13, 2
        // Predicated region
        $region57: #{japanese_lipnet_forward.34} parent=55 // pred_check
          %p550 = pneg %p152
        $region58: #{japanese_lipnet_forward.34} parent=55 // pred_check_branch
          %552 = sbr.rel (%p550) target = $region60
        $region59: #{japanese_lipnet_forward.34} parent=55 // pred_region
          %p553 = scmp.lt.s32.totalorder %s19, 1
          %s554 = scalar_select %p553, %s19, 1
          %s555 = smul.addr %s554, 4
          %s556 = smul.addr %s555, 8
          %s557 = scalar_lea.vmem %s5, %s556
        $region60: #{japanese_lipnet_forward.34} parent=55 // pred_fallthru
          _
      $region56: #{japanese_lipnet_forward.34} parent=5 // pred_fallthru
        _
    $region6: #{japanese_lipnet_forward.34} parent=1 // loop_footer
      %s17 = sadd.s32 1, %s13
    $region7: #{japanese_lipnet_forward.34} parent=1 // loop_footer_branch
      %12 = sbr.rel target = $region3
    $region8: #{japanese_lipnet_forward.34} parent=1 // loop_exit
      _
    %558 = vsyncpa [#allocation3], 1
    %s559 = scalar_lea.sflag [#allocation3], 1
    %560 = vsyncpa %s559, 1
    %561 = vsyncpa [#allocation5], 1

// kernel: japanese_lipnet_forward.43
$region0: #{japanese_lipnet_forward.43}
  #allocation0 [shape = 'u32[]', space=smem, size = 0x4, offset = 0x4, fixed_abs, tag = 'smem constant byte address 0x4 - core index']
  #allocation1 [shape = 'u32[144,128]{1,0:T(1,128)}', space=vmem, size = 0x12000, scoped, tag = 'internal scratch']
  %s0 = inlined_call_operand.vmem [shape: f32[16,128], index: 0, kind: input, shape index: {}]
  %s1 = inlined_call_operand.vmem [shape: f32[128,10], index: 1, kind: input, shape index: {}]
  %s2 = inlined_call_operand.vmem [shape: f32[1,10], index: 2, kind: input, shape index: {}]
  %s3 = inlined_call_operand.hbm [shape: f32[16,10], index: 3, kind: output, shape index: {}]
  %s4 = sld [smem:[#allocation0]]
  $region45: #{japanese_lipnet_forward.43} parent=0
    _
  %s6 = ssub.s32 1, %s4
  %s7 = scalar_select 0, %s6, %s4
  $region1: #{japanese_lipnet_forward.43} parent=0
    #allocation2 [shape = 'u8[8192]{0}', space=vmem, size = 0x2000, scoped, tag = 'output window, operand 0']
    #allocation3 [shape = 's32[2]{0}', space=sflag, size = 0x8, scoped, tag = 'scoped memory for japanese_lipnet_forward.43']
    %8 = vsyncpa [#allocation3], 0
    %s9 = scalar_lea.sflag [#allocation3], 1
    %10 = vsyncpa %s9, 0
    loop: start=0, step=1, limit=4
    $region2: #{japanese_lipnet_forward.43} parent=1 // loop_pre_header
      _
    $region3: #{japanese_lipnet_forward.43} parent=1 // loop_header
      %s12 = sphi 0, %s16
      %p13 = scmp.ge.s32.totalorder %s12, 4
      %s22 = sphi 0, %s24
      %s25 = sphi 0, %s22
      %s26 = sphi 0, %s25
      %s42 = sphi 0, %s26
      %s46 = sphi 0, %s46
      %s48 = sphi 0, %s46
      %s49 = sphi 0, %s48
      %s63 = sphi 0, %s49
      %s67 = sphi 0, %s67
      %s69 = sphi 0, %s67
      %s70 = sphi 0, %s69
      %s84 = sphi 0, %s70
      %s90 = sphi 0, %s92
      %s93 = sphi 0, %s90
      %s94 = sphi 0, %s93
      %s110 = sphi 0, %s94
    $region4: #{japanese_lipnet_forward.43} parent=1 // loop_header_branch
      %15 = sbr.rel (%p13) target = $region8
    $region5: #{japanese_lipnet_forward.43} parent=1 // loop_body
      %s17 = ssub.s32 %s12, 1
      %s18 = ssub.s32 %s12, 2
      %s19 = sadd.s32 %s12, 1
      %s20 = ssub.s32 %s12, %s19
      %p21 = scmp.eq.s32.totalorder %s20, 0
      %s23 = sadd.s32 %s22, 1
      %s24 = scalar_select %p21, %s22, %s23
      %p27 = pneg %p21
      %p28 = scmp.eq.s32.totalorder %s12, 1
      %p29 = por %p27, %p28
      %p30 = scmp.ne.s32.totalorder %s22, %s25
      %p31 = scmp.eq.s32.totalorder %s12, 0
      %p32 = por %p30, %p31
      %p33 = scmp.ne.s32.totalorder %s22, %s25
      %p34 = scmp.eq.s32.totalorder %s17, 1
      %p35 = por %p33, %p34
      %p36 = scmp.ne.s32.totalorder %s25, %s26
      %p37 = scmp.eq.s32.totalorder %s17, 0
      %p38 = por %p36, %p37
      %p39 = scmp.ne.s32.totalorder %s25, %s26
      %p40 = scmp.eq.s32.totalorder %s18, 1
      %p41 = por %p39, %p40
      %p43 = scmp.ne.s32.totalorder %s26, %s42
      %p44 = scmp.eq.s32.totalorder %s18, 0
      %p45 = por %p43, %p44
      %s47 = sadd.s32 %s46, 1
      %p50 = scmp.eq.s32.totalorder %s12, 1
      %p51 = scmp.ne.s32.totalorder %s46, %s48
      %p52 = scmp.eq.s32.totalorder %s12, 0
      %p53 = por %p51, %p52
      %p54 = scmp.ne.s32.totalorder %s46, %s48
      %p55 = scmp.eq.s32.totalorder %s17, 1
      %p56 = por %p54, %p55
      %p57 = scmp.ne.s32.totalorder %s48, %s49
      %p58 = scmp.eq.s32.totalorder %s17, 0
      %p59 = por %p57, %p58
      %p60 = scmp.ne.s32.totalorder %s48, %s49
      %p61 = scmp.eq.s32.totalorder %s18, 1
      %p62 = por %p60, %p61
      %p64 = scmp.ne.s32.totalorder %s49, %s63
      %p65 = scmp.eq.s32.totalorder %s18, 0
      %p66 = por %p64, %p65
      %s68 = sadd.s32 %s67, 1
      %p71 = scmp.eq.s32.totalorder %s12, 1
      %p72 = scmp.ne.s32.totalorder %s67, %s69
      %p73 = scmp.eq.s32.totalorder %s12, 0
      %p74 = por %p72, %p73
      %p75 = scmp.ne.s32.totalorder %s67, %s69
      %p76 = scmp.eq.s32.totalorder %s17, 1
      %p77 = por %p75, %p76
      %p78 = scmp.ne.s32.totalorder %s69, %s70
      %p79 = scmp.eq.s32.totalorder %s17, 0
      %p80 = por %p78, %p79
      %p81 = scmp.ne.s32.totalorder %s69, %s70
      %p82 = scmp.eq.s32.totalorder %s18, 1
      %p83 = por %p81, %p82
      %p85 = scmp.ne.s32.totalorder %s70, %s84
      %p86 = scmp.eq.s32.totalorder %s18, 0
      %p87 = por %p85, %p86
      %s88 = ssub.s32 %s12, %s19
      %p89 = scmp.eq.s32.totalorder %s88, 0
      %s91 = sadd.s32 %s90, 1
      %s92 = scalar_select %p89, %s90, %s91
      %p95 = pneg %p89
      %p96 = scmp.eq.s32.totalorder %s12, 1
      %p97 = por %p95, %p96
      %p98 = scmp.ne.s32.totalorder %s90, %s93
      %p99 = scmp.eq.s32.totalorder %s12, 0
      %p100 = por %p98, %p99
      %p101 = scmp.ne.s32.totalorder %s90, %s93
      %p102 = scmp.eq.s32.totalorder %s17, 1
      %p103 = por %p101, %p102
      %p104 = scmp.ne.s32.totalorder %s93, %s94
      %p105 = scmp.eq.s32.totalorder %s17, 0
      %p106 = por %p104, %p105
      %p107 = scmp.ne.s32.totalorder %s93, %s94
      %p108 = scmp.eq.s32.totalorder %s18, 1
      %p109 = por %p107, %p108
      %p111 = scmp.ne.s32.totalorder %s94, %s110
      %p112 = scmp.eq.s32.totalorder %s18, 0
      %p113 = por %p111, %p112
      %p114 = scmp.le.s32.totalorder 1, %s12
      %p115 = scmp.lt.s32.totalorder %s12, 3
      %p116 = pnand %p114, %p115
      %p117 = pneg %p116
      // Predicated region
      $region9: #{japanese_lipnet_forward.43} parent=5 // pred_check
        _
      $region10: #{japanese_lipnet_forward.43} parent=5 // pred_check_branch
        %119 = sbr.rel (%p116) target = $region12
      $region11: #{japanese_lipnet_forward.43} parent=5 // pred_region
        %s120 = ssub.s32 %s12, 1
        // Predicated region
        $region13: #{japanese_lipnet_forward.43} parent=11 // pred_check
          %p121 = pneg %p59
        $region14: #{japanese_lipnet_forward.43} parent=11 // pred_check_branch
          %123 = sbr.rel (%p121) target = $region16
        $region15: #{japanese_lipnet_forward.43} parent=11 // pred_region
          _
        $region16: #{japanese_lipnet_forward.43} parent=11 // pred_fallthru
          _
        // Predicated region
        $region17: #{japanese_lipnet_forward.43} parent=11 // pred_check
          %p124 = pneg %p80
        $region18: #{japanese_lipnet_forward.43} parent=11 // pred_check_branch
          %126 = sbr.rel (%p124) target = $region20
        $region19: #{japanese_lipnet_forward.43} parent=11 // pred_region
          _
        $region20: #{japanese_lipnet_forward.43} parent=11 // pred_fallthru
          _
      $region12: #{japanese_lipnet_forward.43} parent=5 // pred_fallthru
        _
      %p127 = scmp.lt.s32.totalorder %s12, 2
      // Predicated region
      $region21: #{japanese_lipnet_forward.43} parent=5 // pred_check
        %p128 = pneg %p127
      $region22: #{japanese_lipnet_forward.43} parent=5 // pred_check_branch
        %130 = sbr.rel (%p128) target = $region24
      $region23: #{japanese_lipnet_forward.43} parent=5 // pred_region
        // Predicated region
        $region25: #{japanese_lipnet_forward.43} parent=23 // pred_check
          %p131 = pneg %p32
        $region26: #{japanese_lipnet_forward.43} parent=23 // pred_check_branch
          %133 = sbr.rel (%p131) target = $region28
        $region27: #{japanese_lipnet_forward.43} parent=23 // pred_region
          %p134 = scmp.lt.s32.totalorder %s12, 1
          %s135 = scalar_select %p134, %s12, 1
          %s136 = smul.addr %s135, 8
          %s137 = scalar_lea.vmem %s0, %s136
        $region28: #{japanese_lipnet_forward.43} parent=23 // pred_fallthru
          _
      $region24: #{japanese_lipnet_forward.43} parent=5 // pred_fallthru
        _
      %p138 = scmp.le.s32.totalorder 1, %s12
      %p139 = scmp.lt.s32.totalorder %s12, 3
      %p140 = pnand %p138, %p139
      %p141 = pneg %p140
      // Predicated region
      $region29: #{japanese_lipnet_forward.43} parent=5 // pred_check
        _
      $region30: #{japanese_lipnet_forward.43} parent=5 // pred_check_branch
        %143 = sbr.rel (%p140) target = $region32
      $region31: #{japanese_lipnet_forward.43} parent=5 // pred_region
        %s144 = ssub.s32 %s12, 1
        %p145 = scmp.lt.s32.totalorder %s17, 1
        %s146 = scalar_select %p145, %s17, 1
        %s147 = smul.addr %s146, 8
        %s148 = scalar_lea.vmem %s0, %s147
        %p149 = pneg %p38
        %p150 = pneg %p35
        %p151 = pneg %p59
        %p152 = pneg %p56
        %p153 = pneg %p80
        %p154 = pneg %p77
        %p155 = pneg %p106
        %p156 = pneg %p103
        %s157 = sand.u32 %s93, 1
        %s158 = scalar_lea.sflag [#allocation3], %s157
        %s159 = sand.u32 %s93, 1
        %s160 = smul.addr %s159, 8
        %s161 = scalar_lea.vmem [#allocation2], %s160
        %p162 = scmp.lt.s32.totalorder %s17, 1
        %s163 = scalar_select %p162, %s17, 1
        %s164 = smul.addr %s163, 8
        %s165 = scalar_lea.vmem %s0, %s164
        %v166 = vld [vmem:[%s165] sm:$0xff]
        %v167 = vld [vmem:[%s1] sm:$0xff]
        %v168 = vld [vmem:[%s1 + $0x8] sm:$0xff]
        %v169 = vld [vmem:[%s1 + $0x10] sm:$0xff]
        %v170 = vld [vmem:[%s1 + $0x18] sm:$0xff]
        %v171 = vld [vmem:[%s1 + $0x20] sm:$0xff]
        %v172 = vld [vmem:[%s1 + $0x28] sm:$0xff]
        %v173 = vld [vmem:[%s1 + $0x30] sm:$0xff]
        %v174 = vld [vmem:[%s1 + $0x38] sm:$0xff]
        %v175 = vld [vmem:[%s1 + $0x40] sm:$0xff]
        %v176 = vld [vmem:[%s1 + $0x48] sm:$0xff]
        %v177 = vld [vmem:[%s1 + $0x50] sm:$0xff]
        %v178 = vld [vmem:[%s1 + $0x58] sm:$0xff]
        %v179 = vld [vmem:[%s1 + $0x60] sm:$0xff]
        %v180 = vld [vmem:[%s1 + $0x68] sm:$0xff]
        %v181 = vld [vmem:[%s1 + $0x70] sm:$0xff]
        %v182 = vld [vmem:[%s1 + $0x78] sm:$0xff]
        %v183 = vld [vmem:[%s2] sm:$0x1]
        %v185 = vlaneseq
        %v186 = vshrl.u32 %v185, 7
        %v187 = vsub.s32 0, %v186
        %v188 = vrot.slane %v183, %v187
        %190 = vmatprep.subr.mxu0 0.0
        %191 = vmatpush1.msra.mxu0 %v182
        %192 = vmatprep.subr.mxu0 0.0
        %193 = vmatpush1.msra.mxu0 %v181
        %194 = vmatprep.subr.mxu0 0.0
        %195 = vmatpush1.msra.mxu0 %v180
        %196 = vmatprep.subr.mxu0 0.0
        %197 = vmatpush1.msra.mxu0 %v179
        %198 = vmatprep.subr.mxu0 0.0
        %199 = vmatpush1.msra.mxu0 %v178
        %200 = vmatprep.subr.mxu0 0.0
        %201 = vmatpush1.msra.mxu0 %v177
        %202 = vmatprep.subr.mxu0 0.0
        %203 = vmatpush1.msra.mxu0 %v176
        %204 = vmatprep.subr.mxu0 0.0
        %205 = vmatpush1.msra.mxu0 %v175
        %206 = vmatprep.subr.mxu0 0.0
        %207 = vmatpush1.msra.mxu0 %v174
        %208 = vmatprep.subr.mxu0 0.0
        %209 = vmatpush1.msra.mxu0 %v173
        %210 = vmatprep.subr.mxu0 0.0
        %211 = vmatpush1.msra.mxu0 %v172
        %212 = vmatprep.subr.mxu0 0.0
        %213 = vmatpush1.msra.mxu0 %v171
        %214 = vmatprep.subr.mxu0 0.0
        %215 = vmatpush1.msra.mxu0 %v170
        %216 = vmatprep.subr.mxu0 0.0
        %217 = vmatpush1.msra.mxu0 %v169
        %218 = vmatprep.subr.mxu0 0.0
        %219 = vmatpush1.msra.mxu0 %v168
        %220 = vmatprep.subr.mxu0 0.0
        %221 = vmatpush1.msra.mxu0 %v167
        %222 = vmatprep.subr.mxu0 0.0
        %223 = vmatpush2.msra.mxu0 0.0
        %224 = vmatprep.subr.mxu0 0.0
        %225 = vmatpush2.msra.mxu0 0.0
        %226 = vmatprep.subr.mxu0 0.0
        %227 = vmatpush2.msra.mxu0 0.0
        %228 = vmatprep.subr.mxu0 0.0
        %229 = vmatpush2.msra.mxu0 0.0
        %230 = vmatprep.subr.mxu0 0.0
        %231 = vmatpush2.msra.mxu0 0.0
        %232 = vmatprep.subr.mxu0 0.0
        %233 = vmatpush2.msra.mxu0 0.0
        %234 = vmatprep.subr.mxu0 0.0
        %235 = vmatpush2.msra.mxu0 0.0
        %236 = vmatprep.subr.mxu0 0.0
        %237 = vmatpush2.msra.mxu0 0.0
        %238 = vmatprep.subr.mxu0 0.0
        %239 = vmatpush2.msra.mxu0 0.0
        %240 = vmatprep.subr.mxu0 0.0
        %241 = vmatpush2.msra.mxu0 0.0
        %242 = vmatprep.subr.mxu0 0.0
        %243 = vmatpush2.msra.mxu0 0.0
        %244 = vmatprep.subr.mxu0 0.0
        %245 = vmatpush2.msra.mxu0 0.0
        %246 = vmatprep.subr.mxu0 0.0
        %247 = vmatpush2.msra.mxu0 0.0
        %248 = vmatprep.subr.mxu0 0.0
        %249 = vmatpush2.msra.mxu0 0.0
        %250 = vmatprep.subr.mxu0 0.0
        %251 = vmatpush2.msra.mxu0 0.0
        %252 = vmatprep.subr.mxu0 0.0
        %253 = vmatpush2.msra.mxu0 0.0
        %254 = vmatprep.mubr.f32.mxu0 0.0
        %255 = vmatmul.mubr.f32.gmra.mxu0 %v166
        %v256 = vpop.f32.mrf.mxu0
        %v257 = vadd.f32 %v188, %v256
        %v258 = vpop.f32.mrf.mxu0
        %259 = vdwg.mxu0
        %vm260 = vcmask 80896
        %261 = vst.msk [vmem:[%s161] sm:$0xff] %vm260, %v257
        %s262 = sand.u32 %s93, 1
        %s263 = scalar_lea.sflag [#allocation3], %s262
        %s264 = sand.u32 %s93, 1
        %s265 = smul.addr %s264, 8
        %s266 = scalar_lea.vmem [#allocation2], %s265
        // Predicated region
        $region33: #{japanese_lipnet_forward.43} parent=31 // pred_check
          %p267 = pneg %p103
        $region34: #{japanese_lipnet_forward.43} parent=31 // pred_check_branch
          %269 = sbr.rel (%p267) target = $region36
        $region35: #{japanese_lipnet_forward.43} parent=31 // pred_region
          %s271 = ssub.s32 128, 128
          %272 = vsyncadd %s263, %s271
          %s273 = smul.addr %s17, 128
          %s274 = scalar_lea.hbm %s3, %s273
          %s276 = sshll.u32 %s266, 4
          %s277 = int_to_ptr.vmem [resolvable:$true] %s276
          %279 = dma.vmem_to_hbm [thread:$0]  %s277, 128, %s274, %s263
        $region36: #{japanese_lipnet_forward.43} parent=31 // pred_fallthru
          _
      $region32: #{japanese_lipnet_forward.43} parent=5 // pred_fallthru
        _
      %p280 = scmp.le.s32.totalorder 2, %s12
      // Predicated region
      $region37: #{japanese_lipnet_forward.43} parent=5 // pred_check
        %p281 = pneg %p280
      $region38: #{japanese_lipnet_forward.43} parent=5 // pred_check_branch
        %283 = sbr.rel (%p281) target = $region40
      $region39: #{japanese_lipnet_forward.43} parent=5 // pred_region
        %s284 = ssub.s32 %s12, 2
        // Predicated region
        $region41: #{japanese_lipnet_forward.43} parent=39 // pred_check
          %p285 = pneg %p109
        $region42: #{japanese_lipnet_forward.43} parent=39 // pred_check_branch
          %287 = sbr.rel (%p285) target = $region44
        $region43: #{japanese_lipnet_forward.43} parent=39 // pred_region
          %s288 = sand.u32 %s94, 1
          %s289 = scalar_lea.sflag [#allocation3], %s288
          %s290 = sand.u32 %s94, 1
          %s291 = smul.addr %s290, 8
          %s292 = scalar_lea.vmem [#allocation2], %s291
          %293 = dma.done %s289, 128
        $region44: #{japanese_lipnet_forward.43} parent=39 // pred_fallthru
          _
      $region40: #{japanese_lipnet_forward.43} parent=5 // pred_fallthru
        _
    $region6: #{japanese_lipnet_forward.43} parent=1 // loop_footer
      %s16 = sadd.s32 1, %s12
    $region7: #{japanese_lipnet_forward.43} parent=1 // loop_footer_branch
      %11 = sbr.rel target = $region3
    $region8: #{japanese_lipnet_forward.43} parent=1 // loop_exit
      _
    %294 = vsyncpa [#allocation3], 1
    %s295 = scalar_lea.sflag [#allocation3], 1
    %296 = vsyncpa %s295, 1

</llo_original>
